<compile_context>
chip_gen: v6e
topology: v6e:2x2x1
jax: 0.10.0
libtpu: 0.0.40
codegen_flags: <defaults>
</compile_context>

<pallas_src>
import jax
import jax.numpy as jnp
from jax import lax
from jax.experimental import pallas as pl
from jax.experimental.pallas import tpu as pltpu

LANE = 128   # one TPU lane block per GRU gate
SUB = 8      # sublane group; batch is padded up to a multiple of this


# --------------------------------------------------------------------------- #
# Kernel
# --------------------------------------------------------------------------- #
def euler_combo_kernel(zs_ref,
                       wih0_ref, bih0_ref, whh0_ref, bhh0_ref,
                       wfuse1_ref, bfuse1_ref,
                       wlin_ref, blin_ref,
                       w1a_ref, w1b_ref, b1c_ref, w2c_ref, b2c_ref,
                       preds_ref, zsout_ref,
                       gi0_ref, h2all_ref):
    S, Bp, _ = zs_ref.shape
    L = LANE
    G3 = 3 * L

    # ---- (1) hoisted layer-0 input projection: one batched MXU pass -------- #
    x_all = jnp.tanh(zs_ref[...].astype(jnp.float32))           # (S, Bp, X)
    x_flat = x_all.reshape(S * Bp, x_all.shape[-1])              # (S*Bp, X)
    gi0_ref[...] = (jnp.dot(x_flat, wih0_ref[...],
                            preferred_element_type=jnp.float32)
                    + bih0_ref[...]).reshape(S, Bp, G3)

    # h2 state history: row 0 holds the initial (zero) hidden state
    h2all_ref[0] = jnp.zeros((Bp, L), jnp.float32)

    # ---- (2) serial recurrence: 2 MXU dots per timestep --------------------- #
    def step(t, carry):
        h1, h2 = carry

        # GRU layer 0: only the recurrent matmul remains on the serial path.
        gi0 = gi0_ref[t]                                         # (Bp, 3L)
        gh0 = (jnp.dot(h1, whh0_ref[...],
                       preferred_element_type=jnp.float32) + bhh0_ref[...])
        r0 = jax.nn.sigmoid(gi0[:, 0:L] + gh0[:, 0:L])
        z0 = jax.nn.sigmoid(gi0[:, L:2 * L] + gh0[:, L:2 * L])
        n0 = jnp.tanh(gi0[:, 2 * L:3 * L] + r0 * gh0[:, 2 * L:3 * L])
        h1n = (1.0 - z0) * n0 + z0 * h1

        # GRU layer 1: single fused dot on cat([h1_new, h2_prev]).
        # Output blocks: [r_sum | z_sum | n_sum | gh_n]; PyTorch's n-gate is
        # recovered as tanh(n_sum + (r-1)*gh_n).
        xcat = jnp.concatenate([h1n, h2], axis=-1)               # (Bp, 2L)
        g1 = (jnp.dot(xcat, wfuse1_ref[...],
                      preferred_element_type=jnp.float32) + bfuse1_ref[...])
        r1 = jax.nn.sigmoid(g1[:, 0:L])
        z1 = jax.nn.sigmoid(g1[:, L:2 * L])
        aux = g1[:, 3 * L:4 * L]                                 # gh1_n (+ b_hh1_n)
        n1 = jnp.tanh(g1[:, 2 * L:3 * L] + (r1 - 1.0) * aux)
        h2n = (1.0 - z1) * n1 + z1 * h2

        h2all_ref[t + 1] = h2n
        return h1n, h2n

    zeros_h = jnp.zeros((Bp, L), jnp.float32)
    lax.fori_loop(0, S, step, (zeros_h, zeros_h), unroll=True)

    # ---- (3) hoisted Linear head over all stored states -------------------- #
    h2_states = h2all_ref[...].reshape((S + 1) * Bp, L)          # row 0 is h0=0
    preds_all = (jnp.dot(h2_states, wlin_ref[...],
                         preferred_element_type=jnp.float32) + blin_ref[...])
    preds_ref[...] = preds_all[Bp:].reshape(S, Bp, L).astype(preds_ref.dtype)

    # priors[t] = preds[t-1]; priors[0] = exact zeros (as in the PyTorch code)
    row_idx = lax.broadcasted_iota(jnp.int32, (S * Bp, L), 0)
    priors_flat = jnp.where(row_idx < Bp, 0.0, preds_all[:S * Bp])

    # ---- (4) combiner MLP (batched); 2Z input split into its priors /
    #          tanh(zs) halves so no lane concatenation is needed ------------ #
    hc = jnp.maximum(
        jnp.dot(priors_flat, w1a_ref[...], preferred_element_type=jnp.float32)
        + jnp.dot(x_flat, w1b_ref[...], preferred_element_type=jnp.float32)
        + b1c_ref[...],
        0.0)
    zsout_ref[...] = (jnp.dot(hc, w2c_ref[...],
                              preferred_element_type=jnp.float32)
                      + b2c_ref[...]).reshape(S, Bp, L).astype(zsout_ref.dtype)


# --------------------------------------------------------------------------- #
# Parameter preparation: pad gates to 128-lane blocks, fuse layer-1 weights,
# pre-sum r/z biases.  Done once, outside the kernel hot path.
# --------------------------------------------------------------------------- #
def prepare_params(p):
    L = LANE
    f32 = jnp.float32
    H = p["whh0"].shape[1]
    X = p["wih0"].shape[1]
    Z = p["wlin"].shape[0]
    Hc = p["w1c"].shape[0]
    assert p["w1c"].shape[1] == 2 * Z and X == Z
    assert max(H, X, Z, Hc) <= L

    def gate_w(w_t, rows_pad):
        rows = w_t.shape[0]
        out = jnp.zeros((rows_pad, 3 * L), f32)
        for g in range(3):
            out = out.at[:rows, g * L:g * L + H].set(w_t[:, g * H:(g + 1) * H])
        return out

    def gate_b(b):
        out = jnp.zeros((1, 3 * L), f32)
        for g in range(3):
            out = out.at[0, g * L:g * L + H].set(b[g * H:(g + 1) * H])
        return out

    A0 = p["wih0"].T.astype(f32)   # (X, 3H)
    B0 = p["whh0"].T.astype(f32)   # (H, 3H)
    bi0, bh0 = p["bih0"].astype(f32), p["bhh0"].astype(f32)
    A1 = p["wih1"].T.astype(f32)   # (H, 3H)
    B1 = p["whh1"].T.astype(f32)   # (H, 3H)
    bi1, bh1 = p["bih1"].astype(f32), p["bhh1"].astype(f32)

    # layer 0: b_hh for r/z folds into the hoisted input projection; b_hh_n
    # must stay on the recurrent side (it sits inside r*(...) in PyTorch).
    bih0_fold = jnp.concatenate([bi0[:2 * H] + bh0[:2 * H], bi0[2 * H:]])
    bhh0_keep = jnp.concatenate([jnp.zeros((2 * H,), f32), bh0[2 * H:]])

    # layer 1: fused weight over cat([h1, h2]); blocks [r_sum|z_sum|n_sum|gh_n]
    wf = jnp.zeros((2 * L, 4 * L), f32)
    bf = jnp.zeros((1, 4 * L), f32)
    for g in range(3):
        wf = wf.at[:H, g * L:g * L + H].set(A1[:, g * H:(g + 1) * H])
        wf = wf.at[L:L + H, g * L:g * L + H].set(B1[:, g * H:(g + 1) * H])
        bf = bf.at[0, g * L:g * L + H].set(
            bi1[g * H:(g + 1) * H] + bh1[g * H:(g + 1) * H])
    wf = wf.at[L:L + H, 3 * L:3 * L + H].set(B1[:, 2 * H:])
    bf = bf.at[0, 3 * L:3 * L + H].set(bh1[2 * H:])

    W1t = p["w1c"].T.astype(f32)   # (2Z, Hc)

    return dict(
        wih0=gate_w(A0, X),                        # (X, 3L)  hoisted input proj
        bih0=gate_b(bih0_fold),                    # (1, 3L)
        whh0=gate_w(B0, L),                        # (L, 3L)  recurrent
        bhh0=gate_b(bhh0_keep),                    # (1, 3L)  only the n block
        wfuse1=wf, bfuse1=bf,                      # (2L, 4L), (1, 4L)
        wlin=jnp.zeros((L, L), f32).at[:H, :Z].set(p["wlin"].T.astype(f32)),
        blin=jnp.zeros((1, L), f32).at[0, :Z].set(p["blin"].astype(f32)),
        w1a=jnp.zeros((L, L), f32).at[:Z, :Hc].set(W1t[:Z]),    # priors half
        w1b=jnp.zeros((X, L), f32).at[:, :Hc].set(W1t[Z:]),     # tanh(zs) half
        b1c=jnp.zeros((1, L), f32).at[0, :Hc].set(p["b1c"].astype(f32)),
        w2c=jnp.zeros((L, L), f32).at[:Hc, :Z].set(p["w2c"].T.astype(f32)),
        b2c=jnp.zeros((1, L), f32).at[0, :Z].set(p["b2c"].astype(f32)),
    )


# --------------------------------------------------------------------------- #
# Wrapper
# --------------------------------------------------------------------------- #
@jax.jit
def euler_combo_forward(zs, raw_params):
    S, B, X = zs.shape
    Z = raw_params["wlin"].shape[0]
    L = LANE
    Bp = ((B + SUB - 1) // SUB) * SUB
    pp = prepare_params(raw_params)

    zs_p = jnp.zeros((S, Bp, X), jnp.float32).at[:, :B, :].set(
        zs.astype(jnp.float32))

    vmem = pl.BlockSpec(memory_space=pltpu.MemorySpace.VMEM)
    preds_p, zsout_p = pl.pallas_call(
        euler_combo_kernel,
        out_shape=(jax.ShapeDtypeStruct((S, Bp, L), jnp.float32),   # preds (pad)
                   jax.ShapeDtypeStruct((S, Bp, L), jnp.float32)),  # zs_out (pad)
        in_specs=[vmem] * 14,
        out_specs=(vmem, vmem),
        scratch_shapes=[
            pltpu.VMEM((S, Bp, 3 * LANE), jnp.float32),   # hoisted layer-0 gates
            pltpu.VMEM((S + 1, Bp, LANE), jnp.float32),   # h2 state history
        ],
    )(zs_p,
      pp["wih0"], pp["bih0"], pp["whh0"], pp["bhh0"],
      pp["wfuse1"], pp["bfuse1"], pp["wlin"], pp["blin"],
      pp["w1a"], pp["w1b"], pp["b1c"], pp["w2c"], pp["b2c"])

    return zsout_p[:, :B, :Z], preds_p[:, :B, :Z]


# --------------------------------------------------------------------------- #
# Pure-JAX reference (same math as torch: 2-layer GRU + Linear head + combiner)
# --------------------------------------------------------------------------- #
def euler_combo_ref(zs, p):
    H = p["whh0"].shape[1]

    def cell(x, h, wih, whh, bih, bhh):
        gi = x @ wih.T + bih
        gh = h @ whh.T + bhh
        r = jax.nn.sigmoid(gi[:, :H] + gh[:, :H])
        z = jax.nn.sigmoid(gi[:, H:2 * H] + gh[:, H:2 * H])
        n = jnp.tanh(gi[:, 2 * H:] + r * gh[:, 2 * H:])
        return (1.0 - z) * n + z * h

    def step(carry, z_t):
        h1, h2 = carry
        x = jnp.tanh(z_t)
        h1 = cell(x, h1, p["wih0"], p["whh0"], p["bih0"], p["bhh0"])
        h2 = cell(h1, h2, p["wih1"], p["whh1"], p["bih1"], p["bhh1"])
        pred = h2 @ p["wlin"].T + p["blin"]
        return (h1, h2), pred

    B = zs.shape[1]
    h0 = (jnp.zeros((B, H), jnp.float32), jnp.zeros((B, H), jnp.float32))
    _, preds = lax.scan(step, h0, zs)

    priors = jnp.concatenate([jnp.zeros_like(preds[:1]), preds[:-1]], axis=0)
    comb_in = jnp.concatenate([priors, jnp.tanh(zs)], axis=-1)
    hc = jax.nn.relu(comb_in @ p["w1c"].T + p["b1c"])
    zs_out = hc @ p["w2c"].T + p["b2c"]
    return zs_out, preds


def init_params(key, x_dim, h_dim, z_dim, hc_dim):
    ks = jax.random.split(key, 14)
    u = lambda k, shape, b: jax.random.uniform(k, shape, jnp.float32, -b, b)
    gb = h_dim ** -0.5
    cb1 = (2 * z_dim) ** -0.5
    cb2 = hc_dim ** -0.5
    return {
        "wih0": u(ks[0], (3 * h_dim, x_dim), gb),
        "whh0": u(ks[1], (3 * h_dim, h_dim), gb),
        "bih0": u(ks[2], (3 * h_dim,), gb),
        "bhh0": u(ks[3], (3 * h_dim,), gb),
        "wih1": u(ks[4], (3 * h_dim, h_dim), gb),
        "whh1": u(ks[5], (3 * h_dim, h_dim), gb),
        "bih1": u(ks[6], (3 * h_dim,), gb),
        "bhh1": u(ks[7], (3 * h_dim,), gb),
        "wlin": u(ks[8], (z_dim, h_dim), gb),
        "blin": u(ks[9], (z_dim,), gb),
        "w1c": u(ks[10], (hc_dim, 2 * z_dim), cb1),
        "b1c": u(ks[11], (hc_dim,), cb1),
        "w2c": u(ks[12], (z_dim, hc_dim), cb2),
        "b2c": u(ks[13], (z_dim,), cb2),
    }


if __name__ == "__main__":
    SEQ, BATCH, Z_DIM, H_DIM, HC_DIM = 8, 4, 16, 32, 32

    key = jax.random.PRNGKey(0)
    k_in, k_par = jax.random.split(key)
    zs = jax.random.normal(k_in, (SEQ, BATCH, Z_DIM), jnp.float32)
    params = init_params(k_par, Z_DIM, H_DIM, Z_DIM, HC_DIM)

    z_out, preds = euler_combo_forward(zs, params)
    z_out, preds = jax.block_until_ready((z_out, preds))

    z_ref, p_ref = euler_combo_ref(zs, params)
    assert z_out.shape == (SEQ, BATCH, Z_DIM), z_out.shape
    assert preds.shape == (SEQ, BATCH, Z_DIM), preds.shape
    err_p = float(jnp.max(jnp.abs(preds - p_ref)))
    err_z = float(jnp.max(jnp.abs(z_out - z_ref)))
    assert err_p < 1e-4 and err_z < 1e-4, (err_p, err_z)

    print("KERNEL_OK")
</pallas_src>

<mosaic_0001>
module attributes {stable_mosaic.version = 11 : i64} {
  func.func @euler_combo_kernel(%arg0: memref<8x8x16xf32, #tpu.memory_space<vmem>>, %arg1: memref<16x384xf32, #tpu.memory_space<vmem>>, %arg2: memref<1x384xf32, #tpu.memory_space<vmem>>, %arg3: memref<128x384xf32, #tpu.memory_space<vmem>>, %arg4: memref<1x384xf32, #tpu.memory_space<vmem>>, %arg5: memref<256x512xf32, #tpu.memory_space<vmem>>, %arg6: memref<1x512xf32, #tpu.memory_space<vmem>>, %arg7: memref<128x128xf32, #tpu.memory_space<vmem>>, %arg8: memref<1x128xf32, #tpu.memory_space<vmem>>, %arg9: memref<128x128xf32, #tpu.memory_space<vmem>>, %arg10: memref<16x128xf32, #tpu.memory_space<vmem>>, %arg11: memref<1x128xf32, #tpu.memory_space<vmem>>, %arg12: memref<128x128xf32, #tpu.memory_space<vmem>>, %arg13: memref<1x128xf32, #tpu.memory_space<vmem>>, %arg14: memref<8x8x128xf32, #tpu.memory_space<vmem>>, %arg15: memref<8x8x128xf32, #tpu.memory_space<vmem>>, %arg16: memref<8x8x384xf32, #tpu.memory_space<vmem>>, %arg17: memref<9x8x128xf32, #tpu.memory_space<vmem>>) attributes {dimension_semantics = [], scalar_prefetch = 0 : i64, scratch_operands = 2 : i64, tpu.core_type = #tpu.core_type<tc>} {
    %c0 = arith.constant 0 : index
    %c0_0 = arith.constant 0 : index
    %c0_1 = arith.constant 0 : index
    %0 = vector.load %arg0[%c0, %c0_0, %c0_1] : memref<8x8x16xf32, #tpu.memory_space<vmem>>, vector<8x8x16xf32>
    %1 = math.tanh %0 : vector<8x8x16xf32>
    %2 = vector.shape_cast %1 : vector<8x8x16xf32> to vector<64x16xf32>
    %c0_2 = arith.constant 0 : index
    %c0_3 = arith.constant 0 : index
    %3 = vector.load %arg1[%c0_2, %c0_3] : memref<16x384xf32, #tpu.memory_space<vmem>>, vector<16x384xf32>
    %cst = arith.constant dense<0.000000e+00> : vector<64x384xf32>
    %4 = tpu.matmul %2, %3, %cst {dimension_numbers = #tpu.dot_dimension_numbers<[1], [0], [0], [1], [0, 0, 1, 1], [], []>} : vector<64x16xf32>, vector<16x384xf32>, vector<64x384xf32> -> vector<64x384xf32>
    %c0_4 = arith.constant 0 : index
    %c0_5 = arith.constant 0 : index
    %5 = vector.load %arg2[%c0_4, %c0_5] : memref<1x384xf32, #tpu.memory_space<vmem>>, vector<1x384xf32>
    %6 = vector.broadcast %5 : vector<1x384xf32> to vector<64x384xf32>
    %7 = arith.addf %4, %6 : vector<64x384xf32>
    %8 = vector.shape_cast %7 : vector<64x384xf32> to vector<8x8x384xf32>
    %c0_6 = arith.constant 0 : index
    %c0_7 = arith.constant 0 : index
    %c0_8 = arith.constant 0 : index
    %9 = vector.load %arg16[%c0_6, %c0_7, %c0_8] : memref<8x8x384xf32, #tpu.memory_space<vmem>>, vector<8x8x384xf32>
    tpu.vector_store %arg16[%c0_6, %c0_7, %c0_8], %8 {strides = array<i32>} : memref<8x8x384xf32, #tpu.memory_space<vmem>>, vector<8x8x384xf32>,
    %cst_9 = arith.constant 0.000000e+00 : f32
    %10 = vector.broadcast %cst_9 : f32 to vector<8x128xf32>
    %c0_10 = arith.constant 0 : index
    %c0_11 = arith.constant 0 : index
    %c0_12 = arith.constant 0 : index
    %11 = vector.load %arg17[%c0_10, %c0_11, %c0_12] : memref<9x8x128xf32, #tpu.memory_space<vmem>>, vector<1x8x128xf32>
    %12 = vector.shape_cast %11 : vector<1x8x128xf32> to vector<8x128xf32>
    %13 = vector.shape_cast %10 : vector<8x128xf32> to vector<1x8x128xf32>
    tpu.vector_store %arg17[%c0_10, %c0_11, %c0_12], %13 {strides = array<i32>} : memref<9x8x128xf32, #tpu.memory_space<vmem>>, vector<1x8x128xf32>,
    %cst_13 = arith.constant 0.000000e+00 : f32
    %14 = vector.broadcast %cst_13 : f32 to vector<8x128xf32>
    %c0_i32 = arith.constant 0 : i32
    %15 = arith.index_cast %c0_i32 : i32 to index
    %c0_14 = arith.constant 0 : index
    %c0_15 = arith.constant 0 : index
    %16 = vector.load %arg16[%15, %c0_14, %c0_15] : memref<8x8x384xf32, #tpu.memory_space<vmem>>, vector<1x8x384xf32>
    %17 = vector.shape_cast %16 : vector<1x8x384xf32> to vector<8x384xf32>
    %c0_16 = arith.constant 0 : index
    %c0_17 = arith.constant 0 : index
    %18 = vector.load %arg3[%c0_16, %c0_17] : memref<128x384xf32, #tpu.memory_space<vmem>>, vector<128x384xf32>
    %cst_18 = arith.constant dense<0.000000e+00> : vector<8x384xf32>
    %19 = tpu.matmul %14, %18, %cst_18 {dimension_numbers = #tpu.dot_dimension_numbers<[1], [0], [0], [1], [0, 0, 1, 1], [], []>} : vector<8x128xf32>, vector<128x384xf32>, vector<8x384xf32> -> vector<8x384xf32>
    %c0_19 = arith.constant 0 : index
    %c0_20 = arith.constant 0 : index
    %20 = vector.load %arg4[%c0_19, %c0_20] : memref<1x384xf32, #tpu.memory_space<vmem>>, vector<1x384xf32>
    %21 = vector.broadcast %20 : vector<1x384xf32> to vector<8x384xf32>
    %22 = arith.addf %19, %21 : vector<8x384xf32>
    %23 = vector.extract_strided_slice %17 {offsets = [0, 0], sizes = [8, 128], strides = [1, 1]} : vector<8x384xf32> to vector<8x128xf32>
    %24 = vector.extract_strided_slice %22 {offsets = [0, 0], sizes = [8, 128], strides = [1, 1]} : vector<8x384xf32> to vector<8x128xf32>
    %25 = arith.addf %23, %24 : vector<8x128xf32>
    %26 = arith.negf %25 : vector<8x128xf32>
    %27 = math.exp %26 : vector<8x128xf32>
    %cst_21 = arith.constant 1.000000e+00 : f32
    %28 = vector.broadcast %cst_21 : f32 to vector<8x128xf32>
    %29 = arith.addf %28, %27 : vector<8x128xf32>
    %30 = arith.divf %28, %29 : vector<8x128xf32>
    %31 = vector.extract_strided_slice %17 {offsets = [0, 128], sizes = [8, 128], strides = [1, 1]} : vector<8x384xf32> to vector<8x128xf32>
    %32 = vector.extract_strided_slice %22 {offsets = [0, 128], sizes = [8, 128], strides = [1, 1]} : vector<8x384xf32> to vector<8x128xf32>
    %33 = arith.addf %31, %32 : vector<8x128xf32>
    %34 = arith.negf %33 : vector<8x128xf32>
    %35 = math.exp %34 : vector<8x128xf32>
    %cst_22 = arith.constant 1.000000e+00 : f32
    %36 = vector.broadcast %cst_22 : f32 to vector<8x128xf32>
    %37 = arith.addf %36, %35 : vector<8x128xf32>
    %38 = arith.divf %36, %37 : vector<8x128xf32>
    %39 = vector.extract_strided_slice %17 {offsets = [0, 256], sizes = [8, 128], strides = [1, 1]} : vector<8x384xf32> to vector<8x128xf32>
    %40 = vector.extract_strided_slice %22 {offsets = [0, 256], sizes = [8, 128], strides = [1, 1]} : vector<8x384xf32> to vector<8x128xf32>
    %41 = arith.mulf %30, %40 : vector<8x128xf32>
    %42 = arith.addf %39, %41 : vector<8x128xf32>
    %43 = math.tanh %42 : vector<8x128xf32>
    %cst_23 = arith.constant 1.000000e+00 : f32
    %44 = vector.broadcast %cst_23 : f32 to vector<8x128xf32>
    %45 = arith.subf %44, %38 : vector<8x128xf32>
    %46 = arith.mulf %45, %43 : vector<8x128xf32>
    %47 = arith.mulf %38, %14 : vector<8x128xf32>
    %48 = arith.addf %46, %47 : vector<8x128xf32>
    %49 = tpu.concatenate %48, %14 in 1 : vector<8x128xf32>, vector<8x128xf32> -> vector<8x256xf32>
    %c0_24 = arith.constant 0 : index
    %c0_25 = arith.constant 0 : index
    %50 = vector.load %arg5[%c0_24, %c0_25] : memref<256x512xf32, #tpu.memory_space<vmem>>, vector<256x512xf32>
    %cst_26 = arith.constant dense<0.000000e+00> : vector<8x512xf32>
    %51 = tpu.matmul %49, %50, %cst_26 {dimension_numbers = #tpu.dot_dimension_numbers<[1], [0], [0], [1], [0, 0, 1, 1], [], []>} : vector<8x256xf32>, vector<256x512xf32>, vector<8x512xf32> -> vector<8x512xf32>
    %c0_27 = arith.constant 0 : index
    %c0_28 = arith.constant 0 : index
    %52 = vector.load %arg6[%c0_27, %c0_28] : memref<1x512xf32, #tpu.memory_space<vmem>>, vector<1x512xf32>
    %53 = vector.broadcast %52 : vector<1x512xf32> to vector<8x512xf32>
    %54 = arith.addf %51, %53 : vector<8x512xf32>
    %55 = vector.extract_strided_slice %54 {offsets = [0, 0], sizes = [8, 128], strides = [1, 1]} : vector<8x512xf32> to vector<8x128xf32>
    %56 = arith.negf %55 : vector<8x128xf32>
    %57 = math.exp %56 : vector<8x128xf32>
    %cst_29 = arith.constant 1.000000e+00 : f32
    %58 = vector.broadcast %cst_29 : f32 to vector<8x128xf32>
    %59 = arith.addf %58, %57 : vector<8x128xf32>
    %60 = arith.divf %58, %59 : vector<8x128xf32>
    %61 = vector.extract_strided_slice %54 {offsets = [0, 128], sizes = [8, 128], strides = [1, 1]} : vector<8x512xf32> to vector<8x128xf32>
    %62 = arith.negf %61 : vector<8x128xf32>
    %63 = math.exp %62 : vector<8x128xf32>
    %cst_30 = arith.constant 1.000000e+00 : f32
    %64 = vector.broadcast %cst_30 : f32 to vector<8x128xf32>
    %65 = arith.addf %64, %63 : vector<8x128xf32>
    %66 = arith.divf %64, %65 : vector<8x128xf32>
    %67 = vector.extract_strided_slice %54 {offsets = [0, 384], sizes = [8, 128], strides = [1, 1]} : vector<8x512xf32> to vector<8x128xf32>
    %68 = vector.extract_strided_slice %54 {offsets = [0, 256], sizes = [8, 128], strides = [1, 1]} : vector<8x512xf32> to vector<8x128xf32>
    %cst_31 = arith.constant 1.000000e+00 : f32
    %69 = vector.broadcast %cst_31 : f32 to vector<8x128xf32>
    %70 = arith.subf %60, %69 : vector<8x128xf32>
    %71 = arith.mulf %70, %67 : vector<8x128xf32>
    %72 = arith.addf %68, %71 : vector<8x128xf32>
    %73 = math.tanh %72 : vector<8x128xf32>
    %cst_32 = arith.constant 1.000000e+00 : f32
    %74 = vector.broadcast %cst_32 : f32 to vector<8x128xf32>
    %75 = arith.subf %74, %66 : vector<8x128xf32>
    %76 = arith.mulf %75, %73 : vector<8x128xf32>
    %77 = arith.mulf %66, %14 : vector<8x128xf32>
    %78 = arith.addf %76, %77 : vector<8x128xf32>
    %c1_i32 = arith.constant 1 : i32
    %79 = arith.addi %c0_i32, %c1_i32 : i32
    %80 = arith.index_cast %79 : i32 to index
    %c0_33 = arith.constant 0 : index
    %c0_34 = arith.constant 0 : index
    %81 = vector.load %arg17[%80, %c0_33, %c0_34] : memref<9x8x128xf32, #tpu.memory_space<vmem>>, vector<1x8x128xf32>
    %82 = vector.shape_cast %81 : vector<1x8x128xf32> to vector<8x128xf32>
    %83 = vector.shape_cast %78 : vector<8x128xf32> to vector<1x8x128xf32>
    tpu.vector_store %arg17[%80, %c0_33, %c0_34], %83 {strides = array<i32>} : memref<9x8x128xf32, #tpu.memory_space<vmem>>, vector<1x8x128xf32>,
    %c1_i32_35 = arith.constant 1 : i32
    %84 = arith.index_cast %c1_i32_35 : i32 to index
    %c0_36 = arith.constant 0 : index
    %c0_37 = arith.constant 0 : index
    %85 = vector.load %arg16[%84, %c0_36, %c0_37] : memref<8x8x384xf32, #tpu.memory_space<vmem>>, vector<1x8x384xf32>
    %86 = vector.shape_cast %85 : vector<1x8x384xf32> to vector<8x384xf32>
    %c0_38 = arith.constant 0 : index
    %c0_39 = arith.constant 0 : index
    %87 = vector.load %arg3[%c0_38, %c0_39] : memref<128x384xf32, #tpu.memory_space<vmem>>, vector<128x384xf32>
    %cst_40 = arith.constant dense<0.000000e+00> : vector<8x384xf32>
    %88 = tpu.matmul %48, %87, %cst_40 {dimension_numbers = #tpu.dot_dimension_numbers<[1], [0], [0], [1], [0, 0, 1, 1], [], []>} : vector<8x128xf32>, vector<128x384xf32>, vector<8x384xf32> -> vector<8x384xf32>
    %c0_41 = arith.constant 0 : index
    %c0_42 = arith.constant 0 : index
    %89 = vector.load %arg4[%c0_41, %c0_42] : memref<1x384xf32, #tpu.memory_space<vmem>>, vector<1x384xf32>
    %90 = vector.broadcast %89 : vector<1x384xf32> to vector<8x384xf32>
    %91 = arith.addf %88, %90 : vector<8x384xf32>
    %92 = vector.extract_strided_slice %86 {offsets = [0, 0], sizes = [8, 128], strides = [1, 1]} : vector<8x384xf32> to vector<8x128xf32>
    %93 = vector.extract_strided_slice %91 {offsets = [0, 0], sizes = [8, 128], strides = [1, 1]} : vector<8x384xf32> to vector<8x128xf32>
    %94 = arith.addf %92, %93 : vector<8x128xf32>
    %95 = arith.negf %94 : vector<8x128xf32>
    %96 = math.exp %95 : vector<8x128xf32>
    %cst_43 = arith.constant 1.000000e+00 : f32
    %97 = vector.broadcast %cst_43 : f32 to vector<8x128xf32>
    %98 = arith.addf %97, %96 : vector<8x128xf32>
    %99 = arith.divf %97, %98 : vector<8x128xf32>
    %100 = vector.extract_strided_slice %86 {offsets = [0, 128], sizes = [8, 128], strides = [1, 1]} : vector<8x384xf32> to vector<8x128xf32>
    %101 = vector.extract_strided_slice %91 {offsets = [0, 128], sizes = [8, 128], strides = [1, 1]} : vector<8x384xf32> to vector<8x128xf32>
    %102 = arith.addf %100, %101 : vector<8x128xf32>
    %103 = arith.negf %102 : vector<8x128xf32>
    %104 = math.exp %103 : vector<8x128xf32>
    %cst_44 = arith.constant 1.000000e+00 : f32
    %105 = vector.broadcast %cst_44 : f32 to vector<8x128xf32>
    %106 = arith.addf %105, %104 : vector<8x128xf32>
    %107 = arith.divf %105, %106 : vector<8x128xf32>
    %108 = vector.extract_strided_slice %86 {offsets = [0, 256], sizes = [8, 128], strides = [1, 1]} : vector<8x384xf32> to vector<8x128xf32>
    %109 = vector.extract_strided_slice %91 {offsets = [0, 256], sizes = [8, 128], strides = [1, 1]} : vector<8x384xf32> to vector<8x128xf32>
    %110 = arith.mulf %99, %109 : vector<8x128xf32>
    %111 = arith.addf %108, %110 : vector<8x128xf32>
    %112 = math.tanh %111 : vector<8x128xf32>
    %cst_45 = arith.constant 1.000000e+00 : f32
    %113 = vector.broadcast %cst_45 : f32 to vector<8x128xf32>
    %114 = arith.subf %113, %107 : vector<8x128xf32>
    %115 = arith.mulf %114, %112 : vector<8x128xf32>
    %116 = arith.mulf %107, %48 : vector<8x128xf32>
    %117 = arith.addf %115, %116 : vector<8x128xf32>
    %118 = tpu.concatenate %117, %78 in 1 : vector<8x128xf32>, vector<8x128xf32> -> vector<8x256xf32>
    %c0_46 = arith.constant 0 : index
    %c0_47 = arith.constant 0 : index
    %119 = vector.load %arg5[%c0_46, %c0_47] : memref<256x512xf32, #tpu.memory_space<vmem>>, vector<256x512xf32>
    %cst_48 = arith.constant dense<0.000000e+00> : vector<8x512xf32>
    %120 = tpu.matmul %118, %119, %cst_48 {dimension_numbers = #tpu.dot_dimension_numbers<[1], [0], [0], [1], [0, 0, 1, 1], [], []>} : vector<8x256xf32>, vector<256x512xf32>, vector<8x512xf32> -> vector<8x512xf32>
    %c0_49 = arith.constant 0 : index
    %c0_50 = arith.constant 0 : index
    %121 = vector.load %arg6[%c0_49, %c0_50] : memref<1x512xf32, #tpu.memory_space<vmem>>, vector<1x512xf32>
    %122 = vector.broadcast %121 : vector<1x512xf32> to vector<8x512xf32>
    %123 = arith.addf %120, %122 : vector<8x512xf32>
    %124 = vector.extract_strided_slice %123 {offsets = [0, 0], sizes = [8, 128], strides = [1, 1]} : vector<8x512xf32> to vector<8x128xf32>
    %125 = arith.negf %124 : vector<8x128xf32>
    %126 = math.exp %125 : vector<8x128xf32>
    %cst_51 = arith.constant 1.000000e+00 : f32
    %127 = vector.broadcast %cst_51 : f32 to vector<8x128xf32>
    %128 = arith.addf %127, %126 : vector<8x128xf32>
    %129 = arith.divf %127, %128 : vector<8x128xf32>
    %130 = vector.extract_strided_slice %123 {offsets = [0, 128], sizes = [8, 128], strides = [1, 1]} : vector<8x512xf32> to vector<8x128xf32>
    %131 = arith.negf %130 : vector<8x128xf32>
    %132 = math.exp %131 : vector<8x128xf32>
    %cst_52 = arith.constant 1.000000e+00 : f32
    %133 = vector.broadcast %cst_52 : f32 to vector<8x128xf32>
    %134 = arith.addf %133, %132 : vector<8x128xf32>
    %135 = arith.divf %133, %134 : vector<8x128xf32>
    %136 = vector.extract_strided_slice %123 {offsets = [0, 384], sizes = [8, 128], strides = [1, 1]} : vector<8x512xf32> to vector<8x128xf32>
    %137 = vector.extract_strided_slice %123 {offsets = [0, 256], sizes = [8, 128], strides = [1, 1]} : vector<8x512xf32> to vector<8x128xf32>
    %cst_53 = arith.constant 1.000000e+00 : f32
    %138 = vector.broadcast %cst_53 : f32 to vector<8x128xf32>
    %139 = arith.subf %129, %138 : vector<8x128xf32>
    %140 = arith.mulf %139, %136 : vector<8x128xf32>
    %141 = arith.addf %137, %140 : vector<8x128xf32>
    %142 = math.tanh %141 : vector<8x128xf32>
    %cst_54 = arith.constant 1.000000e+00 : f32
    %143 = vector.broadcast %cst_54 : f32 to vector<8x128xf32>
    %144 = arith.subf %143, %135 : vector<8x128xf32>
    %145 = arith.mulf %144, %142 : vector<8x128xf32>
    %146 = arith.mulf %135, %78 : vector<8x128xf32>
    %147 = arith.addf %145, %146 : vector<8x128xf32>
    %c1_i32_55 = arith.constant 1 : i32
    %148 = arith.addi %c1_i32_35, %c1_i32_55 : i32
    %149 = arith.index_cast %148 : i32 to index
    %c0_56 = arith.constant 0 : index
    %c0_57 = arith.constant 0 : index
    %150 = vector.load %arg17[%149, %c0_56, %c0_57] : memref<9x8x128xf32, #tpu.memory_space<vmem>>, vector<1x8x128xf32>
    %151 = vector.shape_cast %150 : vector<1x8x128xf32> to vector<8x128xf32>
    %152 = vector.shape_cast %147 : vector<8x128xf32> to vector<1x8x128xf32>
    tpu.vector_store %arg17[%149, %c0_56, %c0_57], %152 {strides = array<i32>} : memref<9x8x128xf32, #tpu.memory_space<vmem>>, vector<1x8x128xf32>,
    %c2_i32 = arith.constant 2 : i32
    %153 = arith.index_cast %c2_i32 : i32 to index
    %c0_58 = arith.constant 0 : index
    %c0_59 = arith.constant 0 : index
    %154 = vector.load %arg16[%153, %c0_58, %c0_59] : memref<8x8x384xf32, #tpu.memory_space<vmem>>, vector<1x8x384xf32>
    %155 = vector.shape_cast %154 : vector<1x8x384xf32> to vector<8x384xf32>
    %c0_60 = arith.constant 0 : index
    %c0_61 = arith.constant 0 : index
    %156 = vector.load %arg3[%c0_60, %c0_61] : memref<128x384xf32, #tpu.memory_space<vmem>>, vector<128x384xf32>
    %cst_62 = arith.constant dense<0.000000e+00> : vector<8x384xf32>
    %157 = tpu.matmul %117, %156, %cst_62 {dimension_numbers = #tpu.dot_dimension_numbers<[1], [0], [0], [1], [0, 0, 1, 1], [], []>} : vector<8x128xf32>, vector<128x384xf32>, vector<8x384xf32> -> vector<8x384xf32>
    %c0_63 = arith.constant 0 : index
    %c0_64 = arith.constant 0 : index
    %158 = vector.load %arg4[%c0_63, %c0_64] : memref<1x384xf32, #tpu.memory_space<vmem>>, vector<1x384xf32>
    %159 = vector.broadcast %158 : vector<1x384xf32> to vector<8x384xf32>
    %160 = arith.addf %157, %159 : vector<8x384xf32>
    %161 = vector.extract_strided_slice %155 {offsets = [0, 0], sizes = [8, 128], strides = [1, 1]} : vector<8x384xf32> to vector<8x128xf32>
    %162 = vector.extract_strided_slice %160 {offsets = [0, 0], sizes = [8, 128], strides = [1, 1]} : vector<8x384xf32> to vector<8x128xf32>
    %163 = arith.addf %161, %162 : vector<8x128xf32>
    %164 = arith.negf %163 : vector<8x128xf32>
    %165 = math.exp %164 : vector<8x128xf32>
    %cst_65 = arith.constant 1.000000e+00 : f32
    %166 = vector.broadcast %cst_65 : f32 to vector<8x128xf32>
    %167 = arith.addf %166, %165 : vector<8x128xf32>
    %168 = arith.divf %166, %167 : vector<8x128xf32>
    %169 = vector.extract_strided_slice %155 {offsets = [0, 128], sizes = [8, 128], strides = [1, 1]} : vector<8x384xf32> to vector<8x128xf32>
    %170 = vector.extract_strided_slice %160 {offsets = [0, 128], sizes = [8, 128], strides = [1, 1]} : vector<8x384xf32> to vector<8x128xf32>
    %171 = arith.addf %169, %170 : vector<8x128xf32>
    %172 = arith.negf %171 : vector<8x128xf32>
    %173 = math.exp %172 : vector<8x128xf32>
    %cst_66 = arith.constant 1.000000e+00 : f32
    %174 = vector.broadcast %cst_66 : f32 to vector<8x128xf32>
    %175 = arith.addf %174, %173 : vector<8x128xf32>
    %176 = arith.divf %174, %175 : vector<8x128xf32>
    %177 = vector.extract_strided_slice %155 {offsets = [0, 256], sizes = [8, 128], strides = [1, 1]} : vector<8x384xf32> to vector<8x128xf32>
    %178 = vector.extract_strided_slice %160 {offsets = [0, 256], sizes = [8, 128], strides = [1, 1]} : vector<8x384xf32> to vector<8x128xf32>
    %179 = arith.mulf %168, %178 : vector<8x128xf32>
    %180 = arith.addf %177, %179 : vector<8x128xf32>
    %181 = math.tanh %180 : vector<8x128xf32>
    %cst_67 = arith.constant 1.000000e+00 : f32
    %182 = vector.broadcast %cst_67 : f32 to vector<8x128xf32>
    %183 = arith.subf %182, %176 : vector<8x128xf32>
    %184 = arith.mulf %183, %181 : vector<8x128xf32>
    %185 = arith.mulf %176, %117 : vector<8x128xf32>
    %186 = arith.addf %184, %185 : vector<8x128xf32>
    %187 = tpu.concatenate %186, %147 in 1 : vector<8x128xf32>, vector<8x128xf32> -> vector<8x256xf32>
    %c0_68 = arith.constant 0 : index
    %c0_69 = arith.constant 0 : index
    %188 = vector.load %arg5[%c0_68, %c0_69] : memref<256x512xf32, #tpu.memory_space<vmem>>, vector<256x512xf32>
    %cst_70 = arith.constant dense<0.000000e+00> : vector<8x512xf32>
    %189 = tpu.matmul %187, %188, %cst_70 {dimension_numbers = #tpu.dot_dimension_numbers<[1], [0], [0], [1], [0, 0, 1, 1], [], []>} : vector<8x256xf32>, vector<256x512xf32>, vector<8x512xf32> -> vector<8x512xf32>
    %c0_71 = arith.constant 0 : index
    %c0_72 = arith.constant 0 : index
    %190 = vector.load %arg6[%c0_71, %c0_72] : memref<1x512xf32, #tpu.memory_space<vmem>>, vector<1x512xf32>
    %191 = vector.broadcast %190 : vector<1x512xf32> to vector<8x512xf32>
    %192 = arith.addf %189, %191 : vector<8x512xf32>
    %193 = vector.extract_strided_slice %192 {offsets = [0, 0], sizes = [8, 128], strides = [1, 1]} : vector<8x512xf32> to vector<8x128xf32>
    %194 = arith.negf %193 : vector<8x128xf32>
    %195 = math.exp %194 : vector<8x128xf32>
    %cst_73 = arith.constant 1.000000e+00 : f32
    %196 = vector.broadcast %cst_73 : f32 to vector<8x128xf32>
    %197 = arith.addf %196, %195 : vector<8x128xf32>
    %198 = arith.divf %196, %197 : vector<8x128xf32>
    %199 = vector.extract_strided_slice %192 {offsets = [0, 128], sizes = [8, 128], strides = [1, 1]} : vector<8x512xf32> to vector<8x128xf32>
    %200 = arith.negf %199 : vector<8x128xf32>
    %201 = math.exp %200 : vector<8x128xf32>
    %cst_74 = arith.constant 1.000000e+00 : f32
    %202 = vector.broadcast %cst_74 : f32 to vector<8x128xf32>
    %203 = arith.addf %202, %201 : vector<8x128xf32>
    %204 = arith.divf %202, %203 : vector<8x128xf32>
    %205 = vector.extract_strided_slice %192 {offsets = [0, 384], sizes = [8, 128], strides = [1, 1]} : vector<8x512xf32> to vector<8x128xf32>
    %206 = vector.extract_strided_slice %192 {offsets = [0, 256], sizes = [8, 128], strides = [1, 1]} : vector<8x512xf32> to vector<8x128xf32>
    %cst_75 = arith.constant 1.000000e+00 : f32
    %207 = vector.broadcast %cst_75 : f32 to vector<8x128xf32>
    %208 = arith.subf %198, %207 : vector<8x128xf32>
    %209 = arith.mulf %208, %205 : vector<8x128xf32>
    %210 = arith.addf %206, %209 : vector<8x128xf32>
    %211 = math.tanh %210 : vector<8x128xf32>
    %cst_76 = arith.constant 1.000000e+00 : f32
    %212 = vector.broadcast %cst_76 : f32 to vector<8x128xf32>
    %213 = arith.subf %212, %204 : vector<8x128xf32>
    %214 = arith.mulf %213, %211 : vector<8x128xf32>
    %215 = arith.mulf %204, %147 : vector<8x128xf32>
    %216 = arith.addf %214, %215 : vector<8x128xf32>
    %c1_i32_77 = arith.constant 1 : i32
    %217 = arith.addi %c2_i32, %c1_i32_77 : i32
    %218 = arith.index_cast %217 : i32 to index
    %c0_78 = arith.constant 0 : index
    %c0_79 = arith.constant 0 : index
    %219 = vector.load %arg17[%218, %c0_78, %c0_79] : memref<9x8x128xf32, #tpu.memory_space<vmem>>, vector<1x8x128xf32>
    %220 = vector.shape_cast %219 : vector<1x8x128xf32> to vector<8x128xf32>
    %221 = vector.shape_cast %216 : vector<8x128xf32> to vector<1x8x128xf32>
    tpu.vector_store %arg17[%218, %c0_78, %c0_79], %221 {strides = array<i32>} : memref<9x8x128xf32, #tpu.memory_space<vmem>>, vector<1x8x128xf32>,
    %c3_i32 = arith.constant 3 : i32
    %222 = arith.index_cast %c3_i32 : i32 to index
    %c0_80 = arith.constant 0 : index
    %c0_81 = arith.constant 0 : index
    %223 = vector.load %arg16[%222, %c0_80, %c0_81] : memref<8x8x384xf32, #tpu.memory_space<vmem>>, vector<1x8x384xf32>
    %224 = vector.shape_cast %223 : vector<1x8x384xf32> to vector<8x384xf32>
    %c0_82 = arith.constant 0 : index
    %c0_83 = arith.constant 0 : index
    %225 = vector.load %arg3[%c0_82, %c0_83] : memref<128x384xf32, #tpu.memory_space<vmem>>, vector<128x384xf32>
    %cst_84 = arith.constant dense<0.000000e+00> : vector<8x384xf32>
    %226 = tpu.matmul %186, %225, %cst_84 {dimension_numbers = #tpu.dot_dimension_numbers<[1], [0], [0], [1], [0, 0, 1, 1], [], []>} : vector<8x128xf32>, vector<128x384xf32>, vector<8x384xf32> -> vector<8x384xf32>
    %c0_85 = arith.constant 0 : index
    %c0_86 = arith.constant 0 : index
    %227 = vector.load %arg4[%c0_85, %c0_86] : memref<1x384xf32, #tpu.memory_space<vmem>>, vector<1x384xf32>
    %228 = vector.broadcast %227 : vector<1x384xf32> to vector<8x384xf32>
    %229 = arith.addf %226, %228 : vector<8x384xf32>
    %230 = vector.extract_strided_slice %224 {offsets = [0, 0], sizes = [8, 128], strides = [1, 1]} : vector<8x384xf32> to vector<8x128xf32>
    %231 = vector.extract_strided_slice %229 {offsets = [0, 0], sizes = [8, 128], strides = [1, 1]} : vector<8x384xf32> to vector<8x128xf32>
    %232 = arith.addf %230, %231 : vector<8x128xf32>
    %233 = arith.negf %232 : vector<8x128xf32>
    %234 = math.exp %233 : vector<8x128xf32>
    %cst_87 = arith.constant 1.000000e+00 : f32
    %235 = vector.broadcast %cst_87 : f32 to vector<8x128xf32>
    %236 = arith.addf %235, %234 : vector<8x128xf32>
    %237 = arith.divf %235, %236 : vector<8x128xf32>
    %238 = vector.extract_strided_slice %224 {offsets = [0, 128], sizes = [8, 128], strides = [1, 1]} : vector<8x384xf32> to vector<8x128xf32>
    %239 = vector.extract_strided_slice %229 {offsets = [0, 128], sizes = [8, 128], strides = [1, 1]} : vector<8x384xf32> to vector<8x128xf32>
    %240 = arith.addf %238, %239 : vector<8x128xf32>
    %241 = arith.negf %240 : vector<8x128xf32>
    %242 = math.exp %241 : vector<8x128xf32>
    %cst_88 = arith.constant 1.000000e+00 : f32
    %243 = vector.broadcast %cst_88 : f32 to vector<8x128xf32>
    %244 = arith.addf %243, %242 : vector<8x128xf32>
    %245 = arith.divf %243, %244 : vector<8x128xf32>
    %246 = vector.extract_strided_slice %224 {offsets = [0, 256], sizes = [8, 128], strides = [1, 1]} : vector<8x384xf32> to vector<8x128xf32>
    %247 = vector.extract_strided_slice %229 {offsets = [0, 256], sizes = [8, 128], strides = [1, 1]} : vector<8x384xf32> to vector<8x128xf32>
    %248 = arith.mulf %237, %247 : vector<8x128xf32>
    %249 = arith.addf %246, %248 : vector<8x128xf32>
    %250 = math.tanh %249 : vector<8x128xf32>
    %cst_89 = arith.constant 1.000000e+00 : f32
    %251 = vector.broadcast %cst_89 : f32 to vector<8x128xf32>
    %252 = arith.subf %251, %245 : vector<8x128xf32>
    %253 = arith.mulf %252, %250 : vector<8x128xf32>
    %254 = arith.mulf %245, %186 : vector<8x128xf32>
    %255 = arith.addf %253, %254 : vector<8x128xf32>
    %256 = tpu.concatenate %255, %216 in 1 : vector<8x128xf32>, vector<8x128xf32> -> vector<8x256xf32>
    %c0_90 = arith.constant 0 : index
    %c0_91 = arith.constant 0 : index
    %257 = vector.load %arg5[%c0_90, %c0_91] : memref<256x512xf32, #tpu.memory_space<vmem>>, vector<256x512xf32>
    %cst_92 = arith.constant dense<0.000000e+00> : vector<8x512xf32>
    %258 = tpu.matmul %256, %257, %cst_92 {dimension_numbers = #tpu.dot_dimension_numbers<[1], [0], [0], [1], [0, 0, 1, 1], [], []>} : vector<8x256xf32>, vector<256x512xf32>, vector<8x512xf32> -> vector<8x512xf32>
    %c0_93 = arith.constant 0 : index
    %c0_94 = arith.constant 0 : index
    %259 = vector.load %arg6[%c0_93, %c0_94] : memref<1x512xf32, #tpu.memory_space<vmem>>, vector<1x512xf32>
    %260 = vector.broadcast %259 : vector<1x512xf32> to vector<8x512xf32>
    %261 = arith.addf %258, %260 : vector<8x512xf32>
    %262 = vector.extract_strided_slice %261 {offsets = [0, 0], sizes = [8, 128], strides = [1, 1]} : vector<8x512xf32> to vector<8x128xf32>
    %263 = arith.negf %262 : vector<8x128xf32>
    %264 = math.exp %263 : vector<8x128xf32>
    %cst_95 = arith.constant 1.000000e+00 : f32
    %265 = vector.broadcast %cst_95 : f32 to vector<8x128xf32>
    %266 = arith.addf %265, %264 : vector<8x128xf32>
    %267 = arith.divf %265, %266 : vector<8x128xf32>
    %268 = vector.extract_strided_slice %261 {offsets = [0, 128], sizes = [8, 128], strides = [1, 1]} : vector<8x512xf32> to vector<8x128xf32>
    %269 = arith.negf %268 : vector<8x128xf32>
    %270 = math.exp %269 : vector<8x128xf32>
    %cst_96 = arith.constant 1.000000e+00 : f32
    %271 = vector.broadcast %cst_96 : f32 to vector<8x128xf32>
    %272 = arith.addf %271, %270 : vector<8x128xf32>
    %273 = arith.divf %271, %272 : vector<8x128xf32>
    %274 = vector.extract_strided_slice %261 {offsets = [0, 384], sizes = [8, 128], strides = [1, 1]} : vector<8x512xf32> to vector<8x128xf32>
    %275 = vector.extract_strided_slice %261 {offsets = [0, 256], sizes = [8, 128], strides = [1, 1]} : vector<8x512xf32> to vector<8x128xf32>
    %cst_97 = arith.constant 1.000000e+00 : f32
    %276 = vector.broadcast %cst_97 : f32 to vector<8x128xf32>
    %277 = arith.subf %267, %276 : vector<8x128xf32>
    %278 = arith.mulf %277, %274 : vector<8x128xf32>
    %279 = arith.addf %275, %278 : vector<8x128xf32>
    %280 = math.tanh %279 : vector<8x128xf32>
    %cst_98 = arith.constant 1.000000e+00 : f32
    %281 = vector.broadcast %cst_98 : f32 to vector<8x128xf32>
    %282 = arith.subf %281, %273 : vector<8x128xf32>
    %283 = arith.mulf %282, %280 : vector<8x128xf32>
    %284 = arith.mulf %273, %216 : vector<8x128xf32>
    %285 = arith.addf %283, %284 : vector<8x128xf32>
    %c1_i32_99 = arith.constant 1 : i32
    %286 = arith.addi %c3_i32, %c1_i32_99 : i32
    %287 = arith.index_cast %286 : i32 to index
    %c0_100 = arith.constant 0 : index
    %c0_101 = arith.constant 0 : index
    %288 = vector.load %arg17[%287, %c0_100, %c0_101] : memref<9x8x128xf32, #tpu.memory_space<vmem>>, vector<1x8x128xf32>
    %289 = vector.shape_cast %288 : vector<1x8x128xf32> to vector<8x128xf32>
    %290 = vector.shape_cast %285 : vector<8x128xf32> to vector<1x8x128xf32>
    tpu.vector_store %arg17[%287, %c0_100, %c0_101], %290 {strides = array<i32>} : memref<9x8x128xf32, #tpu.memory_space<vmem>>, vector<1x8x128xf32>,
    %c4_i32 = arith.constant 4 : i32
    %291 = arith.index_cast %c4_i32 : i32 to index
    %c0_102 = arith.constant 0 : index
    %c0_103 = arith.constant 0 : index
    %292 = vector.load %arg16[%291, %c0_102, %c0_103] : memref<8x8x384xf32, #tpu.memory_space<vmem>>, vector<1x8x384xf32>
    %293 = vector.shape_cast %292 : vector<1x8x384xf32> to vector<8x384xf32>
    %c0_104 = arith.constant 0 : index
    %c0_105 = arith.constant 0 : index
    %294 = vector.load %arg3[%c0_104, %c0_105] : memref<128x384xf32, #tpu.memory_space<vmem>>, vector<128x384xf32>
    %cst_106 = arith.constant dense<0.000000e+00> : vector<8x384xf32>
    %295 = tpu.matmul %255, %294, %cst_106 {dimension_numbers = #tpu.dot_dimension_numbers<[1], [0], [0], [1], [0, 0, 1, 1], [], []>} : vector<8x128xf32>, vector<128x384xf32>, vector<8x384xf32> -> vector<8x384xf32>
    %c0_107 = arith.constant 0 : index
    %c0_108 = arith.constant 0 : index
    %296 = vector.load %arg4[%c0_107, %c0_108] : memref<1x384xf32, #tpu.memory_space<vmem>>, vector<1x384xf32>
    %297 = vector.broadcast %296 : vector<1x384xf32> to vector<8x384xf32>
    %298 = arith.addf %295, %297 : vector<8x384xf32>
    %299 = vector.extract_strided_slice %293 {offsets = [0, 0], sizes = [8, 128], strides = [1, 1]} : vector<8x384xf32> to vector<8x128xf32>
    %300 = vector.extract_strided_slice %298 {offsets = [0, 0], sizes = [8, 128], strides = [1, 1]} : vector<8x384xf32> to vector<8x128xf32>
    %301 = arith.addf %299, %300 : vector<8x128xf32>
    %302 = arith.negf %301 : vector<8x128xf32>
    %303 = math.exp %302 : vector<8x128xf32>
    %cst_109 = arith.constant 1.000000e+00 : f32
    %304 = vector.broadcast %cst_109 : f32 to vector<8x128xf32>
    %305 = arith.addf %304, %303 : vector<8x128xf32>
    %306 = arith.divf %304, %305 : vector<8x128xf32>
    %307 = vector.extract_strided_slice %293 {offsets = [0, 128], sizes = [8, 128], strides = [1, 1]} : vector<8x384xf32> to vector<8x128xf32>
    %308 = vector.extract_strided_slice %298 {offsets = [0, 128], sizes = [8, 128], strides = [1, 1]} : vector<8x384xf32> to vector<8x128xf32>
    %309 = arith.addf %307, %308 : vector<8x128xf32>
    %310 = arith.negf %309 : vector<8x128xf32>
    %311 = math.exp %310 : vector<8x128xf32>
    %cst_110 = arith.constant 1.000000e+00 : f32
    %312 = vector.broadcast %cst_110 : f32 to vector<8x128xf32>
    %313 = arith.addf %312, %311 : vector<8x128xf32>
    %314 = arith.divf %312, %313 : vector<8x128xf32>
    %315 = vector.extract_strided_slice %293 {offsets = [0, 256], sizes = [8, 128], strides = [1, 1]} : vector<8x384xf32> to vector<8x128xf32>
    %316 = vector.extract_strided_slice %298 {offsets = [0, 256], sizes = [8, 128], strides = [1, 1]} : vector<8x384xf32> to vector<8x128xf32>
    %317 = arith.mulf %306, %316 : vector<8x128xf32>
    %318 = arith.addf %315, %317 : vector<8x128xf32>
    %319 = math.tanh %318 : vector<8x128xf32>
    %cst_111 = arith.constant 1.000000e+00 : f32
    %320 = vector.broadcast %cst_111 : f32 to vector<8x128xf32>
    %321 = arith.subf %320, %314 : vector<8x128xf32>
    %322 = arith.mulf %321, %319 : vector<8x128xf32>
    %323 = arith.mulf %314, %255 : vector<8x128xf32>
    %324 = arith.addf %322, %323 : vector<8x128xf32>
    %325 = tpu.concatenate %324, %285 in 1 : vector<8x128xf32>, vector<8x128xf32> -> vector<8x256xf32>
    %c0_112 = arith.constant 0 : index
    %c0_113 = arith.constant 0 : index
    %326 = vector.load %arg5[%c0_112, %c0_113] : memref<256x512xf32, #tpu.memory_space<vmem>>, vector<256x512xf32>
    %cst_114 = arith.constant dense<0.000000e+00> : vector<8x512xf32>
    %327 = tpu.matmul %325, %326, %cst_114 {dimension_numbers = #tpu.dot_dimension_numbers<[1], [0], [0], [1], [0, 0, 1, 1], [], []>} : vector<8x256xf32>, vector<256x512xf32>, vector<8x512xf32> -> vector<8x512xf32>
    %c0_115 = arith.constant 0 : index
    %c0_116 = arith.constant 0 : index
    %328 = vector.load %arg6[%c0_115, %c0_116] : memref<1x512xf32, #tpu.memory_space<vmem>>, vector<1x512xf32>
    %329 = vector.broadcast %328 : vector<1x512xf32> to vector<8x512xf32>
    %330 = arith.addf %327, %329 : vector<8x512xf32>
    %331 = vector.extract_strided_slice %330 {offsets = [0, 0], sizes = [8, 128], strides = [1, 1]} : vector<8x512xf32> to vector<8x128xf32>
    %332 = arith.negf %331 : vector<8x128xf32>
    %333 = math.exp %332 : vector<8x128xf32>
    %cst_117 = arith.constant 1.000000e+00 : f32
    %334 = vector.broadcast %cst_117 : f32 to vector<8x128xf32>
    %335 = arith.addf %334, %333 : vector<8x128xf32>
    %336 = arith.divf %334, %335 : vector<8x128xf32>
    %337 = vector.extract_strided_slice %330 {offsets = [0, 128], sizes = [8, 128], strides = [1, 1]} : vector<8x512xf32> to vector<8x128xf32>
    %338 = arith.negf %337 : vector<8x128xf32>
    %339 = math.exp %338 : vector<8x128xf32>
    %cst_118 = arith.constant 1.000000e+00 : f32
    %340 = vector.broadcast %cst_118 : f32 to vector<8x128xf32>
    %341 = arith.addf %340, %339 : vector<8x128xf32>
    %342 = arith.divf %340, %341 : vector<8x128xf32>
    %343 = vector.extract_strided_slice %330 {offsets = [0, 384], sizes = [8, 128], strides = [1, 1]} : vector<8x512xf32> to vector<8x128xf32>
    %344 = vector.extract_strided_slice %330 {offsets = [0, 256], sizes = [8, 128], strides = [1, 1]} : vector<8x512xf32> to vector<8x128xf32>
    %cst_119 = arith.constant 1.000000e+00 : f32
    %345 = vector.broadcast %cst_119 : f32 to vector<8x128xf32>
    %346 = arith.subf %336, %345 : vector<8x128xf32>
    %347 = arith.mulf %346, %343 : vector<8x128xf32>
    %348 = arith.addf %344, %347 : vector<8x128xf32>
    %349 = math.tanh %348 : vector<8x128xf32>
    %cst_120 = arith.constant 1.000000e+00 : f32
    %350 = vector.broadcast %cst_120 : f32 to vector<8x128xf32>
    %351 = arith.subf %350, %342 : vector<8x128xf32>
    %352 = arith.mulf %351, %349 : vector<8x128xf32>
    %353 = arith.mulf %342, %285 : vector<8x128xf32>
    %354 = arith.addf %352, %353 : vector<8x128xf32>
    %c1_i32_121 = arith.constant 1 : i32
    %355 = arith.addi %c4_i32, %c1_i32_121 : i32
    %356 = arith.index_cast %355 : i32 to index
    %c0_122 = arith.constant 0 : index
    %c0_123 = arith.constant 0 : index
    %357 = vector.load %arg17[%356, %c0_122, %c0_123] : memref<9x8x128xf32, #tpu.memory_space<vmem>>, vector<1x8x128xf32>
    %358 = vector.shape_cast %357 : vector<1x8x128xf32> to vector<8x128xf32>
    %359 = vector.shape_cast %354 : vector<8x128xf32> to vector<1x8x128xf32>
    tpu.vector_store %arg17[%356, %c0_122, %c0_123], %359 {strides = array<i32>} : memref<9x8x128xf32, #tpu.memory_space<vmem>>, vector<1x8x128xf32>,
    %c5_i32 = arith.constant 5 : i32
    %360 = arith.index_cast %c5_i32 : i32 to index
    %c0_124 = arith.constant 0 : index
    %c0_125 = arith.constant 0 : index
    %361 = vector.load %arg16[%360, %c0_124, %c0_125] : memref<8x8x384xf32, #tpu.memory_space<vmem>>, vector<1x8x384xf32>
    %362 = vector.shape_cast %361 : vector<1x8x384xf32> to vector<8x384xf32>
    %c0_126 = arith.constant 0 : index
    %c0_127 = arith.constant 0 : index
    %363 = vector.load %arg3[%c0_126, %c0_127] : memref<128x384xf32, #tpu.memory_space<vmem>>, vector<128x384xf32>
    %cst_128 = arith.constant dense<0.000000e+00> : vector<8x384xf32>
    %364 = tpu.matmul %324, %363, %cst_128 {dimension_numbers = #tpu.dot_dimension_numbers<[1], [0], [0], [1], [0, 0, 1, 1], [], []>} : vector<8x128xf32>, vector<128x384xf32>, vector<8x384xf32> -> vector<8x384xf32>
    %c0_129 = arith.constant 0 : index
    %c0_130 = arith.constant 0 : index
    %365 = vector.load %arg4[%c0_129, %c0_130] : memref<1x384xf32, #tpu.memory_space<vmem>>, vector<1x384xf32>
    %366 = vector.broadcast %365 : vector<1x384xf32> to vector<8x384xf32>
    %367 = arith.addf %364, %366 : vector<8x384xf32>
    %368 = vector.extract_strided_slice %362 {offsets = [0, 0], sizes = [8, 128], strides = [1, 1]} : vector<8x384xf32> to vector<8x128xf32>
    %369 = vector.extract_strided_slice %367 {offsets = [0, 0], sizes = [8, 128], strides = [1, 1]} : vector<8x384xf32> to vector<8x128xf32>
    %370 = arith.addf %368, %369 : vector<8x128xf32>
    %371 = arith.negf %370 : vector<8x128xf32>
    %372 = math.exp %371 : vector<8x128xf32>
    %cst_131 = arith.constant 1.000000e+00 : f32
    %373 = vector.broadcast %cst_131 : f32 to vector<8x128xf32>
    %374 = arith.addf %373, %372 : vector<8x128xf32>
    %375 = arith.divf %373, %374 : vector<8x128xf32>
    %376 = vector.extract_strided_slice %362 {offsets = [0, 128], sizes = [8, 128], strides = [1, 1]} : vector<8x384xf32> to vector<8x128xf32>
    %377 = vector.extract_strided_slice %367 {offsets = [0, 128], sizes = [8, 128], strides = [1, 1]} : vector<8x384xf32> to vector<8x128xf32>
    %378 = arith.addf %376, %377 : vector<8x128xf32>
    %379 = arith.negf %378 : vector<8x128xf32>
    %380 = math.exp %379 : vector<8x128xf32>
    %cst_132 = arith.constant 1.000000e+00 : f32
    %381 = vector.broadcast %cst_132 : f32 to vector<8x128xf32>
    %382 = arith.addf %381, %380 : vector<8x128xf32>
    %383 = arith.divf %381, %382 : vector<8x128xf32>
    %384 = vector.extract_strided_slice %362 {offsets = [0, 256], sizes = [8, 128], strides = [1, 1]} : vector<8x384xf32> to vector<8x128xf32>
    %385 = vector.extract_strided_slice %367 {offsets = [0, 256], sizes = [8, 128], strides = [1, 1]} : vector<8x384xf32> to vector<8x128xf32>
    %386 = arith.mulf %375, %385 : vector<8x128xf32>
    %387 = arith.addf %384, %386 : vector<8x128xf32>
    %388 = math.tanh %387 : vector<8x128xf32>
    %cst_133 = arith.constant 1.000000e+00 : f32
    %389 = vector.broadcast %cst_133 : f32 to vector<8x128xf32>
    %390 = arith.subf %389, %383 : vector<8x128xf32>
    %391 = arith.mulf %390, %388 : vector<8x128xf32>
    %392 = arith.mulf %383, %324 : vector<8x128xf32>
    %393 = arith.addf %391, %392 : vector<8x128xf32>
    %394 = tpu.concatenate %393, %354 in 1 : vector<8x128xf32>, vector<8x128xf32> -> vector<8x256xf32>
    %c0_134 = arith.constant 0 : index
    %c0_135 = arith.constant 0 : index
    %395 = vector.load %arg5[%c0_134, %c0_135] : memref<256x512xf32, #tpu.memory_space<vmem>>, vector<256x512xf32>
    %cst_136 = arith.constant dense<0.000000e+00> : vector<8x512xf32>
    %396 = tpu.matmul %394, %395, %cst_136 {dimension_numbers = #tpu.dot_dimension_numbers<[1], [0], [0], [1], [0, 0, 1, 1], [], []>} : vector<8x256xf32>, vector<256x512xf32>, vector<8x512xf32> -> vector<8x512xf32>
    %c0_137 = arith.constant 0 : index
    %c0_138 = arith.constant 0 : index
    %397 = vector.load %arg6[%c0_137, %c0_138] : memref<1x512xf32, #tpu.memory_space<vmem>>, vector<1x512xf32>
    %398 = vector.broadcast %397 : vector<1x512xf32> to vector<8x512xf32>
    %399 = arith.addf %396, %398 : vector<8x512xf32>
    %400 = vector.extract_strided_slice %399 {offsets = [0, 0], sizes = [8, 128], strides = [1, 1]} : vector<8x512xf32> to vector<8x128xf32>
    %401 = arith.negf %400 : vector<8x128xf32>
    %402 = math.exp %401 : vector<8x128xf32>
    %cst_139 = arith.constant 1.000000e+00 : f32
    %403 = vector.broadcast %cst_139 : f32 to vector<8x128xf32>
    %404 = arith.addf %403, %402 : vector<8x128xf32>
    %405 = arith.divf %403, %404 : vector<8x128xf32>
    %406 = vector.extract_strided_slice %399 {offsets = [0, 128], sizes = [8, 128], strides = [1, 1]} : vector<8x512xf32> to vector<8x128xf32>
    %407 = arith.negf %406 : vector<8x128xf32>
    %408 = math.exp %407 : vector<8x128xf32>
    %cst_140 = arith.constant 1.000000e+00 : f32
    %409 = vector.broadcast %cst_140 : f32 to vector<8x128xf32>
    %410 = arith.addf %409, %408 : vector<8x128xf32>
    %411 = arith.divf %409, %410 : vector<8x128xf32>
    %412 = vector.extract_strided_slice %399 {offsets = [0, 384], sizes = [8, 128], strides = [1, 1]} : vector<8x512xf32> to vector<8x128xf32>
    %413 = vector.extract_strided_slice %399 {offsets = [0, 256], sizes = [8, 128], strides = [1, 1]} : vector<8x512xf32> to vector<8x128xf32>
    %cst_141 = arith.constant 1.000000e+00 : f32
    %414 = vector.broadcast %cst_141 : f32 to vector<8x128xf32>
    %415 = arith.subf %405, %414 : vector<8x128xf32>
    %416 = arith.mulf %415, %412 : vector<8x128xf32>
    %417 = arith.addf %413, %416 : vector<8x128xf32>
    %418 = math.tanh %417 : vector<8x128xf32>
    %cst_142 = arith.constant 1.000000e+00 : f32
    %419 = vector.broadcast %cst_142 : f32 to vector<8x128xf32>
    %420 = arith.subf %419, %411 : vector<8x128xf32>
    %421 = arith.mulf %420, %418 : vector<8x128xf32>
    %422 = arith.mulf %411, %354 : vector<8x128xf32>
    %423 = arith.addf %421, %422 : vector<8x128xf32>
    %c1_i32_143 = arith.constant 1 : i32
    %424 = arith.addi %c5_i32, %c1_i32_143 : i32
    %425 = arith.index_cast %424 : i32 to index
    %c0_144 = arith.constant 0 : index
    %c0_145 = arith.constant 0 : index
    %426 = vector.load %arg17[%425, %c0_144, %c0_145] : memref<9x8x128xf32, #tpu.memory_space<vmem>>, vector<1x8x128xf32>
    %427 = vector.shape_cast %426 : vector<1x8x128xf32> to vector<8x128xf32>
    %428 = vector.shape_cast %423 : vector<8x128xf32> to vector<1x8x128xf32>
    tpu.vector_store %arg17[%425, %c0_144, %c0_145], %428 {strides = array<i32>} : memref<9x8x128xf32, #tpu.memory_space<vmem>>, vector<1x8x128xf32>,
    %c6_i32 = arith.constant 6 : i32
    %429 = arith.index_cast %c6_i32 : i32 to index
    %c0_146 = arith.constant 0 : index
    %c0_147 = arith.constant 0 : index
    %430 = vector.load %arg16[%429, %c0_146, %c0_147] : memref<8x8x384xf32, #tpu.memory_space<vmem>>, vector<1x8x384xf32>
    %431 = vector.shape_cast %430 : vector<1x8x384xf32> to vector<8x384xf32>
    %c0_148 = arith.constant 0 : index
    %c0_149 = arith.constant 0 : index
    %432 = vector.load %arg3[%c0_148, %c0_149] : memref<128x384xf32, #tpu.memory_space<vmem>>, vector<128x384xf32>
    %cst_150 = arith.constant dense<0.000000e+00> : vector<8x384xf32>
    %433 = tpu.matmul %393, %432, %cst_150 {dimension_numbers = #tpu.dot_dimension_numbers<[1], [0], [0], [1], [0, 0, 1, 1], [], []>} : vector<8x128xf32>, vector<128x384xf32>, vector<8x384xf32> -> vector<8x384xf32>
    %c0_151 = arith.constant 0 : index
    %c0_152 = arith.constant 0 : index
    %434 = vector.load %arg4[%c0_151, %c0_152] : memref<1x384xf32, #tpu.memory_space<vmem>>, vector<1x384xf32>
    %435 = vector.broadcast %434 : vector<1x384xf32> to vector<8x384xf32>
    %436 = arith.addf %433, %435 : vector<8x384xf32>
    %437 = vector.extract_strided_slice %431 {offsets = [0, 0], sizes = [8, 128], strides = [1, 1]} : vector<8x384xf32> to vector<8x128xf32>
    %438 = vector.extract_strided_slice %436 {offsets = [0, 0], sizes = [8, 128], strides = [1, 1]} : vector<8x384xf32> to vector<8x128xf32>
    %439 = arith.addf %437, %438 : vector<8x128xf32>
    %440 = arith.negf %439 : vector<8x128xf32>
    %441 = math.exp %440 : vector<8x128xf32>
    %cst_153 = arith.constant 1.000000e+00 : f32
    %442 = vector.broadcast %cst_153 : f32 to vector<8x128xf32>
    %443 = arith.addf %442, %441 : vector<8x128xf32>
    %444 = arith.divf %442, %443 : vector<8x128xf32>
    %445 = vector.extract_strided_slice %431 {offsets = [0, 128], sizes = [8, 128], strides = [1, 1]} : vector<8x384xf32> to vector<8x128xf32>
    %446 = vector.extract_strided_slice %436 {offsets = [0, 128], sizes = [8, 128], strides = [1, 1]} : vector<8x384xf32> to vector<8x128xf32>
    %447 = arith.addf %445, %446 : vector<8x128xf32>
    %448 = arith.negf %447 : vector<8x128xf32>
    %449 = math.exp %448 : vector<8x128xf32>
    %cst_154 = arith.constant 1.000000e+00 : f32
    %450 = vector.broadcast %cst_154 : f32 to vector<8x128xf32>
    %451 = arith.addf %450, %449 : vector<8x128xf32>
    %452 = arith.divf %450, %451 : vector<8x128xf32>
    %453 = vector.extract_strided_slice %431 {offsets = [0, 256], sizes = [8, 128], strides = [1, 1]} : vector<8x384xf32> to vector<8x128xf32>
    %454 = vector.extract_strided_slice %436 {offsets = [0, 256], sizes = [8, 128], strides = [1, 1]} : vector<8x384xf32> to vector<8x128xf32>
    %455 = arith.mulf %444, %454 : vector<8x128xf32>
    %456 = arith.addf %453, %455 : vector<8x128xf32>
    %457 = math.tanh %456 : vector<8x128xf32>
    %cst_155 = arith.constant 1.000000e+00 : f32
    %458 = vector.broadcast %cst_155 : f32 to vector<8x128xf32>
    %459 = arith.subf %458, %452 : vector<8x128xf32>
    %460 = arith.mulf %459, %457 : vector<8x128xf32>
    %461 = arith.mulf %452, %393 : vector<8x128xf32>
    %462 = arith.addf %460, %461 : vector<8x128xf32>
    %463 = tpu.concatenate %462, %423 in 1 : vector<8x128xf32>, vector<8x128xf32> -> vector<8x256xf32>
    %c0_156 = arith.constant 0 : index
    %c0_157 = arith.constant 0 : index
    %464 = vector.load %arg5[%c0_156, %c0_157] : memref<256x512xf32, #tpu.memory_space<vmem>>, vector<256x512xf32>
    %cst_158 = arith.constant dense<0.000000e+00> : vector<8x512xf32>
    %465 = tpu.matmul %463, %464, %cst_158 {dimension_numbers = #tpu.dot_dimension_numbers<[1], [0], [0], [1], [0, 0, 1, 1], [], []>} : vector<8x256xf32>, vector<256x512xf32>, vector<8x512xf32> -> vector<8x512xf32>
    %c0_159 = arith.constant 0 : index
    %c0_160 = arith.constant 0 : index
    %466 = vector.load %arg6[%c0_159, %c0_160] : memref<1x512xf32, #tpu.memory_space<vmem>>, vector<1x512xf32>
    %467 = vector.broadcast %466 : vector<1x512xf32> to vector<8x512xf32>
    %468 = arith.addf %465, %467 : vector<8x512xf32>
    %469 = vector.extract_strided_slice %468 {offsets = [0, 0], sizes = [8, 128], strides = [1, 1]} : vector<8x512xf32> to vector<8x128xf32>
    %470 = arith.negf %469 : vector<8x128xf32>
    %471 = math.exp %470 : vector<8x128xf32>
    %cst_161 = arith.constant 1.000000e+00 : f32
    %472 = vector.broadcast %cst_161 : f32 to vector<8x128xf32>
    %473 = arith.addf %472, %471 : vector<8x128xf32>
    %474 = arith.divf %472, %473 : vector<8x128xf32>
    %475 = vector.extract_strided_slice %468 {offsets = [0, 128], sizes = [8, 128], strides = [1, 1]} : vector<8x512xf32> to vector<8x128xf32>
    %476 = arith.negf %475 : vector<8x128xf32>
    %477 = math.exp %476 : vector<8x128xf32>
    %cst_162 = arith.constant 1.000000e+00 : f32
    %478 = vector.broadcast %cst_162 : f32 to vector<8x128xf32>
    %479 = arith.addf %478, %477 : vector<8x128xf32>
    %480 = arith.divf %478, %479 : vector<8x128xf32>
    %481 = vector.extract_strided_slice %468 {offsets = [0, 384], sizes = [8, 128], strides = [1, 1]} : vector<8x512xf32> to vector<8x128xf32>
    %482 = vector.extract_strided_slice %468 {offsets = [0, 256], sizes = [8, 128], strides = [1, 1]} : vector<8x512xf32> to vector<8x128xf32>
    %cst_163 = arith.constant 1.000000e+00 : f32
    %483 = vector.broadcast %cst_163 : f32 to vector<8x128xf32>
    %484 = arith.subf %474, %483 : vector<8x128xf32>
    %485 = arith.mulf %484, %481 : vector<8x128xf32>
    %486 = arith.addf %482, %485 : vector<8x128xf32>
    %487 = math.tanh %486 : vector<8x128xf32>
    %cst_164 = arith.constant 1.000000e+00 : f32
    %488 = vector.broadcast %cst_164 : f32 to vector<8x128xf32>
    %489 = arith.subf %488, %480 : vector<8x128xf32>
    %490 = arith.mulf %489, %487 : vector<8x128xf32>
    %491 = arith.mulf %480, %423 : vector<8x128xf32>
    %492 = arith.addf %490, %491 : vector<8x128xf32>
    %c1_i32_165 = arith.constant 1 : i32
    %493 = arith.addi %c6_i32, %c1_i32_165 : i32
    %494 = arith.index_cast %493 : i32 to index
    %c0_166 = arith.constant 0 : index
    %c0_167 = arith.constant 0 : index
    %495 = vector.load %arg17[%494, %c0_166, %c0_167] : memref<9x8x128xf32, #tpu.memory_space<vmem>>, vector<1x8x128xf32>
    %496 = vector.shape_cast %495 : vector<1x8x128xf32> to vector<8x128xf32>
    %497 = vector.shape_cast %492 : vector<8x128xf32> to vector<1x8x128xf32>
    tpu.vector_store %arg17[%494, %c0_166, %c0_167], %497 {strides = array<i32>} : memref<9x8x128xf32, #tpu.memory_space<vmem>>, vector<1x8x128xf32>,
    %c7_i32 = arith.constant 7 : i32
    %498 = arith.index_cast %c7_i32 : i32 to index
    %c0_168 = arith.constant 0 : index
    %c0_169 = arith.constant 0 : index
    %499 = vector.load %arg16[%498, %c0_168, %c0_169] : memref<8x8x384xf32, #tpu.memory_space<vmem>>, vector<1x8x384xf32>
    %500 = vector.shape_cast %499 : vector<1x8x384xf32> to vector<8x384xf32>
    %c0_170 = arith.constant 0 : index
    %c0_171 = arith.constant 0 : index
    %501 = vector.load %arg3[%c0_170, %c0_171] : memref<128x384xf32, #tpu.memory_space<vmem>>, vector<128x384xf32>
    %cst_172 = arith.constant dense<0.000000e+00> : vector<8x384xf32>
    %502 = tpu.matmul %462, %501, %cst_172 {dimension_numbers = #tpu.dot_dimension_numbers<[1], [0], [0], [1], [0, 0, 1, 1], [], []>} : vector<8x128xf32>, vector<128x384xf32>, vector<8x384xf32> -> vector<8x384xf32>
    %c0_173 = arith.constant 0 : index
    %c0_174 = arith.constant 0 : index
    %503 = vector.load %arg4[%c0_173, %c0_174] : memref<1x384xf32, #tpu.memory_space<vmem>>, vector<1x384xf32>
    %504 = vector.broadcast %503 : vector<1x384xf32> to vector<8x384xf32>
    %505 = arith.addf %502, %504 : vector<8x384xf32>
    %506 = vector.extract_strided_slice %500 {offsets = [0, 0], sizes = [8, 128], strides = [1, 1]} : vector<8x384xf32> to vector<8x128xf32>
    %507 = vector.extract_strided_slice %505 {offsets = [0, 0], sizes = [8, 128], strides = [1, 1]} : vector<8x384xf32> to vector<8x128xf32>
    %508 = arith.addf %506, %507 : vector<8x128xf32>
    %509 = arith.negf %508 : vector<8x128xf32>
    %510 = math.exp %509 : vector<8x128xf32>
    %cst_175 = arith.constant 1.000000e+00 : f32
    %511 = vector.broadcast %cst_175 : f32 to vector<8x128xf32>
    %512 = arith.addf %511, %510 : vector<8x128xf32>
    %513 = arith.divf %511, %512 : vector<8x128xf32>
    %514 = vector.extract_strided_slice %500 {offsets = [0, 128], sizes = [8, 128], strides = [1, 1]} : vector<8x384xf32> to vector<8x128xf32>
    %515 = vector.extract_strided_slice %505 {offsets = [0, 128], sizes = [8, 128], strides = [1, 1]} : vector<8x384xf32> to vector<8x128xf32>
    %516 = arith.addf %514, %515 : vector<8x128xf32>
    %517 = arith.negf %516 : vector<8x128xf32>
    %518 = math.exp %517 : vector<8x128xf32>
    %cst_176 = arith.constant 1.000000e+00 : f32
    %519 = vector.broadcast %cst_176 : f32 to vector<8x128xf32>
    %520 = arith.addf %519, %518 : vector<8x128xf32>
    %521 = arith.divf %519, %520 : vector<8x128xf32>
    %522 = vector.extract_strided_slice %500 {offsets = [0, 256], sizes = [8, 128], strides = [1, 1]} : vector<8x384xf32> to vector<8x128xf32>
    %523 = vector.extract_strided_slice %505 {offsets = [0, 256], sizes = [8, 128], strides = [1, 1]} : vector<8x384xf32> to vector<8x128xf32>
    %524 = arith.mulf %513, %523 : vector<8x128xf32>
    %525 = arith.addf %522, %524 : vector<8x128xf32>
    %526 = math.tanh %525 : vector<8x128xf32>
    %cst_177 = arith.constant 1.000000e+00 : f32
    %527 = vector.broadcast %cst_177 : f32 to vector<8x128xf32>
    %528 = arith.subf %527, %521 : vector<8x128xf32>
    %529 = arith.mulf %528, %526 : vector<8x128xf32>
    %530 = arith.mulf %521, %462 : vector<8x128xf32>
    %531 = arith.addf %529, %530 : vector<8x128xf32>
    %532 = tpu.concatenate %531, %492 in 1 : vector<8x128xf32>, vector<8x128xf32> -> vector<8x256xf32>
    %c0_178 = arith.constant 0 : index
    %c0_179 = arith.constant 0 : index
    %533 = vector.load %arg5[%c0_178, %c0_179] : memref<256x512xf32, #tpu.memory_space<vmem>>, vector<256x512xf32>
    %cst_180 = arith.constant dense<0.000000e+00> : vector<8x512xf32>
    %534 = tpu.matmul %532, %533, %cst_180 {dimension_numbers = #tpu.dot_dimension_numbers<[1], [0], [0], [1], [0, 0, 1, 1], [], []>} : vector<8x256xf32>, vector<256x512xf32>, vector<8x512xf32> -> vector<8x512xf32>
    %c0_181 = arith.constant 0 : index
    %c0_182 = arith.constant 0 : index
    %535 = vector.load %arg6[%c0_181, %c0_182] : memref<1x512xf32, #tpu.memory_space<vmem>>, vector<1x512xf32>
    %536 = vector.broadcast %535 : vector<1x512xf32> to vector<8x512xf32>
    %537 = arith.addf %534, %536 : vector<8x512xf32>
    %538 = vector.extract_strided_slice %537 {offsets = [0, 0], sizes = [8, 128], strides = [1, 1]} : vector<8x512xf32> to vector<8x128xf32>
    %539 = arith.negf %538 : vector<8x128xf32>
    %540 = math.exp %539 : vector<8x128xf32>
    %cst_183 = arith.constant 1.000000e+00 : f32
    %541 = vector.broadcast %cst_183 : f32 to vector<8x128xf32>
    %542 = arith.addf %541, %540 : vector<8x128xf32>
    %543 = arith.divf %541, %542 : vector<8x128xf32>
    %544 = vector.extract_strided_slice %537 {offsets = [0, 128], sizes = [8, 128], strides = [1, 1]} : vector<8x512xf32> to vector<8x128xf32>
    %545 = arith.negf %544 : vector<8x128xf32>
    %546 = math.exp %545 : vector<8x128xf32>
    %cst_184 = arith.constant 1.000000e+00 : f32
    %547 = vector.broadcast %cst_184 : f32 to vector<8x128xf32>
    %548 = arith.addf %547, %546 : vector<8x128xf32>
    %549 = arith.divf %547, %548 : vector<8x128xf32>
    %550 = vector.extract_strided_slice %537 {offsets = [0, 384], sizes = [8, 128], strides = [1, 1]} : vector<8x512xf32> to vector<8x128xf32>
    %551 = vector.extract_strided_slice %537 {offsets = [0, 256], sizes = [8, 128], strides = [1, 1]} : vector<8x512xf32> to vector<8x128xf32>
    %cst_185 = arith.constant 1.000000e+00 : f32
    %552 = vector.broadcast %cst_185 : f32 to vector<8x128xf32>
    %553 = arith.subf %543, %552 : vector<8x128xf32>
    %554 = arith.mulf %553, %550 : vector<8x128xf32>
    %555 = arith.addf %551, %554 : vector<8x128xf32>
    %556 = math.tanh %555 : vector<8x128xf32>
    %cst_186 = arith.constant 1.000000e+00 : f32
    %557 = vector.broadcast %cst_186 : f32 to vector<8x128xf32>
    %558 = arith.subf %557, %549 : vector<8x128xf32>
    %559 = arith.mulf %558, %556 : vector<8x128xf32>
    %560 = arith.mulf %549, %492 : vector<8x128xf32>
    %561 = arith.addf %559, %560 : vector<8x128xf32>
    %c1_i32_187 = arith.constant 1 : i32
    %562 = arith.addi %c7_i32, %c1_i32_187 : i32
    %563 = arith.index_cast %562 : i32 to index
    %c0_188 = arith.constant 0 : index
    %c0_189 = arith.constant 0 : index
    %564 = vector.load %arg17[%563, %c0_188, %c0_189] : memref<9x8x128xf32, #tpu.memory_space<vmem>>, vector<1x8x128xf32>
    %565 = vector.shape_cast %564 : vector<1x8x128xf32> to vector<8x128xf32>
    %566 = vector.shape_cast %561 : vector<8x128xf32> to vector<1x8x128xf32>
    tpu.vector_store %arg17[%563, %c0_188, %c0_189], %566 {strides = array<i32>} : memref<9x8x128xf32, #tpu.memory_space<vmem>>, vector<1x8x128xf32>,
    %c8_i32 = arith.constant 8 : i32
    %c0_190 = arith.constant 0 : index
    %c0_191 = arith.constant 0 : index
    %c0_192 = arith.constant 0 : index
    %567 = vector.load %arg17[%c0_190, %c0_191, %c0_192] : memref<9x8x128xf32, #tpu.memory_space<vmem>>, vector<9x8x128xf32>
    %568 = vector.shape_cast %567 : vector<9x8x128xf32> to vector<72x128xf32>
    %c0_193 = arith.constant 0 : index
    %c0_194 = arith.constant 0 : index
    %569 = vector.load %arg7[%c0_193, %c0_194] : memref<128x128xf32, #tpu.memory_space<vmem>>, vector<128x128xf32>
    %cst_195 = arith.constant dense<0.000000e+00> : vector<72x128xf32>
    %570 = tpu.matmul %568, %569, %cst_195 {dimension_numbers = #tpu.dot_dimension_numbers<[1], [0], [0], [1], [0, 0, 1, 1], [], []>} : vector<72x128xf32>, vector<128x128xf32>, vector<72x128xf32> -> vector<72x128xf32>
    %c0_196 = arith.constant 0 : index
    %c0_197 = arith.constant 0 : index
    %571 = vector.load %arg8[%c0_196, %c0_197] : memref<1x128xf32, #tpu.memory_space<vmem>>, vector<1x128xf32>
    %572 = vector.broadcast %571 : vector<1x128xf32> to vector<72x128xf32>
    %573 = arith.addf %570, %572 : vector<72x128xf32>
    %574 = vector.extract_strided_slice %573 {offsets = [8, 0], sizes = [64, 128], strides = [1, 1]} : vector<72x128xf32> to vector<64x128xf32>
    %575 = vector.shape_cast %574 : vector<64x128xf32> to vector<8x8x128xf32>
    %c0_198 = arith.constant 0 : index
    %c0_199 = arith.constant 0 : index
    %c0_200 = arith.constant 0 : index
    %576 = vector.load %arg14[%c0_198, %c0_199, %c0_200] : memref<8x8x128xf32, #tpu.memory_space<vmem>>, vector<8x8x128xf32>
    tpu.vector_store %arg14[%c0_198, %c0_199, %c0_200], %575 {strides = array<i32>} : memref<8x8x128xf32, #tpu.memory_space<vmem>>, vector<8x8x128xf32>,
    %577 = tpu.iota {dimensions = array<i32: 0>} : vector<64x128xi32>
    %c8_i32_201 = arith.constant 8 : i32
    %578 = vector.broadcast %c8_i32_201 : i32 to vector<64x128xi32>
    %579 = arith.cmpi slt, %577, %578 : vector<64x128xi32>
    %580 = vector.extract_strided_slice %573 {offsets = [0, 0], sizes = [64, 128], strides = [1, 1]} : vector<72x128xf32> to vector<64x128xf32>
    %cst_202 = arith.constant 0.000000e+00 : f32
    %581 = vector.broadcast %cst_202 : f32 to vector<64x128xf32>
    %582 = arith.select %579, %581, %580 : vector<64x128xi1>, vector<64x128xf32>
    %c0_203 = arith.constant 0 : index
    %c0_204 = arith.constant 0 : index
    %583 = vector.load %arg9[%c0_203, %c0_204] : memref<128x128xf32, #tpu.memory_space<vmem>>, vector<128x128xf32>
    %cst_205 = arith.constant dense<0.000000e+00> : vector<64x128xf32>
    %584 = tpu.matmul %582, %583, %cst_205 {dimension_numbers = #tpu.dot_dimension_numbers<[1], [0], [0], [1], [0, 0, 1, 1], [], []>} : vector<64x128xf32>, vector<128x128xf32>, vector<64x128xf32> -> vector<64x128xf32>
    %c0_206 = arith.constant 0 : index
    %c0_207 = arith.constant 0 : index
    %585 = vector.load %arg10[%c0_206, %c0_207] : memref<16x128xf32, #tpu.memory_space<vmem>>, vector<16x128xf32>
    %cst_208 = arith.constant dense<0.000000e+00> : vector<64x128xf32>
    %586 = tpu.matmul %2, %585, %cst_208 {dimension_numbers = #tpu.dot_dimension_numbers<[1], [0], [0], [1], [0, 0, 1, 1], [], []>} : vector<64x16xf32>, vector<16x128xf32>, vector<64x128xf32> -> vector<64x128xf32>
    %587 = arith.addf %584, %586 : vector<64x128xf32>
    %c0_209 = arith.constant 0 : index
    %c0_210 = arith.constant 0 : index
    %588 = vector.load %arg11[%c0_209, %c0_210] : memref<1x128xf32, #tpu.memory_space<vmem>>, vector<1x128xf32>
    %589 = vector.broadcast %588 : vector<1x128xf32> to vector<64x128xf32>
    %590 = arith.addf %587, %589 : vector<64x128xf32>
    %cst_211 = arith.constant 0.000000e+00 : f32
    %591 = vector.broadcast %cst_211 : f32 to vector<64x128xf32>
    %592 = arith.maximumf %590, %591 : vector<64x128xf32>
    %c0_212 = arith.constant 0 : index
    %c0_213 = arith.constant 0 : index
    %593 = vector.load %arg12[%c0_212, %c0_213] : memref<128x128xf32, #tpu.memory_space<vmem>>, vector<128x128xf32>
    %cst_214 = arith.constant dense<0.000000e+00> : vector<64x128xf32>
    %594 = tpu.matmul %592, %593, %cst_214 {dimension_numbers = #tpu.dot_dimension_numbers<[1], [0], [0], [1], [0, 0, 1, 1], [], []>} : vector<64x128xf32>, vector<128x128xf32>, vector<64x128xf32> -> vector<64x128xf32>
    %c0_215 = arith.constant 0 : index
    %c0_216 = arith.constant 0 : index
    %595 = vector.load %arg13[%c0_215, %c0_216] : memref<1x128xf32, #tpu.memory_space<vmem>>, vector<1x128xf32>
    %596 = vector.broadcast %595 : vector<1x128xf32> to vector<64x128xf32>
    %597 = arith.addf %594, %596 : vector<64x128xf32>
    %598 = vector.shape_cast %597 : vector<64x128xf32> to vector<8x8x128xf32>
    %c0_217 = arith.constant 0 : index
    %c0_218 = arith.constant 0 : index
    %c0_219 = arith.constant 0 : index
    %599 = vector.load %arg15[%c0_217, %c0_218, %c0_219] : memref<8x8x128xf32, #tpu.memory_space<vmem>>, vector<8x8x128xf32>
    tpu.vector_store %arg15[%c0_217, %c0_218, %c0_219], %598 {strides = array<i32>} : memref<8x8x128xf32, #tpu.memory_space<vmem>>, vector<8x8x128xf32>,
    return
  }
}

</mosaic_0001>

<llo_original>
// kernel: euler_combo_forward.1
$region0: #{euler_combo_forward.1}
  #allocation0 [shape = 'u32[]', space=smem, size = 0x4, offset = 0x4, fixed_abs, tag = 'smem constant byte address 0x4 - core index']
  #allocation1 [shape = 'u32[144,128]{1,0:T(1,128)}', space=vmem, size = 0x12000, scoped, tag = 'internal scratch']
  #allocation2 [shape = 'f32[8,8,384]{2,1,0:T(8,128)}', space=vmem, size = 0x18000, scoped, tag = 'scratch operand']
  #allocation3 [shape = 'f32[9,8,128]{2,1,0:T(8,128)}', space=vmem, size = 0x9000, scoped, tag = 'scratch operand']
  %s0 = inlined_call_operand.vmem [shape: f32[8,8,16], index: 0, kind: input, shape index: {}]
  %s1 = inlined_call_operand.vmem [shape: f32[16,384], index: 1, kind: input, shape index: {}]
  %s2 = inlined_call_operand.vmem [shape: f32[1,384], index: 2, kind: input, shape index: {}]
  %s3 = inlined_call_operand.vmem [shape: f32[128,384], index: 3, kind: input, shape index: {}]
  %s4 = inlined_call_operand.vmem [shape: f32[1,384], index: 4, kind: input, shape index: {}]
  %s5 = inlined_call_operand.vmem [shape: f32[256,512], index: 5, kind: input, shape index: {}]
  %s6 = inlined_call_operand.vmem [shape: f32[1,512], index: 6, kind: input, shape index: {}]
  %s7 = inlined_call_operand.vmem [shape: f32[128,128], index: 7, kind: input, shape index: {}]
  %s8 = inlined_call_operand.vmem [shape: f32[1,128], index: 8, kind: input, shape index: {}]
  %s9 = inlined_call_operand.vmem [shape: f32[128,128], index: 9, kind: input, shape index: {}]
  %s10 = inlined_call_operand.vmem [shape: f32[16,128], index: 10, kind: input, shape index: {}]
  %s11 = inlined_call_operand.vmem [shape: f32[1,128], index: 11, kind: input, shape index: {}]
  %s12 = inlined_call_operand.vmem [shape: f32[128,128], index: 12, kind: input, shape index: {}]
  %s13 = inlined_call_operand.vmem [shape: f32[1,128], index: 13, kind: input, shape index: {}]
  %s14 = inlined_call_operand.vmem [shape: f32[8,8,128], index: 14, kind: output, shape index: {0}]
  %s15 = inlined_call_operand.vmem [shape: f32[8,8,128], index: 15, kind: output, shape index: {1}]
  %16 = xla_tuple %s14, %s15
  %s17 = sld [smem:[#allocation0]]
  $region74: #{euler_combo_forward.1} parent=0
    _
  %s19 = ssub.s32 1, %s17
  %s20 = scalar_select 0, %s19, %s17
  // Predicated region
  $region2: #{euler_combo_forward.1} parent=0 // pred_check
    _
  $region3: #{euler_combo_forward.1} parent=0 // pred_check_branch
    %22 = sbr.rel (0) target = $region5
  $region4: #{euler_combo_forward.1} parent=0 // pred_region
    _
  $region5: #{euler_combo_forward.1} parent=0 // pred_fallthru
    _
  // Predicated region
  $region6: #{euler_combo_forward.1} parent=0 // pred_check
    _
  $region7: #{euler_combo_forward.1} parent=0 // pred_check_branch
    %24 = sbr.rel (0) target = $region9
  $region8: #{euler_combo_forward.1} parent=0 // pred_region
    _
  $region9: #{euler_combo_forward.1} parent=0 // pred_fallthru
    _
  // Predicated region
  $region10: #{euler_combo_forward.1} parent=0 // pred_check
    _
  $region11: #{euler_combo_forward.1} parent=0 // pred_check_branch
    %26 = sbr.rel (0) target = $region13
  $region12: #{euler_combo_forward.1} parent=0 // pred_region
    _
  $region13: #{euler_combo_forward.1} parent=0 // pred_fallthru
    _
  // Predicated region
  $region14: #{euler_combo_forward.1} parent=0 // pred_check
    _
  $region15: #{euler_combo_forward.1} parent=0 // pred_check_branch
    %28 = sbr.rel (0) target = $region17
  $region16: #{euler_combo_forward.1} parent=0 // pred_region
    _
  $region17: #{euler_combo_forward.1} parent=0 // pred_fallthru
    _
  // Predicated region
  $region18: #{euler_combo_forward.1} parent=0 // pred_check
    _
  $region19: #{euler_combo_forward.1} parent=0 // pred_check_branch
    %30 = sbr.rel (0) target = $region21
  $region20: #{euler_combo_forward.1} parent=0 // pred_region
    _
  $region21: #{euler_combo_forward.1} parent=0 // pred_fallthru
    _
  // Predicated region
  $region22: #{euler_combo_forward.1} parent=0 // pred_check
    _
  $region23: #{euler_combo_forward.1} parent=0 // pred_check_branch
    %32 = sbr.rel (0) target = $region25
  $region24: #{euler_combo_forward.1} parent=0 // pred_region
    _
  $region25: #{euler_combo_forward.1} parent=0 // pred_fallthru
    _
  // Predicated region
  $region26: #{euler_combo_forward.1} parent=0 // pred_check
    _
  $region27: #{euler_combo_forward.1} parent=0 // pred_check_branch
    %34 = sbr.rel (0) target = $region29
  $region28: #{euler_combo_forward.1} parent=0 // pred_region
    _
  $region29: #{euler_combo_forward.1} parent=0 // pred_fallthru
    _
  // Predicated region
  $region30: #{euler_combo_forward.1} parent=0 // pred_check
    _
  $region31: #{euler_combo_forward.1} parent=0 // pred_check_branch
    %36 = sbr.rel (0) target = $region33
  $region32: #{euler_combo_forward.1} parent=0 // pred_region
    _
  $region33: #{euler_combo_forward.1} parent=0 // pred_fallthru
    _
  // Predicated region
  $region34: #{euler_combo_forward.1} parent=0 // pred_check
    _
  $region35: #{euler_combo_forward.1} parent=0 // pred_check_branch
    %38 = sbr.rel (0) target = $region37
  $region36: #{euler_combo_forward.1} parent=0 // pred_region
    _
  $region37: #{euler_combo_forward.1} parent=0 // pred_fallthru
    _
  // Predicated region
  $region38: #{euler_combo_forward.1} parent=0 // pred_check
    _
  $region39: #{euler_combo_forward.1} parent=0 // pred_check_branch
    %40 = sbr.rel (0) target = $region41
  $region40: #{euler_combo_forward.1} parent=0 // pred_region
    _
  $region41: #{euler_combo_forward.1} parent=0 // pred_fallthru
    _
  // Predicated region
  $region42: #{euler_combo_forward.1} parent=0 // pred_check
    _
  $region43: #{euler_combo_forward.1} parent=0 // pred_check_branch
    %42 = sbr.rel (0) target = $region45
  $region44: #{euler_combo_forward.1} parent=0 // pred_region
    _
  $region45: #{euler_combo_forward.1} parent=0 // pred_fallthru
    _
  // Predicated region
  $region46: #{euler_combo_forward.1} parent=0 // pred_check
    _
  $region47: #{euler_combo_forward.1} parent=0 // pred_check_branch
    %44 = sbr.rel (0) target = $region49
  $region48: #{euler_combo_forward.1} parent=0 // pred_region
    _
  $region49: #{euler_combo_forward.1} parent=0 // pred_fallthru
    _
  // Predicated region
  $region50: #{euler_combo_forward.1} parent=0 // pred_check
    _
  $region51: #{euler_combo_forward.1} parent=0 // pred_check_branch
    %46 = sbr.rel (0) target = $region53
  $region52: #{euler_combo_forward.1} parent=0 // pred_region
    _
  $region53: #{euler_combo_forward.1} parent=0 // pred_fallthru
    _
  // Predicated region
  $region54: #{euler_combo_forward.1} parent=0 // pred_check
    _
  $region55: #{euler_combo_forward.1} parent=0 // pred_check_branch
    %48 = sbr.rel (0) target = $region57
  $region56: #{euler_combo_forward.1} parent=0 // pred_region
    _
  $region57: #{euler_combo_forward.1} parent=0 // pred_fallthru
    _
  %v49 = vld [vmem:[%s0] sm:$0xff]
  %v50 = vld [vmem:[%s0 + $0x8] sm:$0xff]
  %v51 = vld [vmem:[%s0 + $0x10] sm:$0xff]
  %v52 = vld [vmem:[%s0 + $0x18] sm:$0xff]
  %v53 = vld [vmem:[%s0 + $0x20] sm:$0xff]
  %v54 = vld [vmem:[%s0 + $0x28] sm:$0xff]
  %v55 = vld [vmem:[%s0 + $0x30] sm:$0xff]
  %v56 = vld [vmem:[%s0 + $0x38] sm:$0xff]
  %v57 = vtanh.pop %v49
  %v58 = vtanh.pop %v50
  %v59 = vtanh.pop %v51
  %v60 = vtanh.pop %v52
  %v61 = vtanh.pop %v53
  %v62 = vtanh.pop %v54
  %v63 = vtanh.pop %v55
  %v64 = vtanh.pop %v56
  %v65 = vld [vmem:[%s1] sm:$0xff]
  %v66 = vld [vmem:[%s1 + $0x8] sm:$0xff]
  %v67 = vld [vmem:[%s1 + $0x10] sm:$0xff]
  %v68 = vld [vmem:[%s1 + $0x18] sm:$0xff]
  %v69 = vld [vmem:[%s1 + $0x20] sm:$0xff]
  %v70 = vld [vmem:[%s1 + $0x28] sm:$0xff]
  %v71 = vld [vmem:[%s2] sm:$0x7]
  %v73 = vlaneseq
  %v74 = vshrl.u32 %v73, 7
  %v75 = vsub.s32 0, %v74
  %v76 = vrot.slane %v71, %v75
  %v77 = vlaneseq
  %v78 = vshrl.u32 %v77, 7
  %v79 = vsub.s32 1, %v78
  %v80 = vrot.slane %v71, %v79
  %v81 = vlaneseq
  %v82 = vshrl.u32 %v81, 7
  %v83 = vsub.s32 2, %v82
  %v84 = vrot.slane %v71, %v83
  %vm88 = vcmask 130048
  %v90 = vsel %vm88, %v57, 0
  %v93 = vsel %vm88, %v58, 0
  %v96 = vsel %vm88, %v59, 0
  %v99 = vsel %vm88, %v60, 0
  %v102 = vsel %vm88, %v61, 0
  %v105 = vsel %vm88, %v62, 0
  %v108 = vsel %vm88, %v63, 0
  %v111 = vsel %vm88, %v64, 0
  %113 = vmatprep.subr.mxu0 0.0
  %114 = vmatpush1.msra.mxu0 0.0
  %115 = vmatprep.subr.mxu0 0.0
  %116 = vmatpush1.msra.mxu0 0.0
  %117 = vmatprep.subr.mxu0 0.0
  %118 = vmatpush1.msra.mxu0 0.0
  %119 = vmatprep.subr.mxu0 0.0
  %120 = vmatpush1.msra.mxu0 0.0
  %121 = vmatprep.subr.mxu0 0.0
  %122 = vmatpush1.msra.mxu0 0.0
  %123 = vmatprep.subr.mxu0 0.0
  %124 = vmatpush1.msra.mxu0 0.0
  %125 = vmatprep.subr.mxu0 0.0
  %126 = vmatpush1.msra.mxu0 0.0
  %127 = vmatprep.subr.mxu0 0.0
  %128 = vmatpush1.msra.mxu0 0.0
  %129 = vmatprep.subr.mxu0 0.0
  %130 = vmatpush1.msra.mxu0 0.0
  %131 = vmatprep.subr.mxu0 0.0
  %132 = vmatpush1.msra.mxu0 0.0
  %133 = vmatprep.subr.mxu0 0.0
  %134 = vmatpush1.msra.mxu0 0.0
  %135 = vmatprep.subr.mxu0 0.0
  %136 = vmatpush1.msra.mxu0 0.0
  %137 = vmatprep.subr.mxu0 0.0
  %138 = vmatpush1.msra.mxu0 0.0
  %139 = vmatprep.subr.mxu0 0.0
  %140 = vmatpush1.msra.mxu0 0.0
  %141 = vmatprep.subr.mxu0 %v69
  %142 = vmatpush1.msra.mxu0 %v68
  %143 = vmatprep.subr.mxu0 %v66
  %144 = vmatpush1.msra.mxu0 %v65
  %145 = vmatprep.subr.mxu0 0.0
  %146 = vmatpush2.msra.mxu0 0.0
  %147 = vmatprep.subr.mxu0 0.0
  %148 = vmatpush2.msra.mxu0 0.0
  %149 = vmatprep.subr.mxu0 0.0
  %150 = vmatpush2.msra.mxu0 0.0
  %151 = vmatprep.subr.mxu0 0.0
  %152 = vmatpush2.msra.mxu0 0.0
  %153 = vmatprep.subr.mxu0 0.0
  %154 = vmatpush2.msra.mxu0 0.0
  %155 = vmatprep.subr.mxu0 0.0
  %156 = vmatpush2.msra.mxu0 0.0
  %157 = vmatprep.subr.mxu0 0.0
  %158 = vmatpush2.msra.mxu0 0.0
  %159 = vmatprep.subr.mxu0 0.0
  %160 = vmatpush2.msra.mxu0 0.0
  %161 = vmatprep.subr.mxu0 0.0
  %162 = vmatpush2.msra.mxu0 0.0
  %163 = vmatprep.subr.mxu0 0.0
  %164 = vmatpush2.msra.mxu0 0.0
  %165 = vmatprep.subr.mxu0 0.0
  %166 = vmatpush2.msra.mxu0 0.0
  %167 = vmatprep.subr.mxu0 0.0
  %168 = vmatpush2.msra.mxu0 0.0
  %169 = vmatprep.subr.mxu0 0.0
  %170 = vmatpush2.msra.mxu0 0.0
  %171 = vmatprep.subr.mxu0 0.0
  %172 = vmatpush2.msra.mxu0 0.0
  %173 = vmatprep.subr.mxu0 0.0
  %174 = vmatpush2.msra.mxu0 0.0
  %175 = vmatprep.subr.mxu0 0.0
  %176 = vmatpush2.msra.mxu0 0.0
  %177 = vmatprep.mubr.f32.mxu0 0.0
  %178 = vmatmul.mubr.f32.gmra.mxu0 %v90
  %v179 = vpop.f32.mrf.mxu0
  %v180 = vadd.f32 %v76, %v179
  %v181 = vpop.f32.mrf.mxu0
  %v182 = vadd.f32 %v80, %v181
  %183 = vmatprep.mubr.f32.mxu0 0.0
  %184 = vmatmul.mubr.f32.gmra.mxu0 %v93
  %v185 = vpop.f32.mrf.mxu0
  %v186 = vadd.f32 %v76, %v185
  %v187 = vpop.f32.mrf.mxu0
  %v188 = vadd.f32 %v80, %v187
  %189 = vmatprep.mubr.f32.mxu0 0.0
  %190 = vmatmul.mubr.f32.gmra.mxu0 %v96
  %v191 = vpop.f32.mrf.mxu0
  %v192 = vadd.f32 %v76, %v191
  %v193 = vpop.f32.mrf.mxu0
  %v194 = vadd.f32 %v80, %v193
  %195 = vmatprep.mubr.f32.mxu0 0.0
  %196 = vmatmul.mubr.f32.gmra.mxu0 %v99
  %v197 = vpop.f32.mrf.mxu0
  %v198 = vadd.f32 %v76, %v197
  %v199 = vpop.f32.mrf.mxu0
  %v200 = vadd.f32 %v80, %v199
  %201 = vmatprep.mubr.f32.mxu0 0.0
  %202 = vmatmul.mubr.f32.gmra.mxu0 %v102
  %v203 = vpop.f32.mrf.mxu0
  %v204 = vadd.f32 %v76, %v203
  %v205 = vpop.f32.mrf.mxu0
  %v206 = vadd.f32 %v80, %v205
  %207 = vmatprep.mubr.f32.mxu0 0.0
  %208 = vmatmul.mubr.f32.gmra.mxu0 %v105
  %v209 = vpop.f32.mrf.mxu0
  %v210 = vadd.f32 %v76, %v209
  %v211 = vpop.f32.mrf.mxu0
  %v212 = vadd.f32 %v80, %v211
  %213 = vmatprep.mubr.f32.mxu0 0.0
  %214 = vmatmul.mubr.f32.gmra.mxu0 %v108
  %v215 = vpop.f32.mrf.mxu0
  %v216 = vadd.f32 %v76, %v215
  %v217 = vpop.f32.mrf.mxu0
  %v218 = vadd.f32 %v80, %v217
  %219 = vmatprep.mubr.f32.mxu0 0.0
  %220 = vmatmul.mubr.f32.gmra.mxu0 %v111
  %v221 = vpop.f32.mrf.mxu0
  %v222 = vadd.f32 %v76, %v221
  %v223 = vpop.f32.mrf.mxu0
  %v224 = vadd.f32 %v80, %v223
  %225 = vdwg.mxu0
  %226 = vmatprep.subr.mxu0 0.0
  %227 = vmatpush1.msra.mxu0 0.0
  %228 = vmatprep.subr.mxu0 0.0
  %229 = vmatpush1.msra.mxu0 0.0
  %230 = vmatprep.subr.mxu0 0.0
  %231 = vmatpush1.msra.mxu0 0.0
  %232 = vmatprep.subr.mxu0 0.0
  %233 = vmatpush1.msra.mxu0 0.0
  %234 = vmatprep.subr.mxu0 0.0
  %235 = vmatpush1.msra.mxu0 0.0
  %236 = vmatprep.subr.mxu0 0.0
  %237 = vmatpush1.msra.mxu0 0.0
  %238 = vmatprep.subr.mxu0 0.0
  %239 = vmatpush1.msra.mxu0 0.0
  %240 = vmatprep.subr.mxu0 0.0
  %241 = vmatpush1.msra.mxu0 0.0
  %242 = vmatprep.subr.mxu0 0.0
  %243 = vmatpush1.msra.mxu0 0.0
  %244 = vmatprep.subr.mxu0 0.0
  %245 = vmatpush1.msra.mxu0 0.0
  %246 = vmatprep.subr.mxu0 0.0
  %247 = vmatpush1.msra.mxu0 0.0
  %248 = vmatprep.subr.mxu0 0.0
  %249 = vmatpush1.msra.mxu0 0.0
  %250 = vmatprep.subr.mxu0 0.0
  %251 = vmatpush1.msra.mxu0 0.0
  %252 = vmatprep.subr.mxu0 0.0
  %253 = vmatpush1.msra.mxu0 0.0
  %254 = vmatprep.subr.mxu0 0.0
  %255 = vmatpush1.msra.mxu0 %v70
  %256 = vmatprep.subr.mxu0 0.0
  %257 = vmatpush1.msra.mxu0 %v67
  %258 = vmatprep.subr.mxu0 0.0
  %259 = vmatpush2.msra.mxu0 0.0
  %260 = vmatprep.subr.mxu0 0.0
  %261 = vmatpush2.msra.mxu0 0.0
  %262 = vmatprep.subr.mxu0 0.0
  %263 = vmatpush2.msra.mxu0 0.0
  %264 = vmatprep.subr.mxu0 0.0
  %265 = vmatpush2.msra.mxu0 0.0
  %266 = vmatprep.subr.mxu0 0.0
  %267 = vmatpush2.msra.mxu0 0.0
  %268 = vmatprep.subr.mxu0 0.0
  %269 = vmatpush2.msra.mxu0 0.0
  %270 = vmatprep.subr.mxu0 0.0
  %271 = vmatpush2.msra.mxu0 0.0
  %272 = vmatprep.subr.mxu0 0.0
  %273 = vmatpush2.msra.mxu0 0.0
  %274 = vmatprep.subr.mxu0 0.0
  %275 = vmatpush2.msra.mxu0 0.0
  %276 = vmatprep.subr.mxu0 0.0
  %277 = vmatpush2.msra.mxu0 0.0
  %278 = vmatprep.subr.mxu0 0.0
  %279 = vmatpush2.msra.mxu0 0.0
  %280 = vmatprep.subr.mxu0 0.0
  %281 = vmatpush2.msra.mxu0 0.0
  %282 = vmatprep.subr.mxu0 0.0
  %283 = vmatpush2.msra.mxu0 0.0
  %284 = vmatprep.subr.mxu0 0.0
  %285 = vmatpush2.msra.mxu0 0.0
  %286 = vmatprep.subr.mxu0 0.0
  %287 = vmatpush2.msra.mxu0 0.0
  %288 = vmatprep.subr.mxu0 0.0
  %289 = vmatpush2.msra.mxu0 0.0
  %290 = vmatprep.mubr.f32.mxu0 0.0
  %291 = vmatmul.mubr.f32.gmra.mxu0 %v90
  %v292 = vpop.f32.mrf.mxu0
  %v293 = vadd.f32 %v84, %v292
  %v294 = vpop.f32.mrf.mxu0
  %295 = vmatprep.mubr.f32.mxu0 0.0
  %296 = vmatmul.mubr.f32.gmra.mxu0 %v93
  %v297 = vpop.f32.mrf.mxu0
  %v298 = vadd.f32 %v84, %v297
  %v299 = vpop.f32.mrf.mxu0
  %300 = vmatprep.mubr.f32.mxu0 0.0
  %301 = vmatmul.mubr.f32.gmra.mxu0 %v96
  %v302 = vpop.f32.mrf.mxu0
  %v303 = vadd.f32 %v84, %v302
  %v304 = vpop.f32.mrf.mxu0
  %305 = vmatprep.mubr.f32.mxu0 0.0
  %306 = vmatmul.mubr.f32.gmra.mxu0 %v99
  %v307 = vpop.f32.mrf.mxu0
  %v308 = vadd.f32 %v84, %v307
  %v309 = vpop.f32.mrf.mxu0
  %310 = vmatprep.mubr.f32.mxu0 0.0
  %311 = vmatmul.mubr.f32.gmra.mxu0 %v102
  %v312 = vpop.f32.mrf.mxu0
  %v313 = vadd.f32 %v84, %v312
  %v314 = vpop.f32.mrf.mxu0
  %315 = vmatprep.mubr.f32.mxu0 0.0
  %316 = vmatmul.mubr.f32.gmra.mxu0 %v105
  %v317 = vpop.f32.mrf.mxu0
  %v318 = vadd.f32 %v84, %v317
  %v319 = vpop.f32.mrf.mxu0
  %320 = vmatprep.mubr.f32.mxu0 0.0
  %321 = vmatmul.mubr.f32.gmra.mxu0 %v108
  %v322 = vpop.f32.mrf.mxu0
  %v323 = vadd.f32 %v84, %v322
  %v324 = vpop.f32.mrf.mxu0
  %325 = vmatprep.mubr.f32.mxu0 0.0
  %326 = vmatmul.mubr.f32.gmra.mxu0 %v111
  %v327 = vpop.f32.mrf.mxu0
  %v328 = vadd.f32 %v84, %v327
  %v329 = vpop.f32.mrf.mxu0
  %330 = vdwg.mxu0
  %331 = vst [vmem:[#allocation2] sm:$0xff] %v180
  %332 = vst [vmem:[#allocation2 + $0x8] sm:$0xff] %v182
  %333 = vst [vmem:[#allocation2 + $0x10] sm:$0xff] %v293
  %334 = vst [vmem:[#allocation2 + $0x18] sm:$0xff] %v186
  %335 = vst [vmem:[#allocation2 + $0x20] sm:$0xff] %v188
  %336 = vst [vmem:[#allocation2 + $0x28] sm:$0xff] %v298
  %337 = vst [vmem:[#allocation2 + $0x30] sm:$0xff] %v192
  %338 = vst [vmem:[#allocation2 + $0x38] sm:$0xff] %v194
  %339 = vst [vmem:[#allocation2 + $0x40] sm:$0xff] %v303
  %340 = vst [vmem:[#allocation2 + $0x48] sm:$0xff] %v198
  %341 = vst [vmem:[#allocation2 + $0x50] sm:$0xff] %v200
  %342 = vst [vmem:[#allocation2 + $0x58] sm:$0xff] %v308
  %343 = vst [vmem:[#allocation2 + $0x60] sm:$0xff] %v204
  %344 = vst [vmem:[#allocation2 + $0x68] sm:$0xff] %v206
  %345 = vst [vmem:[#allocation2 + $0x70] sm:$0xff] %v313
  %346 = vst [vmem:[#allocation2 + $0x78] sm:$0xff] %v210
  %347 = vst [vmem:[#allocation2 + $0x80] sm:$0xff] %v212
  %348 = vst [vmem:[#allocation2 + $0x88] sm:$0xff] %v318
  %349 = vst [vmem:[#allocation2 + $0x90] sm:$0xff] %v216
  %350 = vst [vmem:[#allocation2 + $0x98] sm:$0xff] %v218
  %351 = vst [vmem:[#allocation2 + $0xa0] sm:$0xff] %v323
  %352 = vst [vmem:[#allocation2 + $0xa8] sm:$0xff] %v222
  %353 = vst [vmem:[#allocation2 + $0xb0] sm:$0xff] %v224
  %354 = vst [vmem:[#allocation2 + $0xb8] sm:$0xff] %v328
  %355 = vst [vmem:[#allocation3] sm:$0xff] 0.0
  %v356 = vld [vmem:[#allocation2] sm:$0xff]
  %v357 = vld [vmem:[#allocation2 + $0x8] sm:$0xff]
  %v358 = vld [vmem:[#allocation2 + $0x10] sm:$0xff]
  %v359 = vld [vmem:[%s3] sm:$0xff]
  %v360 = vld [vmem:[%s3 + $0x8] sm:$0xff]
  %v361 = vld [vmem:[%s3 + $0x10] sm:$0xff]
  %v362 = vld [vmem:[%s3 + $0x18] sm:$0xff]
  %v363 = vld [vmem:[%s3 + $0x20] sm:$0xff]
  %v364 = vld [vmem:[%s3 + $0x28] sm:$0xff]
  %v365 = vld [vmem:[%s3 + $0x30] sm:$0xff]
  %v366 = vld [vmem:[%s3 + $0x38] sm:$0xff]
  %v367 = vld [vmem:[%s3 + $0x40] sm:$0xff]
  %v368 = vld [vmem:[%s3 + $0x48] sm:$0xff]
  %v369 = vld [vmem:[%s3 + $0x50] sm:$0xff]
  %v370 = vld [vmem:[%s3 + $0x58] sm:$0xff]
  %v371 = vld [vmem:[%s3 + $0x60] sm:$0xff]
  %v372 = vld [vmem:[%s3 + $0x68] sm:$0xff]
  %v373 = vld [vmem:[%s3 + $0x70] sm:$0xff]
  %v374 = vld [vmem:[%s3 + $0x78] sm:$0xff]
  %v375 = vld [vmem:[%s3 + $0x80] sm:$0xff]
  %v376 = vld [vmem:[%s3 + $0x88] sm:$0xff]
  %v377 = vld [vmem:[%s3 + $0x90] sm:$0xff]
  %v378 = vld [vmem:[%s3 + $0x98] sm:$0xff]
  %v379 = vld [vmem:[%s3 + $0xa0] sm:$0xff]
  %v380 = vld [vmem:[%s3 + $0xa8] sm:$0xff]
  %v381 = vld [vmem:[%s3 + $0xb0] sm:$0xff]
  %v382 = vld [vmem:[%s3 + $0xb8] sm:$0xff]
  %v383 = vld [vmem:[%s3 + $0xc0] sm:$0xff]
  %v384 = vld [vmem:[%s3 + $0xc8] sm:$0xff]
  %v385 = vld [vmem:[%s3 + $0xd0] sm:$0xff]
  %v386 = vld [vmem:[%s3 + $0xd8] sm:$0xff]
  %v387 = vld [vmem:[%s3 + $0xe0] sm:$0xff]
  %v388 = vld [vmem:[%s3 + $0xe8] sm:$0xff]
  %v389 = vld [vmem:[%s3 + $0xf0] sm:$0xff]
  %v390 = vld [vmem:[%s3 + $0xf8] sm:$0xff]
  %v391 = vld [vmem:[%s3 + $0x100] sm:$0xff]
  %v392 = vld [vmem:[%s3 + $0x108] sm:$0xff]
  %v393 = vld [vmem:[%s3 + $0x110] sm:$0xff]
  %v394 = vld [vmem:[%s3 + $0x118] sm:$0xff]
  %v395 = vld [vmem:[%s3 + $0x120] sm:$0xff]
  %v396 = vld [vmem:[%s3 + $0x128] sm:$0xff]
  %v397 = vld [vmem:[%s3 + $0x130] sm:$0xff]
  %v398 = vld [vmem:[%s3 + $0x138] sm:$0xff]
  %v399 = vld [vmem:[%s3 + $0x140] sm:$0xff]
  %v400 = vld [vmem:[%s3 + $0x148] sm:$0xff]
  %v401 = vld [vmem:[%s3 + $0x150] sm:$0xff]
  %v402 = vld [vmem:[%s3 + $0x158] sm:$0xff]
  %v403 = vld [vmem:[%s3 + $0x160] sm:$0xff]
  %v404 = vld [vmem:[%s3 + $0x168] sm:$0xff]
  %v405 = vld [vmem:[%s3 + $0x170] sm:$0xff]
  %v406 = vld [vmem:[%s3 + $0x178] sm:$0xff]
  %v407 = vld [vmem:[%s4] sm:$0x7]
  %v409 = vlaneseq
  %v410 = vshrl.u32 %v409, 7
  %v411 = vsub.s32 0, %v410
  %v412 = vrot.slane %v407, %v411
  %v413 = vlaneseq
  %v414 = vshrl.u32 %v413, 7
  %v415 = vsub.s32 1, %v414
  %v416 = vrot.slane %v407, %v415
  %v417 = vlaneseq
  %v418 = vshrl.u32 %v417, 7
  %v419 = vsub.s32 2, %v418
  %v420 = vrot.slane %v407, %v419
  %424 = vmatprep.subr.mxu0 %v405
  %425 = vmatpush1.msra.mxu0 %v404
  %426 = vmatprep.subr.mxu0 %v402
  %427 = vmatpush1.msra.mxu0 %v401
  %428 = vmatprep.subr.mxu0 %v399
  %429 = vmatpush1.msra.mxu0 %v398
  %430 = vmatprep.subr.mxu0 %v396
  %431 = vmatpush1.msra.mxu0 %v395
  %432 = vmatprep.subr.mxu0 %v393
  %433 = vmatpush1.msra.mxu0 %v392
  %434 = vmatprep.subr.mxu0 %v390
  %435 = vmatpush1.msra.mxu0 %v389
  %436 = vmatprep.subr.mxu0 %v387
  %437 = vmatpush1.msra.mxu0 %v386
  %438 = vmatprep.subr.mxu0 %v384
  %439 = vmatpush1.msra.mxu0 %v383
  %440 = vmatprep.subr.mxu0 %v381
  %441 = vmatpush1.msra.mxu0 %v380
  %442 = vmatprep.subr.mxu0 %v378
  %443 = vmatpush1.msra.mxu0 %v377
  %444 = vmatprep.subr.mxu0 %v375
  %445 = vmatpush1.msra.mxu0 %v374
  %446 = vmatprep.subr.mxu0 %v372
  %447 = vmatpush1.msra.mxu0 %v371
  %448 = vmatprep.subr.mxu0 %v369
  %449 = vmatpush1.msra.mxu0 %v368
  %450 = vmatprep.subr.mxu0 %v366
  %451 = vmatpush1.msra.mxu0 %v365
  %452 = vmatprep.subr.mxu0 %v363
  %453 = vmatpush1.msra.mxu0 %v362
  %454 = vmatprep.subr.mxu0 %v360
  %455 = vmatpush1.msra.mxu0 %v359
  %456 = vmatprep.subr.mxu0 0.0
  %457 = vmatpush2.msra.mxu0 0.0
  %458 = vmatprep.subr.mxu0 0.0
  %459 = vmatpush2.msra.mxu0 0.0
  %460 = vmatprep.subr.mxu0 0.0
  %461 = vmatpush2.msra.mxu0 0.0
  %462 = vmatprep.subr.mxu0 0.0
  %463 = vmatpush2.msra.mxu0 0.0
  %464 = vmatprep.subr.mxu0 0.0
  %465 = vmatpush2.msra.mxu0 0.0
  %466 = vmatprep.subr.mxu0 0.0
  %467 = vmatpush2.msra.mxu0 0.0
  %468 = vmatprep.subr.mxu0 0.0
  %469 = vmatpush2.msra.mxu0 0.0
  %470 = vmatprep.subr.mxu0 0.0
  %471 = vmatpush2.msra.mxu0 0.0
  %472 = vmatprep.subr.mxu0 0.0
  %473 = vmatpush2.msra.mxu0 0.0
  %474 = vmatprep.subr.mxu0 0.0
  %475 = vmatpush2.msra.mxu0 0.0
  %476 = vmatprep.subr.mxu0 0.0
  %477 = vmatpush2.msra.mxu0 0.0
  %478 = vmatprep.subr.mxu0 0.0
  %479 = vmatpush2.msra.mxu0 0.0
  %480 = vmatprep.subr.mxu0 0.0
  %481 = vmatpush2.msra.mxu0 0.0
  %482 = vmatprep.subr.mxu0 0.0
  %483 = vmatpush2.msra.mxu0 0.0
  %484 = vmatprep.subr.mxu0 0.0
  %485 = vmatpush2.msra.mxu0 0.0
  %486 = vmatprep.subr.mxu0 0.0
  %487 = vmatpush2.msra.mxu0 0.0
  %488 = vmatprep.mubr.f32.mxu0 0.0
  %489 = vmatmul.mubr.f32.gmra.mxu0 0.0
  %v490 = vpop.f32.mrf.mxu0
  %v491 = vadd.f32 %v412, %v490
  %v492 = vpop.f32.mrf.mxu0
  %v493 = vadd.f32 %v416, %v492
  %494 = vdwg.mxu0
  %495 = vmatprep.subr.mxu0 0.0
  %496 = vmatpush1.msra.mxu0 %v406
  %497 = vmatprep.subr.mxu0 0.0
  %498 = vmatpush1.msra.mxu0 %v403
  %499 = vmatprep.subr.mxu0 0.0
  %500 = vmatpush1.msra.mxu0 %v400
  %501 = vmatprep.subr.mxu0 0.0
  %502 = vmatpush1.msra.mxu0 %v397
  %503 = vmatprep.subr.mxu0 0.0
  %504 = vmatpush1.msra.mxu0 %v394
  %505 = vmatprep.subr.mxu0 0.0
  %506 = vmatpush1.msra.mxu0 %v391
  %507 = vmatprep.subr.mxu0 0.0
  %508 = vmatpush1.msra.mxu0 %v388
  %509 = vmatprep.subr.mxu0 0.0
  %510 = vmatpush1.msra.mxu0 %v385
  %511 = vmatprep.subr.mxu0 0.0
  %512 = vmatpush1.msra.mxu0 %v382
  %513 = vmatprep.subr.mxu0 0.0
  %514 = vmatpush1.msra.mxu0 %v379
  %515 = vmatprep.subr.mxu0 0.0
  %516 = vmatpush1.msra.mxu0 %v376
  %517 = vmatprep.subr.mxu0 0.0
  %518 = vmatpush1.msra.mxu0 %v373
  %519 = vmatprep.subr.mxu0 0.0
  %520 = vmatpush1.msra.mxu0 %v370
  %521 = vmatprep.subr.mxu0 0.0
  %522 = vmatpush1.msra.mxu0 %v367
  %523 = vmatprep.subr.mxu0 0.0
  %524 = vmatpush1.msra.mxu0 %v364
  %525 = vmatprep.subr.mxu0 0.0
  %526 = vmatpush1.msra.mxu0 %v361
  %527 = vmatprep.subr.mxu0 0.0
  %528 = vmatpush2.msra.mxu0 0.0
  %529 = vmatprep.subr.mxu0 0.0
  %530 = vmatpush2.msra.mxu0 0.0
  %531 = vmatprep.subr.mxu0 0.0
  %532 = vmatpush2.msra.mxu0 0.0
  %533 = vmatprep.subr.mxu0 0.0
  %534 = vmatpush2.msra.mxu0 0.0
  %535 = vmatprep.subr.mxu0 0.0
  %536 = vmatpush2.msra.mxu0 0.0
  %537 = vmatprep.subr.mxu0 0.0
  %538 = vmatpush2.msra.mxu0 0.0
  %539 = vmatprep.subr.mxu0 0.0
  %540 = vmatpush2.msra.mxu0 0.0
  %541 = vmatprep.subr.mxu0 0.0
  %542 = vmatpush2.msra.mxu0 0.0
  %543 = vmatprep.subr.mxu0 0.0
  %544 = vmatpush2.msra.mxu0 0.0
  %545 = vmatprep.subr.mxu0 0.0
  %546 = vmatpush2.msra.mxu0 0.0
  %547 = vmatprep.subr.mxu0 0.0
  %548 = vmatpush2.msra.mxu0 0.0
  %549 = vmatprep.subr.mxu0 0.0
  %550 = vmatpush2.msra.mxu0 0.0
  %551 = vmatprep.subr.mxu0 0.0
  %552 = vmatpush2.msra.mxu0 0.0
  %553 = vmatprep.subr.mxu0 0.0
  %554 = vmatpush2.msra.mxu0 0.0
  %555 = vmatprep.subr.mxu0 0.0
  %556 = vmatpush2.msra.mxu0 0.0
  %557 = vmatprep.subr.mxu0 0.0
  %558 = vmatpush2.msra.mxu0 0.0
  %559 = vmatprep.mubr.f32.mxu0 0.0
  %560 = vmatmul.mubr.f32.gmra.mxu0 0.0
  %v561 = vpop.f32.mrf.mxu0
  %v562 = vadd.f32 %v420, %v561
  %v563 = vpop.f32.mrf.mxu0
  %564 = vdwg.mxu0
  %v565 = vadd.f32 %v356, %v491
  %v566 = vxor.u32 %v565, 2147483648
  %v567 = vmul.f32 %v566, 1.442695
  %v568 = vpow.pop %v567
  %v569 = vadd.f32 %v568, 1.0
  %v570 = vrcp.pop %v569
  %v571 = vmul.f32 1.0, %v570
  %v572 = vadd.f32 %v357, %v493
  %v573 = vxor.u32 %v572, 2147483648
  %v574 = vmul.f32 %v573, 1.442695
  %v575 = vpow.pop %v574
  %v576 = vadd.f32 %v575, 1.0
  %v577 = vrcp.pop %v576
  %v578 = vmul.f32 1.0, %v577
  %v579 = vmul.f32 %v571, %v562
  %v580 = vadd.f32 %v358, %v579
  %v581 = vtanh.pop %v580
  %v582 = vsub.f32 1.0, %v578
  %v583 = vmul.f32 %v582, %v581
  %v584 = vmul.f32 %v578, 0.0
  %v585 = vadd.f32 %v583, %v584
  %v586 = vld [vmem:[%s5] sm:$0xff]
  %v587 = vld [vmem:[%s5 + $0x8] sm:$0xff]
  %v588 = vld [vmem:[%s5 + $0x10] sm:$0xff]
  %v589 = vld [vmem:[%s5 + $0x18] sm:$0xff]
  %v590 = vld [vmem:[%s5 + $0x20] sm:$0xff]
  %v591 = vld [vmem:[%s5 + $0x28] sm:$0xff]
  %v592 = vld [vmem:[%s5 + $0x30] sm:$0xff]
  %v593 = vld [vmem:[%s5 + $0x38] sm:$0xff]
  %v594 = vld [vmem:[%s5 + $0x40] sm:$0xff]
  %v595 = vld [vmem:[%s5 + $0x48] sm:$0xff]
  %v596 = vld [vmem:[%s5 + $0x50] sm:$0xff]
  %v597 = vld [vmem:[%s5 + $0x58] sm:$0xff]
  %v598 = vld [vmem:[%s5 + $0x60] sm:$0xff]
  %v599 = vld [vmem:[%s5 + $0x68] sm:$0xff]
  %v600 = vld [vmem:[%s5 + $0x70] sm:$0xff]
  %v601 = vld [vmem:[%s5 + $0x78] sm:$0xff]
  %v602 = vld [vmem:[%s5 + $0x80] sm:$0xff]
  %v603 = vld [vmem:[%s5 + $0x88] sm:$0xff]
  %v604 = vld [vmem:[%s5 + $0x90] sm:$0xff]
  %v605 = vld [vmem:[%s5 + $0x98] sm:$0xff]
  %v606 = vld [vmem:[%s5 + $0xa0] sm:$0xff]
  %v607 = vld [vmem:[%s5 + $0xa8] sm:$0xff]
  %v608 = vld [vmem:[%s5 + $0xb0] sm:$0xff]
  %v609 = vld [vmem:[%s5 + $0xb8] sm:$0xff]
  %v610 = vld [vmem:[%s5 + $0xc0] sm:$0xff]
  %v611 = vld [vmem:[%s5 + $0xc8] sm:$0xff]
  %v612 = vld [vmem:[%s5 + $0xd0] sm:$0xff]
  %v613 = vld [vmem:[%s5 + $0xd8] sm:$0xff]
  %v614 = vld [vmem:[%s5 + $0xe0] sm:$0xff]
  %v615 = vld [vmem:[%s5 + $0xe8] sm:$0xff]
  %v616 = vld [vmem:[%s5 + $0xf0] sm:$0xff]
  %v617 = vld [vmem:[%s5 + $0xf8] sm:$0xff]
  %v618 = vld [vmem:[%s5 + $0x100] sm:$0xff]
  %v619 = vld [vmem:[%s5 + $0x108] sm:$0xff]
  %v620 = vld [vmem:[%s5 + $0x110] sm:$0xff]
  %v621 = vld [vmem:[%s5 + $0x118] sm:$0xff]
  %v622 = vld [vmem:[%s5 + $0x120] sm:$0xff]
  %v623 = vld [vmem:[%s5 + $0x128] sm:$0xff]
  %v624 = vld [vmem:[%s5 + $0x130] sm:$0xff]
  %v625 = vld [vmem:[%s5 + $0x138] sm:$0xff]
  %v626 = vld [vmem:[%s5 + $0x140] sm:$0xff]
  %v627 = vld [vmem:[%s5 + $0x148] sm:$0xff]
  %v628 = vld [vmem:[%s5 + $0x150] sm:$0xff]
  %v629 = vld [vmem:[%s5 + $0x158] sm:$0xff]
  %v630 = vld [vmem:[%s5 + $0x160] sm:$0xff]
  %v631 = vld [vmem:[%s5 + $0x168] sm:$0xff]
  %v632 = vld [vmem:[%s5 + $0x170] sm:$0xff]
  %v633 = vld [vmem:[%s5 + $0x178] sm:$0xff]
  %v634 = vld [vmem:[%s5 + $0x180] sm:$0xff]
  %v635 = vld [vmem:[%s5 + $0x188] sm:$0xff]
  %v636 = vld [vmem:[%s5 + $0x190] sm:$0xff]
  %v637 = vld [vmem:[%s5 + $0x198] sm:$0xff]
  %v638 = vld [vmem:[%s5 + $0x1a0] sm:$0xff]
  %v639 = vld [vmem:[%s5 + $0x1a8] sm:$0xff]
  %v640 = vld [vmem:[%s5 + $0x1b0] sm:$0xff]
  %v641 = vld [vmem:[%s5 + $0x1b8] sm:$0xff]
  %v642 = vld [vmem:[%s5 + $0x1c0] sm:$0xff]
  %v643 = vld [vmem:[%s5 + $0x1c8] sm:$0xff]
  %v644 = vld [vmem:[%s5 + $0x1d0] sm:$0xff]
  %v645 = vld [vmem:[%s5 + $0x1d8] sm:$0xff]
  %v646 = vld [vmem:[%s5 + $0x1e0] sm:$0xff]
  %v647 = vld [vmem:[%s5 + $0x1e8] sm:$0xff]
  %v648 = vld [vmem:[%s5 + $0x1f0] sm:$0xff]
  %v649 = vld [vmem:[%s5 + $0x1f8] sm:$0xff]
  %v650 = vld [vmem:[%s5 + $0x200] sm:$0xff]
  %v651 = vld [vmem:[%s5 + $0x208] sm:$0xff]
  %v652 = vld [vmem:[%s5 + $0x210] sm:$0xff]
  %v653 = vld [vmem:[%s5 + $0x218] sm:$0xff]
  %v654 = vld [vmem:[%s5 + $0x220] sm:$0xff]
  %v655 = vld [vmem:[%s5 + $0x228] sm:$0xff]
  %v656 = vld [vmem:[%s5 + $0x230] sm:$0xff]
  %v657 = vld [vmem:[%s5 + $0x238] sm:$0xff]
  %v658 = vld [vmem:[%s5 + $0x240] sm:$0xff]
  %v659 = vld [vmem:[%s5 + $0x248] sm:$0xff]
  %v660 = vld [vmem:[%s5 + $0x250] sm:$0xff]
  %v661 = vld [vmem:[%s5 + $0x258] sm:$0xff]
  %v662 = vld [vmem:[%s5 + $0x260] sm:$0xff]
  %v663 = vld [vmem:[%s5 + $0x268] sm:$0xff]
  %v664 = vld [vmem:[%s5 + $0x270] sm:$0xff]
  %v665 = vld [vmem:[%s5 + $0x278] sm:$0xff]
  %v666 = vld [vmem:[%s5 + $0x280] sm:$0xff]
  %v667 = vld [vmem:[%s5 + $0x288] sm:$0xff]
  %v668 = vld [vmem:[%s5 + $0x290] sm:$0xff]
  %v669 = vld [vmem:[%s5 + $0x298] sm:$0xff]
  %v670 = vld [vmem:[%s5 + $0x2a0] sm:$0xff]
  %v671 = vld [vmem:[%s5 + $0x2a8] sm:$0xff]
  %v672 = vld [vmem:[%s5 + $0x2b0] sm:$0xff]
  %v673 = vld [vmem:[%s5 + $0x2b8] sm:$0xff]
  %v674 = vld [vmem:[%s5 + $0x2c0] sm:$0xff]
  %v675 = vld [vmem:[%s5 + $0x2c8] sm:$0xff]
  %v676 = vld [vmem:[%s5 + $0x2d0] sm:$0xff]
  %v677 = vld [vmem:[%s5 + $0x2d8] sm:$0xff]
  %v678 = vld [vmem:[%s5 + $0x2e0] sm:$0xff]
  %v679 = vld [vmem:[%s5 + $0x2e8] sm:$0xff]
  %v680 = vld [vmem:[%s5 + $0x2f0] sm:$0xff]
  %v681 = vld [vmem:[%s5 + $0x2f8] sm:$0xff]
  %v682 = vld [vmem:[%s5 + $0x300] sm:$0xff]
  %v683 = vld [vmem:[%s5 + $0x308] sm:$0xff]
  %v684 = vld [vmem:[%s5 + $0x310] sm:$0xff]
  %v685 = vld [vmem:[%s5 + $0x318] sm:$0xff]
  %v686 = vld [vmem:[%s5 + $0x320] sm:$0xff]
  %v687 = vld [vmem:[%s5 + $0x328] sm:$0xff]
  %v688 = vld [vmem:[%s5 + $0x330] sm:$0xff]
  %v689 = vld [vmem:[%s5 + $0x338] sm:$0xff]
  %v690 = vld [vmem:[%s5 + $0x340] sm:$0xff]
  %v691 = vld [vmem:[%s5 + $0x348] sm:$0xff]
  %v692 = vld [vmem:[%s5 + $0x350] sm:$0xff]
  %v693 = vld [vmem:[%s5 + $0x358] sm:$0xff]
  %v694 = vld [vmem:[%s5 + $0x360] sm:$0xff]
  %v695 = vld [vmem:[%s5 + $0x368] sm:$0xff]
  %v696 = vld [vmem:[%s5 + $0x370] sm:$0xff]
  %v697 = vld [vmem:[%s5 + $0x378] sm:$0xff]
  %v698 = vld [vmem:[%s5 + $0x380] sm:$0xff]
  %v699 = vld [vmem:[%s5 + $0x388] sm:$0xff]
  %v700 = vld [vmem:[%s5 + $0x390] sm:$0xff]
  %v701 = vld [vmem:[%s5 + $0x398] sm:$0xff]
  %v702 = vld [vmem:[%s5 + $0x3a0] sm:$0xff]
  %v703 = vld [vmem:[%s5 + $0x3a8] sm:$0xff]
  %v704 = vld [vmem:[%s5 + $0x3b0] sm:$0xff]
  %v705 = vld [vmem:[%s5 + $0x3b8] sm:$0xff]
  %v706 = vld [vmem:[%s5 + $0x3c0] sm:$0xff]
  %v707 = vld [vmem:[%s5 + $0x3c8] sm:$0xff]
  %v708 = vld [vmem:[%s5 + $0x3d0] sm:$0xff]
  %v709 = vld [vmem:[%s5 + $0x3d8] sm:$0xff]
  %v710 = vld [vmem:[%s5 + $0x3e0] sm:$0xff]
  %v711 = vld [vmem:[%s5 + $0x3e8] sm:$0xff]
  %v712 = vld [vmem:[%s5 + $0x3f0] sm:$0xff]
  %v713 = vld [vmem:[%s5 + $0x3f8] sm:$0xff]
  %v714 = vld [vmem:[%s6] sm:$0xf]
  %v716 = vlaneseq
  %v717 = vshrl.u32 %v716, 7
  %v718 = vsub.s32 0, %v717
  %v719 = vrot.slane %v714, %v718
  %v720 = vlaneseq
  %v721 = vshrl.u32 %v720, 7
  %v722 = vsub.s32 1, %v721
  %v723 = vrot.slane %v714, %v722
  %v724 = vlaneseq
  %v725 = vshrl.u32 %v724, 7
  %v726 = vsub.s32 2, %v725
  %v727 = vrot.slane %v714, %v726
  %v728 = vlaneseq
  %v729 = vshrl.u32 %v728, 7
  %v730 = vsub.s32 3, %v729
  %v731 = vrot.slane %v714, %v730
  %736 = vmatprep.subr.mxu0 %v647
  %737 = vmatpush1.msra.mxu0 %v646
  %738 = vmatprep.subr.mxu0 %v643
  %739 = vmatpush1.msra.mxu0 %v642
  %740 = vmatprep.subr.mxu0 %v639
  %741 = vmatpush1.msra.mxu0 %v638
  %742 = vmatprep.subr.mxu0 %v635
  %743 = vmatpush1.msra.mxu0 %v634
  %744 = vmatprep.subr.mxu0 %v631
  %745 = vmatpush1.msra.mxu0 %v630
  %746 = vmatprep.subr.mxu0 %v627
  %747 = vmatpush1.msra.mxu0 %v626
  %748 = vmatprep.subr.mxu0 %v623
  %749 = vmatpush1.msra.mxu0 %v622
  %750 = vmatprep.subr.mxu0 %v619
  %751 = vmatpush1.msra.mxu0 %v618
  %752 = vmatprep.subr.mxu0 %v615
  %753 = vmatpush1.msra.mxu0 %v614
  %754 = vmatprep.subr.mxu0 %v611
  %755 = vmatpush1.msra.mxu0 %v610
  %756 = vmatprep.subr.mxu0 %v607
  %757 = vmatpush1.msra.mxu0 %v606
  %758 = vmatprep.subr.mxu0 %v603
  %759 = vmatpush1.msra.mxu0 %v602
  %760 = vmatprep.subr.mxu0 %v599
  %761 = vmatpush1.msra.mxu0 %v598
  %762 = vmatprep.subr.mxu0 %v595
  %763 = vmatpush1.msra.mxu0 %v594
  %764 = vmatprep.subr.mxu0 %v591
  %765 = vmatpush1.msra.mxu0 %v590
  %766 = vmatprep.subr.mxu0 %v587
  %767 = vmatpush1.msra.mxu0 %v586
  %768 = vmatprep.subr.mxu0 %v711
  %769 = vmatpush2.msra.mxu0 %v710
  %770 = vmatprep.subr.mxu0 %v707
  %771 = vmatpush2.msra.mxu0 %v706
  %772 = vmatprep.subr.mxu0 %v703
  %773 = vmatpush2.msra.mxu0 %v702
  %774 = vmatprep.subr.mxu0 %v699
  %775 = vmatpush2.msra.mxu0 %v698
  %776 = vmatprep.subr.mxu0 %v695
  %777 = vmatpush2.msra.mxu0 %v694
  %778 = vmatprep.subr.mxu0 %v691
  %779 = vmatpush2.msra.mxu0 %v690
  %780 = vmatprep.subr.mxu0 %v687
  %781 = vmatpush2.msra.mxu0 %v686
  %782 = vmatprep.subr.mxu0 %v683
  %783 = vmatpush2.msra.mxu0 %v682
  %784 = vmatprep.subr.mxu0 %v679
  %785 = vmatpush2.msra.mxu0 %v678
  %786 = vmatprep.subr.mxu0 %v675
  %787 = vmatpush2.msra.mxu0 %v674
  %788 = vmatprep.subr.mxu0 %v671
  %789 = vmatpush2.msra.mxu0 %v670
  %790 = vmatprep.subr.mxu0 %v667
  %791 = vmatpush2.msra.mxu0 %v666
  %792 = vmatprep.subr.mxu0 %v663
  %793 = vmatpush2.msra.mxu0 %v662
  %794 = vmatprep.subr.mxu0 %v659
  %795 = vmatpush2.msra.mxu0 %v658
  %796 = vmatprep.subr.mxu0 %v655
  %797 = vmatpush2.msra.mxu0 %v654
  %798 = vmatprep.subr.mxu0 %v651
  %799 = vmatpush2.msra.mxu0 %v650
  %800 = vmatprep.mubr.f32.mxu0 0.0
  %801 = vmatmul.mubr.f32.gmra.mxu0 %v585
  %v802 = vpop.f32.mrf.mxu0
  %v803 = vadd.f32 %v719, %v802
  %v804 = vpop.f32.mrf.mxu0
  %v805 = vadd.f32 %v723, %v804
  %806 = vdwg.mxu0
  %807 = vmatprep.subr.mxu0 %v649
  %808 = vmatpush1.msra.mxu0 %v648
  %809 = vmatprep.subr.mxu0 %v645
  %810 = vmatpush1.msra.mxu0 %v644
  %811 = vmatprep.subr.mxu0 %v641
  %812 = vmatpush1.msra.mxu0 %v640
  %813 = vmatprep.subr.mxu0 %v637
  %814 = vmatpush1.msra.mxu0 %v636
  %815 = vmatprep.subr.mxu0 %v633
  %816 = vmatpush1.msra.mxu0 %v632
  %817 = vmatprep.subr.mxu0 %v629
  %818 = vmatpush1.msra.mxu0 %v628
  %819 = vmatprep.subr.mxu0 %v625
  %820 = vmatpush1.msra.mxu0 %v624
  %821 = vmatprep.subr.mxu0 %v621
  %822 = vmatpush1.msra.mxu0 %v620
  %823 = vmatprep.subr.mxu0 %v617
  %824 = vmatpush1.msra.mxu0 %v616
  %825 = vmatprep.subr.mxu0 %v613
  %826 = vmatpush1.msra.mxu0 %v612
  %827 = vmatprep.subr.mxu0 %v609
  %828 = vmatpush1.msra.mxu0 %v608
  %829 = vmatprep.subr.mxu0 %v605
  %830 = vmatpush1.msra.mxu0 %v604
  %831 = vmatprep.subr.mxu0 %v601
  %832 = vmatpush1.msra.mxu0 %v600
  %833 = vmatprep.subr.mxu0 %v597
  %834 = vmatpush1.msra.mxu0 %v596
  %835 = vmatprep.subr.mxu0 %v593
  %836 = vmatpush1.msra.mxu0 %v592
  %837 = vmatprep.subr.mxu0 %v589
  %838 = vmatpush1.msra.mxu0 %v588
  %839 = vmatprep.subr.mxu0 %v713
  %840 = vmatpush2.msra.mxu0 %v712
  %841 = vmatprep.subr.mxu0 %v709
  %842 = vmatpush2.msra.mxu0 %v708
  %843 = vmatprep.subr.mxu0 %v705
  %844 = vmatpush2.msra.mxu0 %v704
  %845 = vmatprep.subr.mxu0 %v701
  %846 = vmatpush2.msra.mxu0 %v700
  %847 = vmatprep.subr.mxu0 %v697
  %848 = vmatpush2.msra.mxu0 %v696
  %849 = vmatprep.subr.mxu0 %v693
  %850 = vmatpush2.msra.mxu0 %v692
  %851 = vmatprep.subr.mxu0 %v689
  %852 = vmatpush2.msra.mxu0 %v688
  %853 = vmatprep.subr.mxu0 %v685
  %854 = vmatpush2.msra.mxu0 %v684
  %855 = vmatprep.subr.mxu0 %v681
  %856 = vmatpush2.msra.mxu0 %v680
  %857 = vmatprep.subr.mxu0 %v677
  %858 = vmatpush2.msra.mxu0 %v676
  %859 = vmatprep.subr.mxu0 %v673
  %860 = vmatpush2.msra.mxu0 %v672
  %861 = vmatprep.subr.mxu0 %v669
  %862 = vmatpush2.msra.mxu0 %v668
  %863 = vmatprep.subr.mxu0 %v665
  %864 = vmatpush2.msra.mxu0 %v664
  %865 = vmatprep.subr.mxu0 %v661
  %866 = vmatpush2.msra.mxu0 %v660
  %867 = vmatprep.subr.mxu0 %v657
  %868 = vmatpush2.msra.mxu0 %v656
  %869 = vmatprep.subr.mxu0 %v653
  %870 = vmatpush2.msra.mxu0 %v652
  %871 = vmatprep.mubr.f32.mxu0 0.0
  %872 = vmatmul.mubr.f32.gmra.mxu0 %v585
  %v873 = vpop.f32.mrf.mxu0
  %v874 = vadd.f32 %v727, %v873
  %v875 = vpop.f32.mrf.mxu0
  %v876 = vadd.f32 %v731, %v875
  %877 = vdwg.mxu0
  %v878 = vxor.u32 %v803, 2147483648
  %v879 = vmul.f32 %v878, 1.442695
  %v880 = vpow.pop %v879
  %v881 = vadd.f32 %v880, 1.0
  %v882 = vrcp.pop %v881
  %v883 = vmul.f32 1.0, %v882
  %v884 = vxor.u32 %v805, 2147483648
  %v885 = vmul.f32 %v884, 1.442695
  %v886 = vpow.pop %v885
  %v887 = vadd.f32 %v886, 1.0
  %v888 = vrcp.pop %v887
  %v889 = vmul.f32 1.0, %v888
  %v890 = vsub.f32 %v883, 1.0
  %v891 = vmul.f32 %v890, %v876
  %v892 = vadd.f32 %v874, %v891
  %v893 = vtanh.pop %v892
  %v894 = vsub.f32 1.0, %v889
  %v895 = vmul.f32 %v894, %v893
  %v896 = vmul.f32 %v889, 0.0
  %v897 = vadd.f32 %v895, %v896
  %s898 = scalar_lea.vmem [#allocation3], 8
  %899 = vst [vmem:[%s898] sm:$0xff] %v897
  %s900 = scalar_lea.vmem [#allocation2], 24
  %v901 = vld [vmem:[%s900] sm:$0xff]
  %v902 = vld [vmem:[%s900 + $0x8] sm:$0xff]
  %v903 = vld [vmem:[%s900 + $0x10] sm:$0xff]
  %v904 = vld [vmem:[%s3] sm:$0xff]
  %v905 = vld [vmem:[%s3 + $0x8] sm:$0xff]
  %v906 = vld [vmem:[%s3 + $0x10] sm:$0xff]
  %v907 = vld [vmem:[%s3 + $0x18] sm:$0xff]
  %v908 = vld [vmem:[%s3 + $0x20] sm:$0xff]
  %v909 = vld [vmem:[%s3 + $0x28] sm:$0xff]
  %v910 = vld [vmem:[%s3 + $0x30] sm:$0xff]
  %v911 = vld [vmem:[%s3 + $0x38] sm:$0xff]
  %v912 = vld [vmem:[%s3 + $0x40] sm:$0xff]
  %v913 = vld [vmem:[%s3 + $0x48] sm:$0xff]
  %v914 = vld [vmem:[%s3 + $0x50] sm:$0xff]
  %v915 = vld [vmem:[%s3 + $0x58] sm:$0xff]
  %v916 = vld [vmem:[%s3 + $0x60] sm:$0xff]
  %v917 = vld [vmem:[%s3 + $0x68] sm:$0xff]
  %v918 = vld [vmem:[%s3 + $0x70] sm:$0xff]
  %v919 = vld [vmem:[%s3 + $0x78] sm:$0xff]
  %v920 = vld [vmem:[%s3 + $0x80] sm:$0xff]
  %v921 = vld [vmem:[%s3 + $0x88] sm:$0xff]
  %v922 = vld [vmem:[%s3 + $0x90] sm:$0xff]
  %v923 = vld [vmem:[%s3 + $0x98] sm:$0xff]
  %v924 = vld [vmem:[%s3 + $0xa0] sm:$0xff]
  %v925 = vld [vmem:[%s3 + $0xa8] sm:$0xff]
  %v926 = vld [vmem:[%s3 + $0xb0] sm:$0xff]
  %v927 = vld [vmem:[%s3 + $0xb8] sm:$0xff]
  %v928 = vld [vmem:[%s3 + $0xc0] sm:$0xff]
  %v929 = vld [vmem:[%s3 + $0xc8] sm:$0xff]
  %v930 = vld [vmem:[%s3 + $0xd0] sm:$0xff]
  %v931 = vld [vmem:[%s3 + $0xd8] sm:$0xff]
  %v932 = vld [vmem:[%s3 + $0xe0] sm:$0xff]
  %v933 = vld [vmem:[%s3 + $0xe8] sm:$0xff]
  %v934 = vld [vmem:[%s3 + $0xf0] sm:$0xff]
  %v935 = vld [vmem:[%s3 + $0xf8] sm:$0xff]
  %v936 = vld [vmem:[%s3 + $0x100] sm:$0xff]
  %v937 = vld [vmem:[%s3 + $0x108] sm:$0xff]
  %v938 = vld [vmem:[%s3 + $0x110] sm:$0xff]
  %v939 = vld [vmem:[%s3 + $0x118] sm:$0xff]
  %v940 = vld [vmem:[%s3 + $0x120] sm:$0xff]
  %v941 = vld [vmem:[%s3 + $0x128] sm:$0xff]
  %v942 = vld [vmem:[%s3 + $0x130] sm:$0xff]
  %v943 = vld [vmem:[%s3 + $0x138] sm:$0xff]
  %v944 = vld [vmem:[%s3 + $0x140] sm:$0xff]
  %v945 = vld [vmem:[%s3 + $0x148] sm:$0xff]
  %v946 = vld [vmem:[%s3 + $0x150] sm:$0xff]
  %v947 = vld [vmem:[%s3 + $0x158] sm:$0xff]
  %v948 = vld [vmem:[%s3 + $0x160] sm:$0xff]
  %v949 = vld [vmem:[%s3 + $0x168] sm:$0xff]
  %v950 = vld [vmem:[%s3 + $0x170] sm:$0xff]
  %v951 = vld [vmem:[%s3 + $0x178] sm:$0xff]
  %v952 = vld [vmem:[%s4] sm:$0x7]
  %v954 = vlaneseq
  %v955 = vshrl.u32 %v954, 7
  %v956 = vsub.s32 0, %v955
  %v957 = vrot.slane %v952, %v956
  %v958 = vlaneseq
  %v959 = vshrl.u32 %v958, 7
  %v960 = vsub.s32 1, %v959
  %v961 = vrot.slane %v952, %v960
  %v962 = vlaneseq
  %v963 = vshrl.u32 %v962, 7
  %v964 = vsub.s32 2, %v963
  %v965 = vrot.slane %v952, %v964
  %969 = vmatprep.subr.mxu0 %v950
  %970 = vmatpush1.msra.mxu0 %v949
  %971 = vmatprep.subr.mxu0 %v947
  %972 = vmatpush1.msra.mxu0 %v946
  %973 = vmatprep.subr.mxu0 %v944
  %974 = vmatpush1.msra.mxu0 %v943
  %975 = vmatprep.subr.mxu0 %v941
  %976 = vmatpush1.msra.mxu0 %v940
  %977 = vmatprep.subr.mxu0 %v938
  %978 = vmatpush1.msra.mxu0 %v937
  %979 = vmatprep.subr.mxu0 %v935
  %980 = vmatpush1.msra.mxu0 %v934
  %981 = vmatprep.subr.mxu0 %v932
  %982 = vmatpush1.msra.mxu0 %v931
  %983 = vmatprep.subr.mxu0 %v929
  %984 = vmatpush1.msra.mxu0 %v928
  %985 = vmatprep.subr.mxu0 %v926
  %986 = vmatpush1.msra.mxu0 %v925
  %987 = vmatprep.subr.mxu0 %v923
  %988 = vmatpush1.msra.mxu0 %v922
  %989 = vmatprep.subr.mxu0 %v920
  %990 = vmatpush1.msra.mxu0 %v919
  %991 = vmatprep.subr.mxu0 %v917
  %992 = vmatpush1.msra.mxu0 %v916
  %993 = vmatprep.subr.mxu0 %v914
  %994 = vmatpush1.msra.mxu0 %v913
  %995 = vmatprep.subr.mxu0 %v911
  %996 = vmatpush1.msra.mxu0 %v910
  %997 = vmatprep.subr.mxu0 %v908
  %998 = vmatpush1.msra.mxu0 %v907
  %999 = vmatprep.subr.mxu0 %v905
  %1000 = vmatpush1.msra.mxu0 %v904
  %1001 = vmatprep.subr.mxu0 0.0
  %1002 = vmatpush2.msra.mxu0 0.0
  %1003 = vmatprep.subr.mxu0 0.0
  %1004 = vmatpush2.msra.mxu0 0.0
  %1005 = vmatprep.subr.mxu0 0.0
  %1006 = vmatpush2.msra.mxu0 0.0
  %1007 = vmatprep.subr.mxu0 0.0
  %1008 = vmatpush2.msra.mxu0 0.0
  %1009 = vmatprep.subr.mxu0 0.0
  %1010 = vmatpush2.msra.mxu0 0.0
  %1011 = vmatprep.subr.mxu0 0.0
  %1012 = vmatpush2.msra.mxu0 0.0
  %1013 = vmatprep.subr.mxu0 0.0
  %1014 = vmatpush2.msra.mxu0 0.0
  %1015 = vmatprep.subr.mxu0 0.0
  %1016 = vmatpush2.msra.mxu0 0.0
  %1017 = vmatprep.subr.mxu0 0.0
  %1018 = vmatpush2.msra.mxu0 0.0
  %1019 = vmatprep.subr.mxu0 0.0
  %1020 = vmatpush2.msra.mxu0 0.0
  %1021 = vmatprep.subr.mxu0 0.0
  %1022 = vmatpush2.msra.mxu0 0.0
  %1023 = vmatprep.subr.mxu0 0.0
  %1024 = vmatpush2.msra.mxu0 0.0
  %1025 = vmatprep.subr.mxu0 0.0
  %1026 = vmatpush2.msra.mxu0 0.0
  %1027 = vmatprep.subr.mxu0 0.0
  %1028 = vmatpush2.msra.mxu0 0.0
  %1029 = vmatprep.subr.mxu0 0.0
  %1030 = vmatpush2.msra.mxu0 0.0
  %1031 = vmatprep.subr.mxu0 0.0
  %1032 = vmatpush2.msra.mxu0 0.0
  %1033 = vmatprep.mubr.f32.mxu0 0.0
  %1034 = vmatmul.mubr.f32.gmra.mxu0 %v585
  %v1035 = vpop.f32.mrf.mxu0
  %v1036 = vadd.f32 %v957, %v1035
  %v1037 = vpop.f32.mrf.mxu0
  %v1038 = vadd.f32 %v961, %v1037
  %1039 = vdwg.mxu0
  %1040 = vmatprep.subr.mxu0 0.0
  %1041 = vmatpush1.msra.mxu0 %v951
  %1042 = vmatprep.subr.mxu0 0.0
  %1043 = vmatpush1.msra.mxu0 %v948
  %1044 = vmatprep.subr.mxu0 0.0
  %1045 = vmatpush1.msra.mxu0 %v945
  %1046 = vmatprep.subr.mxu0 0.0
  %1047 = vmatpush1.msra.mxu0 %v942
  %1048 = vmatprep.subr.mxu0 0.0
  %1049 = vmatpush1.msra.mxu0 %v939
  %1050 = vmatprep.subr.mxu0 0.0
  %1051 = vmatpush1.msra.mxu0 %v936
  %1052 = vmatprep.subr.mxu0 0.0
  %1053 = vmatpush1.msra.mxu0 %v933
  %1054 = vmatprep.subr.mxu0 0.0
  %1055 = vmatpush1.msra.mxu0 %v930
  %1056 = vmatprep.subr.mxu0 0.0
  %1057 = vmatpush1.msra.mxu0 %v927
  %1058 = vmatprep.subr.mxu0 0.0
  %1059 = vmatpush1.msra.mxu0 %v924
  %1060 = vmatprep.subr.mxu0 0.0
  %1061 = vmatpush1.msra.mxu0 %v921
  %1062 = vmatprep.subr.mxu0 0.0
  %1063 = vmatpush1.msra.mxu0 %v918
  %1064 = vmatprep.subr.mxu0 0.0
  %1065 = vmatpush1.msra.mxu0 %v915
  %1066 = vmatprep.subr.mxu0 0.0
  %1067 = vmatpush1.msra.mxu0 %v912
  %1068 = vmatprep.subr.mxu0 0.0
  %1069 = vmatpush1.msra.mxu0 %v909
  %1070 = vmatprep.subr.mxu0 0.0
  %1071 = vmatpush1.msra.mxu0 %v906
  %1072 = vmatprep.subr.mxu0 0.0
  %1073 = vmatpush2.msra.mxu0 0.0
  %1074 = vmatprep.subr.mxu0 0.0
  %1075 = vmatpush2.msra.mxu0 0.0
  %1076 = vmatprep.subr.mxu0 0.0
  %1077 = vmatpush2.msra.mxu0 0.0
  %1078 = vmatprep.subr.mxu0 0.0
  %1079 = vmatpush2.msra.mxu0 0.0
  %1080 = vmatprep.subr.mxu0 0.0
  %1081 = vmatpush2.msra.mxu0 0.0
  %1082 = vmatprep.subr.mxu0 0.0
  %1083 = vmatpush2.msra.mxu0 0.0
  %1084 = vmatprep.subr.mxu0 0.0
  %1085 = vmatpush2.msra.mxu0 0.0
  %1086 = vmatprep.subr.mxu0 0.0
  %1087 = vmatpush2.msra.mxu0 0.0
  %1088 = vmatprep.subr.mxu0 0.0
  %1089 = vmatpush2.msra.mxu0 0.0
  %1090 = vmatprep.subr.mxu0 0.0
  %1091 = vmatpush2.msra.mxu0 0.0
  %1092 = vmatprep.subr.mxu0 0.0
  %1093 = vmatpush2.msra.mxu0 0.0
  %1094 = vmatprep.subr.mxu0 0.0
  %1095 = vmatpush2.msra.mxu0 0.0
  %1096 = vmatprep.subr.mxu0 0.0
  %1097 = vmatpush2.msra.mxu0 0.0
  %1098 = vmatprep.subr.mxu0 0.0
  %1099 = vmatpush2.msra.mxu0 0.0
  %1100 = vmatprep.subr.mxu0 0.0
  %1101 = vmatpush2.msra.mxu0 0.0
  %1102 = vmatprep.subr.mxu0 0.0
  %1103 = vmatpush2.msra.mxu0 0.0
  %1104 = vmatprep.mubr.f32.mxu0 0.0
  %1105 = vmatmul.mubr.f32.gmra.mxu0 %v585
  %v1106 = vpop.f32.mrf.mxu0
  %v1107 = vadd.f32 %v965, %v1106
  %v1108 = vpop.f32.mrf.mxu0
  %1109 = vdwg.mxu0
  %v1110 = vadd.f32 %v901, %v1036
  %v1111 = vxor.u32 %v1110, 2147483648
  %v1112 = vmul.f32 %v1111, 1.442695
  %v1113 = vpow.pop %v1112
  %v1114 = vadd.f32 %v1113, 1.0
  %v1115 = vrcp.pop %v1114
  %v1116 = vmul.f32 1.0, %v1115
  %v1117 = vadd.f32 %v902, %v1038
  %v1118 = vxor.u32 %v1117, 2147483648
  %v1119 = vmul.f32 %v1118, 1.442695
  %v1120 = vpow.pop %v1119
  %v1121 = vadd.f32 %v1120, 1.0
  %v1122 = vrcp.pop %v1121
  %v1123 = vmul.f32 1.0, %v1122
  %v1124 = vmul.f32 %v1116, %v1107
  %v1125 = vadd.f32 %v903, %v1124
  %v1126 = vtanh.pop %v1125
  %v1127 = vsub.f32 1.0, %v1123
  %v1128 = vmul.f32 %v1127, %v1126
  %v1129 = vmul.f32 %v1123, %v585
  %v1130 = vadd.f32 %v1128, %v1129
  %v1131 = vld [vmem:[%s5] sm:$0xff]
  %v1132 = vld [vmem:[%s5 + $0x8] sm:$0xff]
  %v1133 = vld [vmem:[%s5 + $0x10] sm:$0xff]
  %v1134 = vld [vmem:[%s5 + $0x18] sm:$0xff]
  %v1135 = vld [vmem:[%s5 + $0x20] sm:$0xff]
  %v1136 = vld [vmem:[%s5 + $0x28] sm:$0xff]
  %v1137 = vld [vmem:[%s5 + $0x30] sm:$0xff]
  %v1138 = vld [vmem:[%s5 + $0x38] sm:$0xff]
  %v1139 = vld [vmem:[%s5 + $0x40] sm:$0xff]
  %v1140 = vld [vmem:[%s5 + $0x48] sm:$0xff]
  %v1141 = vld [vmem:[%s5 + $0x50] sm:$0xff]
  %v1142 = vld [vmem:[%s5 + $0x58] sm:$0xff]
  %v1143 = vld [vmem:[%s5 + $0x60] sm:$0xff]
  %v1144 = vld [vmem:[%s5 + $0x68] sm:$0xff]
  %v1145 = vld [vmem:[%s5 + $0x70] sm:$0xff]
  %v1146 = vld [vmem:[%s5 + $0x78] sm:$0xff]
  %v1147 = vld [vmem:[%s5 + $0x80] sm:$0xff]
  %v1148 = vld [vmem:[%s5 + $0x88] sm:$0xff]
  %v1149 = vld [vmem:[%s5 + $0x90] sm:$0xff]
  %v1150 = vld [vmem:[%s5 + $0x98] sm:$0xff]
  %v1151 = vld [vmem:[%s5 + $0xa0] sm:$0xff]
  %v1152 = vld [vmem:[%s5 + $0xa8] sm:$0xff]
  %v1153 = vld [vmem:[%s5 + $0xb0] sm:$0xff]
  %v1154 = vld [vmem:[%s5 + $0xb8] sm:$0xff]
  %v1155 = vld [vmem:[%s5 + $0xc0] sm:$0xff]
  %v1156 = vld [vmem:[%s5 + $0xc8] sm:$0xff]
  %v1157 = vld [vmem:[%s5 + $0xd0] sm:$0xff]
  %v1158 = vld [vmem:[%s5 + $0xd8] sm:$0xff]
  %v1159 = vld [vmem:[%s5 + $0xe0] sm:$0xff]
  %v1160 = vld [vmem:[%s5 + $0xe8] sm:$0xff]
  %v1161 = vld [vmem:[%s5 + $0xf0] sm:$0xff]
  %v1162 = vld [vmem:[%s5 + $0xf8] sm:$0xff]
  %v1163 = vld [vmem:[%s5 + $0x100] sm:$0xff]
  %v1164 = vld [vmem:[%s5 + $0x108] sm:$0xff]
  %v1165 = vld [vmem:[%s5 + $0x110] sm:$0xff]
  %v1166 = vld [vmem:[%s5 + $0x118] sm:$0xff]
  %v1167 = vld [vmem:[%s5 + $0x120] sm:$0xff]
  %v1168 = vld [vmem:[%s5 + $0x128] sm:$0xff]
  %v1169 = vld [vmem:[%s5 + $0x130] sm:$0xff]
  %v1170 = vld [vmem:[%s5 + $0x138] sm:$0xff]
  %v1171 = vld [vmem:[%s5 + $0x140] sm:$0xff]
  %v1172 = vld [vmem:[%s5 + $0x148] sm:$0xff]
  %v1173 = vld [vmem:[%s5 + $0x150] sm:$0xff]
  %v1174 = vld [vmem:[%s5 + $0x158] sm:$0xff]
  %v1175 = vld [vmem:[%s5 + $0x160] sm:$0xff]
  %v1176 = vld [vmem:[%s5 + $0x168] sm:$0xff]
  %v1177 = vld [vmem:[%s5 + $0x170] sm:$0xff]
  %v1178 = vld [vmem:[%s5 + $0x178] sm:$0xff]
  %v1179 = vld [vmem:[%s5 + $0x180] sm:$0xff]
  %v1180 = vld [vmem:[%s5 + $0x188] sm:$0xff]
  %v1181 = vld [vmem:[%s5 + $0x190] sm:$0xff]
  %v1182 = vld [vmem:[%s5 + $0x198] sm:$0xff]
  %v1183 = vld [vmem:[%s5 + $0x1a0] sm:$0xff]
  %v1184 = vld [vmem:[%s5 + $0x1a8] sm:$0xff]
  %v1185 = vld [vmem:[%s5 + $0x1b0] sm:$0xff]
  %v1186 = vld [vmem:[%s5 + $0x1b8] sm:$0xff]
  %v1187 = vld [vmem:[%s5 + $0x1c0] sm:$0xff]
  %v1188 = vld [vmem:[%s5 + $0x1c8] sm:$0xff]
  %v1189 = vld [vmem:[%s5 + $0x1d0] sm:$0xff]
  %v1190 = vld [vmem:[%s5 + $0x1d8] sm:$0xff]
  %v1191 = vld [vmem:[%s5 + $0x1e0] sm:$0xff]
  %v1192 = vld [vmem:[%s5 + $0x1e8] sm:$0xff]
  %v1193 = vld [vmem:[%s5 + $0x1f0] sm:$0xff]
  %v1194 = vld [vmem:[%s5 + $0x1f8] sm:$0xff]
  %v1195 = vld [vmem:[%s5 + $0x200] sm:$0xff]
  %v1196 = vld [vmem:[%s5 + $0x208] sm:$0xff]
  %v1197 = vld [vmem:[%s5 + $0x210] sm:$0xff]
  %v1198 = vld [vmem:[%s5 + $0x218] sm:$0xff]
  %v1199 = vld [vmem:[%s5 + $0x220] sm:$0xff]
  %v1200 = vld [vmem:[%s5 + $0x228] sm:$0xff]
  %v1201 = vld [vmem:[%s5 + $0x230] sm:$0xff]
  %v1202 = vld [vmem:[%s5 + $0x238] sm:$0xff]
  %v1203 = vld [vmem:[%s5 + $0x240] sm:$0xff]
  %v1204 = vld [vmem:[%s5 + $0x248] sm:$0xff]
  %v1205 = vld [vmem:[%s5 + $0x250] sm:$0xff]
  %v1206 = vld [vmem:[%s5 + $0x258] sm:$0xff]
  %v1207 = vld [vmem:[%s5 + $0x260] sm:$0xff]
  %v1208 = vld [vmem:[%s5 + $0x268] sm:$0xff]
  %v1209 = vld [vmem:[%s5 + $0x270] sm:$0xff]
  %v1210 = vld [vmem:[%s5 + $0x278] sm:$0xff]
  %v1211 = vld [vmem:[%s5 + $0x280] sm:$0xff]
  %v1212 = vld [vmem:[%s5 + $0x288] sm:$0xff]
  %v1213 = vld [vmem:[%s5 + $0x290] sm:$0xff]
  %v1214 = vld [vmem:[%s5 + $0x298] sm:$0xff]
  %v1215 = vld [vmem:[%s5 + $0x2a0] sm:$0xff]
  %v1216 = vld [vmem:[%s5 + $0x2a8] sm:$0xff]
  %v1217 = vld [vmem:[%s5 + $0x2b0] sm:$0xff]
  %v1218 = vld [vmem:[%s5 + $0x2b8] sm:$0xff]
  %v1219 = vld [vmem:[%s5 + $0x2c0] sm:$0xff]
  %v1220 = vld [vmem:[%s5 + $0x2c8] sm:$0xff]
  %v1221 = vld [vmem:[%s5 + $0x2d0] sm:$0xff]
  %v1222 = vld [vmem:[%s5 + $0x2d8] sm:$0xff]
  %v1223 = vld [vmem:[%s5 + $0x2e0] sm:$0xff]
  %v1224 = vld [vmem:[%s5 + $0x2e8] sm:$0xff]
  %v1225 = vld [vmem:[%s5 + $0x2f0] sm:$0xff]
  %v1226 = vld [vmem:[%s5 + $0x2f8] sm:$0xff]
  %v1227 = vld [vmem:[%s5 + $0x300] sm:$0xff]
  %v1228 = vld [vmem:[%s5 + $0x308] sm:$0xff]
  %v1229 = vld [vmem:[%s5 + $0x310] sm:$0xff]
  %v1230 = vld [vmem:[%s5 + $0x318] sm:$0xff]
  %v1231 = vld [vmem:[%s5 + $0x320] sm:$0xff]
  %v1232 = vld [vmem:[%s5 + $0x328] sm:$0xff]
  %v1233 = vld [vmem:[%s5 + $0x330] sm:$0xff]
  %v1234 = vld [vmem:[%s5 + $0x338] sm:$0xff]
  %v1235 = vld [vmem:[%s5 + $0x340] sm:$0xff]
  %v1236 = vld [vmem:[%s5 + $0x348] sm:$0xff]
  %v1237 = vld [vmem:[%s5 + $0x350] sm:$0xff]
  %v1238 = vld [vmem:[%s5 + $0x358] sm:$0xff]
  %v1239 = vld [vmem:[%s5 + $0x360] sm:$0xff]
  %v1240 = vld [vmem:[%s5 + $0x368] sm:$0xff]
  %v1241 = vld [vmem:[%s5 + $0x370] sm:$0xff]
  %v1242 = vld [vmem:[%s5 + $0x378] sm:$0xff]
  %v1243 = vld [vmem:[%s5 + $0x380] sm:$0xff]
  %v1244 = vld [vmem:[%s5 + $0x388] sm:$0xff]
  %v1245 = vld [vmem:[%s5 + $0x390] sm:$0xff]
  %v1246 = vld [vmem:[%s5 + $0x398] sm:$0xff]
  %v1247 = vld [vmem:[%s5 + $0x3a0] sm:$0xff]
  %v1248 = vld [vmem:[%s5 + $0x3a8] sm:$0xff]
  %v1249 = vld [vmem:[%s5 + $0x3b0] sm:$0xff]
  %v1250 = vld [vmem:[%s5 + $0x3b8] sm:$0xff]
  %v1251 = vld [vmem:[%s5 + $0x3c0] sm:$0xff]
  %v1252 = vld [vmem:[%s5 + $0x3c8] sm:$0xff]
  %v1253 = vld [vmem:[%s5 + $0x3d0] sm:$0xff]
  %v1254 = vld [vmem:[%s5 + $0x3d8] sm:$0xff]
  %v1255 = vld [vmem:[%s5 + $0x3e0] sm:$0xff]
  %v1256 = vld [vmem:[%s5 + $0x3e8] sm:$0xff]
  %v1257 = vld [vmem:[%s5 + $0x3f0] sm:$0xff]
  %v1258 = vld [vmem:[%s5 + $0x3f8] sm:$0xff]
  %v1259 = vld [vmem:[%s6] sm:$0xf]
  %v1261 = vlaneseq
  %v1262 = vshrl.u32 %v1261, 7
  %v1263 = vsub.s32 0, %v1262
  %v1264 = vrot.slane %v1259, %v1263
  %v1265 = vlaneseq
  %v1266 = vshrl.u32 %v1265, 7
  %v1267 = vsub.s32 1, %v1266
  %v1268 = vrot.slane %v1259, %v1267
  %v1269 = vlaneseq
  %v1270 = vshrl.u32 %v1269, 7
  %v1271 = vsub.s32 2, %v1270
  %v1272 = vrot.slane %v1259, %v1271
  %v1273 = vlaneseq
  %v1274 = vshrl.u32 %v1273, 7
  %v1275 = vsub.s32 3, %v1274
  %v1276 = vrot.slane %v1259, %v1275
  %1281 = vmatprep.subr.mxu0 %v1192
  %1282 = vmatpush1.msra.mxu0 %v1191
  %1283 = vmatprep.subr.mxu0 %v1188
  %1284 = vmatpush1.msra.mxu0 %v1187
  %1285 = vmatprep.subr.mxu0 %v1184
  %1286 = vmatpush1.msra.mxu0 %v1183
  %1287 = vmatprep.subr.mxu0 %v1180
  %1288 = vmatpush1.msra.mxu0 %v1179
  %1289 = vmatprep.subr.mxu0 %v1176
  %1290 = vmatpush1.msra.mxu0 %v1175
  %1291 = vmatprep.subr.mxu0 %v1172
  %1292 = vmatpush1.msra.mxu0 %v1171
  %1293 = vmatprep.subr.mxu0 %v1168
  %1294 = vmatpush1.msra.mxu0 %v1167
  %1295 = vmatprep.subr.mxu0 %v1164
  %1296 = vmatpush1.msra.mxu0 %v1163
  %1297 = vmatprep.subr.mxu0 %v1160
  %1298 = vmatpush1.msra.mxu0 %v1159
  %1299 = vmatprep.subr.mxu0 %v1156
  %1300 = vmatpush1.msra.mxu0 %v1155
  %1301 = vmatprep.subr.mxu0 %v1152
  %1302 = vmatpush1.msra.mxu0 %v1151
  %1303 = vmatprep.subr.mxu0 %v1148
  %1304 = vmatpush1.msra.mxu0 %v1147
  %1305 = vmatprep.subr.mxu0 %v1144
  %1306 = vmatpush1.msra.mxu0 %v1143
  %1307 = vmatprep.subr.mxu0 %v1140
  %1308 = vmatpush1.msra.mxu0 %v1139
  %1309 = vmatprep.subr.mxu0 %v1136
  %1310 = vmatpush1.msra.mxu0 %v1135
  %1311 = vmatprep.subr.mxu0 %v1132
  %1312 = vmatpush1.msra.mxu0 %v1131
  %1313 = vmatprep.subr.mxu0 %v1256
  %1314 = vmatpush2.msra.mxu0 %v1255
  %1315 = vmatprep.subr.mxu0 %v1252
  %1316 = vmatpush2.msra.mxu0 %v1251
  %1317 = vmatprep.subr.mxu0 %v1248
  %1318 = vmatpush2.msra.mxu0 %v1247
  %1319 = vmatprep.subr.mxu0 %v1244
  %1320 = vmatpush2.msra.mxu0 %v1243
  %1321 = vmatprep.subr.mxu0 %v1240
  %1322 = vmatpush2.msra.mxu0 %v1239
  %1323 = vmatprep.subr.mxu0 %v1236
  %1324 = vmatpush2.msra.mxu0 %v1235
  %1325 = vmatprep.subr.mxu0 %v1232
  %1326 = vmatpush2.msra.mxu0 %v1231
  %1327 = vmatprep.subr.mxu0 %v1228
  %1328 = vmatpush2.msra.mxu0 %v1227
  %1329 = vmatprep.subr.mxu0 %v1224
  %1330 = vmatpush2.msra.mxu0 %v1223
  %1331 = vmatprep.subr.mxu0 %v1220
  %1332 = vmatpush2.msra.mxu0 %v1219
  %1333 = vmatprep.subr.mxu0 %v1216
  %1334 = vmatpush2.msra.mxu0 %v1215
  %1335 = vmatprep.subr.mxu0 %v1212
  %1336 = vmatpush2.msra.mxu0 %v1211
  %1337 = vmatprep.subr.mxu0 %v1208
  %1338 = vmatpush2.msra.mxu0 %v1207
  %1339 = vmatprep.subr.mxu0 %v1204
  %1340 = vmatpush2.msra.mxu0 %v1203
  %1341 = vmatprep.subr.mxu0 %v1200
  %1342 = vmatpush2.msra.mxu0 %v1199
  %1343 = vmatprep.subr.mxu0 %v1196
  %1344 = vmatpush2.msra.mxu0 %v1195
  %1345 = vmatprep.mubr.f32.mxu0 %v897
  %1346 = vmatmul.mubr.f32.gmra.mxu0 %v1130
  %v1347 = vpop.f32.mrf.mxu0
  %v1348 = vadd.f32 %v1264, %v1347
  %v1349 = vpop.f32.mrf.mxu0
  %v1350 = vadd.f32 %v1268, %v1349
  %1351 = vdwg.mxu0
  %1352 = vmatprep.subr.mxu0 %v1194
  %1353 = vmatpush1.msra.mxu0 %v1193
  %1354 = vmatprep.subr.mxu0 %v1190
  %1355 = vmatpush1.msra.mxu0 %v1189
  %1356 = vmatprep.subr.mxu0 %v1186
  %1357 = vmatpush1.msra.mxu0 %v1185
  %1358 = vmatprep.subr.mxu0 %v1182
  %1359 = vmatpush1.msra.mxu0 %v1181
  %1360 = vmatprep.subr.mxu0 %v1178
  %1361 = vmatpush1.msra.mxu0 %v1177
  %1362 = vmatprep.subr.mxu0 %v1174
  %1363 = vmatpush1.msra.mxu0 %v1173
  %1364 = vmatprep.subr.mxu0 %v1170
  %1365 = vmatpush1.msra.mxu0 %v1169
  %1366 = vmatprep.subr.mxu0 %v1166
  %1367 = vmatpush1.msra.mxu0 %v1165
  %1368 = vmatprep.subr.mxu0 %v1162
  %1369 = vmatpush1.msra.mxu0 %v1161
  %1370 = vmatprep.subr.mxu0 %v1158
  %1371 = vmatpush1.msra.mxu0 %v1157
  %1372 = vmatprep.subr.mxu0 %v1154
  %1373 = vmatpush1.msra.mxu0 %v1153
  %1374 = vmatprep.subr.mxu0 %v1150
  %1375 = vmatpush1.msra.mxu0 %v1149
  %1376 = vmatprep.subr.mxu0 %v1146
  %1377 = vmatpush1.msra.mxu0 %v1145
  %1378 = vmatprep.subr.mxu0 %v1142
  %1379 = vmatpush1.msra.mxu0 %v1141
  %1380 = vmatprep.subr.mxu0 %v1138
  %1381 = vmatpush1.msra.mxu0 %v1137
  %1382 = vmatprep.subr.mxu0 %v1134
  %1383 = vmatpush1.msra.mxu0 %v1133
  %1384 = vmatprep.subr.mxu0 %v1258
  %1385 = vmatpush2.msra.mxu0 %v1257
  %1386 = vmatprep.subr.mxu0 %v1254
  %1387 = vmatpush2.msra.mxu0 %v1253
  %1388 = vmatprep.subr.mxu0 %v1250
  %1389 = vmatpush2.msra.mxu0 %v1249
  %1390 = vmatprep.subr.mxu0 %v1246
  %1391 = vmatpush2.msra.mxu0 %v1245
  %1392 = vmatprep.subr.mxu0 %v1242
  %1393 = vmatpush2.msra.mxu0 %v1241
  %1394 = vmatprep.subr.mxu0 %v1238
  %1395 = vmatpush2.msra.mxu0 %v1237
  %1396 = vmatprep.subr.mxu0 %v1234
  %1397 = vmatpush2.msra.mxu0 %v1233
  %1398 = vmatprep.subr.mxu0 %v1230
  %1399 = vmatpush2.msra.mxu0 %v1229
  %1400 = vmatprep.subr.mxu0 %v1226
  %1401 = vmatpush2.msra.mxu0 %v1225
  %1402 = vmatprep.subr.mxu0 %v1222
  %1403 = vmatpush2.msra.mxu0 %v1221
  %1404 = vmatprep.subr.mxu0 %v1218
  %1405 = vmatpush2.msra.mxu0 %v1217
  %1406 = vmatprep.subr.mxu0 %v1214
  %1407 = vmatpush2.msra.mxu0 %v1213
  %1408 = vmatprep.subr.mxu0 %v1210
  %1409 = vmatpush2.msra.mxu0 %v1209
  %1410 = vmatprep.subr.mxu0 %v1206
  %1411 = vmatpush2.msra.mxu0 %v1205
  %1412 = vmatprep.subr.mxu0 %v1202
  %1413 = vmatpush2.msra.mxu0 %v1201
  %1414 = vmatprep.subr.mxu0 %v1198
  %1415 = vmatpush2.msra.mxu0 %v1197
  %1416 = vmatprep.mubr.f32.mxu0 %v897
  %1417 = vmatmul.mubr.f32.gmra.mxu0 %v1130
  %v1418 = vpop.f32.mrf.mxu0
  %v1419 = vadd.f32 %v1272, %v1418
  %v1420 = vpop.f32.mrf.mxu0
  %v1421 = vadd.f32 %v1276, %v1420
  %1422 = vdwg.mxu0
  %v1423 = vxor.u32 %v1348, 2147483648
  %v1424 = vmul.f32 %v1423, 1.442695
  %v1425 = vpow.pop %v1424
  %v1426 = vadd.f32 %v1425, 1.0
  %v1427 = vrcp.pop %v1426
  %v1428 = vmul.f32 1.0, %v1427
  %v1429 = vxor.u32 %v1350, 2147483648
  %v1430 = vmul.f32 %v1429, 1.442695
  %v1431 = vpow.pop %v1430
  %v1432 = vadd.f32 %v1431, 1.0
  %v1433 = vrcp.pop %v1432
  %v1434 = vmul.f32 1.0, %v1433
  %v1435 = vsub.f32 %v1428, 1.0
  %v1436 = vmul.f32 %v1435, %v1421
  %v1437 = vadd.f32 %v1419, %v1436
  %v1438 = vtanh.pop %v1437
  %v1439 = vsub.f32 1.0, %v1434
  %v1440 = vmul.f32 %v1439, %v1438
  %v1441 = vmul.f32 %v1434, %v897
  %v1442 = vadd.f32 %v1440, %v1441
  %s1443 = scalar_lea.vmem [#allocation3], 16
  %1444 = vst [vmem:[%s1443] sm:$0xff] %v1442
  %s1445 = scalar_lea.vmem [#allocation2], 48
  %v1446 = vld [vmem:[%s1445] sm:$0xff]
  %v1447 = vld [vmem:[%s1445 + $0x8] sm:$0xff]
  %v1448 = vld [vmem:[%s1445 + $0x10] sm:$0xff]
  %v1449 = vld [vmem:[%s3] sm:$0xff]
  %v1450 = vld [vmem:[%s3 + $0x8] sm:$0xff]
  %v1451 = vld [vmem:[%s3 + $0x10] sm:$0xff]
  %v1452 = vld [vmem:[%s3 + $0x18] sm:$0xff]
  %v1453 = vld [vmem:[%s3 + $0x20] sm:$0xff]
  %v1454 = vld [vmem:[%s3 + $0x28] sm:$0xff]
  %v1455 = vld [vmem:[%s3 + $0x30] sm:$0xff]
  %v1456 = vld [vmem:[%s3 + $0x38] sm:$0xff]
  %v1457 = vld [vmem:[%s3 + $0x40] sm:$0xff]
  %v1458 = vld [vmem:[%s3 + $0x48] sm:$0xff]
  %v1459 = vld [vmem:[%s3 + $0x50] sm:$0xff]
  %v1460 = vld [vmem:[%s3 + $0x58] sm:$0xff]
  %v1461 = vld [vmem:[%s3 + $0x60] sm:$0xff]
  %v1462 = vld [vmem:[%s3 + $0x68] sm:$0xff]
  %v1463 = vld [vmem:[%s3 + $0x70] sm:$0xff]
  %v1464 = vld [vmem:[%s3 + $0x78] sm:$0xff]
  %v1465 = vld [vmem:[%s3 + $0x80] sm:$0xff]
  %v1466 = vld [vmem:[%s3 + $0x88] sm:$0xff]
  %v1467 = vld [vmem:[%s3 + $0x90] sm:$0xff]
  %v1468 = vld [vmem:[%s3 + $0x98] sm:$0xff]
  %v1469 = vld [vmem:[%s3 + $0xa0] sm:$0xff]
  %v1470 = vld [vmem:[%s3 + $0xa8] sm:$0xff]
  %v1471 = vld [vmem:[%s3 + $0xb0] sm:$0xff]
  %v1472 = vld [vmem:[%s3 + $0xb8] sm:$0xff]
  %v1473 = vld [vmem:[%s3 + $0xc0] sm:$0xff]
  %v1474 = vld [vmem:[%s3 + $0xc8] sm:$0xff]
  %v1475 = vld [vmem:[%s3 + $0xd0] sm:$0xff]
  %v1476 = vld [vmem:[%s3 + $0xd8] sm:$0xff]
  %v1477 = vld [vmem:[%s3 + $0xe0] sm:$0xff]
  %v1478 = vld [vmem:[%s3 + $0xe8] sm:$0xff]
  %v1479 = vld [vmem:[%s3 + $0xf0] sm:$0xff]
  %v1480 = vld [vmem:[%s3 + $0xf8] sm:$0xff]
  %v1481 = vld [vmem:[%s3 + $0x100] sm:$0xff]
  %v1482 = vld [vmem:[%s3 + $0x108] sm:$0xff]
  %v1483 = vld [vmem:[%s3 + $0x110] sm:$0xff]
  %v1484 = vld [vmem:[%s3 + $0x118] sm:$0xff]
  %v1485 = vld [vmem:[%s3 + $0x120] sm:$0xff]
  %v1486 = vld [vmem:[%s3 + $0x128] sm:$0xff]
  %v1487 = vld [vmem:[%s3 + $0x130] sm:$0xff]
  %v1488 = vld [vmem:[%s3 + $0x138] sm:$0xff]
  %v1489 = vld [vmem:[%s3 + $0x140] sm:$0xff]
  %v1490 = vld [vmem:[%s3 + $0x148] sm:$0xff]
  %v1491 = vld [vmem:[%s3 + $0x150] sm:$0xff]
  %v1492 = vld [vmem:[%s3 + $0x158] sm:$0xff]
  %v1493 = vld [vmem:[%s3 + $0x160] sm:$0xff]
  %v1494 = vld [vmem:[%s3 + $0x168] sm:$0xff]
  %v1495 = vld [vmem:[%s3 + $0x170] sm:$0xff]
  %v1496 = vld [vmem:[%s3 + $0x178] sm:$0xff]
  %v1497 = vld [vmem:[%s4] sm:$0x7]
  %v1499 = vlaneseq
  %v1500 = vshrl.u32 %v1499, 7
  %v1501 = vsub.s32 0, %v1500
  %v1502 = vrot.slane %v1497, %v1501
  %v1503 = vlaneseq
  %v1504 = vshrl.u32 %v1503, 7
  %v1505 = vsub.s32 1, %v1504
  %v1506 = vrot.slane %v1497, %v1505
  %v1507 = vlaneseq
  %v1508 = vshrl.u32 %v1507, 7
  %v1509 = vsub.s32 2, %v1508
  %v1510 = vrot.slane %v1497, %v1509
  %1514 = vmatprep.subr.mxu0 %v1495
  %1515 = vmatpush1.msra.mxu0 %v1494
  %1516 = vmatprep.subr.mxu0 %v1492
  %1517 = vmatpush1.msra.mxu0 %v1491
  %1518 = vmatprep.subr.mxu0 %v1489
  %1519 = vmatpush1.msra.mxu0 %v1488
  %1520 = vmatprep.subr.mxu0 %v1486
  %1521 = vmatpush1.msra.mxu0 %v1485
  %1522 = vmatprep.subr.mxu0 %v1483
  %1523 = vmatpush1.msra.mxu0 %v1482
  %1524 = vmatprep.subr.mxu0 %v1480
  %1525 = vmatpush1.msra.mxu0 %v1479
  %1526 = vmatprep.subr.mxu0 %v1477
  %1527 = vmatpush1.msra.mxu0 %v1476
  %1528 = vmatprep.subr.mxu0 %v1474
  %1529 = vmatpush1.msra.mxu0 %v1473
  %1530 = vmatprep.subr.mxu0 %v1471
  %1531 = vmatpush1.msra.mxu0 %v1470
  %1532 = vmatprep.subr.mxu0 %v1468
  %1533 = vmatpush1.msra.mxu0 %v1467
  %1534 = vmatprep.subr.mxu0 %v1465
  %1535 = vmatpush1.msra.mxu0 %v1464
  %1536 = vmatprep.subr.mxu0 %v1462
  %1537 = vmatpush1.msra.mxu0 %v1461
  %1538 = vmatprep.subr.mxu0 %v1459
  %1539 = vmatpush1.msra.mxu0 %v1458
  %1540 = vmatprep.subr.mxu0 %v1456
  %1541 = vmatpush1.msra.mxu0 %v1455
  %1542 = vmatprep.subr.mxu0 %v1453
  %1543 = vmatpush1.msra.mxu0 %v1452
  %1544 = vmatprep.subr.mxu0 %v1450
  %1545 = vmatpush1.msra.mxu0 %v1449
  %1546 = vmatprep.subr.mxu0 0.0
  %1547 = vmatpush2.msra.mxu0 0.0
  %1548 = vmatprep.subr.mxu0 0.0
  %1549 = vmatpush2.msra.mxu0 0.0
  %1550 = vmatprep.subr.mxu0 0.0
  %1551 = vmatpush2.msra.mxu0 0.0
  %1552 = vmatprep.subr.mxu0 0.0
  %1553 = vmatpush2.msra.mxu0 0.0
  %1554 = vmatprep.subr.mxu0 0.0
  %1555 = vmatpush2.msra.mxu0 0.0
  %1556 = vmatprep.subr.mxu0 0.0
  %1557 = vmatpush2.msra.mxu0 0.0
  %1558 = vmatprep.subr.mxu0 0.0
  %1559 = vmatpush2.msra.mxu0 0.0
  %1560 = vmatprep.subr.mxu0 0.0
  %1561 = vmatpush2.msra.mxu0 0.0
  %1562 = vmatprep.subr.mxu0 0.0
  %1563 = vmatpush2.msra.mxu0 0.0
  %1564 = vmatprep.subr.mxu0 0.0
  %1565 = vmatpush2.msra.mxu0 0.0
  %1566 = vmatprep.subr.mxu0 0.0
  %1567 = vmatpush2.msra.mxu0 0.0
  %1568 = vmatprep.subr.mxu0 0.0
  %1569 = vmatpush2.msra.mxu0 0.0
  %1570 = vmatprep.subr.mxu0 0.0
  %1571 = vmatpush2.msra.mxu0 0.0
  %1572 = vmatprep.subr.mxu0 0.0
  %1573 = vmatpush2.msra.mxu0 0.0
  %1574 = vmatprep.subr.mxu0 0.0
  %1575 = vmatpush2.msra.mxu0 0.0
  %1576 = vmatprep.subr.mxu0 0.0
  %1577 = vmatpush2.msra.mxu0 0.0
  %1578 = vmatprep.mubr.f32.mxu0 0.0
  %1579 = vmatmul.mubr.f32.gmra.mxu0 %v1130
  %v1580 = vpop.f32.mrf.mxu0
  %v1581 = vadd.f32 %v1502, %v1580
  %v1582 = vpop.f32.mrf.mxu0
  %v1583 = vadd.f32 %v1506, %v1582
  %1584 = vdwg.mxu0
  %1585 = vmatprep.subr.mxu0 0.0
  %1586 = vmatpush1.msra.mxu0 %v1496
  %1587 = vmatprep.subr.mxu0 0.0
  %1588 = vmatpush1.msra.mxu0 %v1493
  %1589 = vmatprep.subr.mxu0 0.0
  %1590 = vmatpush1.msra.mxu0 %v1490
  %1591 = vmatprep.subr.mxu0 0.0
  %1592 = vmatpush1.msra.mxu0 %v1487
  %1593 = vmatprep.subr.mxu0 0.0
  %1594 = vmatpush1.msra.mxu0 %v1484
  %1595 = vmatprep.subr.mxu0 0.0
  %1596 = vmatpush1.msra.mxu0 %v1481
  %1597 = vmatprep.subr.mxu0 0.0
  %1598 = vmatpush1.msra.mxu0 %v1478
  %1599 = vmatprep.subr.mxu0 0.0
  %1600 = vmatpush1.msra.mxu0 %v1475
  %1601 = vmatprep.subr.mxu0 0.0
  %1602 = vmatpush1.msra.mxu0 %v1472
  %1603 = vmatprep.subr.mxu0 0.0
  %1604 = vmatpush1.msra.mxu0 %v1469
  %1605 = vmatprep.subr.mxu0 0.0
  %1606 = vmatpush1.msra.mxu0 %v1466
  %1607 = vmatprep.subr.mxu0 0.0
  %1608 = vmatpush1.msra.mxu0 %v1463
  %1609 = vmatprep.subr.mxu0 0.0
  %1610 = vmatpush1.msra.mxu0 %v1460
  %1611 = vmatprep.subr.mxu0 0.0
  %1612 = vmatpush1.msra.mxu0 %v1457
  %1613 = vmatprep.subr.mxu0 0.0
  %1614 = vmatpush1.msra.mxu0 %v1454
  %1615 = vmatprep.subr.mxu0 0.0
  %1616 = vmatpush1.msra.mxu0 %v1451
  %1617 = vmatprep.subr.mxu0 0.0
  %1618 = vmatpush2.msra.mxu0 0.0
  %1619 = vmatprep.subr.mxu0 0.0
  %1620 = vmatpush2.msra.mxu0 0.0
  %1621 = vmatprep.subr.mxu0 0.0
  %1622 = vmatpush2.msra.mxu0 0.0
  %1623 = vmatprep.subr.mxu0 0.0
  %1624 = vmatpush2.msra.mxu0 0.0
  %1625 = vmatprep.subr.mxu0 0.0
  %1626 = vmatpush2.msra.mxu0 0.0
  %1627 = vmatprep.subr.mxu0 0.0
  %1628 = vmatpush2.msra.mxu0 0.0
  %1629 = vmatprep.subr.mxu0 0.0
  %1630 = vmatpush2.msra.mxu0 0.0
  %1631 = vmatprep.subr.mxu0 0.0
  %1632 = vmatpush2.msra.mxu0 0.0
  %1633 = vmatprep.subr.mxu0 0.0
  %1634 = vmatpush2.msra.mxu0 0.0
  %1635 = vmatprep.subr.mxu0 0.0
  %1636 = vmatpush2.msra.mxu0 0.0
  %1637 = vmatprep.subr.mxu0 0.0
  %1638 = vmatpush2.msra.mxu0 0.0
  %1639 = vmatprep.subr.mxu0 0.0
  %1640 = vmatpush2.msra.mxu0 0.0
  %1641 = vmatprep.subr.mxu0 0.0
  %1642 = vmatpush2.msra.mxu0 0.0
  %1643 = vmatprep.subr.mxu0 0.0
  %1644 = vmatpush2.msra.mxu0 0.0
  %1645 = vmatprep.subr.mxu0 0.0
  %1646 = vmatpush2.msra.mxu0 0.0
  %1647 = vmatprep.subr.mxu0 0.0
  %1648 = vmatpush2.msra.mxu0 0.0
  %1649 = vmatprep.mubr.f32.mxu0 0.0
  %1650 = vmatmul.mubr.f32.gmra.mxu0 %v1130
  %v1651 = vpop.f32.mrf.mxu0
  %v1652 = vadd.f32 %v1510, %v1651
  %v1653 = vpop.f32.mrf.mxu0
  %1654 = vdwg.mxu0
  %v1655 = vadd.f32 %v1446, %v1581
  %v1656 = vxor.u32 %v1655, 2147483648
  %v1657 = vmul.f32 %v1656, 1.442695
  %v1658 = vpow.pop %v1657
  %v1659 = vadd.f32 %v1658, 1.0
  %v1660 = vrcp.pop %v1659
  %v1661 = vmul.f32 1.0, %v1660
  %v1662 = vadd.f32 %v1447, %v1583
  %v1663 = vxor.u32 %v1662, 2147483648
  %v1664 = vmul.f32 %v1663, 1.442695
  %v1665 = vpow.pop %v1664
  %v1666 = vadd.f32 %v1665, 1.0
  %v1667 = vrcp.pop %v1666
  %v1668 = vmul.f32 1.0, %v1667
  %v1669 = vmul.f32 %v1661, %v1652
  %v1670 = vadd.f32 %v1448, %v1669
  %v1671 = vtanh.pop %v1670
  %v1672 = vsub.f32 1.0, %v1668
  %v1673 = vmul.f32 %v1672, %v1671
  %v1674 = vmul.f32 %v1668, %v1130
  %v1675 = vadd.f32 %v1673, %v1674
  %v1676 = vld [vmem:[%s5] sm:$0xff]
  %v1677 = vld [vmem:[%s5 + $0x8] sm:$0xff]
  %v1678 = vld [vmem:[%s5 + $0x10] sm:$0xff]
  %v1679 = vld [vmem:[%s5 + $0x18] sm:$0xff]
  %v1680 = vld [vmem:[%s5 + $0x20] sm:$0xff]
  %v1681 = vld [vmem:[%s5 + $0x28] sm:$0xff]
  %v1682 = vld [vmem:[%s5 + $0x30] sm:$0xff]
  %v1683 = vld [vmem:[%s5 + $0x38] sm:$0xff]
  %v1684 = vld [vmem:[%s5 + $0x40] sm:$0xff]
  %v1685 = vld [vmem:[%s5 + $0x48] sm:$0xff]
  %v1686 = vld [vmem:[%s5 + $0x50] sm:$0xff]
  %v1687 = vld [vmem:[%s5 + $0x58] sm:$0xff]
  %v1688 = vld [vmem:[%s5 + $0x60] sm:$0xff]
  %v1689 = vld [vmem:[%s5 + $0x68] sm:$0xff]
  %v1690 = vld [vmem:[%s5 + $0x70] sm:$0xff]
  %v1691 = vld [vmem:[%s5 + $0x78] sm:$0xff]
  %v1692 = vld [vmem:[%s5 + $0x80] sm:$0xff]
  %v1693 = vld [vmem:[%s5 + $0x88] sm:$0xff]
  %v1694 = vld [vmem:[%s5 + $0x90] sm:$0xff]
  %v1695 = vld [vmem:[%s5 + $0x98] sm:$0xff]
  %v1696 = vld [vmem:[%s5 + $0xa0] sm:$0xff]
  %v1697 = vld [vmem:[%s5 + $0xa8] sm:$0xff]
  %v1698 = vld [vmem:[%s5 + $0xb0] sm:$0xff]
  %v1699 = vld [vmem:[%s5 + $0xb8] sm:$0xff]
  %v1700 = vld [vmem:[%s5 + $0xc0] sm:$0xff]
  %v1701 = vld [vmem:[%s5 + $0xc8] sm:$0xff]
  %v1702 = vld [vmem:[%s5 + $0xd0] sm:$0xff]
  %v1703 = vld [vmem:[%s5 + $0xd8] sm:$0xff]
  %v1704 = vld [vmem:[%s5 + $0xe0] sm:$0xff]
  %v1705 = vld [vmem:[%s5 + $0xe8] sm:$0xff]
  %v1706 = vld [vmem:[%s5 + $0xf0] sm:$0xff]
  %v1707 = vld [vmem:[%s5 + $0xf8] sm:$0xff]
  %v1708 = vld [vmem:[%s5 + $0x100] sm:$0xff]
  %v1709 = vld [vmem:[%s5 + $0x108] sm:$0xff]
  %v1710 = vld [vmem:[%s5 + $0x110] sm:$0xff]
  %v1711 = vld [vmem:[%s5 + $0x118] sm:$0xff]
  %v1712 = vld [vmem:[%s5 + $0x120] sm:$0xff]
  %v1713 = vld [vmem:[%s5 + $0x128] sm:$0xff]
  %v1714 = vld [vmem:[%s5 + $0x130] sm:$0xff]
  %v1715 = vld [vmem:[%s5 + $0x138] sm:$0xff]
  %v1716 = vld [vmem:[%s5 + $0x140] sm:$0xff]
  %v1717 = vld [vmem:[%s5 + $0x148] sm:$0xff]
  %v1718 = vld [vmem:[%s5 + $0x150] sm:$0xff]
  %v1719 = vld [vmem:[%s5 + $0x158] sm:$0xff]
  %v1720 = vld [vmem:[%s5 + $0x160] sm:$0xff]
  %v1721 = vld [vmem:[%s5 + $0x168] sm:$0xff]
  %v1722 = vld [vmem:[%s5 + $0x170] sm:$0xff]
  %v1723 = vld [vmem:[%s5 + $0x178] sm:$0xff]
  %v1724 = vld [vmem:[%s5 + $0x180] sm:$0xff]
  %v1725 = vld [vmem:[%s5 + $0x188] sm:$0xff]
  %v1726 = vld [vmem:[%s5 + $0x190] sm:$0xff]
  %v1727 = vld [vmem:[%s5 + $0x198] sm:$0xff]
  %v1728 = vld [vmem:[%s5 + $0x1a0] sm:$0xff]
  %v1729 = vld [vmem:[%s5 + $0x1a8] sm:$0xff]
  %v1730 = vld [vmem:[%s5 + $0x1b0] sm:$0xff]
  %v1731 = vld [vmem:[%s5 + $0x1b8] sm:$0xff]
  %v1732 = vld [vmem:[%s5 + $0x1c0] sm:$0xff]
  %v1733 = vld [vmem:[%s5 + $0x1c8] sm:$0xff]
  %v1734 = vld [vmem:[%s5 + $0x1d0] sm:$0xff]
  %v1735 = vld [vmem:[%s5 + $0x1d8] sm:$0xff]
  %v1736 = vld [vmem:[%s5 + $0x1e0] sm:$0xff]
  %v1737 = vld [vmem:[%s5 + $0x1e8] sm:$0xff]
  %v1738 = vld [vmem:[%s5 + $0x1f0] sm:$0xff]
  %v1739 = vld [vmem:[%s5 + $0x1f8] sm:$0xff]
  %v1740 = vld [vmem:[%s5 + $0x200] sm:$0xff]
  %v1741 = vld [vmem:[%s5 + $0x208] sm:$0xff]
  %v1742 = vld [vmem:[%s5 + $0x210] sm:$0xff]
  %v1743 = vld [vmem:[%s5 + $0x218] sm:$0xff]
  %v1744 = vld [vmem:[%s5 + $0x220] sm:$0xff]
  %v1745 = vld [vmem:[%s5 + $0x228] sm:$0xff]
  %v1746 = vld [vmem:[%s5 + $0x230] sm:$0xff]
  %v1747 = vld [vmem:[%s5 + $0x238] sm:$0xff]
  %v1748 = vld [vmem:[%s5 + $0x240] sm:$0xff]
  %v1749 = vld [vmem:[%s5 + $0x248] sm:$0xff]
  %v1750 = vld [vmem:[%s5 + $0x250] sm:$0xff]
  %v1751 = vld [vmem:[%s5 + $0x258] sm:$0xff]
  %v1752 = vld [vmem:[%s5 + $0x260] sm:$0xff]
  %v1753 = vld [vmem:[%s5 + $0x268] sm:$0xff]
  %v1754 = vld [vmem:[%s5 + $0x270] sm:$0xff]
  %v1755 = vld [vmem:[%s5 + $0x278] sm:$0xff]
  %v1756 = vld [vmem:[%s5 + $0x280] sm:$0xff]
  %v1757 = vld [vmem:[%s5 + $0x288] sm:$0xff]
  %v1758 = vld [vmem:[%s5 + $0x290] sm:$0xff]
  %v1759 = vld [vmem:[%s5 + $0x298] sm:$0xff]
  %v1760 = vld [vmem:[%s5 + $0x2a0] sm:$0xff]
  %v1761 = vld [vmem:[%s5 + $0x2a8] sm:$0xff]
  %v1762 = vld [vmem:[%s5 + $0x2b0] sm:$0xff]
  %v1763 = vld [vmem:[%s5 + $0x2b8] sm:$0xff]
  %v1764 = vld [vmem:[%s5 + $0x2c0] sm:$0xff]
  %v1765 = vld [vmem:[%s5 + $0x2c8] sm:$0xff]
  %v1766 = vld [vmem:[%s5 + $0x2d0] sm:$0xff]
  %v1767 = vld [vmem:[%s5 + $0x2d8] sm:$0xff]
  %v1768 = vld [vmem:[%s5 + $0x2e0] sm:$0xff]
  %v1769 = vld [vmem:[%s5 + $0x2e8] sm:$0xff]
  %v1770 = vld [vmem:[%s5 + $0x2f0] sm:$0xff]
  %v1771 = vld [vmem:[%s5 + $0x2f8] sm:$0xff]
  %v1772 = vld [vmem:[%s5 + $0x300] sm:$0xff]
  %v1773 = vld [vmem:[%s5 + $0x308] sm:$0xff]
  %v1774 = vld [vmem:[%s5 + $0x310] sm:$0xff]
  %v1775 = vld [vmem:[%s5 + $0x318] sm:$0xff]
  %v1776 = vld [vmem:[%s5 + $0x320] sm:$0xff]
  %v1777 = vld [vmem:[%s5 + $0x328] sm:$0xff]
  %v1778 = vld [vmem:[%s5 + $0x330] sm:$0xff]
  %v1779 = vld [vmem:[%s5 + $0x338] sm:$0xff]
  %v1780 = vld [vmem:[%s5 + $0x340] sm:$0xff]
  %v1781 = vld [vmem:[%s5 + $0x348] sm:$0xff]
  %v1782 = vld [vmem:[%s5 + $0x350] sm:$0xff]
  %v1783 = vld [vmem:[%s5 + $0x358] sm:$0xff]
  %v1784 = vld [vmem:[%s5 + $0x360] sm:$0xff]
  %v1785 = vld [vmem:[%s5 + $0x368] sm:$0xff]
  %v1786 = vld [vmem:[%s5 + $0x370] sm:$0xff]
  %v1787 = vld [vmem:[%s5 + $0x378] sm:$0xff]
  %v1788 = vld [vmem:[%s5 + $0x380] sm:$0xff]
  %v1789 = vld [vmem:[%s5 + $0x388] sm:$0xff]
  %v1790 = vld [vmem:[%s5 + $0x390] sm:$0xff]
  %v1791 = vld [vmem:[%s5 + $0x398] sm:$0xff]
  %v1792 = vld [vmem:[%s5 + $0x3a0] sm:$0xff]
  %v1793 = vld [vmem:[%s5 + $0x3a8] sm:$0xff]
  %v1794 = vld [vmem:[%s5 + $0x3b0] sm:$0xff]
  %v1795 = vld [vmem:[%s5 + $0x3b8] sm:$0xff]
  %v1796 = vld [vmem:[%s5 + $0x3c0] sm:$0xff]
  %v1797 = vld [vmem:[%s5 + $0x3c8] sm:$0xff]
  %v1798 = vld [vmem:[%s5 + $0x3d0] sm:$0xff]
  %v1799 = vld [vmem:[%s5 + $0x3d8] sm:$0xff]
  %v1800 = vld [vmem:[%s5 + $0x3e0] sm:$0xff]
  %v1801 = vld [vmem:[%s5 + $0x3e8] sm:$0xff]
  %v1802 = vld [vmem:[%s5 + $0x3f0] sm:$0xff]
  %v1803 = vld [vmem:[%s5 + $0x3f8] sm:$0xff]
  %v1804 = vld [vmem:[%s6] sm:$0xf]
  %v1806 = vlaneseq
  %v1807 = vshrl.u32 %v1806, 7
  %v1808 = vsub.s32 0, %v1807
  %v1809 = vrot.slane %v1804, %v1808
  %v1810 = vlaneseq
  %v1811 = vshrl.u32 %v1810, 7
  %v1812 = vsub.s32 1, %v1811
  %v1813 = vrot.slane %v1804, %v1812
  %v1814 = vlaneseq
  %v1815 = vshrl.u32 %v1814, 7
  %v1816 = vsub.s32 2, %v1815
  %v1817 = vrot.slane %v1804, %v1816
  %v1818 = vlaneseq
  %v1819 = vshrl.u32 %v1818, 7
  %v1820 = vsub.s32 3, %v1819
  %v1821 = vrot.slane %v1804, %v1820
  %1826 = vmatprep.subr.mxu0 %v1737
  %1827 = vmatpush1.msra.mxu0 %v1736
  %1828 = vmatprep.subr.mxu0 %v1733
  %1829 = vmatpush1.msra.mxu0 %v1732
  %1830 = vmatprep.subr.mxu0 %v1729
  %1831 = vmatpush1.msra.mxu0 %v1728
  %1832 = vmatprep.subr.mxu0 %v1725
  %1833 = vmatpush1.msra.mxu0 %v1724
  %1834 = vmatprep.subr.mxu0 %v1721
  %1835 = vmatpush1.msra.mxu0 %v1720
  %1836 = vmatprep.subr.mxu0 %v1717
  %1837 = vmatpush1.msra.mxu0 %v1716
  %1838 = vmatprep.subr.mxu0 %v1713
  %1839 = vmatpush1.msra.mxu0 %v1712
  %1840 = vmatprep.subr.mxu0 %v1709
  %1841 = vmatpush1.msra.mxu0 %v1708
  %1842 = vmatprep.subr.mxu0 %v1705
  %1843 = vmatpush1.msra.mxu0 %v1704
  %1844 = vmatprep.subr.mxu0 %v1701
  %1845 = vmatpush1.msra.mxu0 %v1700
  %1846 = vmatprep.subr.mxu0 %v1697
  %1847 = vmatpush1.msra.mxu0 %v1696
  %1848 = vmatprep.subr.mxu0 %v1693
  %1849 = vmatpush1.msra.mxu0 %v1692
  %1850 = vmatprep.subr.mxu0 %v1689
  %1851 = vmatpush1.msra.mxu0 %v1688
  %1852 = vmatprep.subr.mxu0 %v1685
  %1853 = vmatpush1.msra.mxu0 %v1684
  %1854 = vmatprep.subr.mxu0 %v1681
  %1855 = vmatpush1.msra.mxu0 %v1680
  %1856 = vmatprep.subr.mxu0 %v1677
  %1857 = vmatpush1.msra.mxu0 %v1676
  %1858 = vmatprep.subr.mxu0 %v1801
  %1859 = vmatpush2.msra.mxu0 %v1800
  %1860 = vmatprep.subr.mxu0 %v1797
  %1861 = vmatpush2.msra.mxu0 %v1796
  %1862 = vmatprep.subr.mxu0 %v1793
  %1863 = vmatpush2.msra.mxu0 %v1792
  %1864 = vmatprep.subr.mxu0 %v1789
  %1865 = vmatpush2.msra.mxu0 %v1788
  %1866 = vmatprep.subr.mxu0 %v1785
  %1867 = vmatpush2.msra.mxu0 %v1784
  %1868 = vmatprep.subr.mxu0 %v1781
  %1869 = vmatpush2.msra.mxu0 %v1780
  %1870 = vmatprep.subr.mxu0 %v1777
  %1871 = vmatpush2.msra.mxu0 %v1776
  %1872 = vmatprep.subr.mxu0 %v1773
  %1873 = vmatpush2.msra.mxu0 %v1772
  %1874 = vmatprep.subr.mxu0 %v1769
  %1875 = vmatpush2.msra.mxu0 %v1768
  %1876 = vmatprep.subr.mxu0 %v1765
  %1877 = vmatpush2.msra.mxu0 %v1764
  %1878 = vmatprep.subr.mxu0 %v1761
  %1879 = vmatpush2.msra.mxu0 %v1760
  %1880 = vmatprep.subr.mxu0 %v1757
  %1881 = vmatpush2.msra.mxu0 %v1756
  %1882 = vmatprep.subr.mxu0 %v1753
  %1883 = vmatpush2.msra.mxu0 %v1752
  %1884 = vmatprep.subr.mxu0 %v1749
  %1885 = vmatpush2.msra.mxu0 %v1748
  %1886 = vmatprep.subr.mxu0 %v1745
  %1887 = vmatpush2.msra.mxu0 %v1744
  %1888 = vmatprep.subr.mxu0 %v1741
  %1889 = vmatpush2.msra.mxu0 %v1740
  %1890 = vmatprep.mubr.f32.mxu0 %v1442
  %1891 = vmatmul.mubr.f32.gmra.mxu0 %v1675
  %v1892 = vpop.f32.mrf.mxu0
  %v1893 = vadd.f32 %v1809, %v1892
  %v1894 = vpop.f32.mrf.mxu0
  %v1895 = vadd.f32 %v1813, %v1894
  %1896 = vdwg.mxu0
  %1897 = vmatprep.subr.mxu0 %v1739
  %1898 = vmatpush1.msra.mxu0 %v1738
  %1899 = vmatprep.subr.mxu0 %v1735
  %1900 = vmatpush1.msra.mxu0 %v1734
  %1901 = vmatprep.subr.mxu0 %v1731
  %1902 = vmatpush1.msra.mxu0 %v1730
  %1903 = vmatprep.subr.mxu0 %v1727
  %1904 = vmatpush1.msra.mxu0 %v1726
  %1905 = vmatprep.subr.mxu0 %v1723
  %1906 = vmatpush1.msra.mxu0 %v1722
  %1907 = vmatprep.subr.mxu0 %v1719
  %1908 = vmatpush1.msra.mxu0 %v1718
  %1909 = vmatprep.subr.mxu0 %v1715
  %1910 = vmatpush1.msra.mxu0 %v1714
  %1911 = vmatprep.subr.mxu0 %v1711
  %1912 = vmatpush1.msra.mxu0 %v1710
  %1913 = vmatprep.subr.mxu0 %v1707
  %1914 = vmatpush1.msra.mxu0 %v1706
  %1915 = vmatprep.subr.mxu0 %v1703
  %1916 = vmatpush1.msra.mxu0 %v1702
  %1917 = vmatprep.subr.mxu0 %v1699
  %1918 = vmatpush1.msra.mxu0 %v1698
  %1919 = vmatprep.subr.mxu0 %v1695
  %1920 = vmatpush1.msra.mxu0 %v1694
  %1921 = vmatprep.subr.mxu0 %v1691
  %1922 = vmatpush1.msra.mxu0 %v1690
  %1923 = vmatprep.subr.mxu0 %v1687
  %1924 = vmatpush1.msra.mxu0 %v1686
  %1925 = vmatprep.subr.mxu0 %v1683
  %1926 = vmatpush1.msra.mxu0 %v1682
  %1927 = vmatprep.subr.mxu0 %v1679
  %1928 = vmatpush1.msra.mxu0 %v1678
  %1929 = vmatprep.subr.mxu0 %v1803
  %1930 = vmatpush2.msra.mxu0 %v1802
  %1931 = vmatprep.subr.mxu0 %v1799
  %1932 = vmatpush2.msra.mxu0 %v1798
  %1933 = vmatprep.subr.mxu0 %v1795
  %1934 = vmatpush2.msra.mxu0 %v1794
  %1935 = vmatprep.subr.mxu0 %v1791
  %1936 = vmatpush2.msra.mxu0 %v1790
  %1937 = vmatprep.subr.mxu0 %v1787
  %1938 = vmatpush2.msra.mxu0 %v1786
  %1939 = vmatprep.subr.mxu0 %v1783
  %1940 = vmatpush2.msra.mxu0 %v1782
  %1941 = vmatprep.subr.mxu0 %v1779
  %1942 = vmatpush2.msra.mxu0 %v1778
  %1943 = vmatprep.subr.mxu0 %v1775
  %1944 = vmatpush2.msra.mxu0 %v1774
  %1945 = vmatprep.subr.mxu0 %v1771
  %1946 = vmatpush2.msra.mxu0 %v1770
  %1947 = vmatprep.subr.mxu0 %v1767
  %1948 = vmatpush2.msra.mxu0 %v1766
  %1949 = vmatprep.subr.mxu0 %v1763
  %1950 = vmatpush2.msra.mxu0 %v1762
  %1951 = vmatprep.subr.mxu0 %v1759
  %1952 = vmatpush2.msra.mxu0 %v1758
  %1953 = vmatprep.subr.mxu0 %v1755
  %1954 = vmatpush2.msra.mxu0 %v1754
  %1955 = vmatprep.subr.mxu0 %v1751
  %1956 = vmatpush2.msra.mxu0 %v1750
  %1957 = vmatprep.subr.mxu0 %v1747
  %1958 = vmatpush2.msra.mxu0 %v1746
  %1959 = vmatprep.subr.mxu0 %v1743
  %1960 = vmatpush2.msra.mxu0 %v1742
  %1961 = vmatprep.mubr.f32.mxu0 %v1442
  %1962 = vmatmul.mubr.f32.gmra.mxu0 %v1675
  %v1963 = vpop.f32.mrf.mxu0
  %v1964 = vadd.f32 %v1817, %v1963
  %v1965 = vpop.f32.mrf.mxu0
  %v1966 = vadd.f32 %v1821, %v1965
  %1967 = vdwg.mxu0
  %v1968 = vxor.u32 %v1893, 2147483648
  %v1969 = vmul.f32 %v1968, 1.442695
  %v1970 = vpow.pop %v1969
  %v1971 = vadd.f32 %v1970, 1.0
  %v1972 = vrcp.pop %v1971
  %v1973 = vmul.f32 1.0, %v1972
  %v1974 = vxor.u32 %v1895, 2147483648
  %v1975 = vmul.f32 %v1974, 1.442695
  %v1976 = vpow.pop %v1975
  %v1977 = vadd.f32 %v1976, 1.0
  %v1978 = vrcp.pop %v1977
  %v1979 = vmul.f32 1.0, %v1978
  %v1980 = vsub.f32 %v1973, 1.0
  %v1981 = vmul.f32 %v1980, %v1966
  %v1982 = vadd.f32 %v1964, %v1981
  %v1983 = vtanh.pop %v1982
  %v1984 = vsub.f32 1.0, %v1979
  %v1985 = vmul.f32 %v1984, %v1983
  %v1986 = vmul.f32 %v1979, %v1442
  %v1987 = vadd.f32 %v1985, %v1986
  %s1988 = scalar_lea.vmem [#allocation3], 24
  %1989 = vst [vmem:[%s1988] sm:$0xff] %v1987
  %s1990 = scalar_lea.vmem [#allocation2], 72
  %v1991 = vld [vmem:[%s1990] sm:$0xff]
  %v1992 = vld [vmem:[%s1990 + $0x8] sm:$0xff]
  %v1993 = vld [vmem:[%s1990 + $0x10] sm:$0xff]
  %v1994 = vld [vmem:[%s3] sm:$0xff]
  %v1995 = vld [vmem:[%s3 + $0x8] sm:$0xff]
  %v1996 = vld [vmem:[%s3 + $0x10] sm:$0xff]
  %v1997 = vld [vmem:[%s3 + $0x18] sm:$0xff]
  %v1998 = vld [vmem:[%s3 + $0x20] sm:$0xff]
  %v1999 = vld [vmem:[%s3 + $0x28] sm:$0xff]
  %v2000 = vld [vmem:[%s3 + $0x30] sm:$0xff]
  %v2001 = vld [vmem:[%s3 + $0x38] sm:$0xff]
  %v2002 = vld [vmem:[%s3 + $0x40] sm:$0xff]
  %v2003 = vld [vmem:[%s3 + $0x48] sm:$0xff]
  %v2004 = vld [vmem:[%s3 + $0x50] sm:$0xff]
  %v2005 = vld [vmem:[%s3 + $0x58] sm:$0xff]
  %v2006 = vld [vmem:[%s3 + $0x60] sm:$0xff]
  %v2007 = vld [vmem:[%s3 + $0x68] sm:$0xff]
  %v2008 = vld [vmem:[%s3 + $0x70] sm:$0xff]
  %v2009 = vld [vmem:[%s3 + $0x78] sm:$0xff]
  %v2010 = vld [vmem:[%s3 + $0x80] sm:$0xff]
  %v2011 = vld [vmem:[%s3 + $0x88] sm:$0xff]
  %v2012 = vld [vmem:[%s3 + $0x90] sm:$0xff]
  %v2013 = vld [vmem:[%s3 + $0x98] sm:$0xff]
  %v2014 = vld [vmem:[%s3 + $0xa0] sm:$0xff]
  %v2015 = vld [vmem:[%s3 + $0xa8] sm:$0xff]
  %v2016 = vld [vmem:[%s3 + $0xb0] sm:$0xff]
  %v2017 = vld [vmem:[%s3 + $0xb8] sm:$0xff]
  %v2018 = vld [vmem:[%s3 + $0xc0] sm:$0xff]
  %v2019 = vld [vmem:[%s3 + $0xc8] sm:$0xff]
  %v2020 = vld [vmem:[%s3 + $0xd0] sm:$0xff]
  %v2021 = vld [vmem:[%s3 + $0xd8] sm:$0xff]
  %v2022 = vld [vmem:[%s3 + $0xe0] sm:$0xff]
  %v2023 = vld [vmem:[%s3 + $0xe8] sm:$0xff]
  %v2024 = vld [vmem:[%s3 + $0xf0] sm:$0xff]
  %v2025 = vld [vmem:[%s3 + $0xf8] sm:$0xff]
  %v2026 = vld [vmem:[%s3 + $0x100] sm:$0xff]
  %v2027 = vld [vmem:[%s3 + $0x108] sm:$0xff]
  %v2028 = vld [vmem:[%s3 + $0x110] sm:$0xff]
  %v2029 = vld [vmem:[%s3 + $0x118] sm:$0xff]
  %v2030 = vld [vmem:[%s3 + $0x120] sm:$0xff]
  %v2031 = vld [vmem:[%s3 + $0x128] sm:$0xff]
  %v2032 = vld [vmem:[%s3 + $0x130] sm:$0xff]
  %v2033 = vld [vmem:[%s3 + $0x138] sm:$0xff]
  %v2034 = vld [vmem:[%s3 + $0x140] sm:$0xff]
  %v2035 = vld [vmem:[%s3 + $0x148] sm:$0xff]
  %v2036 = vld [vmem:[%s3 + $0x150] sm:$0xff]
  %v2037 = vld [vmem:[%s3 + $0x158] sm:$0xff]
  %v2038 = vld [vmem:[%s3 + $0x160] sm:$0xff]
  %v2039 = vld [vmem:[%s3 + $0x168] sm:$0xff]
  %v2040 = vld [vmem:[%s3 + $0x170] sm:$0xff]
  %v2041 = vld [vmem:[%s3 + $0x178] sm:$0xff]
  %v2042 = vld [vmem:[%s4] sm:$0x7]
  %v2044 = vlaneseq
  %v2045 = vshrl.u32 %v2044, 7
  %v2046 = vsub.s32 0, %v2045
  %v2047 = vrot.slane %v2042, %v2046
  %v2048 = vlaneseq
  %v2049 = vshrl.u32 %v2048, 7
  %v2050 = vsub.s32 1, %v2049
  %v2051 = vrot.slane %v2042, %v2050
  %v2052 = vlaneseq
  %v2053 = vshrl.u32 %v2052, 7
  %v2054 = vsub.s32 2, %v2053
  %v2055 = vrot.slane %v2042, %v2054
  %2059 = vmatprep.subr.mxu0 %v2040
  %2060 = vmatpush1.msra.mxu0 %v2039
  %2061 = vmatprep.subr.mxu0 %v2037
  %2062 = vmatpush1.msra.mxu0 %v2036
  %2063 = vmatprep.subr.mxu0 %v2034
  %2064 = vmatpush1.msra.mxu0 %v2033
  %2065 = vmatprep.subr.mxu0 %v2031
  %2066 = vmatpush1.msra.mxu0 %v2030
  %2067 = vmatprep.subr.mxu0 %v2028
  %2068 = vmatpush1.msra.mxu0 %v2027
  %2069 = vmatprep.subr.mxu0 %v2025
  %2070 = vmatpush1.msra.mxu0 %v2024
  %2071 = vmatprep.subr.mxu0 %v2022
  %2072 = vmatpush1.msra.mxu0 %v2021
  %2073 = vmatprep.subr.mxu0 %v2019
  %2074 = vmatpush1.msra.mxu0 %v2018
  %2075 = vmatprep.subr.mxu0 %v2016
  %2076 = vmatpush1.msra.mxu0 %v2015
  %2077 = vmatprep.subr.mxu0 %v2013
  %2078 = vmatpush1.msra.mxu0 %v2012
  %2079 = vmatprep.subr.mxu0 %v2010
  %2080 = vmatpush1.msra.mxu0 %v2009
  %2081 = vmatprep.subr.mxu0 %v2007
  %2082 = vmatpush1.msra.mxu0 %v2006
  %2083 = vmatprep.subr.mxu0 %v2004
  %2084 = vmatpush1.msra.mxu0 %v2003
  %2085 = vmatprep.subr.mxu0 %v2001
  %2086 = vmatpush1.msra.mxu0 %v2000
  %2087 = vmatprep.subr.mxu0 %v1998
  %2088 = vmatpush1.msra.mxu0 %v1997
  %2089 = vmatprep.subr.mxu0 %v1995
  %2090 = vmatpush1.msra.mxu0 %v1994
  %2091 = vmatprep.subr.mxu0 0.0
  %2092 = vmatpush2.msra.mxu0 0.0
  %2093 = vmatprep.subr.mxu0 0.0
  %2094 = vmatpush2.msra.mxu0 0.0
  %2095 = vmatprep.subr.mxu0 0.0
  %2096 = vmatpush2.msra.mxu0 0.0
  %2097 = vmatprep.subr.mxu0 0.0
  %2098 = vmatpush2.msra.mxu0 0.0
  %2099 = vmatprep.subr.mxu0 0.0
  %2100 = vmatpush2.msra.mxu0 0.0
  %2101 = vmatprep.subr.mxu0 0.0
  %2102 = vmatpush2.msra.mxu0 0.0
  %2103 = vmatprep.subr.mxu0 0.0
  %2104 = vmatpush2.msra.mxu0 0.0
  %2105 = vmatprep.subr.mxu0 0.0
  %2106 = vmatpush2.msra.mxu0 0.0
  %2107 = vmatprep.subr.mxu0 0.0
  %2108 = vmatpush2.msra.mxu0 0.0
  %2109 = vmatprep.subr.mxu0 0.0
  %2110 = vmatpush2.msra.mxu0 0.0
  %2111 = vmatprep.subr.mxu0 0.0
  %2112 = vmatpush2.msra.mxu0 0.0
  %2113 = vmatprep.subr.mxu0 0.0
  %2114 = vmatpush2.msra.mxu0 0.0
  %2115 = vmatprep.subr.mxu0 0.0
  %2116 = vmatpush2.msra.mxu0 0.0
  %2117 = vmatprep.subr.mxu0 0.0
  %2118 = vmatpush2.msra.mxu0 0.0
  %2119 = vmatprep.subr.mxu0 0.0
  %2120 = vmatpush2.msra.mxu0 0.0
  %2121 = vmatprep.subr.mxu0 0.0
  %2122 = vmatpush2.msra.mxu0 0.0
  %2123 = vmatprep.mubr.f32.mxu0 0.0
  %2124 = vmatmul.mubr.f32.gmra.mxu0 %v1675
  %v2125 = vpop.f32.mrf.mxu0
  %v2126 = vadd.f32 %v2047, %v2125
  %v2127 = vpop.f32.mrf.mxu0
  %v2128 = vadd.f32 %v2051, %v2127
  %2129 = vdwg.mxu0
  %2130 = vmatprep.subr.mxu0 0.0
  %2131 = vmatpush1.msra.mxu0 %v2041
  %2132 = vmatprep.subr.mxu0 0.0
  %2133 = vmatpush1.msra.mxu0 %v2038
  %2134 = vmatprep.subr.mxu0 0.0
  %2135 = vmatpush1.msra.mxu0 %v2035
  %2136 = vmatprep.subr.mxu0 0.0
  %2137 = vmatpush1.msra.mxu0 %v2032
  %2138 = vmatprep.subr.mxu0 0.0
  %2139 = vmatpush1.msra.mxu0 %v2029
  %2140 = vmatprep.subr.mxu0 0.0
  %2141 = vmatpush1.msra.mxu0 %v2026
  %2142 = vmatprep.subr.mxu0 0.0
  %2143 = vmatpush1.msra.mxu0 %v2023
  %2144 = vmatprep.subr.mxu0 0.0
  %2145 = vmatpush1.msra.mxu0 %v2020
  %2146 = vmatprep.subr.mxu0 0.0
  %2147 = vmatpush1.msra.mxu0 %v2017
  %2148 = vmatprep.subr.mxu0 0.0
  %2149 = vmatpush1.msra.mxu0 %v2014
  %2150 = vmatprep.subr.mxu0 0.0
  %2151 = vmatpush1.msra.mxu0 %v2011
  %2152 = vmatprep.subr.mxu0 0.0
  %2153 = vmatpush1.msra.mxu0 %v2008
  %2154 = vmatprep.subr.mxu0 0.0
  %2155 = vmatpush1.msra.mxu0 %v2005
  %2156 = vmatprep.subr.mxu0 0.0
  %2157 = vmatpush1.msra.mxu0 %v2002
  %2158 = vmatprep.subr.mxu0 0.0
  %2159 = vmatpush1.msra.mxu0 %v1999
  %2160 = vmatprep.subr.mxu0 0.0
  %2161 = vmatpush1.msra.mxu0 %v1996
  %2162 = vmatprep.subr.mxu0 0.0
  %2163 = vmatpush2.msra.mxu0 0.0
  %2164 = vmatprep.subr.mxu0 0.0
  %2165 = vmatpush2.msra.mxu0 0.0
  %2166 = vmatprep.subr.mxu0 0.0
  %2167 = vmatpush2.msra.mxu0 0.0
  %2168 = vmatprep.subr.mxu0 0.0
  %2169 = vmatpush2.msra.mxu0 0.0
  %2170 = vmatprep.subr.mxu0 0.0
  %2171 = vmatpush2.msra.mxu0 0.0
  %2172 = vmatprep.subr.mxu0 0.0
  %2173 = vmatpush2.msra.mxu0 0.0
  %2174 = vmatprep.subr.mxu0 0.0
  %2175 = vmatpush2.msra.mxu0 0.0
  %2176 = vmatprep.subr.mxu0 0.0
  %2177 = vmatpush2.msra.mxu0 0.0
  %2178 = vmatprep.subr.mxu0 0.0
  %2179 = vmatpush2.msra.mxu0 0.0
  %2180 = vmatprep.subr.mxu0 0.0
  %2181 = vmatpush2.msra.mxu0 0.0
  %2182 = vmatprep.subr.mxu0 0.0
  %2183 = vmatpush2.msra.mxu0 0.0
  %2184 = vmatprep.subr.mxu0 0.0
  %2185 = vmatpush2.msra.mxu0 0.0
  %2186 = vmatprep.subr.mxu0 0.0
  %2187 = vmatpush2.msra.mxu0 0.0
  %2188 = vmatprep.subr.mxu0 0.0
  %2189 = vmatpush2.msra.mxu0 0.0
  %2190 = vmatprep.subr.mxu0 0.0
  %2191 = vmatpush2.msra.mxu0 0.0
  %2192 = vmatprep.subr.mxu0 0.0
  %2193 = vmatpush2.msra.mxu0 0.0
  %2194 = vmatprep.mubr.f32.mxu0 0.0
  %2195 = vmatmul.mubr.f32.gmra.mxu0 %v1675
  %v2196 = vpop.f32.mrf.mxu0
  %v2197 = vadd.f32 %v2055, %v2196
  %v2198 = vpop.f32.mrf.mxu0
  %2199 = vdwg.mxu0
  %v2200 = vadd.f32 %v1991, %v2126
  %v2201 = vxor.u32 %v2200, 2147483648
  %v2202 = vmul.f32 %v2201, 1.442695
  %v2203 = vpow.pop %v2202
  %v2204 = vadd.f32 %v2203, 1.0
  %v2205 = vrcp.pop %v2204
  %v2206 = vmul.f32 1.0, %v2205
  %v2207 = vadd.f32 %v1992, %v2128
  %v2208 = vxor.u32 %v2207, 2147483648
  %v2209 = vmul.f32 %v2208, 1.442695
  %v2210 = vpow.pop %v2209
  %v2211 = vadd.f32 %v2210, 1.0
  %v2212 = vrcp.pop %v2211
  %v2213 = vmul.f32 1.0, %v2212
  %v2214 = vmul.f32 %v2206, %v2197
  %v2215 = vadd.f32 %v1993, %v2214
  %v2216 = vtanh.pop %v2215
  %v2217 = vsub.f32 1.0, %v2213
  %v2218 = vmul.f32 %v2217, %v2216
  %v2219 = vmul.f32 %v2213, %v1675
  %v2220 = vadd.f32 %v2218, %v2219
  %v2221 = vld [vmem:[%s5] sm:$0xff]
  %v2222 = vld [vmem:[%s5 + $0x8] sm:$0xff]
  %v2223 = vld [vmem:[%s5 + $0x10] sm:$0xff]
  %v2224 = vld [vmem:[%s5 + $0x18] sm:$0xff]
  %v2225 = vld [vmem:[%s5 + $0x20] sm:$0xff]
  %v2226 = vld [vmem:[%s5 + $0x28] sm:$0xff]
  %v2227 = vld [vmem:[%s5 + $0x30] sm:$0xff]
  %v2228 = vld [vmem:[%s5 + $0x38] sm:$0xff]
  %v2229 = vld [vmem:[%s5 + $0x40] sm:$0xff]
  %v2230 = vld [vmem:[%s5 + $0x48] sm:$0xff]
  %v2231 = vld [vmem:[%s5 + $0x50] sm:$0xff]
  %v2232 = vld [vmem:[%s5 + $0x58] sm:$0xff]
  %v2233 = vld [vmem:[%s5 + $0x60] sm:$0xff]
  %v2234 = vld [vmem:[%s5 + $0x68] sm:$0xff]
  %v2235 = vld [vmem:[%s5 + $0x70] sm:$0xff]
  %v2236 = vld [vmem:[%s5 + $0x78] sm:$0xff]
  %v2237 = vld [vmem:[%s5 + $0x80] sm:$0xff]
  %v2238 = vld [vmem:[%s5 + $0x88] sm:$0xff]
  %v2239 = vld [vmem:[%s5 + $0x90] sm:$0xff]
  %v2240 = vld [vmem:[%s5 + $0x98] sm:$0xff]
  %v2241 = vld [vmem:[%s5 + $0xa0] sm:$0xff]
  %v2242 = vld [vmem:[%s5 + $0xa8] sm:$0xff]
  %v2243 = vld [vmem:[%s5 + $0xb0] sm:$0xff]
  %v2244 = vld [vmem:[%s5 + $0xb8] sm:$0xff]
  %v2245 = vld [vmem:[%s5 + $0xc0] sm:$0xff]
  %v2246 = vld [vmem:[%s5 + $0xc8] sm:$0xff]
  %v2247 = vld [vmem:[%s5 + $0xd0] sm:$0xff]
  %v2248 = vld [vmem:[%s5 + $0xd8] sm:$0xff]
  %v2249 = vld [vmem:[%s5 + $0xe0] sm:$0xff]
  %v2250 = vld [vmem:[%s5 + $0xe8] sm:$0xff]
  %v2251 = vld [vmem:[%s5 + $0xf0] sm:$0xff]
  %v2252 = vld [vmem:[%s5 + $0xf8] sm:$0xff]
  %v2253 = vld [vmem:[%s5 + $0x100] sm:$0xff]
  %v2254 = vld [vmem:[%s5 + $0x108] sm:$0xff]
  %v2255 = vld [vmem:[%s5 + $0x110] sm:$0xff]
  %v2256 = vld [vmem:[%s5 + $0x118] sm:$0xff]
  %v2257 = vld [vmem:[%s5 + $0x120] sm:$0xff]
  %v2258 = vld [vmem:[%s5 + $0x128] sm:$0xff]
  %v2259 = vld [vmem:[%s5 + $0x130] sm:$0xff]
  %v2260 = vld [vmem:[%s5 + $0x138] sm:$0xff]
  %v2261 = vld [vmem:[%s5 + $0x140] sm:$0xff]
  %v2262 = vld [vmem:[%s5 + $0x148] sm:$0xff]
  %v2263 = vld [vmem:[%s5 + $0x150] sm:$0xff]
  %v2264 = vld [vmem:[%s5 + $0x158] sm:$0xff]
  %v2265 = vld [vmem:[%s5 + $0x160] sm:$0xff]
  %v2266 = vld [vmem:[%s5 + $0x168] sm:$0xff]
  %v2267 = vld [vmem:[%s5 + $0x170] sm:$0xff]
  %v2268 = vld [vmem:[%s5 + $0x178] sm:$0xff]
  %v2269 = vld [vmem:[%s5 + $0x180] sm:$0xff]
  %v2270 = vld [vmem:[%s5 + $0x188] sm:$0xff]
  %v2271 = vld [vmem:[%s5 + $0x190] sm:$0xff]
  %v2272 = vld [vmem:[%s5 + $0x198] sm:$0xff]
  %v2273 = vld [vmem:[%s5 + $0x1a0] sm:$0xff]
  %v2274 = vld [vmem:[%s5 + $0x1a8] sm:$0xff]
  %v2275 = vld [vmem:[%s5 + $0x1b0] sm:$0xff]
  %v2276 = vld [vmem:[%s5 + $0x1b8] sm:$0xff]
  %v2277 = vld [vmem:[%s5 + $0x1c0] sm:$0xff]
  %v2278 = vld [vmem:[%s5 + $0x1c8] sm:$0xff]
  %v2279 = vld [vmem:[%s5 + $0x1d0] sm:$0xff]
  %v2280 = vld [vmem:[%s5 + $0x1d8] sm:$0xff]
  %v2281 = vld [vmem:[%s5 + $0x1e0] sm:$0xff]
  %v2282 = vld [vmem:[%s5 + $0x1e8] sm:$0xff]
  %v2283 = vld [vmem:[%s5 + $0x1f0] sm:$0xff]
  %v2284 = vld [vmem:[%s5 + $0x1f8] sm:$0xff]
  %v2285 = vld [vmem:[%s5 + $0x200] sm:$0xff]
  %v2286 = vld [vmem:[%s5 + $0x208] sm:$0xff]
  %v2287 = vld [vmem:[%s5 + $0x210] sm:$0xff]
  %v2288 = vld [vmem:[%s5 + $0x218] sm:$0xff]
  %v2289 = vld [vmem:[%s5 + $0x220] sm:$0xff]
  %v2290 = vld [vmem:[%s5 + $0x228] sm:$0xff]
  %v2291 = vld [vmem:[%s5 + $0x230] sm:$0xff]
  %v2292 = vld [vmem:[%s5 + $0x238] sm:$0xff]
  %v2293 = vld [vmem:[%s5 + $0x240] sm:$0xff]
  %v2294 = vld [vmem:[%s5 + $0x248] sm:$0xff]
  %v2295 = vld [vmem:[%s5 + $0x250] sm:$0xff]
  %v2296 = vld [vmem:[%s5 + $0x258] sm:$0xff]
  %v2297 = vld [vmem:[%s5 + $0x260] sm:$0xff]
  %v2298 = vld [vmem:[%s5 + $0x268] sm:$0xff]
  %v2299 = vld [vmem:[%s5 + $0x270] sm:$0xff]
  %v2300 = vld [vmem:[%s5 + $0x278] sm:$0xff]
  %v2301 = vld [vmem:[%s5 + $0x280] sm:$0xff]
  %v2302 = vld [vmem:[%s5 + $0x288] sm:$0xff]
  %v2303 = vld [vmem:[%s5 + $0x290] sm:$0xff]
  %v2304 = vld [vmem:[%s5 + $0x298] sm:$0xff]
  %v2305 = vld [vmem:[%s5 + $0x2a0] sm:$0xff]
  %v2306 = vld [vmem:[%s5 + $0x2a8] sm:$0xff]
  %v2307 = vld [vmem:[%s5 + $0x2b0] sm:$0xff]
  %v2308 = vld [vmem:[%s5 + $0x2b8] sm:$0xff]
  %v2309 = vld [vmem:[%s5 + $0x2c0] sm:$0xff]
  %v2310 = vld [vmem:[%s5 + $0x2c8] sm:$0xff]
  %v2311 = vld [vmem:[%s5 + $0x2d0] sm:$0xff]
  %v2312 = vld [vmem:[%s5 + $0x2d8] sm:$0xff]
  %v2313 = vld [vmem:[%s5 + $0x2e0] sm:$0xff]
  %v2314 = vld [vmem:[%s5 + $0x2e8] sm:$0xff]
  %v2315 = vld [vmem:[%s5 + $0x2f0] sm:$0xff]
  %v2316 = vld [vmem:[%s5 + $0x2f8] sm:$0xff]
  %v2317 = vld [vmem:[%s5 + $0x300] sm:$0xff]
  %v2318 = vld [vmem:[%s5 + $0x308] sm:$0xff]
  %v2319 = vld [vmem:[%s5 + $0x310] sm:$0xff]
  %v2320 = vld [vmem:[%s5 + $0x318] sm:$0xff]
  %v2321 = vld [vmem:[%s5 + $0x320] sm:$0xff]
  %v2322 = vld [vmem:[%s5 + $0x328] sm:$0xff]
  %v2323 = vld [vmem:[%s5 + $0x330] sm:$0xff]
  %v2324 = vld [vmem:[%s5 + $0x338] sm:$0xff]
  %v2325 = vld [vmem:[%s5 + $0x340] sm:$0xff]
  %v2326 = vld [vmem:[%s5 + $0x348] sm:$0xff]
  %v2327 = vld [vmem:[%s5 + $0x350] sm:$0xff]
  %v2328 = vld [vmem:[%s5 + $0x358] sm:$0xff]
  %v2329 = vld [vmem:[%s5 + $0x360] sm:$0xff]
  %v2330 = vld [vmem:[%s5 + $0x368] sm:$0xff]
  %v2331 = vld [vmem:[%s5 + $0x370] sm:$0xff]
  %v2332 = vld [vmem:[%s5 + $0x378] sm:$0xff]
  %v2333 = vld [vmem:[%s5 + $0x380] sm:$0xff]
  %v2334 = vld [vmem:[%s5 + $0x388] sm:$0xff]
  %v2335 = vld [vmem:[%s5 + $0x390] sm:$0xff]
  %v2336 = vld [vmem:[%s5 + $0x398] sm:$0xff]
  %v2337 = vld [vmem:[%s5 + $0x3a0] sm:$0xff]
  %v2338 = vld [vmem:[%s5 + $0x3a8] sm:$0xff]
  %v2339 = vld [vmem:[%s5 + $0x3b0] sm:$0xff]
  %v2340 = vld [vmem:[%s5 + $0x3b8] sm:$0xff]
  %v2341 = vld [vmem:[%s5 + $0x3c0] sm:$0xff]
  %v2342 = vld [vmem:[%s5 + $0x3c8] sm:$0xff]
  %v2343 = vld [vmem:[%s5 + $0x3d0] sm:$0xff]
  %v2344 = vld [vmem:[%s5 + $0x3d8] sm:$0xff]
  %v2345 = vld [vmem:[%s5 + $0x3e0] sm:$0xff]
  %v2346 = vld [vmem:[%s5 + $0x3e8] sm:$0xff]
  %v2347 = vld [vmem:[%s5 + $0x3f0] sm:$0xff]
  %v2348 = vld [vmem:[%s5 + $0x3f8] sm:$0xff]
  %v2349 = vld [vmem:[%s6] sm:$0xf]
  %v2351 = vlaneseq
  %v2352 = vshrl.u32 %v2351, 7
  %v2353 = vsub.s32 0, %v2352
  %v2354 = vrot.slane %v2349, %v2353
  %v2355 = vlaneseq
  %v2356 = vshrl.u32 %v2355, 7
  %v2357 = vsub.s32 1, %v2356
  %v2358 = vrot.slane %v2349, %v2357
  %v2359 = vlaneseq
  %v2360 = vshrl.u32 %v2359, 7
  %v2361 = vsub.s32 2, %v2360
  %v2362 = vrot.slane %v2349, %v2361
  %v2363 = vlaneseq
  %v2364 = vshrl.u32 %v2363, 7
  %v2365 = vsub.s32 3, %v2364
  %v2366 = vrot.slane %v2349, %v2365
  %2371 = vmatprep.subr.mxu0 %v2282
  %2372 = vmatpush1.msra.mxu0 %v2281
  %2373 = vmatprep.subr.mxu0 %v2278
  %2374 = vmatpush1.msra.mxu0 %v2277
  %2375 = vmatprep.subr.mxu0 %v2274
  %2376 = vmatpush1.msra.mxu0 %v2273
  %2377 = vmatprep.subr.mxu0 %v2270
  %2378 = vmatpush1.msra.mxu0 %v2269
  %2379 = vmatprep.subr.mxu0 %v2266
  %2380 = vmatpush1.msra.mxu0 %v2265
  %2381 = vmatprep.subr.mxu0 %v2262
  %2382 = vmatpush1.msra.mxu0 %v2261
  %2383 = vmatprep.subr.mxu0 %v2258
  %2384 = vmatpush1.msra.mxu0 %v2257
  %2385 = vmatprep.subr.mxu0 %v2254
  %2386 = vmatpush1.msra.mxu0 %v2253
  %2387 = vmatprep.subr.mxu0 %v2250
  %2388 = vmatpush1.msra.mxu0 %v2249
  %2389 = vmatprep.subr.mxu0 %v2246
  %2390 = vmatpush1.msra.mxu0 %v2245
  %2391 = vmatprep.subr.mxu0 %v2242
  %2392 = vmatpush1.msra.mxu0 %v2241
  %2393 = vmatprep.subr.mxu0 %v2238
  %2394 = vmatpush1.msra.mxu0 %v2237
  %2395 = vmatprep.subr.mxu0 %v2234
  %2396 = vmatpush1.msra.mxu0 %v2233
  %2397 = vmatprep.subr.mxu0 %v2230
  %2398 = vmatpush1.msra.mxu0 %v2229
  %2399 = vmatprep.subr.mxu0 %v2226
  %2400 = vmatpush1.msra.mxu0 %v2225
  %2401 = vmatprep.subr.mxu0 %v2222
  %2402 = vmatpush1.msra.mxu0 %v2221
  %2403 = vmatprep.subr.mxu0 %v2346
  %2404 = vmatpush2.msra.mxu0 %v2345
  %2405 = vmatprep.subr.mxu0 %v2342
  %2406 = vmatpush2.msra.mxu0 %v2341
  %2407 = vmatprep.subr.mxu0 %v2338
  %2408 = vmatpush2.msra.mxu0 %v2337
  %2409 = vmatprep.subr.mxu0 %v2334
  %2410 = vmatpush2.msra.mxu0 %v2333
  %2411 = vmatprep.subr.mxu0 %v2330
  %2412 = vmatpush2.msra.mxu0 %v2329
  %2413 = vmatprep.subr.mxu0 %v2326
  %2414 = vmatpush2.msra.mxu0 %v2325
  %2415 = vmatprep.subr.mxu0 %v2322
  %2416 = vmatpush2.msra.mxu0 %v2321
  %2417 = vmatprep.subr.mxu0 %v2318
  %2418 = vmatpush2.msra.mxu0 %v2317
  %2419 = vmatprep.subr.mxu0 %v2314
  %2420 = vmatpush2.msra.mxu0 %v2313
  %2421 = vmatprep.subr.mxu0 %v2310
  %2422 = vmatpush2.msra.mxu0 %v2309
  %2423 = vmatprep.subr.mxu0 %v2306
  %2424 = vmatpush2.msra.mxu0 %v2305
  %2425 = vmatprep.subr.mxu0 %v2302
  %2426 = vmatpush2.msra.mxu0 %v2301
  %2427 = vmatprep.subr.mxu0 %v2298
  %2428 = vmatpush2.msra.mxu0 %v2297
  %2429 = vmatprep.subr.mxu0 %v2294
  %2430 = vmatpush2.msra.mxu0 %v2293
  %2431 = vmatprep.subr.mxu0 %v2290
  %2432 = vmatpush2.msra.mxu0 %v2289
  %2433 = vmatprep.subr.mxu0 %v2286
  %2434 = vmatpush2.msra.mxu0 %v2285
  %2435 = vmatprep.mubr.f32.mxu0 %v1987
  %2436 = vmatmul.mubr.f32.gmra.mxu0 %v2220
  %v2437 = vpop.f32.mrf.mxu0
  %v2438 = vadd.f32 %v2354, %v2437
  %v2439 = vpop.f32.mrf.mxu0
  %v2440 = vadd.f32 %v2358, %v2439
  %2441 = vdwg.mxu0
  %2442 = vmatprep.subr.mxu0 %v2284
  %2443 = vmatpush1.msra.mxu0 %v2283
  %2444 = vmatprep.subr.mxu0 %v2280
  %2445 = vmatpush1.msra.mxu0 %v2279
  %2446 = vmatprep.subr.mxu0 %v2276
  %2447 = vmatpush1.msra.mxu0 %v2275
  %2448 = vmatprep.subr.mxu0 %v2272
  %2449 = vmatpush1.msra.mxu0 %v2271
  %2450 = vmatprep.subr.mxu0 %v2268
  %2451 = vmatpush1.msra.mxu0 %v2267
  %2452 = vmatprep.subr.mxu0 %v2264
  %2453 = vmatpush1.msra.mxu0 %v2263
  %2454 = vmatprep.subr.mxu0 %v2260
  %2455 = vmatpush1.msra.mxu0 %v2259
  %2456 = vmatprep.subr.mxu0 %v2256
  %2457 = vmatpush1.msra.mxu0 %v2255
  %2458 = vmatprep.subr.mxu0 %v2252
  %2459 = vmatpush1.msra.mxu0 %v2251
  %2460 = vmatprep.subr.mxu0 %v2248
  %2461 = vmatpush1.msra.mxu0 %v2247
  %2462 = vmatprep.subr.mxu0 %v2244
  %2463 = vmatpush1.msra.mxu0 %v2243
  %2464 = vmatprep.subr.mxu0 %v2240
  %2465 = vmatpush1.msra.mxu0 %v2239
  %2466 = vmatprep.subr.mxu0 %v2236
  %2467 = vmatpush1.msra.mxu0 %v2235
  %2468 = vmatprep.subr.mxu0 %v2232
  %2469 = vmatpush1.msra.mxu0 %v2231
  %2470 = vmatprep.subr.mxu0 %v2228
  %2471 = vmatpush1.msra.mxu0 %v2227
  %2472 = vmatprep.subr.mxu0 %v2224
  %2473 = vmatpush1.msra.mxu0 %v2223
  %2474 = vmatprep.subr.mxu0 %v2348
  %2475 = vmatpush2.msra.mxu0 %v2347
  %2476 = vmatprep.subr.mxu0 %v2344
  %2477 = vmatpush2.msra.mxu0 %v2343
  %2478 = vmatprep.subr.mxu0 %v2340
  %2479 = vmatpush2.msra.mxu0 %v2339
  %2480 = vmatprep.subr.mxu0 %v2336
  %2481 = vmatpush2.msra.mxu0 %v2335
  %2482 = vmatprep.subr.mxu0 %v2332
  %2483 = vmatpush2.msra.mxu0 %v2331
  %2484 = vmatprep.subr.mxu0 %v2328
  %2485 = vmatpush2.msra.mxu0 %v2327
  %2486 = vmatprep.subr.mxu0 %v2324
  %2487 = vmatpush2.msra.mxu0 %v2323
  %2488 = vmatprep.subr.mxu0 %v2320
  %2489 = vmatpush2.msra.mxu0 %v2319
  %2490 = vmatprep.subr.mxu0 %v2316
  %2491 = vmatpush2.msra.mxu0 %v2315
  %2492 = vmatprep.subr.mxu0 %v2312
  %2493 = vmatpush2.msra.mxu0 %v2311
  %2494 = vmatprep.subr.mxu0 %v2308
  %2495 = vmatpush2.msra.mxu0 %v2307
  %2496 = vmatprep.subr.mxu0 %v2304
  %2497 = vmatpush2.msra.mxu0 %v2303
  %2498 = vmatprep.subr.mxu0 %v2300
  %2499 = vmatpush2.msra.mxu0 %v2299
  %2500 = vmatprep.subr.mxu0 %v2296
  %2501 = vmatpush2.msra.mxu0 %v2295
  %2502 = vmatprep.subr.mxu0 %v2292
  %2503 = vmatpush2.msra.mxu0 %v2291
  %2504 = vmatprep.subr.mxu0 %v2288
  %2505 = vmatpush2.msra.mxu0 %v2287
  %2506 = vmatprep.mubr.f32.mxu0 %v1987
  %2507 = vmatmul.mubr.f32.gmra.mxu0 %v2220
  %v2508 = vpop.f32.mrf.mxu0
  %v2509 = vadd.f32 %v2362, %v2508
  %v2510 = vpop.f32.mrf.mxu0
  %v2511 = vadd.f32 %v2366, %v2510
  %2512 = vdwg.mxu0
  %v2513 = vxor.u32 %v2438, 2147483648
  %v2514 = vmul.f32 %v2513, 1.442695
  %v2515 = vpow.pop %v2514
  %v2516 = vadd.f32 %v2515, 1.0
  %v2517 = vrcp.pop %v2516
  %v2518 = vmul.f32 1.0, %v2517
  %v2519 = vxor.u32 %v2440, 2147483648
  %v2520 = vmul.f32 %v2519, 1.442695
  %v2521 = vpow.pop %v2520
  %v2522 = vadd.f32 %v2521, 1.0
  %v2523 = vrcp.pop %v2522
  %v2524 = vmul.f32 1.0, %v2523
  %v2525 = vsub.f32 %v2518, 1.0
  %v2526 = vmul.f32 %v2525, %v2511
  %v2527 = vadd.f32 %v2509, %v2526
  %v2528 = vtanh.pop %v2527
  %v2529 = vsub.f32 1.0, %v2524
  %v2530 = vmul.f32 %v2529, %v2528
  %v2531 = vmul.f32 %v2524, %v1987
  %v2532 = vadd.f32 %v2530, %v2531
  %s2533 = scalar_lea.vmem [#allocation3], 32
  %2534 = vst [vmem:[%s2533] sm:$0xff] %v2532
  %s2535 = scalar_lea.vmem [#allocation2], 96
  %v2536 = vld [vmem:[%s2535] sm:$0xff]
  %v2537 = vld [vmem:[%s2535 + $0x8] sm:$0xff]
  %v2538 = vld [vmem:[%s2535 + $0x10] sm:$0xff]
  %v2539 = vld [vmem:[%s3] sm:$0xff]
  %v2540 = vld [vmem:[%s3 + $0x8] sm:$0xff]
  %v2541 = vld [vmem:[%s3 + $0x10] sm:$0xff]
  %v2542 = vld [vmem:[%s3 + $0x18] sm:$0xff]
  %v2543 = vld [vmem:[%s3 + $0x20] sm:$0xff]
  %v2544 = vld [vmem:[%s3 + $0x28] sm:$0xff]
  %v2545 = vld [vmem:[%s3 + $0x30] sm:$0xff]
  %v2546 = vld [vmem:[%s3 + $0x38] sm:$0xff]
  %v2547 = vld [vmem:[%s3 + $0x40] sm:$0xff]
  %v2548 = vld [vmem:[%s3 + $0x48] sm:$0xff]
  %v2549 = vld [vmem:[%s3 + $0x50] sm:$0xff]
  %v2550 = vld [vmem:[%s3 + $0x58] sm:$0xff]
  %v2551 = vld [vmem:[%s3 + $0x60] sm:$0xff]
  %v2552 = vld [vmem:[%s3 + $0x68] sm:$0xff]
  %v2553 = vld [vmem:[%s3 + $0x70] sm:$0xff]
  %v2554 = vld [vmem:[%s3 + $0x78] sm:$0xff]
  %v2555 = vld [vmem:[%s3 + $0x80] sm:$0xff]
  %v2556 = vld [vmem:[%s3 + $0x88] sm:$0xff]
  %v2557 = vld [vmem:[%s3 + $0x90] sm:$0xff]
  %v2558 = vld [vmem:[%s3 + $0x98] sm:$0xff]
  %v2559 = vld [vmem:[%s3 + $0xa0] sm:$0xff]
  %v2560 = vld [vmem:[%s3 + $0xa8] sm:$0xff]
  %v2561 = vld [vmem:[%s3 + $0xb0] sm:$0xff]
  %v2562 = vld [vmem:[%s3 + $0xb8] sm:$0xff]
  %v2563 = vld [vmem:[%s3 + $0xc0] sm:$0xff]
  %v2564 = vld [vmem:[%s3 + $0xc8] sm:$0xff]
  %v2565 = vld [vmem:[%s3 + $0xd0] sm:$0xff]
  %v2566 = vld [vmem:[%s3 + $0xd8] sm:$0xff]
  %v2567 = vld [vmem:[%s3 + $0xe0] sm:$0xff]
  %v2568 = vld [vmem:[%s3 + $0xe8] sm:$0xff]
  %v2569 = vld [vmem:[%s3 + $0xf0] sm:$0xff]
  %v2570 = vld [vmem:[%s3 + $0xf8] sm:$0xff]
  %v2571 = vld [vmem:[%s3 + $0x100] sm:$0xff]
  %v2572 = vld [vmem:[%s3 + $0x108] sm:$0xff]
  %v2573 = vld [vmem:[%s3 + $0x110] sm:$0xff]
  %v2574 = vld [vmem:[%s3 + $0x118] sm:$0xff]
  %v2575 = vld [vmem:[%s3 + $0x120] sm:$0xff]
  %v2576 = vld [vmem:[%s3 + $0x128] sm:$0xff]
  %v2577 = vld [vmem:[%s3 + $0x130] sm:$0xff]
  %v2578 = vld [vmem:[%s3 + $0x138] sm:$0xff]
  %v2579 = vld [vmem:[%s3 + $0x140] sm:$0xff]
  %v2580 = vld [vmem:[%s3 + $0x148] sm:$0xff]
  %v2581 = vld [vmem:[%s3 + $0x150] sm:$0xff]
  %v2582 = vld [vmem:[%s3 + $0x158] sm:$0xff]
  %v2583 = vld [vmem:[%s3 + $0x160] sm:$0xff]
  %v2584 = vld [vmem:[%s3 + $0x168] sm:$0xff]
  %v2585 = vld [vmem:[%s3 + $0x170] sm:$0xff]
  %v2586 = vld [vmem:[%s3 + $0x178] sm:$0xff]
  %v2587 = vld [vmem:[%s4] sm:$0x7]
  %v2589 = vlaneseq
  %v2590 = vshrl.u32 %v2589, 7
  %v2591 = vsub.s32 0, %v2590
  %v2592 = vrot.slane %v2587, %v2591
  %v2593 = vlaneseq
  %v2594 = vshrl.u32 %v2593, 7
  %v2595 = vsub.s32 1, %v2594
  %v2596 = vrot.slane %v2587, %v2595
  %v2597 = vlaneseq
  %v2598 = vshrl.u32 %v2597, 7
  %v2599 = vsub.s32 2, %v2598
  %v2600 = vrot.slane %v2587, %v2599
  %2604 = vmatprep.subr.mxu0 %v2585
  %2605 = vmatpush1.msra.mxu0 %v2584
  %2606 = vmatprep.subr.mxu0 %v2582
  %2607 = vmatpush1.msra.mxu0 %v2581
  %2608 = vmatprep.subr.mxu0 %v2579
  %2609 = vmatpush1.msra.mxu0 %v2578
  %2610 = vmatprep.subr.mxu0 %v2576
  %2611 = vmatpush1.msra.mxu0 %v2575
  %2612 = vmatprep.subr.mxu0 %v2573
  %2613 = vmatpush1.msra.mxu0 %v2572
  %2614 = vmatprep.subr.mxu0 %v2570
  %2615 = vmatpush1.msra.mxu0 %v2569
  %2616 = vmatprep.subr.mxu0 %v2567
  %2617 = vmatpush1.msra.mxu0 %v2566
  %2618 = vmatprep.subr.mxu0 %v2564
  %2619 = vmatpush1.msra.mxu0 %v2563
  %2620 = vmatprep.subr.mxu0 %v2561
  %2621 = vmatpush1.msra.mxu0 %v2560
  %2622 = vmatprep.subr.mxu0 %v2558
  %2623 = vmatpush1.msra.mxu0 %v2557
  %2624 = vmatprep.subr.mxu0 %v2555
  %2625 = vmatpush1.msra.mxu0 %v2554
  %2626 = vmatprep.subr.mxu0 %v2552
  %2627 = vmatpush1.msra.mxu0 %v2551
  %2628 = vmatprep.subr.mxu0 %v2549
  %2629 = vmatpush1.msra.mxu0 %v2548
  %2630 = vmatprep.subr.mxu0 %v2546
  %2631 = vmatpush1.msra.mxu0 %v2545
  %2632 = vmatprep.subr.mxu0 %v2543
  %2633 = vmatpush1.msra.mxu0 %v2542
  %2634 = vmatprep.subr.mxu0 %v2540
  %2635 = vmatpush1.msra.mxu0 %v2539
  %2636 = vmatprep.subr.mxu0 0.0
  %2637 = vmatpush2.msra.mxu0 0.0
  %2638 = vmatprep.subr.mxu0 0.0
  %2639 = vmatpush2.msra.mxu0 0.0
  %2640 = vmatprep.subr.mxu0 0.0
  %2641 = vmatpush2.msra.mxu0 0.0
  %2642 = vmatprep.subr.mxu0 0.0
  %2643 = vmatpush2.msra.mxu0 0.0
  %2644 = vmatprep.subr.mxu0 0.0
  %2645 = vmatpush2.msra.mxu0 0.0
  %2646 = vmatprep.subr.mxu0 0.0
  %2647 = vmatpush2.msra.mxu0 0.0
  %2648 = vmatprep.subr.mxu0 0.0
  %2649 = vmatpush2.msra.mxu0 0.0
  %2650 = vmatprep.subr.mxu0 0.0
  %2651 = vmatpush2.msra.mxu0 0.0
  %2652 = vmatprep.subr.mxu0 0.0
  %2653 = vmatpush2.msra.mxu0 0.0
  %2654 = vmatprep.subr.mxu0 0.0
  %2655 = vmatpush2.msra.mxu0 0.0
  %2656 = vmatprep.subr.mxu0 0.0
  %2657 = vmatpush2.msra.mxu0 0.0
  %2658 = vmatprep.subr.mxu0 0.0
  %2659 = vmatpush2.msra.mxu0 0.0
  %2660 = vmatprep.subr.mxu0 0.0
  %2661 = vmatpush2.msra.mxu0 0.0
  %2662 = vmatprep.subr.mxu0 0.0
  %2663 = vmatpush2.msra.mxu0 0.0
  %2664 = vmatprep.subr.mxu0 0.0
  %2665 = vmatpush2.msra.mxu0 0.0
  %2666 = vmatprep.subr.mxu0 0.0
  %2667 = vmatpush2.msra.mxu0 0.0
  %2668 = vmatprep.mubr.f32.mxu0 0.0
  %2669 = vmatmul.mubr.f32.gmra.mxu0 %v2220
  %v2670 = vpop.f32.mrf.mxu0
  %v2671 = vadd.f32 %v2592, %v2670
  %v2672 = vpop.f32.mrf.mxu0
  %v2673 = vadd.f32 %v2596, %v2672
  %2674 = vdwg.mxu0
  %2675 = vmatprep.subr.mxu0 0.0
  %2676 = vmatpush1.msra.mxu0 %v2586
  %2677 = vmatprep.subr.mxu0 0.0
  %2678 = vmatpush1.msra.mxu0 %v2583
  %2679 = vmatprep.subr.mxu0 0.0
  %2680 = vmatpush1.msra.mxu0 %v2580
  %2681 = vmatprep.subr.mxu0 0.0
  %2682 = vmatpush1.msra.mxu0 %v2577
  %2683 = vmatprep.subr.mxu0 0.0
  %2684 = vmatpush1.msra.mxu0 %v2574
  %2685 = vmatprep.subr.mxu0 0.0
  %2686 = vmatpush1.msra.mxu0 %v2571
  %2687 = vmatprep.subr.mxu0 0.0
  %2688 = vmatpush1.msra.mxu0 %v2568
  %2689 = vmatprep.subr.mxu0 0.0
  %2690 = vmatpush1.msra.mxu0 %v2565
  %2691 = vmatprep.subr.mxu0 0.0
  %2692 = vmatpush1.msra.mxu0 %v2562
  %2693 = vmatprep.subr.mxu0 0.0
  %2694 = vmatpush1.msra.mxu0 %v2559
  %2695 = vmatprep.subr.mxu0 0.0
  %2696 = vmatpush1.msra.mxu0 %v2556
  %2697 = vmatprep.subr.mxu0 0.0
  %2698 = vmatpush1.msra.mxu0 %v2553
  %2699 = vmatprep.subr.mxu0 0.0
  %2700 = vmatpush1.msra.mxu0 %v2550
  %2701 = vmatprep.subr.mxu0 0.0
  %2702 = vmatpush1.msra.mxu0 %v2547
  %2703 = vmatprep.subr.mxu0 0.0
  %2704 = vmatpush1.msra.mxu0 %v2544
  %2705 = vmatprep.subr.mxu0 0.0
  %2706 = vmatpush1.msra.mxu0 %v2541
  %2707 = vmatprep.subr.mxu0 0.0
  %2708 = vmatpush2.msra.mxu0 0.0
  %2709 = vmatprep.subr.mxu0 0.0
  %2710 = vmatpush2.msra.mxu0 0.0
  %2711 = vmatprep.subr.mxu0 0.0
  %2712 = vmatpush2.msra.mxu0 0.0
  %2713 = vmatprep.subr.mxu0 0.0
  %2714 = vmatpush2.msra.mxu0 0.0
  %2715 = vmatprep.subr.mxu0 0.0
  %2716 = vmatpush2.msra.mxu0 0.0
  %2717 = vmatprep.subr.mxu0 0.0
  %2718 = vmatpush2.msra.mxu0 0.0
  %2719 = vmatprep.subr.mxu0 0.0
  %2720 = vmatpush2.msra.mxu0 0.0
  %2721 = vmatprep.subr.mxu0 0.0
  %2722 = vmatpush2.msra.mxu0 0.0
  %2723 = vmatprep.subr.mxu0 0.0
  %2724 = vmatpush2.msra.mxu0 0.0
  %2725 = vmatprep.subr.mxu0 0.0
  %2726 = vmatpush2.msra.mxu0 0.0
  %2727 = vmatprep.subr.mxu0 0.0
  %2728 = vmatpush2.msra.mxu0 0.0
  %2729 = vmatprep.subr.mxu0 0.0
  %2730 = vmatpush2.msra.mxu0 0.0
  %2731 = vmatprep.subr.mxu0 0.0
  %2732 = vmatpush2.msra.mxu0 0.0
  %2733 = vmatprep.subr.mxu0 0.0
  %2734 = vmatpush2.msra.mxu0 0.0
  %2735 = vmatprep.subr.mxu0 0.0
  %2736 = vmatpush2.msra.mxu0 0.0
  %2737 = vmatprep.subr.mxu0 0.0
  %2738 = vmatpush2.msra.mxu0 0.0
  %2739 = vmatprep.mubr.f32.mxu0 0.0
  %2740 = vmatmul.mubr.f32.gmra.mxu0 %v2220
  %v2741 = vpop.f32.mrf.mxu0
  %v2742 = vadd.f32 %v2600, %v2741
  %v2743 = vpop.f32.mrf.mxu0
  %2744 = vdwg.mxu0
  %v2745 = vadd.f32 %v2536, %v2671
  %v2746 = vxor.u32 %v2745, 2147483648
  %v2747 = vmul.f32 %v2746, 1.442695
  %v2748 = vpow.pop %v2747
  %v2749 = vadd.f32 %v2748, 1.0
  %v2750 = vrcp.pop %v2749
  %v2751 = vmul.f32 1.0, %v2750
  %v2752 = vadd.f32 %v2537, %v2673
  %v2753 = vxor.u32 %v2752, 2147483648
  %v2754 = vmul.f32 %v2753, 1.442695
  %v2755 = vpow.pop %v2754
  %v2756 = vadd.f32 %v2755, 1.0
  %v2757 = vrcp.pop %v2756
  %v2758 = vmul.f32 1.0, %v2757
  %v2759 = vmul.f32 %v2751, %v2742
  %v2760 = vadd.f32 %v2538, %v2759
  %v2761 = vtanh.pop %v2760
  %v2762 = vsub.f32 1.0, %v2758
  %v2763 = vmul.f32 %v2762, %v2761
  %v2764 = vmul.f32 %v2758, %v2220
  %v2765 = vadd.f32 %v2763, %v2764
  %v2766 = vld [vmem:[%s5] sm:$0xff]
  %v2767 = vld [vmem:[%s5 + $0x8] sm:$0xff]
  %v2768 = vld [vmem:[%s5 + $0x10] sm:$0xff]
  %v2769 = vld [vmem:[%s5 + $0x18] sm:$0xff]
  %v2770 = vld [vmem:[%s5 + $0x20] sm:$0xff]
  %v2771 = vld [vmem:[%s5 + $0x28] sm:$0xff]
  %v2772 = vld [vmem:[%s5 + $0x30] sm:$0xff]
  %v2773 = vld [vmem:[%s5 + $0x38] sm:$0xff]
  %v2774 = vld [vmem:[%s5 + $0x40] sm:$0xff]
  %v2775 = vld [vmem:[%s5 + $0x48] sm:$0xff]
  %v2776 = vld [vmem:[%s5 + $0x50] sm:$0xff]
  %v2777 = vld [vmem:[%s5 + $0x58] sm:$0xff]
  %v2778 = vld [vmem:[%s5 + $0x60] sm:$0xff]
  %v2779 = vld [vmem:[%s5 + $0x68] sm:$0xff]
  %v2780 = vld [vmem:[%s5 + $0x70] sm:$0xff]
  %v2781 = vld [vmem:[%s5 + $0x78] sm:$0xff]
  %v2782 = vld [vmem:[%s5 + $0x80] sm:$0xff]
  %v2783 = vld [vmem:[%s5 + $0x88] sm:$0xff]
  %v2784 = vld [vmem:[%s5 + $0x90] sm:$0xff]
  %v2785 = vld [vmem:[%s5 + $0x98] sm:$0xff]
  %v2786 = vld [vmem:[%s5 + $0xa0] sm:$0xff]
  %v2787 = vld [vmem:[%s5 + $0xa8] sm:$0xff]
  %v2788 = vld [vmem:[%s5 + $0xb0] sm:$0xff]
  %v2789 = vld [vmem:[%s5 + $0xb8] sm:$0xff]
  %v2790 = vld [vmem:[%s5 + $0xc0] sm:$0xff]
  %v2791 = vld [vmem:[%s5 + $0xc8] sm:$0xff]
  %v2792 = vld [vmem:[%s5 + $0xd0] sm:$0xff]
  %v2793 = vld [vmem:[%s5 + $0xd8] sm:$0xff]
  %v2794 = vld [vmem:[%s5 + $0xe0] sm:$0xff]
  %v2795 = vld [vmem:[%s5 + $0xe8] sm:$0xff]
  %v2796 = vld [vmem:[%s5 + $0xf0] sm:$0xff]
  %v2797 = vld [vmem:[%s5 + $0xf8] sm:$0xff]
  %v2798 = vld [vmem:[%s5 + $0x100] sm:$0xff]
  %v2799 = vld [vmem:[%s5 + $0x108] sm:$0xff]
  %v2800 = vld [vmem:[%s5 + $0x110] sm:$0xff]
  %v2801 = vld [vmem:[%s5 + $0x118] sm:$0xff]
  %v2802 = vld [vmem:[%s5 + $0x120] sm:$0xff]
  %v2803 = vld [vmem:[%s5 + $0x128] sm:$0xff]
  %v2804 = vld [vmem:[%s5 + $0x130] sm:$0xff]
  %v2805 = vld [vmem:[%s5 + $0x138] sm:$0xff]
  %v2806 = vld [vmem:[%s5 + $0x140] sm:$0xff]
  %v2807 = vld [vmem:[%s5 + $0x148] sm:$0xff]
  %v2808 = vld [vmem:[%s5 + $0x150] sm:$0xff]
  %v2809 = vld [vmem:[%s5 + $0x158] sm:$0xff]
  %v2810 = vld [vmem:[%s5 + $0x160] sm:$0xff]
  %v2811 = vld [vmem:[%s5 + $0x168] sm:$0xff]
  %v2812 = vld [vmem:[%s5 + $0x170] sm:$0xff]
  %v2813 = vld [vmem:[%s5 + $0x178] sm:$0xff]
  %v2814 = vld [vmem:[%s5 + $0x180] sm:$0xff]
  %v2815 = vld [vmem:[%s5 + $0x188] sm:$0xff]
  %v2816 = vld [vmem:[%s5 + $0x190] sm:$0xff]
  %v2817 = vld [vmem:[%s5 + $0x198] sm:$0xff]
  %v2818 = vld [vmem:[%s5 + $0x1a0] sm:$0xff]
  %v2819 = vld [vmem:[%s5 + $0x1a8] sm:$0xff]
  %v2820 = vld [vmem:[%s5 + $0x1b0] sm:$0xff]
  %v2821 = vld [vmem:[%s5 + $0x1b8] sm:$0xff]
  %v2822 = vld [vmem:[%s5 + $0x1c0] sm:$0xff]
  %v2823 = vld [vmem:[%s5 + $0x1c8] sm:$0xff]
  %v2824 = vld [vmem:[%s5 + $0x1d0] sm:$0xff]
  %v2825 = vld [vmem:[%s5 + $0x1d8] sm:$0xff]
  %v2826 = vld [vmem:[%s5 + $0x1e0] sm:$0xff]
  %v2827 = vld [vmem:[%s5 + $0x1e8] sm:$0xff]
  %v2828 = vld [vmem:[%s5 + $0x1f0] sm:$0xff]
  %v2829 = vld [vmem:[%s5 + $0x1f8] sm:$0xff]
  %v2830 = vld [vmem:[%s5 + $0x200] sm:$0xff]
  %v2831 = vld [vmem:[%s5 + $0x208] sm:$0xff]
  %v2832 = vld [vmem:[%s5 + $0x210] sm:$0xff]
  %v2833 = vld [vmem:[%s5 + $0x218] sm:$0xff]
  %v2834 = vld [vmem:[%s5 + $0x220] sm:$0xff]
  %v2835 = vld [vmem:[%s5 + $0x228] sm:$0xff]
  %v2836 = vld [vmem:[%s5 + $0x230] sm:$0xff]
  %v2837 = vld [vmem:[%s5 + $0x238] sm:$0xff]
  %v2838 = vld [vmem:[%s5 + $0x240] sm:$0xff]
  %v2839 = vld [vmem:[%s5 + $0x248] sm:$0xff]
  %v2840 = vld [vmem:[%s5 + $0x250] sm:$0xff]
  %v2841 = vld [vmem:[%s5 + $0x258] sm:$0xff]
  %v2842 = vld [vmem:[%s5 + $0x260] sm:$0xff]
  %v2843 = vld [vmem:[%s5 + $0x268] sm:$0xff]
  %v2844 = vld [vmem:[%s5 + $0x270] sm:$0xff]
  %v2845 = vld [vmem:[%s5 + $0x278] sm:$0xff]
  %v2846 = vld [vmem:[%s5 + $0x280] sm:$0xff]
  %v2847 = vld [vmem:[%s5 + $0x288] sm:$0xff]
  %v2848 = vld [vmem:[%s5 + $0x290] sm:$0xff]
  %v2849 = vld [vmem:[%s5 + $0x298] sm:$0xff]
  %v2850 = vld [vmem:[%s5 + $0x2a0] sm:$0xff]
  %v2851 = vld [vmem:[%s5 + $0x2a8] sm:$0xff]
  %v2852 = vld [vmem:[%s5 + $0x2b0] sm:$0xff]
  %v2853 = vld [vmem:[%s5 + $0x2b8] sm:$0xff]
  %v2854 = vld [vmem:[%s5 + $0x2c0] sm:$0xff]
  %v2855 = vld [vmem:[%s5 + $0x2c8] sm:$0xff]
  %v2856 = vld [vmem:[%s5 + $0x2d0] sm:$0xff]
  %v2857 = vld [vmem:[%s5 + $0x2d8] sm:$0xff]
  %v2858 = vld [vmem:[%s5 + $0x2e0] sm:$0xff]
  %v2859 = vld [vmem:[%s5 + $0x2e8] sm:$0xff]
  %v2860 = vld [vmem:[%s5 + $0x2f0] sm:$0xff]
  %v2861 = vld [vmem:[%s5 + $0x2f8] sm:$0xff]
  %v2862 = vld [vmem:[%s5 + $0x300] sm:$0xff]
  %v2863 = vld [vmem:[%s5 + $0x308] sm:$0xff]
  %v2864 = vld [vmem:[%s5 + $0x310] sm:$0xff]
  %v2865 = vld [vmem:[%s5 + $0x318] sm:$0xff]
  %v2866 = vld [vmem:[%s5 + $0x320] sm:$0xff]
  %v2867 = vld [vmem:[%s5 + $0x328] sm:$0xff]
  %v2868 = vld [vmem:[%s5 + $0x330] sm:$0xff]
  %v2869 = vld [vmem:[%s5 + $0x338] sm:$0xff]
  %v2870 = vld [vmem:[%s5 + $0x340] sm:$0xff]
  %v2871 = vld [vmem:[%s5 + $0x348] sm:$0xff]
  %v2872 = vld [vmem:[%s5 + $0x350] sm:$0xff]
  %v2873 = vld [vmem:[%s5 + $0x358] sm:$0xff]
  %v2874 = vld [vmem:[%s5 + $0x360] sm:$0xff]
  %v2875 = vld [vmem:[%s5 + $0x368] sm:$0xff]
  %v2876 = vld [vmem:[%s5 + $0x370] sm:$0xff]
  %v2877 = vld [vmem:[%s5 + $0x378] sm:$0xff]
  %v2878 = vld [vmem:[%s5 + $0x380] sm:$0xff]
  %v2879 = vld [vmem:[%s5 + $0x388] sm:$0xff]
  %v2880 = vld [vmem:[%s5 + $0x390] sm:$0xff]
  %v2881 = vld [vmem:[%s5 + $0x398] sm:$0xff]
  %v2882 = vld [vmem:[%s5 + $0x3a0] sm:$0xff]
  %v2883 = vld [vmem:[%s5 + $0x3a8] sm:$0xff]
  %v2884 = vld [vmem:[%s5 + $0x3b0] sm:$0xff]
  %v2885 = vld [vmem:[%s5 + $0x3b8] sm:$0xff]
  %v2886 = vld [vmem:[%s5 + $0x3c0] sm:$0xff]
  %v2887 = vld [vmem:[%s5 + $0x3c8] sm:$0xff]
  %v2888 = vld [vmem:[%s5 + $0x3d0] sm:$0xff]
  %v2889 = vld [vmem:[%s5 + $0x3d8] sm:$0xff]
  %v2890 = vld [vmem:[%s5 + $0x3e0] sm:$0xff]
  %v2891 = vld [vmem:[%s5 + $0x3e8] sm:$0xff]
  %v2892 = vld [vmem:[%s5 + $0x3f0] sm:$0xff]
  %v2893 = vld [vmem:[%s5 + $0x3f8] sm:$0xff]
  %v2894 = vld [vmem:[%s6] sm:$0xf]
  %v2896 = vlaneseq
  %v2897 = vshrl.u32 %v2896, 7
  %v2898 = vsub.s32 0, %v2897
  %v2899 = vrot.slane %v2894, %v2898
  %v2900 = vlaneseq
  %v2901 = vshrl.u32 %v2900, 7
  %v2902 = vsub.s32 1, %v2901
  %v2903 = vrot.slane %v2894, %v2902
  %v2904 = vlaneseq
  %v2905 = vshrl.u32 %v2904, 7
  %v2906 = vsub.s32 2, %v2905
  %v2907 = vrot.slane %v2894, %v2906
  %v2908 = vlaneseq
  %v2909 = vshrl.u32 %v2908, 7
  %v2910 = vsub.s32 3, %v2909
  %v2911 = vrot.slane %v2894, %v2910
  %2916 = vmatprep.subr.mxu0 %v2827
  %2917 = vmatpush1.msra.mxu0 %v2826
  %2918 = vmatprep.subr.mxu0 %v2823
  %2919 = vmatpush1.msra.mxu0 %v2822
  %2920 = vmatprep.subr.mxu0 %v2819
  %2921 = vmatpush1.msra.mxu0 %v2818
  %2922 = vmatprep.subr.mxu0 %v2815
  %2923 = vmatpush1.msra.mxu0 %v2814
  %2924 = vmatprep.subr.mxu0 %v2811
  %2925 = vmatpush1.msra.mxu0 %v2810
  %2926 = vmatprep.subr.mxu0 %v2807
  %2927 = vmatpush1.msra.mxu0 %v2806
  %2928 = vmatprep.subr.mxu0 %v2803
  %2929 = vmatpush1.msra.mxu0 %v2802
  %2930 = vmatprep.subr.mxu0 %v2799
  %2931 = vmatpush1.msra.mxu0 %v2798
  %2932 = vmatprep.subr.mxu0 %v2795
  %2933 = vmatpush1.msra.mxu0 %v2794
  %2934 = vmatprep.subr.mxu0 %v2791
  %2935 = vmatpush1.msra.mxu0 %v2790
  %2936 = vmatprep.subr.mxu0 %v2787
  %2937 = vmatpush1.msra.mxu0 %v2786
  %2938 = vmatprep.subr.mxu0 %v2783
  %2939 = vmatpush1.msra.mxu0 %v2782
  %2940 = vmatprep.subr.mxu0 %v2779
  %2941 = vmatpush1.msra.mxu0 %v2778
  %2942 = vmatprep.subr.mxu0 %v2775
  %2943 = vmatpush1.msra.mxu0 %v2774
  %2944 = vmatprep.subr.mxu0 %v2771
  %2945 = vmatpush1.msra.mxu0 %v2770
  %2946 = vmatprep.subr.mxu0 %v2767
  %2947 = vmatpush1.msra.mxu0 %v2766
  %2948 = vmatprep.subr.mxu0 %v2891
  %2949 = vmatpush2.msra.mxu0 %v2890
  %2950 = vmatprep.subr.mxu0 %v2887
  %2951 = vmatpush2.msra.mxu0 %v2886
  %2952 = vmatprep.subr.mxu0 %v2883
  %2953 = vmatpush2.msra.mxu0 %v2882
  %2954 = vmatprep.subr.mxu0 %v2879
  %2955 = vmatpush2.msra.mxu0 %v2878
  %2956 = vmatprep.subr.mxu0 %v2875
  %2957 = vmatpush2.msra.mxu0 %v2874
  %2958 = vmatprep.subr.mxu0 %v2871
  %2959 = vmatpush2.msra.mxu0 %v2870
  %2960 = vmatprep.subr.mxu0 %v2867
  %2961 = vmatpush2.msra.mxu0 %v2866
  %2962 = vmatprep.subr.mxu0 %v2863
  %2963 = vmatpush2.msra.mxu0 %v2862
  %2964 = vmatprep.subr.mxu0 %v2859
  %2965 = vmatpush2.msra.mxu0 %v2858
  %2966 = vmatprep.subr.mxu0 %v2855
  %2967 = vmatpush2.msra.mxu0 %v2854
  %2968 = vmatprep.subr.mxu0 %v2851
  %2969 = vmatpush2.msra.mxu0 %v2850
  %2970 = vmatprep.subr.mxu0 %v2847
  %2971 = vmatpush2.msra.mxu0 %v2846
  %2972 = vmatprep.subr.mxu0 %v2843
  %2973 = vmatpush2.msra.mxu0 %v2842
  %2974 = vmatprep.subr.mxu0 %v2839
  %2975 = vmatpush2.msra.mxu0 %v2838
  %2976 = vmatprep.subr.mxu0 %v2835
  %2977 = vmatpush2.msra.mxu0 %v2834
  %2978 = vmatprep.subr.mxu0 %v2831
  %2979 = vmatpush2.msra.mxu0 %v2830
  %2980 = vmatprep.mubr.f32.mxu0 %v2532
  %2981 = vmatmul.mubr.f32.gmra.mxu0 %v2765
  %v2982 = vpop.f32.mrf.mxu0
  %v2983 = vadd.f32 %v2899, %v2982
  %v2984 = vpop.f32.mrf.mxu0
  %v2985 = vadd.f32 %v2903, %v2984
  %2986 = vdwg.mxu0
  %2987 = vmatprep.subr.mxu0 %v2829
  %2988 = vmatpush1.msra.mxu0 %v2828
  %2989 = vmatprep.subr.mxu0 %v2825
  %2990 = vmatpush1.msra.mxu0 %v2824
  %2991 = vmatprep.subr.mxu0 %v2821
  %2992 = vmatpush1.msra.mxu0 %v2820
  %2993 = vmatprep.subr.mxu0 %v2817
  %2994 = vmatpush1.msra.mxu0 %v2816
  %2995 = vmatprep.subr.mxu0 %v2813
  %2996 = vmatpush1.msra.mxu0 %v2812
  %2997 = vmatprep.subr.mxu0 %v2809
  %2998 = vmatpush1.msra.mxu0 %v2808
  %2999 = vmatprep.subr.mxu0 %v2805
  %3000 = vmatpush1.msra.mxu0 %v2804
  %3001 = vmatprep.subr.mxu0 %v2801
  %3002 = vmatpush1.msra.mxu0 %v2800
  %3003 = vmatprep.subr.mxu0 %v2797
  %3004 = vmatpush1.msra.mxu0 %v2796
  %3005 = vmatprep.subr.mxu0 %v2793
  %3006 = vmatpush1.msra.mxu0 %v2792
  %3007 = vmatprep.subr.mxu0 %v2789
  %3008 = vmatpush1.msra.mxu0 %v2788
  %3009 = vmatprep.subr.mxu0 %v2785
  %3010 = vmatpush1.msra.mxu0 %v2784
  %3011 = vmatprep.subr.mxu0 %v2781
  %3012 = vmatpush1.msra.mxu0 %v2780
  %3013 = vmatprep.subr.mxu0 %v2777
  %3014 = vmatpush1.msra.mxu0 %v2776
  %3015 = vmatprep.subr.mxu0 %v2773
  %3016 = vmatpush1.msra.mxu0 %v2772
  %3017 = vmatprep.subr.mxu0 %v2769
  %3018 = vmatpush1.msra.mxu0 %v2768
  %3019 = vmatprep.subr.mxu0 %v2893
  %3020 = vmatpush2.msra.mxu0 %v2892
  %3021 = vmatprep.subr.mxu0 %v2889
  %3022 = vmatpush2.msra.mxu0 %v2888
  %3023 = vmatprep.subr.mxu0 %v2885
  %3024 = vmatpush2.msra.mxu0 %v2884
  %3025 = vmatprep.subr.mxu0 %v2881
  %3026 = vmatpush2.msra.mxu0 %v2880
  %3027 = vmatprep.subr.mxu0 %v2877
  %3028 = vmatpush2.msra.mxu0 %v2876
  %3029 = vmatprep.subr.mxu0 %v2873
  %3030 = vmatpush2.msra.mxu0 %v2872
  %3031 = vmatprep.subr.mxu0 %v2869
  %3032 = vmatpush2.msra.mxu0 %v2868
  %3033 = vmatprep.subr.mxu0 %v2865
  %3034 = vmatpush2.msra.mxu0 %v2864
  %3035 = vmatprep.subr.mxu0 %v2861
  %3036 = vmatpush2.msra.mxu0 %v2860
  %3037 = vmatprep.subr.mxu0 %v2857
  %3038 = vmatpush2.msra.mxu0 %v2856
  %3039 = vmatprep.subr.mxu0 %v2853
  %3040 = vmatpush2.msra.mxu0 %v2852
  %3041 = vmatprep.subr.mxu0 %v2849
  %3042 = vmatpush2.msra.mxu0 %v2848
  %3043 = vmatprep.subr.mxu0 %v2845
  %3044 = vmatpush2.msra.mxu0 %v2844
  %3045 = vmatprep.subr.mxu0 %v2841
  %3046 = vmatpush2.msra.mxu0 %v2840
  %3047 = vmatprep.subr.mxu0 %v2837
  %3048 = vmatpush2.msra.mxu0 %v2836
  %3049 = vmatprep.subr.mxu0 %v2833
  %3050 = vmatpush2.msra.mxu0 %v2832
  %3051 = vmatprep.mubr.f32.mxu0 %v2532
  %3052 = vmatmul.mubr.f32.gmra.mxu0 %v2765
  %v3053 = vpop.f32.mrf.mxu0
  %v3054 = vadd.f32 %v2907, %v3053
  %v3055 = vpop.f32.mrf.mxu0
  %v3056 = vadd.f32 %v2911, %v3055
  %3057 = vdwg.mxu0
  %v3058 = vxor.u32 %v2983, 2147483648
  %v3059 = vmul.f32 %v3058, 1.442695
  %v3060 = vpow.pop %v3059
  %v3061 = vadd.f32 %v3060, 1.0
  %v3062 = vrcp.pop %v3061
  %v3063 = vmul.f32 1.0, %v3062
  %v3064 = vxor.u32 %v2985, 2147483648
  %v3065 = vmul.f32 %v3064, 1.442695
  %v3066 = vpow.pop %v3065
  %v3067 = vadd.f32 %v3066, 1.0
  %v3068 = vrcp.pop %v3067
  %v3069 = vmul.f32 1.0, %v3068
  %v3070 = vsub.f32 %v3063, 1.0
  %v3071 = vmul.f32 %v3070, %v3056
  %v3072 = vadd.f32 %v3054, %v3071
  %v3073 = vtanh.pop %v3072
  %v3074 = vsub.f32 1.0, %v3069
  %v3075 = vmul.f32 %v3074, %v3073
  %v3076 = vmul.f32 %v3069, %v2532
  %v3077 = vadd.f32 %v3075, %v3076
  %s3078 = scalar_lea.vmem [#allocation3], 40
  %3079 = vst [vmem:[%s3078] sm:$0xff] %v3077
  %s3080 = scalar_lea.vmem [#allocation2], 120
  %v3081 = vld [vmem:[%s3080] sm:$0xff]
  %v3082 = vld [vmem:[%s3080 + $0x8] sm:$0xff]
  %v3083 = vld [vmem:[%s3080 + $0x10] sm:$0xff]
  %v3084 = vld [vmem:[%s3] sm:$0xff]
  %v3085 = vld [vmem:[%s3 + $0x8] sm:$0xff]
  %v3086 = vld [vmem:[%s3 + $0x10] sm:$0xff]
  %v3087 = vld [vmem:[%s3 + $0x18] sm:$0xff]
  %v3088 = vld [vmem:[%s3 + $0x20] sm:$0xff]
  %v3089 = vld [vmem:[%s3 + $0x28] sm:$0xff]
  %v3090 = vld [vmem:[%s3 + $0x30] sm:$0xff]
  %v3091 = vld [vmem:[%s3 + $0x38] sm:$0xff]
  %v3092 = vld [vmem:[%s3 + $0x40] sm:$0xff]
  %v3093 = vld [vmem:[%s3 + $0x48] sm:$0xff]
  %v3094 = vld [vmem:[%s3 + $0x50] sm:$0xff]
  %v3095 = vld [vmem:[%s3 + $0x58] sm:$0xff]
  %v3096 = vld [vmem:[%s3 + $0x60] sm:$0xff]
  %v3097 = vld [vmem:[%s3 + $0x68] sm:$0xff]
  %v3098 = vld [vmem:[%s3 + $0x70] sm:$0xff]
  %v3099 = vld [vmem:[%s3 + $0x78] sm:$0xff]
  %v3100 = vld [vmem:[%s3 + $0x80] sm:$0xff]
  %v3101 = vld [vmem:[%s3 + $0x88] sm:$0xff]
  %v3102 = vld [vmem:[%s3 + $0x90] sm:$0xff]
  %v3103 = vld [vmem:[%s3 + $0x98] sm:$0xff]
  %v3104 = vld [vmem:[%s3 + $0xa0] sm:$0xff]
  %v3105 = vld [vmem:[%s3 + $0xa8] sm:$0xff]
  %v3106 = vld [vmem:[%s3 + $0xb0] sm:$0xff]
  %v3107 = vld [vmem:[%s3 + $0xb8] sm:$0xff]
  %v3108 = vld [vmem:[%s3 + $0xc0] sm:$0xff]
  %v3109 = vld [vmem:[%s3 + $0xc8] sm:$0xff]
  %v3110 = vld [vmem:[%s3 + $0xd0] sm:$0xff]
  %v3111 = vld [vmem:[%s3 + $0xd8] sm:$0xff]
  %v3112 = vld [vmem:[%s3 + $0xe0] sm:$0xff]
  %v3113 = vld [vmem:[%s3 + $0xe8] sm:$0xff]
  %v3114 = vld [vmem:[%s3 + $0xf0] sm:$0xff]
  %v3115 = vld [vmem:[%s3 + $0xf8] sm:$0xff]
  %v3116 = vld [vmem:[%s3 + $0x100] sm:$0xff]
  %v3117 = vld [vmem:[%s3 + $0x108] sm:$0xff]
  %v3118 = vld [vmem:[%s3 + $0x110] sm:$0xff]
  %v3119 = vld [vmem:[%s3 + $0x118] sm:$0xff]
  %v3120 = vld [vmem:[%s3 + $0x120] sm:$0xff]
  %v3121 = vld [vmem:[%s3 + $0x128] sm:$0xff]
  %v3122 = vld [vmem:[%s3 + $0x130] sm:$0xff]
  %v3123 = vld [vmem:[%s3 + $0x138] sm:$0xff]
  %v3124 = vld [vmem:[%s3 + $0x140] sm:$0xff]
  %v3125 = vld [vmem:[%s3 + $0x148] sm:$0xff]
  %v3126 = vld [vmem:[%s3 + $0x150] sm:$0xff]
  %v3127 = vld [vmem:[%s3 + $0x158] sm:$0xff]
  %v3128 = vld [vmem:[%s3 + $0x160] sm:$0xff]
  %v3129 = vld [vmem:[%s3 + $0x168] sm:$0xff]
  %v3130 = vld [vmem:[%s3 + $0x170] sm:$0xff]
  %v3131 = vld [vmem:[%s3 + $0x178] sm:$0xff]
  %v3132 = vld [vmem:[%s4] sm:$0x7]
  %v3134 = vlaneseq
  %v3135 = vshrl.u32 %v3134, 7
  %v3136 = vsub.s32 0, %v3135
  %v3137 = vrot.slane %v3132, %v3136
  %v3138 = vlaneseq
  %v3139 = vshrl.u32 %v3138, 7
  %v3140 = vsub.s32 1, %v3139
  %v3141 = vrot.slane %v3132, %v3140
  %v3142 = vlaneseq
  %v3143 = vshrl.u32 %v3142, 7
  %v3144 = vsub.s32 2, %v3143
  %v3145 = vrot.slane %v3132, %v3144
  %3149 = vmatprep.subr.mxu0 %v3130
  %3150 = vmatpush1.msra.mxu0 %v3129
  %3151 = vmatprep.subr.mxu0 %v3127
  %3152 = vmatpush1.msra.mxu0 %v3126
  %3153 = vmatprep.subr.mxu0 %v3124
  %3154 = vmatpush1.msra.mxu0 %v3123
  %3155 = vmatprep.subr.mxu0 %v3121
  %3156 = vmatpush1.msra.mxu0 %v3120
  %3157 = vmatprep.subr.mxu0 %v3118
  %3158 = vmatpush1.msra.mxu0 %v3117
  %3159 = vmatprep.subr.mxu0 %v3115
  %3160 = vmatpush1.msra.mxu0 %v3114
  %3161 = vmatprep.subr.mxu0 %v3112
  %3162 = vmatpush1.msra.mxu0 %v3111
  %3163 = vmatprep.subr.mxu0 %v3109
  %3164 = vmatpush1.msra.mxu0 %v3108
  %3165 = vmatprep.subr.mxu0 %v3106
  %3166 = vmatpush1.msra.mxu0 %v3105
  %3167 = vmatprep.subr.mxu0 %v3103
  %3168 = vmatpush1.msra.mxu0 %v3102
  %3169 = vmatprep.subr.mxu0 %v3100
  %3170 = vmatpush1.msra.mxu0 %v3099
  %3171 = vmatprep.subr.mxu0 %v3097
  %3172 = vmatpush1.msra.mxu0 %v3096
  %3173 = vmatprep.subr.mxu0 %v3094
  %3174 = vmatpush1.msra.mxu0 %v3093
  %3175 = vmatprep.subr.mxu0 %v3091
  %3176 = vmatpush1.msra.mxu0 %v3090
  %3177 = vmatprep.subr.mxu0 %v3088
  %3178 = vmatpush1.msra.mxu0 %v3087
  %3179 = vmatprep.subr.mxu0 %v3085
  %3180 = vmatpush1.msra.mxu0 %v3084
  %3181 = vmatprep.subr.mxu0 0.0
  %3182 = vmatpush2.msra.mxu0 0.0
  %3183 = vmatprep.subr.mxu0 0.0
  %3184 = vmatpush2.msra.mxu0 0.0
  %3185 = vmatprep.subr.mxu0 0.0
  %3186 = vmatpush2.msra.mxu0 0.0
  %3187 = vmatprep.subr.mxu0 0.0
  %3188 = vmatpush2.msra.mxu0 0.0
  %3189 = vmatprep.subr.mxu0 0.0
  %3190 = vmatpush2.msra.mxu0 0.0
  %3191 = vmatprep.subr.mxu0 0.0
  %3192 = vmatpush2.msra.mxu0 0.0
  %3193 = vmatprep.subr.mxu0 0.0
  %3194 = vmatpush2.msra.mxu0 0.0
  %3195 = vmatprep.subr.mxu0 0.0
  %3196 = vmatpush2.msra.mxu0 0.0
  %3197 = vmatprep.subr.mxu0 0.0
  %3198 = vmatpush2.msra.mxu0 0.0
  %3199 = vmatprep.subr.mxu0 0.0
  %3200 = vmatpush2.msra.mxu0 0.0
  %3201 = vmatprep.subr.mxu0 0.0
  %3202 = vmatpush2.msra.mxu0 0.0
  %3203 = vmatprep.subr.mxu0 0.0
  %3204 = vmatpush2.msra.mxu0 0.0
  %3205 = vmatprep.subr.mxu0 0.0
  %3206 = vmatpush2.msra.mxu0 0.0
  %3207 = vmatprep.subr.mxu0 0.0
  %3208 = vmatpush2.msra.mxu0 0.0
  %3209 = vmatprep.subr.mxu0 0.0
  %3210 = vmatpush2.msra.mxu0 0.0
  %3211 = vmatprep.subr.mxu0 0.0
  %3212 = vmatpush2.msra.mxu0 0.0
  %3213 = vmatprep.mubr.f32.mxu0 0.0
  %3214 = vmatmul.mubr.f32.gmra.mxu0 %v2765
  %v3215 = vpop.f32.mrf.mxu0
  %v3216 = vadd.f32 %v3137, %v3215
  %v3217 = vpop.f32.mrf.mxu0
  %v3218 = vadd.f32 %v3141, %v3217
  %3219 = vdwg.mxu0
  %3220 = vmatprep.subr.mxu0 0.0
  %3221 = vmatpush1.msra.mxu0 %v3131
  %3222 = vmatprep.subr.mxu0 0.0
  %3223 = vmatpush1.msra.mxu0 %v3128
  %3224 = vmatprep.subr.mxu0 0.0
  %3225 = vmatpush1.msra.mxu0 %v3125
  %3226 = vmatprep.subr.mxu0 0.0
  %3227 = vmatpush1.msra.mxu0 %v3122
  %3228 = vmatprep.subr.mxu0 0.0
  %3229 = vmatpush1.msra.mxu0 %v3119
  %3230 = vmatprep.subr.mxu0 0.0
  %3231 = vmatpush1.msra.mxu0 %v3116
  %3232 = vmatprep.subr.mxu0 0.0
  %3233 = vmatpush1.msra.mxu0 %v3113
  %3234 = vmatprep.subr.mxu0 0.0
  %3235 = vmatpush1.msra.mxu0 %v3110
  %3236 = vmatprep.subr.mxu0 0.0
  %3237 = vmatpush1.msra.mxu0 %v3107
  %3238 = vmatprep.subr.mxu0 0.0
  %3239 = vmatpush1.msra.mxu0 %v3104
  %3240 = vmatprep.subr.mxu0 0.0
  %3241 = vmatpush1.msra.mxu0 %v3101
  %3242 = vmatprep.subr.mxu0 0.0
  %3243 = vmatpush1.msra.mxu0 %v3098
  %3244 = vmatprep.subr.mxu0 0.0
  %3245 = vmatpush1.msra.mxu0 %v3095
  %3246 = vmatprep.subr.mxu0 0.0
  %3247 = vmatpush1.msra.mxu0 %v3092
  %3248 = vmatprep.subr.mxu0 0.0
  %3249 = vmatpush1.msra.mxu0 %v3089
  %3250 = vmatprep.subr.mxu0 0.0
  %3251 = vmatpush1.msra.mxu0 %v3086
  %3252 = vmatprep.subr.mxu0 0.0
  %3253 = vmatpush2.msra.mxu0 0.0
  %3254 = vmatprep.subr.mxu0 0.0
  %3255 = vmatpush2.msra.mxu0 0.0
  %3256 = vmatprep.subr.mxu0 0.0
  %3257 = vmatpush2.msra.mxu0 0.0
  %3258 = vmatprep.subr.mxu0 0.0
  %3259 = vmatpush2.msra.mxu0 0.0
  %3260 = vmatprep.subr.mxu0 0.0
  %3261 = vmatpush2.msra.mxu0 0.0
  %3262 = vmatprep.subr.mxu0 0.0
  %3263 = vmatpush2.msra.mxu0 0.0
  %3264 = vmatprep.subr.mxu0 0.0
  %3265 = vmatpush2.msra.mxu0 0.0
  %3266 = vmatprep.subr.mxu0 0.0
  %3267 = vmatpush2.msra.mxu0 0.0
  %3268 = vmatprep.subr.mxu0 0.0
  %3269 = vmatpush2.msra.mxu0 0.0
  %3270 = vmatprep.subr.mxu0 0.0
  %3271 = vmatpush2.msra.mxu0 0.0
  %3272 = vmatprep.subr.mxu0 0.0
  %3273 = vmatpush2.msra.mxu0 0.0
  %3274 = vmatprep.subr.mxu0 0.0
  %3275 = vmatpush2.msra.mxu0 0.0
  %3276 = vmatprep.subr.mxu0 0.0
  %3277 = vmatpush2.msra.mxu0 0.0
  %3278 = vmatprep.subr.mxu0 0.0
  %3279 = vmatpush2.msra.mxu0 0.0
  %3280 = vmatprep.subr.mxu0 0.0
  %3281 = vmatpush2.msra.mxu0 0.0
  %3282 = vmatprep.subr.mxu0 0.0
  %3283 = vmatpush2.msra.mxu0 0.0
  %3284 = vmatprep.mubr.f32.mxu0 0.0
  %3285 = vmatmul.mubr.f32.gmra.mxu0 %v2765
  %v3286 = vpop.f32.mrf.mxu0
  %v3287 = vadd.f32 %v3145, %v3286
  %v3288 = vpop.f32.mrf.mxu0
  %3289 = vdwg.mxu0
  %v3290 = vadd.f32 %v3081, %v3216
  %v3291 = vxor.u32 %v3290, 2147483648
  %v3292 = vmul.f32 %v3291, 1.442695
  %v3293 = vpow.pop %v3292
  %v3294 = vadd.f32 %v3293, 1.0
  %v3295 = vrcp.pop %v3294
  %v3296 = vmul.f32 1.0, %v3295
  %v3297 = vadd.f32 %v3082, %v3218
  %v3298 = vxor.u32 %v3297, 2147483648
  %v3299 = vmul.f32 %v3298, 1.442695
  %v3300 = vpow.pop %v3299
  %v3301 = vadd.f32 %v3300, 1.0
  %v3302 = vrcp.pop %v3301
  %v3303 = vmul.f32 1.0, %v3302
  %v3304 = vmul.f32 %v3296, %v3287
  %v3305 = vadd.f32 %v3083, %v3304
  %v3306 = vtanh.pop %v3305
  %v3307 = vsub.f32 1.0, %v3303
  %v3308 = vmul.f32 %v3307, %v3306
  %v3309 = vmul.f32 %v3303, %v2765
  %v3310 = vadd.f32 %v3308, %v3309
  %v3311 = vld [vmem:[%s5] sm:$0xff]
  %v3312 = vld [vmem:[%s5 + $0x8] sm:$0xff]
  %v3313 = vld [vmem:[%s5 + $0x10] sm:$0xff]
  %v3314 = vld [vmem:[%s5 + $0x18] sm:$0xff]
  %v3315 = vld [vmem:[%s5 + $0x20] sm:$0xff]
  %v3316 = vld [vmem:[%s5 + $0x28] sm:$0xff]
  %v3317 = vld [vmem:[%s5 + $0x30] sm:$0xff]
  %v3318 = vld [vmem:[%s5 + $0x38] sm:$0xff]
  %v3319 = vld [vmem:[%s5 + $0x40] sm:$0xff]
  %v3320 = vld [vmem:[%s5 + $0x48] sm:$0xff]
  %v3321 = vld [vmem:[%s5 + $0x50] sm:$0xff]
  %v3322 = vld [vmem:[%s5 + $0x58] sm:$0xff]
  %v3323 = vld [vmem:[%s5 + $0x60] sm:$0xff]
  %v3324 = vld [vmem:[%s5 + $0x68] sm:$0xff]
  %v3325 = vld [vmem:[%s5 + $0x70] sm:$0xff]
  %v3326 = vld [vmem:[%s5 + $0x78] sm:$0xff]
  %v3327 = vld [vmem:[%s5 + $0x80] sm:$0xff]
  %v3328 = vld [vmem:[%s5 + $0x88] sm:$0xff]
  %v3329 = vld [vmem:[%s5 + $0x90] sm:$0xff]
  %v3330 = vld [vmem:[%s5 + $0x98] sm:$0xff]
  %v3331 = vld [vmem:[%s5 + $0xa0] sm:$0xff]
  %v3332 = vld [vmem:[%s5 + $0xa8] sm:$0xff]
  %v3333 = vld [vmem:[%s5 + $0xb0] sm:$0xff]
  %v3334 = vld [vmem:[%s5 + $0xb8] sm:$0xff]
  %v3335 = vld [vmem:[%s5 + $0xc0] sm:$0xff]
  %v3336 = vld [vmem:[%s5 + $0xc8] sm:$0xff]
  %v3337 = vld [vmem:[%s5 + $0xd0] sm:$0xff]
  %v3338 = vld [vmem:[%s5 + $0xd8] sm:$0xff]
  %v3339 = vld [vmem:[%s5 + $0xe0] sm:$0xff]
  %v3340 = vld [vmem:[%s5 + $0xe8] sm:$0xff]
  %v3341 = vld [vmem:[%s5 + $0xf0] sm:$0xff]
  %v3342 = vld [vmem:[%s5 + $0xf8] sm:$0xff]
  %v3343 = vld [vmem:[%s5 + $0x100] sm:$0xff]
  %v3344 = vld [vmem:[%s5 + $0x108] sm:$0xff]
  %v3345 = vld [vmem:[%s5 + $0x110] sm:$0xff]
  %v3346 = vld [vmem:[%s5 + $0x118] sm:$0xff]
  %v3347 = vld [vmem:[%s5 + $0x120] sm:$0xff]
  %v3348 = vld [vmem:[%s5 + $0x128] sm:$0xff]
  %v3349 = vld [vmem:[%s5 + $0x130] sm:$0xff]
  %v3350 = vld [vmem:[%s5 + $0x138] sm:$0xff]
  %v3351 = vld [vmem:[%s5 + $0x140] sm:$0xff]
  %v3352 = vld [vmem:[%s5 + $0x148] sm:$0xff]
  %v3353 = vld [vmem:[%s5 + $0x150] sm:$0xff]
  %v3354 = vld [vmem:[%s5 + $0x158] sm:$0xff]
  %v3355 = vld [vmem:[%s5 + $0x160] sm:$0xff]
  %v3356 = vld [vmem:[%s5 + $0x168] sm:$0xff]
  %v3357 = vld [vmem:[%s5 + $0x170] sm:$0xff]
  %v3358 = vld [vmem:[%s5 + $0x178] sm:$0xff]
  %v3359 = vld [vmem:[%s5 + $0x180] sm:$0xff]
  %v3360 = vld [vmem:[%s5 + $0x188] sm:$0xff]
  %v3361 = vld [vmem:[%s5 + $0x190] sm:$0xff]
  %v3362 = vld [vmem:[%s5 + $0x198] sm:$0xff]
  %v3363 = vld [vmem:[%s5 + $0x1a0] sm:$0xff]
  %v3364 = vld [vmem:[%s5 + $0x1a8] sm:$0xff]
  %v3365 = vld [vmem:[%s5 + $0x1b0] sm:$0xff]
  %v3366 = vld [vmem:[%s5 + $0x1b8] sm:$0xff]
  %v3367 = vld [vmem:[%s5 + $0x1c0] sm:$0xff]
  %v3368 = vld [vmem:[%s5 + $0x1c8] sm:$0xff]
  %v3369 = vld [vmem:[%s5 + $0x1d0] sm:$0xff]
  %v3370 = vld [vmem:[%s5 + $0x1d8] sm:$0xff]
  %v3371 = vld [vmem:[%s5 + $0x1e0] sm:$0xff]
  %v3372 = vld [vmem:[%s5 + $0x1e8] sm:$0xff]
  %v3373 = vld [vmem:[%s5 + $0x1f0] sm:$0xff]
  %v3374 = vld [vmem:[%s5 + $0x1f8] sm:$0xff]
  %v3375 = vld [vmem:[%s5 + $0x200] sm:$0xff]
  %v3376 = vld [vmem:[%s5 + $0x208] sm:$0xff]
  %v3377 = vld [vmem:[%s5 + $0x210] sm:$0xff]
  %v3378 = vld [vmem:[%s5 + $0x218] sm:$0xff]
  %v3379 = vld [vmem:[%s5 + $0x220] sm:$0xff]
  %v3380 = vld [vmem:[%s5 + $0x228] sm:$0xff]
  %v3381 = vld [vmem:[%s5 + $0x230] sm:$0xff]
  %v3382 = vld [vmem:[%s5 + $0x238] sm:$0xff]
  %v3383 = vld [vmem:[%s5 + $0x240] sm:$0xff]
  %v3384 = vld [vmem:[%s5 + $0x248] sm:$0xff]
  %v3385 = vld [vmem:[%s5 + $0x250] sm:$0xff]
  %v3386 = vld [vmem:[%s5 + $0x258] sm:$0xff]
  %v3387 = vld [vmem:[%s5 + $0x260] sm:$0xff]
  %v3388 = vld [vmem:[%s5 + $0x268] sm:$0xff]
  %v3389 = vld [vmem:[%s5 + $0x270] sm:$0xff]
  %v3390 = vld [vmem:[%s5 + $0x278] sm:$0xff]
  %v3391 = vld [vmem:[%s5 + $0x280] sm:$0xff]
  %v3392 = vld [vmem:[%s5 + $0x288] sm:$0xff]
  %v3393 = vld [vmem:[%s5 + $0x290] sm:$0xff]
  %v3394 = vld [vmem:[%s5 + $0x298] sm:$0xff]
  %v3395 = vld [vmem:[%s5 + $0x2a0] sm:$0xff]
  %v3396 = vld [vmem:[%s5 + $0x2a8] sm:$0xff]
  %v3397 = vld [vmem:[%s5 + $0x2b0] sm:$0xff]
  %v3398 = vld [vmem:[%s5 + $0x2b8] sm:$0xff]
  %v3399 = vld [vmem:[%s5 + $0x2c0] sm:$0xff]
  %v3400 = vld [vmem:[%s5 + $0x2c8] sm:$0xff]
  %v3401 = vld [vmem:[%s5 + $0x2d0] sm:$0xff]
  %v3402 = vld [vmem:[%s5 + $0x2d8] sm:$0xff]
  %v3403 = vld [vmem:[%s5 + $0x2e0] sm:$0xff]
  %v3404 = vld [vmem:[%s5 + $0x2e8] sm:$0xff]
  %v3405 = vld [vmem:[%s5 + $0x2f0] sm:$0xff]
  %v3406 = vld [vmem:[%s5 + $0x2f8] sm:$0xff]
  %v3407 = vld [vmem:[%s5 + $0x300] sm:$0xff]
  %v3408 = vld [vmem:[%s5 + $0x308] sm:$0xff]
  %v3409 = vld [vmem:[%s5 + $0x310] sm:$0xff]
  %v3410 = vld [vmem:[%s5 + $0x318] sm:$0xff]
  %v3411 = vld [vmem:[%s5 + $0x320] sm:$0xff]
  %v3412 = vld [vmem:[%s5 + $0x328] sm:$0xff]
  %v3413 = vld [vmem:[%s5 + $0x330] sm:$0xff]
  %v3414 = vld [vmem:[%s5 + $0x338] sm:$0xff]
  %v3415 = vld [vmem:[%s5 + $0x340] sm:$0xff]
  %v3416 = vld [vmem:[%s5 + $0x348] sm:$0xff]
  %v3417 = vld [vmem:[%s5 + $0x350] sm:$0xff]
  %v3418 = vld [vmem:[%s5 + $0x358] sm:$0xff]
  %v3419 = vld [vmem:[%s5 + $0x360] sm:$0xff]
  %v3420 = vld [vmem:[%s5 + $0x368] sm:$0xff]
  %v3421 = vld [vmem:[%s5 + $0x370] sm:$0xff]
  %v3422 = vld [vmem:[%s5 + $0x378] sm:$0xff]
  %v3423 = vld [vmem:[%s5 + $0x380] sm:$0xff]
  %v3424 = vld [vmem:[%s5 + $0x388] sm:$0xff]
  %v3425 = vld [vmem:[%s5 + $0x390] sm:$0xff]
  %v3426 = vld [vmem:[%s5 + $0x398] sm:$0xff]
  %v3427 = vld [vmem:[%s5 + $0x3a0] sm:$0xff]
  %v3428 = vld [vmem:[%s5 + $0x3a8] sm:$0xff]
  %v3429 = vld [vmem:[%s5 + $0x3b0] sm:$0xff]
  %v3430 = vld [vmem:[%s5 + $0x3b8] sm:$0xff]
  %v3431 = vld [vmem:[%s5 + $0x3c0] sm:$0xff]
  %v3432 = vld [vmem:[%s5 + $0x3c8] sm:$0xff]
  %v3433 = vld [vmem:[%s5 + $0x3d0] sm:$0xff]
  %v3434 = vld [vmem:[%s5 + $0x3d8] sm:$0xff]
  %v3435 = vld [vmem:[%s5 + $0x3e0] sm:$0xff]
  %v3436 = vld [vmem:[%s5 + $0x3e8] sm:$0xff]
  %v3437 = vld [vmem:[%s5 + $0x3f0] sm:$0xff]
  %v3438 = vld [vmem:[%s5 + $0x3f8] sm:$0xff]
  %v3439 = vld [vmem:[%s6] sm:$0xf]
  %v3441 = vlaneseq
  %v3442 = vshrl.u32 %v3441, 7
  %v3443 = vsub.s32 0, %v3442
  %v3444 = vrot.slane %v3439, %v3443
  %v3445 = vlaneseq
  %v3446 = vshrl.u32 %v3445, 7
  %v3447 = vsub.s32 1, %v3446
  %v3448 = vrot.slane %v3439, %v3447
  %v3449 = vlaneseq
  %v3450 = vshrl.u32 %v3449, 7
  %v3451 = vsub.s32 2, %v3450
  %v3452 = vrot.slane %v3439, %v3451
  %v3453 = vlaneseq
  %v3454 = vshrl.u32 %v3453, 7
  %v3455 = vsub.s32 3, %v3454
  %v3456 = vrot.slane %v3439, %v3455
  %3461 = vmatprep.subr.mxu0 %v3372
  %3462 = vmatpush1.msra.mxu0 %v3371
  %3463 = vmatprep.subr.mxu0 %v3368
  %3464 = vmatpush1.msra.mxu0 %v3367
  %3465 = vmatprep.subr.mxu0 %v3364
  %3466 = vmatpush1.msra.mxu0 %v3363
  %3467 = vmatprep.subr.mxu0 %v3360
  %3468 = vmatpush1.msra.mxu0 %v3359
  %3469 = vmatprep.subr.mxu0 %v3356
  %3470 = vmatpush1.msra.mxu0 %v3355
  %3471 = vmatprep.subr.mxu0 %v3352
  %3472 = vmatpush1.msra.mxu0 %v3351
  %3473 = vmatprep.subr.mxu0 %v3348
  %3474 = vmatpush1.msra.mxu0 %v3347
  %3475 = vmatprep.subr.mxu0 %v3344
  %3476 = vmatpush1.msra.mxu0 %v3343
  %3477 = vmatprep.subr.mxu0 %v3340
  %3478 = vmatpush1.msra.mxu0 %v3339
  %3479 = vmatprep.subr.mxu0 %v3336
  %3480 = vmatpush1.msra.mxu0 %v3335
  %3481 = vmatprep.subr.mxu0 %v3332
  %3482 = vmatpush1.msra.mxu0 %v3331
  %3483 = vmatprep.subr.mxu0 %v3328
  %3484 = vmatpush1.msra.mxu0 %v3327
  %3485 = vmatprep.subr.mxu0 %v3324
  %3486 = vmatpush1.msra.mxu0 %v3323
  %3487 = vmatprep.subr.mxu0 %v3320
  %3488 = vmatpush1.msra.mxu0 %v3319
  %3489 = vmatprep.subr.mxu0 %v3316
  %3490 = vmatpush1.msra.mxu0 %v3315
  %3491 = vmatprep.subr.mxu0 %v3312
  %3492 = vmatpush1.msra.mxu0 %v3311
  %3493 = vmatprep.subr.mxu0 %v3436
  %3494 = vmatpush2.msra.mxu0 %v3435
  %3495 = vmatprep.subr.mxu0 %v3432
  %3496 = vmatpush2.msra.mxu0 %v3431
  %3497 = vmatprep.subr.mxu0 %v3428
  %3498 = vmatpush2.msra.mxu0 %v3427
  %3499 = vmatprep.subr.mxu0 %v3424
  %3500 = vmatpush2.msra.mxu0 %v3423
  %3501 = vmatprep.subr.mxu0 %v3420
  %3502 = vmatpush2.msra.mxu0 %v3419
  %3503 = vmatprep.subr.mxu0 %v3416
  %3504 = vmatpush2.msra.mxu0 %v3415
  %3505 = vmatprep.subr.mxu0 %v3412
  %3506 = vmatpush2.msra.mxu0 %v3411
  %3507 = vmatprep.subr.mxu0 %v3408
  %3508 = vmatpush2.msra.mxu0 %v3407
  %3509 = vmatprep.subr.mxu0 %v3404
  %3510 = vmatpush2.msra.mxu0 %v3403
  %3511 = vmatprep.subr.mxu0 %v3400
  %3512 = vmatpush2.msra.mxu0 %v3399
  %3513 = vmatprep.subr.mxu0 %v3396
  %3514 = vmatpush2.msra.mxu0 %v3395
  %3515 = vmatprep.subr.mxu0 %v3392
  %3516 = vmatpush2.msra.mxu0 %v3391
  %3517 = vmatprep.subr.mxu0 %v3388
  %3518 = vmatpush2.msra.mxu0 %v3387
  %3519 = vmatprep.subr.mxu0 %v3384
  %3520 = vmatpush2.msra.mxu0 %v3383
  %3521 = vmatprep.subr.mxu0 %v3380
  %3522 = vmatpush2.msra.mxu0 %v3379
  %3523 = vmatprep.subr.mxu0 %v3376
  %3524 = vmatpush2.msra.mxu0 %v3375
  %3525 = vmatprep.mubr.f32.mxu0 %v3077
  %3526 = vmatmul.mubr.f32.gmra.mxu0 %v3310
  %v3527 = vpop.f32.mrf.mxu0
  %v3528 = vadd.f32 %v3444, %v3527
  %v3529 = vpop.f32.mrf.mxu0
  %v3530 = vadd.f32 %v3448, %v3529
  %3531 = vdwg.mxu0
  %3532 = vmatprep.subr.mxu0 %v3374
  %3533 = vmatpush1.msra.mxu0 %v3373
  %3534 = vmatprep.subr.mxu0 %v3370
  %3535 = vmatpush1.msra.mxu0 %v3369
  %3536 = vmatprep.subr.mxu0 %v3366
  %3537 = vmatpush1.msra.mxu0 %v3365
  %3538 = vmatprep.subr.mxu0 %v3362
  %3539 = vmatpush1.msra.mxu0 %v3361
  %3540 = vmatprep.subr.mxu0 %v3358
  %3541 = vmatpush1.msra.mxu0 %v3357
  %3542 = vmatprep.subr.mxu0 %v3354
  %3543 = vmatpush1.msra.mxu0 %v3353
  %3544 = vmatprep.subr.mxu0 %v3350
  %3545 = vmatpush1.msra.mxu0 %v3349
  %3546 = vmatprep.subr.mxu0 %v3346
  %3547 = vmatpush1.msra.mxu0 %v3345
  %3548 = vmatprep.subr.mxu0 %v3342
  %3549 = vmatpush1.msra.mxu0 %v3341
  %3550 = vmatprep.subr.mxu0 %v3338
  %3551 = vmatpush1.msra.mxu0 %v3337
  %3552 = vmatprep.subr.mxu0 %v3334
  %3553 = vmatpush1.msra.mxu0 %v3333
  %3554 = vmatprep.subr.mxu0 %v3330
  %3555 = vmatpush1.msra.mxu0 %v3329
  %3556 = vmatprep.subr.mxu0 %v3326
  %3557 = vmatpush1.msra.mxu0 %v3325
  %3558 = vmatprep.subr.mxu0 %v3322
  %3559 = vmatpush1.msra.mxu0 %v3321
  %3560 = vmatprep.subr.mxu0 %v3318
  %3561 = vmatpush1.msra.mxu0 %v3317
  %3562 = vmatprep.subr.mxu0 %v3314
  %3563 = vmatpush1.msra.mxu0 %v3313
  %3564 = vmatprep.subr.mxu0 %v3438
  %3565 = vmatpush2.msra.mxu0 %v3437
  %3566 = vmatprep.subr.mxu0 %v3434
  %3567 = vmatpush2.msra.mxu0 %v3433
  %3568 = vmatprep.subr.mxu0 %v3430
  %3569 = vmatpush2.msra.mxu0 %v3429
  %3570 = vmatprep.subr.mxu0 %v3426
  %3571 = vmatpush2.msra.mxu0 %v3425
  %3572 = vmatprep.subr.mxu0 %v3422
  %3573 = vmatpush2.msra.mxu0 %v3421
  %3574 = vmatprep.subr.mxu0 %v3418
  %3575 = vmatpush2.msra.mxu0 %v3417
  %3576 = vmatprep.subr.mxu0 %v3414
  %3577 = vmatpush2.msra.mxu0 %v3413
  %3578 = vmatprep.subr.mxu0 %v3410
  %3579 = vmatpush2.msra.mxu0 %v3409
  %3580 = vmatprep.subr.mxu0 %v3406
  %3581 = vmatpush2.msra.mxu0 %v3405
  %3582 = vmatprep.subr.mxu0 %v3402
  %3583 = vmatpush2.msra.mxu0 %v3401
  %3584 = vmatprep.subr.mxu0 %v3398
  %3585 = vmatpush2.msra.mxu0 %v3397
  %3586 = vmatprep.subr.mxu0 %v3394
  %3587 = vmatpush2.msra.mxu0 %v3393
  %3588 = vmatprep.subr.mxu0 %v3390
  %3589 = vmatpush2.msra.mxu0 %v3389
  %3590 = vmatprep.subr.mxu0 %v3386
  %3591 = vmatpush2.msra.mxu0 %v3385
  %3592 = vmatprep.subr.mxu0 %v3382
  %3593 = vmatpush2.msra.mxu0 %v3381
  %3594 = vmatprep.subr.mxu0 %v3378
  %3595 = vmatpush2.msra.mxu0 %v3377
  %3596 = vmatprep.mubr.f32.mxu0 %v3077
  %3597 = vmatmul.mubr.f32.gmra.mxu0 %v3310
  %v3598 = vpop.f32.mrf.mxu0
  %v3599 = vadd.f32 %v3452, %v3598
  %v3600 = vpop.f32.mrf.mxu0
  %v3601 = vadd.f32 %v3456, %v3600
  %3602 = vdwg.mxu0
  %v3603 = vxor.u32 %v3528, 2147483648
  %v3604 = vmul.f32 %v3603, 1.442695
  %v3605 = vpow.pop %v3604
  %v3606 = vadd.f32 %v3605, 1.0
  %v3607 = vrcp.pop %v3606
  %v3608 = vmul.f32 1.0, %v3607
  %v3609 = vxor.u32 %v3530, 2147483648
  %v3610 = vmul.f32 %v3609, 1.442695
  %v3611 = vpow.pop %v3610
  %v3612 = vadd.f32 %v3611, 1.0
  %v3613 = vrcp.pop %v3612
  %v3614 = vmul.f32 1.0, %v3613
  %v3615 = vsub.f32 %v3608, 1.0
  %v3616 = vmul.f32 %v3615, %v3601
  %v3617 = vadd.f32 %v3599, %v3616
  %v3618 = vtanh.pop %v3617
  %v3619 = vsub.f32 1.0, %v3614
  %v3620 = vmul.f32 %v3619, %v3618
  %v3621 = vmul.f32 %v3614, %v3077
  %v3622 = vadd.f32 %v3620, %v3621
  %s3623 = scalar_lea.vmem [#allocation3], 48
  %3624 = vst [vmem:[%s3623] sm:$0xff] %v3622
  %s3625 = scalar_lea.vmem [#allocation2], 144
  %v3626 = vld [vmem:[%s3625] sm:$0xff]
  %v3627 = vld [vmem:[%s3625 + $0x8] sm:$0xff]
  %v3628 = vld [vmem:[%s3625 + $0x10] sm:$0xff]
  %v3629 = vld [vmem:[%s3] sm:$0xff]
  %v3630 = vld [vmem:[%s3 + $0x8] sm:$0xff]
  %v3631 = vld [vmem:[%s3 + $0x10] sm:$0xff]
  %v3632 = vld [vmem:[%s3 + $0x18] sm:$0xff]
  %v3633 = vld [vmem:[%s3 + $0x20] sm:$0xff]
  %v3634 = vld [vmem:[%s3 + $0x28] sm:$0xff]
  %v3635 = vld [vmem:[%s3 + $0x30] sm:$0xff]
  %v3636 = vld [vmem:[%s3 + $0x38] sm:$0xff]
  %v3637 = vld [vmem:[%s3 + $0x40] sm:$0xff]
  %v3638 = vld [vmem:[%s3 + $0x48] sm:$0xff]
  %v3639 = vld [vmem:[%s3 + $0x50] sm:$0xff]
  %v3640 = vld [vmem:[%s3 + $0x58] sm:$0xff]
  %v3641 = vld [vmem:[%s3 + $0x60] sm:$0xff]
  %v3642 = vld [vmem:[%s3 + $0x68] sm:$0xff]
  %v3643 = vld [vmem:[%s3 + $0x70] sm:$0xff]
  %v3644 = vld [vmem:[%s3 + $0x78] sm:$0xff]
  %v3645 = vld [vmem:[%s3 + $0x80] sm:$0xff]
  %v3646 = vld [vmem:[%s3 + $0x88] sm:$0xff]
  %v3647 = vld [vmem:[%s3 + $0x90] sm:$0xff]
  %v3648 = vld [vmem:[%s3 + $0x98] sm:$0xff]
  %v3649 = vld [vmem:[%s3 + $0xa0] sm:$0xff]
  %v3650 = vld [vmem:[%s3 + $0xa8] sm:$0xff]
  %v3651 = vld [vmem:[%s3 + $0xb0] sm:$0xff]
  %v3652 = vld [vmem:[%s3 + $0xb8] sm:$0xff]
  %v3653 = vld [vmem:[%s3 + $0xc0] sm:$0xff]
  %v3654 = vld [vmem:[%s3 + $0xc8] sm:$0xff]
  %v3655 = vld [vmem:[%s3 + $0xd0] sm:$0xff]
  %v3656 = vld [vmem:[%s3 + $0xd8] sm:$0xff]
  %v3657 = vld [vmem:[%s3 + $0xe0] sm:$0xff]
  %v3658 = vld [vmem:[%s3 + $0xe8] sm:$0xff]
  %v3659 = vld [vmem:[%s3 + $0xf0] sm:$0xff]
  %v3660 = vld [vmem:[%s3 + $0xf8] sm:$0xff]
  %v3661 = vld [vmem:[%s3 + $0x100] sm:$0xff]
  %v3662 = vld [vmem:[%s3 + $0x108] sm:$0xff]
  %v3663 = vld [vmem:[%s3 + $0x110] sm:$0xff]
  %v3664 = vld [vmem:[%s3 + $0x118] sm:$0xff]
  %v3665 = vld [vmem:[%s3 + $0x120] sm:$0xff]
  %v3666 = vld [vmem:[%s3 + $0x128] sm:$0xff]
  %v3667 = vld [vmem:[%s3 + $0x130] sm:$0xff]
  %v3668 = vld [vmem:[%s3 + $0x138] sm:$0xff]
  %v3669 = vld [vmem:[%s3 + $0x140] sm:$0xff]
  %v3670 = vld [vmem:[%s3 + $0x148] sm:$0xff]
  %v3671 = vld [vmem:[%s3 + $0x150] sm:$0xff]
  %v3672 = vld [vmem:[%s3 + $0x158] sm:$0xff]
  %v3673 = vld [vmem:[%s3 + $0x160] sm:$0xff]
  %v3674 = vld [vmem:[%s3 + $0x168] sm:$0xff]
  %v3675 = vld [vmem:[%s3 + $0x170] sm:$0xff]
  %v3676 = vld [vmem:[%s3 + $0x178] sm:$0xff]
  %v3677 = vld [vmem:[%s4] sm:$0x7]
  %v3679 = vlaneseq
  %v3680 = vshrl.u32 %v3679, 7
  %v3681 = vsub.s32 0, %v3680
  %v3682 = vrot.slane %v3677, %v3681
  %v3683 = vlaneseq
  %v3684 = vshrl.u32 %v3683, 7
  %v3685 = vsub.s32 1, %v3684
  %v3686 = vrot.slane %v3677, %v3685
  %v3687 = vlaneseq
  %v3688 = vshrl.u32 %v3687, 7
  %v3689 = vsub.s32 2, %v3688
  %v3690 = vrot.slane %v3677, %v3689
  %3694 = vmatprep.subr.mxu0 %v3675
  %3695 = vmatpush1.msra.mxu0 %v3674
  %3696 = vmatprep.subr.mxu0 %v3672
  %3697 = vmatpush1.msra.mxu0 %v3671
  %3698 = vmatprep.subr.mxu0 %v3669
  %3699 = vmatpush1.msra.mxu0 %v3668
  %3700 = vmatprep.subr.mxu0 %v3666
  %3701 = vmatpush1.msra.mxu0 %v3665
  %3702 = vmatprep.subr.mxu0 %v3663
  %3703 = vmatpush1.msra.mxu0 %v3662
  %3704 = vmatprep.subr.mxu0 %v3660
  %3705 = vmatpush1.msra.mxu0 %v3659
  %3706 = vmatprep.subr.mxu0 %v3657
  %3707 = vmatpush1.msra.mxu0 %v3656
  %3708 = vmatprep.subr.mxu0 %v3654
  %3709 = vmatpush1.msra.mxu0 %v3653
  %3710 = vmatprep.subr.mxu0 %v3651
  %3711 = vmatpush1.msra.mxu0 %v3650
  %3712 = vmatprep.subr.mxu0 %v3648
  %3713 = vmatpush1.msra.mxu0 %v3647
  %3714 = vmatprep.subr.mxu0 %v3645
  %3715 = vmatpush1.msra.mxu0 %v3644
  %3716 = vmatprep.subr.mxu0 %v3642
  %3717 = vmatpush1.msra.mxu0 %v3641
  %3718 = vmatprep.subr.mxu0 %v3639
  %3719 = vmatpush1.msra.mxu0 %v3638
  %3720 = vmatprep.subr.mxu0 %v3636
  %3721 = vmatpush1.msra.mxu0 %v3635
  %3722 = vmatprep.subr.mxu0 %v3633
  %3723 = vmatpush1.msra.mxu0 %v3632
  %3724 = vmatprep.subr.mxu0 %v3630
  %3725 = vmatpush1.msra.mxu0 %v3629
  %3726 = vmatprep.subr.mxu0 0.0
  %3727 = vmatpush2.msra.mxu0 0.0
  %3728 = vmatprep.subr.mxu0 0.0
  %3729 = vmatpush2.msra.mxu0 0.0
  %3730 = vmatprep.subr.mxu0 0.0
  %3731 = vmatpush2.msra.mxu0 0.0
  %3732 = vmatprep.subr.mxu0 0.0
  %3733 = vmatpush2.msra.mxu0 0.0
  %3734 = vmatprep.subr.mxu0 0.0
  %3735 = vmatpush2.msra.mxu0 0.0
  %3736 = vmatprep.subr.mxu0 0.0
  %3737 = vmatpush2.msra.mxu0 0.0
  %3738 = vmatprep.subr.mxu0 0.0
  %3739 = vmatpush2.msra.mxu0 0.0
  %3740 = vmatprep.subr.mxu0 0.0
  %3741 = vmatpush2.msra.mxu0 0.0
  %3742 = vmatprep.subr.mxu0 0.0
  %3743 = vmatpush2.msra.mxu0 0.0
  %3744 = vmatprep.subr.mxu0 0.0
  %3745 = vmatpush2.msra.mxu0 0.0
  %3746 = vmatprep.subr.mxu0 0.0
  %3747 = vmatpush2.msra.mxu0 0.0
  %3748 = vmatprep.subr.mxu0 0.0
  %3749 = vmatpush2.msra.mxu0 0.0
  %3750 = vmatprep.subr.mxu0 0.0
  %3751 = vmatpush2.msra.mxu0 0.0
  %3752 = vmatprep.subr.mxu0 0.0
  %3753 = vmatpush2.msra.mxu0 0.0
  %3754 = vmatprep.subr.mxu0 0.0
  %3755 = vmatpush2.msra.mxu0 0.0
  %3756 = vmatprep.subr.mxu0 0.0
  %3757 = vmatpush2.msra.mxu0 0.0
  %3758 = vmatprep.mubr.f32.mxu0 0.0
  %3759 = vmatmul.mubr.f32.gmra.mxu0 %v3310
  %v3760 = vpop.f32.mrf.mxu0
  %v3761 = vadd.f32 %v3682, %v3760
  %v3762 = vpop.f32.mrf.mxu0
  %v3763 = vadd.f32 %v3686, %v3762
  %3764 = vdwg.mxu0
  %3765 = vmatprep.subr.mxu0 0.0
  %3766 = vmatpush1.msra.mxu0 %v3676
  %3767 = vmatprep.subr.mxu0 0.0
  %3768 = vmatpush1.msra.mxu0 %v3673
  %3769 = vmatprep.subr.mxu0 0.0
  %3770 = vmatpush1.msra.mxu0 %v3670
  %3771 = vmatprep.subr.mxu0 0.0
  %3772 = vmatpush1.msra.mxu0 %v3667
  %3773 = vmatprep.subr.mxu0 0.0
  %3774 = vmatpush1.msra.mxu0 %v3664
  %3775 = vmatprep.subr.mxu0 0.0
  %3776 = vmatpush1.msra.mxu0 %v3661
  %3777 = vmatprep.subr.mxu0 0.0
  %3778 = vmatpush1.msra.mxu0 %v3658
  %3779 = vmatprep.subr.mxu0 0.0
  %3780 = vmatpush1.msra.mxu0 %v3655
  %3781 = vmatprep.subr.mxu0 0.0
  %3782 = vmatpush1.msra.mxu0 %v3652
  %3783 = vmatprep.subr.mxu0 0.0
  %3784 = vmatpush1.msra.mxu0 %v3649
  %3785 = vmatprep.subr.mxu0 0.0
  %3786 = vmatpush1.msra.mxu0 %v3646
  %3787 = vmatprep.subr.mxu0 0.0
  %3788 = vmatpush1.msra.mxu0 %v3643
  %3789 = vmatprep.subr.mxu0 0.0
  %3790 = vmatpush1.msra.mxu0 %v3640
  %3791 = vmatprep.subr.mxu0 0.0
  %3792 = vmatpush1.msra.mxu0 %v3637
  %3793 = vmatprep.subr.mxu0 0.0
  %3794 = vmatpush1.msra.mxu0 %v3634
  %3795 = vmatprep.subr.mxu0 0.0
  %3796 = vmatpush1.msra.mxu0 %v3631
  %3797 = vmatprep.subr.mxu0 0.0
  %3798 = vmatpush2.msra.mxu0 0.0
  %3799 = vmatprep.subr.mxu0 0.0
  %3800 = vmatpush2.msra.mxu0 0.0
  %3801 = vmatprep.subr.mxu0 0.0
  %3802 = vmatpush2.msra.mxu0 0.0
  %3803 = vmatprep.subr.mxu0 0.0
  %3804 = vmatpush2.msra.mxu0 0.0
  %3805 = vmatprep.subr.mxu0 0.0
  %3806 = vmatpush2.msra.mxu0 0.0
  %3807 = vmatprep.subr.mxu0 0.0
  %3808 = vmatpush2.msra.mxu0 0.0
  %3809 = vmatprep.subr.mxu0 0.0
  %3810 = vmatpush2.msra.mxu0 0.0
  %3811 = vmatprep.subr.mxu0 0.0
  %3812 = vmatpush2.msra.mxu0 0.0
  %3813 = vmatprep.subr.mxu0 0.0
  %3814 = vmatpush2.msra.mxu0 0.0
  %3815 = vmatprep.subr.mxu0 0.0
  %3816 = vmatpush2.msra.mxu0 0.0
  %3817 = vmatprep.subr.mxu0 0.0
  %3818 = vmatpush2.msra.mxu0 0.0
  %3819 = vmatprep.subr.mxu0 0.0
  %3820 = vmatpush2.msra.mxu0 0.0
  %3821 = vmatprep.subr.mxu0 0.0
  %3822 = vmatpush2.msra.mxu0 0.0
  %3823 = vmatprep.subr.mxu0 0.0
  %3824 = vmatpush2.msra.mxu0 0.0
  %3825 = vmatprep.subr.mxu0 0.0
  %3826 = vmatpush2.msra.mxu0 0.0
  %3827 = vmatprep.subr.mxu0 0.0
  %3828 = vmatpush2.msra.mxu0 0.0
  %3829 = vmatprep.mubr.f32.mxu0 0.0
  %3830 = vmatmul.mubr.f32.gmra.mxu0 %v3310
  %v3831 = vpop.f32.mrf.mxu0
  %v3832 = vadd.f32 %v3690, %v3831
  %v3833 = vpop.f32.mrf.mxu0
  %3834 = vdwg.mxu0
  %v3835 = vadd.f32 %v3626, %v3761
  %v3836 = vxor.u32 %v3835, 2147483648
  %v3837 = vmul.f32 %v3836, 1.442695
  %v3838 = vpow.pop %v3837
  %v3839 = vadd.f32 %v3838, 1.0
  %v3840 = vrcp.pop %v3839
  %v3841 = vmul.f32 1.0, %v3840
  %v3842 = vadd.f32 %v3627, %v3763
  %v3843 = vxor.u32 %v3842, 2147483648
  %v3844 = vmul.f32 %v3843, 1.442695
  %v3845 = vpow.pop %v3844
  %v3846 = vadd.f32 %v3845, 1.0
  %v3847 = vrcp.pop %v3846
  %v3848 = vmul.f32 1.0, %v3847
  %v3849 = vmul.f32 %v3841, %v3832
  %v3850 = vadd.f32 %v3628, %v3849
  %v3851 = vtanh.pop %v3850
  %v3852 = vsub.f32 1.0, %v3848
  %v3853 = vmul.f32 %v3852, %v3851
  %v3854 = vmul.f32 %v3848, %v3310
  %v3855 = vadd.f32 %v3853, %v3854
  %v3856 = vld [vmem:[%s5] sm:$0xff]
  %v3857 = vld [vmem:[%s5 + $0x8] sm:$0xff]
  %v3858 = vld [vmem:[%s5 + $0x10] sm:$0xff]
  %v3859 = vld [vmem:[%s5 + $0x18] sm:$0xff]
  %v3860 = vld [vmem:[%s5 + $0x20] sm:$0xff]
  %v3861 = vld [vmem:[%s5 + $0x28] sm:$0xff]
  %v3862 = vld [vmem:[%s5 + $0x30] sm:$0xff]
  %v3863 = vld [vmem:[%s5 + $0x38] sm:$0xff]
  %v3864 = vld [vmem:[%s5 + $0x40] sm:$0xff]
  %v3865 = vld [vmem:[%s5 + $0x48] sm:$0xff]
  %v3866 = vld [vmem:[%s5 + $0x50] sm:$0xff]
  %v3867 = vld [vmem:[%s5 + $0x58] sm:$0xff]
  %v3868 = vld [vmem:[%s5 + $0x60] sm:$0xff]
  %v3869 = vld [vmem:[%s5 + $0x68] sm:$0xff]
  %v3870 = vld [vmem:[%s5 + $0x70] sm:$0xff]
  %v3871 = vld [vmem:[%s5 + $0x78] sm:$0xff]
  %v3872 = vld [vmem:[%s5 + $0x80] sm:$0xff]
  %v3873 = vld [vmem:[%s5 + $0x88] sm:$0xff]
  %v3874 = vld [vmem:[%s5 + $0x90] sm:$0xff]
  %v3875 = vld [vmem:[%s5 + $0x98] sm:$0xff]
  %v3876 = vld [vmem:[%s5 + $0xa0] sm:$0xff]
  %v3877 = vld [vmem:[%s5 + $0xa8] sm:$0xff]
  %v3878 = vld [vmem:[%s5 + $0xb0] sm:$0xff]
  %v3879 = vld [vmem:[%s5 + $0xb8] sm:$0xff]
  %v3880 = vld [vmem:[%s5 + $0xc0] sm:$0xff]
  %v3881 = vld [vmem:[%s5 + $0xc8] sm:$0xff]
  %v3882 = vld [vmem:[%s5 + $0xd0] sm:$0xff]
  %v3883 = vld [vmem:[%s5 + $0xd8] sm:$0xff]
  %v3884 = vld [vmem:[%s5 + $0xe0] sm:$0xff]
  %v3885 = vld [vmem:[%s5 + $0xe8] sm:$0xff]
  %v3886 = vld [vmem:[%s5 + $0xf0] sm:$0xff]
  %v3887 = vld [vmem:[%s5 + $0xf8] sm:$0xff]
  %v3888 = vld [vmem:[%s5 + $0x100] sm:$0xff]
  %v3889 = vld [vmem:[%s5 + $0x108] sm:$0xff]
  %v3890 = vld [vmem:[%s5 + $0x110] sm:$0xff]
  %v3891 = vld [vmem:[%s5 + $0x118] sm:$0xff]
  %v3892 = vld [vmem:[%s5 + $0x120] sm:$0xff]
  %v3893 = vld [vmem:[%s5 + $0x128] sm:$0xff]
  %v3894 = vld [vmem:[%s5 + $0x130] sm:$0xff]
  %v3895 = vld [vmem:[%s5 + $0x138] sm:$0xff]
  %v3896 = vld [vmem:[%s5 + $0x140] sm:$0xff]
  %v3897 = vld [vmem:[%s5 + $0x148] sm:$0xff]
  %v3898 = vld [vmem:[%s5 + $0x150] sm:$0xff]
  %v3899 = vld [vmem:[%s5 + $0x158] sm:$0xff]
  %v3900 = vld [vmem:[%s5 + $0x160] sm:$0xff]
  %v3901 = vld [vmem:[%s5 + $0x168] sm:$0xff]
  %v3902 = vld [vmem:[%s5 + $0x170] sm:$0xff]
  %v3903 = vld [vmem:[%s5 + $0x178] sm:$0xff]
  %v3904 = vld [vmem:[%s5 + $0x180] sm:$0xff]
  %v3905 = vld [vmem:[%s5 + $0x188] sm:$0xff]
  %v3906 = vld [vmem:[%s5 + $0x190] sm:$0xff]
  %v3907 = vld [vmem:[%s5 + $0x198] sm:$0xff]
  %v3908 = vld [vmem:[%s5 + $0x1a0] sm:$0xff]
  %v3909 = vld [vmem:[%s5 + $0x1a8] sm:$0xff]
  %v3910 = vld [vmem:[%s5 + $0x1b0] sm:$0xff]
  %v3911 = vld [vmem:[%s5 + $0x1b8] sm:$0xff]
  %v3912 = vld [vmem:[%s5 + $0x1c0] sm:$0xff]
  %v3913 = vld [vmem:[%s5 + $0x1c8] sm:$0xff]
  %v3914 = vld [vmem:[%s5 + $0x1d0] sm:$0xff]
  %v3915 = vld [vmem:[%s5 + $0x1d8] sm:$0xff]
  %v3916 = vld [vmem:[%s5 + $0x1e0] sm:$0xff]
  %v3917 = vld [vmem:[%s5 + $0x1e8] sm:$0xff]
  %v3918 = vld [vmem:[%s5 + $0x1f0] sm:$0xff]
  %v3919 = vld [vmem:[%s5 + $0x1f8] sm:$0xff]
  %v3920 = vld [vmem:[%s5 + $0x200] sm:$0xff]
  %v3921 = vld [vmem:[%s5 + $0x208] sm:$0xff]
  %v3922 = vld [vmem:[%s5 + $0x210] sm:$0xff]
  %v3923 = vld [vmem:[%s5 + $0x218] sm:$0xff]
  %v3924 = vld [vmem:[%s5 + $0x220] sm:$0xff]
  %v3925 = vld [vmem:[%s5 + $0x228] sm:$0xff]
  %v3926 = vld [vmem:[%s5 + $0x230] sm:$0xff]
  %v3927 = vld [vmem:[%s5 + $0x238] sm:$0xff]
  %v3928 = vld [vmem:[%s5 + $0x240] sm:$0xff]
  %v3929 = vld [vmem:[%s5 + $0x248] sm:$0xff]
  %v3930 = vld [vmem:[%s5 + $0x250] sm:$0xff]
  %v3931 = vld [vmem:[%s5 + $0x258] sm:$0xff]
  %v3932 = vld [vmem:[%s5 + $0x260] sm:$0xff]
  %v3933 = vld [vmem:[%s5 + $0x268] sm:$0xff]
  %v3934 = vld [vmem:[%s5 + $0x270] sm:$0xff]
  %v3935 = vld [vmem:[%s5 + $0x278] sm:$0xff]
  %v3936 = vld [vmem:[%s5 + $0x280] sm:$0xff]
  %v3937 = vld [vmem:[%s5 + $0x288] sm:$0xff]
  %v3938 = vld [vmem:[%s5 + $0x290] sm:$0xff]
  %v3939 = vld [vmem:[%s5 + $0x298] sm:$0xff]
  %v3940 = vld [vmem:[%s5 + $0x2a0] sm:$0xff]
  %v3941 = vld [vmem:[%s5 + $0x2a8] sm:$0xff]
  %v3942 = vld [vmem:[%s5 + $0x2b0] sm:$0xff]
  %v3943 = vld [vmem:[%s5 + $0x2b8] sm:$0xff]
  %v3944 = vld [vmem:[%s5 + $0x2c0] sm:$0xff]
  %v3945 = vld [vmem:[%s5 + $0x2c8] sm:$0xff]
  %v3946 = vld [vmem:[%s5 + $0x2d0] sm:$0xff]
  %v3947 = vld [vmem:[%s5 + $0x2d8] sm:$0xff]
  %v3948 = vld [vmem:[%s5 + $0x2e0] sm:$0xff]
  %v3949 = vld [vmem:[%s5 + $0x2e8] sm:$0xff]
  %v3950 = vld [vmem:[%s5 + $0x2f0] sm:$0xff]
  %v3951 = vld [vmem:[%s5 + $0x2f8] sm:$0xff]
  %v3952 = vld [vmem:[%s5 + $0x300] sm:$0xff]
  %v3953 = vld [vmem:[%s5 + $0x308] sm:$0xff]
  %v3954 = vld [vmem:[%s5 + $0x310] sm:$0xff]
  %v3955 = vld [vmem:[%s5 + $0x318] sm:$0xff]
  %v3956 = vld [vmem:[%s5 + $0x320] sm:$0xff]
  %v3957 = vld [vmem:[%s5 + $0x328] sm:$0xff]
  %v3958 = vld [vmem:[%s5 + $0x330] sm:$0xff]
  %v3959 = vld [vmem:[%s5 + $0x338] sm:$0xff]
  %v3960 = vld [vmem:[%s5 + $0x340] sm:$0xff]
  %v3961 = vld [vmem:[%s5 + $0x348] sm:$0xff]
  %v3962 = vld [vmem:[%s5 + $0x350] sm:$0xff]
  %v3963 = vld [vmem:[%s5 + $0x358] sm:$0xff]
  %v3964 = vld [vmem:[%s5 + $0x360] sm:$0xff]
  %v3965 = vld [vmem:[%s5 + $0x368] sm:$0xff]
  %v3966 = vld [vmem:[%s5 + $0x370] sm:$0xff]
  %v3967 = vld [vmem:[%s5 + $0x378] sm:$0xff]
  %v3968 = vld [vmem:[%s5 + $0x380] sm:$0xff]
  %v3969 = vld [vmem:[%s5 + $0x388] sm:$0xff]
  %v3970 = vld [vmem:[%s5 + $0x390] sm:$0xff]
  %v3971 = vld [vmem:[%s5 + $0x398] sm:$0xff]
  %v3972 = vld [vmem:[%s5 + $0x3a0] sm:$0xff]
  %v3973 = vld [vmem:[%s5 + $0x3a8] sm:$0xff]
  %v3974 = vld [vmem:[%s5 + $0x3b0] sm:$0xff]
  %v3975 = vld [vmem:[%s5 + $0x3b8] sm:$0xff]
  %v3976 = vld [vmem:[%s5 + $0x3c0] sm:$0xff]
  %v3977 = vld [vmem:[%s5 + $0x3c8] sm:$0xff]
  %v3978 = vld [vmem:[%s5 + $0x3d0] sm:$0xff]
  %v3979 = vld [vmem:[%s5 + $0x3d8] sm:$0xff]
  %v3980 = vld [vmem:[%s5 + $0x3e0] sm:$0xff]
  %v3981 = vld [vmem:[%s5 + $0x3e8] sm:$0xff]
  %v3982 = vld [vmem:[%s5 + $0x3f0] sm:$0xff]
  %v3983 = vld [vmem:[%s5 + $0x3f8] sm:$0xff]
  %v3984 = vld [vmem:[%s6] sm:$0xf]
  %v3986 = vlaneseq
  %v3987 = vshrl.u32 %v3986, 7
  %v3988 = vsub.s32 0, %v3987
  %v3989 = vrot.slane %v3984, %v3988
  %v3990 = vlaneseq
  %v3991 = vshrl.u32 %v3990, 7
  %v3992 = vsub.s32 1, %v3991
  %v3993 = vrot.slane %v3984, %v3992
  %v3994 = vlaneseq
  %v3995 = vshrl.u32 %v3994, 7
  %v3996 = vsub.s32 2, %v3995
  %v3997 = vrot.slane %v3984, %v3996
  %v3998 = vlaneseq
  %v3999 = vshrl.u32 %v3998, 7
  %v4000 = vsub.s32 3, %v3999
  %v4001 = vrot.slane %v3984, %v4000
  %4006 = vmatprep.subr.mxu0 %v3917
  %4007 = vmatpush1.msra.mxu0 %v3916
  %4008 = vmatprep.subr.mxu0 %v3913
  %4009 = vmatpush1.msra.mxu0 %v3912
  %4010 = vmatprep.subr.mxu0 %v3909
  %4011 = vmatpush1.msra.mxu0 %v3908
  %4012 = vmatprep.subr.mxu0 %v3905
  %4013 = vmatpush1.msra.mxu0 %v3904
  %4014 = vmatprep.subr.mxu0 %v3901
  %4015 = vmatpush1.msra.mxu0 %v3900
  %4016 = vmatprep.subr.mxu0 %v3897
  %4017 = vmatpush1.msra.mxu0 %v3896
  %4018 = vmatprep.subr.mxu0 %v3893
  %4019 = vmatpush1.msra.mxu0 %v3892
  %4020 = vmatprep.subr.mxu0 %v3889
  %4021 = vmatpush1.msra.mxu0 %v3888
  %4022 = vmatprep.subr.mxu0 %v3885
  %4023 = vmatpush1.msra.mxu0 %v3884
  %4024 = vmatprep.subr.mxu0 %v3881
  %4025 = vmatpush1.msra.mxu0 %v3880
  %4026 = vmatprep.subr.mxu0 %v3877
  %4027 = vmatpush1.msra.mxu0 %v3876
  %4028 = vmatprep.subr.mxu0 %v3873
  %4029 = vmatpush1.msra.mxu0 %v3872
  %4030 = vmatprep.subr.mxu0 %v3869
  %4031 = vmatpush1.msra.mxu0 %v3868
  %4032 = vmatprep.subr.mxu0 %v3865
  %4033 = vmatpush1.msra.mxu0 %v3864
  %4034 = vmatprep.subr.mxu0 %v3861
  %4035 = vmatpush1.msra.mxu0 %v3860
  %4036 = vmatprep.subr.mxu0 %v3857
  %4037 = vmatpush1.msra.mxu0 %v3856
  %4038 = vmatprep.subr.mxu0 %v3981
  %4039 = vmatpush2.msra.mxu0 %v3980
  %4040 = vmatprep.subr.mxu0 %v3977
  %4041 = vmatpush2.msra.mxu0 %v3976
  %4042 = vmatprep.subr.mxu0 %v3973
  %4043 = vmatpush2.msra.mxu0 %v3972
  %4044 = vmatprep.subr.mxu0 %v3969
  %4045 = vmatpush2.msra.mxu0 %v3968
  %4046 = vmatprep.subr.mxu0 %v3965
  %4047 = vmatpush2.msra.mxu0 %v3964
  %4048 = vmatprep.subr.mxu0 %v3961
  %4049 = vmatpush2.msra.mxu0 %v3960
  %4050 = vmatprep.subr.mxu0 %v3957
  %4051 = vmatpush2.msra.mxu0 %v3956
  %4052 = vmatprep.subr.mxu0 %v3953
  %4053 = vmatpush2.msra.mxu0 %v3952
  %4054 = vmatprep.subr.mxu0 %v3949
  %4055 = vmatpush2.msra.mxu0 %v3948
  %4056 = vmatprep.subr.mxu0 %v3945
  %4057 = vmatpush2.msra.mxu0 %v3944
  %4058 = vmatprep.subr.mxu0 %v3941
  %4059 = vmatpush2.msra.mxu0 %v3940
  %4060 = vmatprep.subr.mxu0 %v3937
  %4061 = vmatpush2.msra.mxu0 %v3936
  %4062 = vmatprep.subr.mxu0 %v3933
  %4063 = vmatpush2.msra.mxu0 %v3932
  %4064 = vmatprep.subr.mxu0 %v3929
  %4065 = vmatpush2.msra.mxu0 %v3928
  %4066 = vmatprep.subr.mxu0 %v3925
  %4067 = vmatpush2.msra.mxu0 %v3924
  %4068 = vmatprep.subr.mxu0 %v3921
  %4069 = vmatpush2.msra.mxu0 %v3920
  %4070 = vmatprep.mubr.f32.mxu0 %v3622
  %4071 = vmatmul.mubr.f32.gmra.mxu0 %v3855
  %v4072 = vpop.f32.mrf.mxu0
  %v4073 = vadd.f32 %v3989, %v4072
  %v4074 = vpop.f32.mrf.mxu0
  %v4075 = vadd.f32 %v3993, %v4074
  %4076 = vdwg.mxu0
  %4077 = vmatprep.subr.mxu0 %v3919
  %4078 = vmatpush1.msra.mxu0 %v3918
  %4079 = vmatprep.subr.mxu0 %v3915
  %4080 = vmatpush1.msra.mxu0 %v3914
  %4081 = vmatprep.subr.mxu0 %v3911
  %4082 = vmatpush1.msra.mxu0 %v3910
  %4083 = vmatprep.subr.mxu0 %v3907
  %4084 = vmatpush1.msra.mxu0 %v3906
  %4085 = vmatprep.subr.mxu0 %v3903
  %4086 = vmatpush1.msra.mxu0 %v3902
  %4087 = vmatprep.subr.mxu0 %v3899
  %4088 = vmatpush1.msra.mxu0 %v3898
  %4089 = vmatprep.subr.mxu0 %v3895
  %4090 = vmatpush1.msra.mxu0 %v3894
  %4091 = vmatprep.subr.mxu0 %v3891
  %4092 = vmatpush1.msra.mxu0 %v3890
  %4093 = vmatprep.subr.mxu0 %v3887
  %4094 = vmatpush1.msra.mxu0 %v3886
  %4095 = vmatprep.subr.mxu0 %v3883
  %4096 = vmatpush1.msra.mxu0 %v3882
  %4097 = vmatprep.subr.mxu0 %v3879
  %4098 = vmatpush1.msra.mxu0 %v3878
  %4099 = vmatprep.subr.mxu0 %v3875
  %4100 = vmatpush1.msra.mxu0 %v3874
  %4101 = vmatprep.subr.mxu0 %v3871
  %4102 = vmatpush1.msra.mxu0 %v3870
  %4103 = vmatprep.subr.mxu0 %v3867
  %4104 = vmatpush1.msra.mxu0 %v3866
  %4105 = vmatprep.subr.mxu0 %v3863
  %4106 = vmatpush1.msra.mxu0 %v3862
  %4107 = vmatprep.subr.mxu0 %v3859
  %4108 = vmatpush1.msra.mxu0 %v3858
  %4109 = vmatprep.subr.mxu0 %v3983
  %4110 = vmatpush2.msra.mxu0 %v3982
  %4111 = vmatprep.subr.mxu0 %v3979
  %4112 = vmatpush2.msra.mxu0 %v3978
  %4113 = vmatprep.subr.mxu0 %v3975
  %4114 = vmatpush2.msra.mxu0 %v3974
  %4115 = vmatprep.subr.mxu0 %v3971
  %4116 = vmatpush2.msra.mxu0 %v3970
  %4117 = vmatprep.subr.mxu0 %v3967
  %4118 = vmatpush2.msra.mxu0 %v3966
  %4119 = vmatprep.subr.mxu0 %v3963
  %4120 = vmatpush2.msra.mxu0 %v3962
  %4121 = vmatprep.subr.mxu0 %v3959
  %4122 = vmatpush2.msra.mxu0 %v3958
  %4123 = vmatprep.subr.mxu0 %v3955
  %4124 = vmatpush2.msra.mxu0 %v3954
  %4125 = vmatprep.subr.mxu0 %v3951
  %4126 = vmatpush2.msra.mxu0 %v3950
  %4127 = vmatprep.subr.mxu0 %v3947
  %4128 = vmatpush2.msra.mxu0 %v3946
  %4129 = vmatprep.subr.mxu0 %v3943
  %4130 = vmatpush2.msra.mxu0 %v3942
  %4131 = vmatprep.subr.mxu0 %v3939
  %4132 = vmatpush2.msra.mxu0 %v3938
  %4133 = vmatprep.subr.mxu0 %v3935
  %4134 = vmatpush2.msra.mxu0 %v3934
  %4135 = vmatprep.subr.mxu0 %v3931
  %4136 = vmatpush2.msra.mxu0 %v3930
  %4137 = vmatprep.subr.mxu0 %v3927
  %4138 = vmatpush2.msra.mxu0 %v3926
  %4139 = vmatprep.subr.mxu0 %v3923
  %4140 = vmatpush2.msra.mxu0 %v3922
  %4141 = vmatprep.mubr.f32.mxu0 %v3622
  %4142 = vmatmul.mubr.f32.gmra.mxu0 %v3855
  %v4143 = vpop.f32.mrf.mxu0
  %v4144 = vadd.f32 %v3997, %v4143
  %v4145 = vpop.f32.mrf.mxu0
  %v4146 = vadd.f32 %v4001, %v4145
  %4147 = vdwg.mxu0
  %v4148 = vxor.u32 %v4073, 2147483648
  %v4149 = vmul.f32 %v4148, 1.442695
  %v4150 = vpow.pop %v4149
  %v4151 = vadd.f32 %v4150, 1.0
  %v4152 = vrcp.pop %v4151
  %v4153 = vmul.f32 1.0, %v4152
  %v4154 = vxor.u32 %v4075, 2147483648
  %v4155 = vmul.f32 %v4154, 1.442695
  %v4156 = vpow.pop %v4155
  %v4157 = vadd.f32 %v4156, 1.0
  %v4158 = vrcp.pop %v4157
  %v4159 = vmul.f32 1.0, %v4158
  %v4160 = vsub.f32 %v4153, 1.0
  %v4161 = vmul.f32 %v4160, %v4146
  %v4162 = vadd.f32 %v4144, %v4161
  %v4163 = vtanh.pop %v4162
  %v4164 = vsub.f32 1.0, %v4159
  %v4165 = vmul.f32 %v4164, %v4163
  %v4166 = vmul.f32 %v4159, %v3622
  %v4167 = vadd.f32 %v4165, %v4166
  %s4168 = scalar_lea.vmem [#allocation3], 56
  %4169 = vst [vmem:[%s4168] sm:$0xff] %v4167
  %s4170 = scalar_lea.vmem [#allocation2], 168
  %v4171 = vld [vmem:[%s4170] sm:$0xff]
  %v4172 = vld [vmem:[%s4170 + $0x8] sm:$0xff]
  %v4173 = vld [vmem:[%s4170 + $0x10] sm:$0xff]
  %v4174 = vld [vmem:[%s3] sm:$0xff]
  %v4175 = vld [vmem:[%s3 + $0x8] sm:$0xff]
  %v4176 = vld [vmem:[%s3 + $0x10] sm:$0xff]
  %v4177 = vld [vmem:[%s3 + $0x18] sm:$0xff]
  %v4178 = vld [vmem:[%s3 + $0x20] sm:$0xff]
  %v4179 = vld [vmem:[%s3 + $0x28] sm:$0xff]
  %v4180 = vld [vmem:[%s3 + $0x30] sm:$0xff]
  %v4181 = vld [vmem:[%s3 + $0x38] sm:$0xff]
  %v4182 = vld [vmem:[%s3 + $0x40] sm:$0xff]
  %v4183 = vld [vmem:[%s3 + $0x48] sm:$0xff]
  %v4184 = vld [vmem:[%s3 + $0x50] sm:$0xff]
  %v4185 = vld [vmem:[%s3 + $0x58] sm:$0xff]
  %v4186 = vld [vmem:[%s3 + $0x60] sm:$0xff]
  %v4187 = vld [vmem:[%s3 + $0x68] sm:$0xff]
  %v4188 = vld [vmem:[%s3 + $0x70] sm:$0xff]
  %v4189 = vld [vmem:[%s3 + $0x78] sm:$0xff]
  %v4190 = vld [vmem:[%s3 + $0x80] sm:$0xff]
  %v4191 = vld [vmem:[%s3 + $0x88] sm:$0xff]
  %v4192 = vld [vmem:[%s3 + $0x90] sm:$0xff]
  %v4193 = vld [vmem:[%s3 + $0x98] sm:$0xff]
  %v4194 = vld [vmem:[%s3 + $0xa0] sm:$0xff]
  %v4195 = vld [vmem:[%s3 + $0xa8] sm:$0xff]
  %v4196 = vld [vmem:[%s3 + $0xb0] sm:$0xff]
  %v4197 = vld [vmem:[%s3 + $0xb8] sm:$0xff]
  %v4198 = vld [vmem:[%s3 + $0xc0] sm:$0xff]
  %v4199 = vld [vmem:[%s3 + $0xc8] sm:$0xff]
  %v4200 = vld [vmem:[%s3 + $0xd0] sm:$0xff]
  %v4201 = vld [vmem:[%s3 + $0xd8] sm:$0xff]
  %v4202 = vld [vmem:[%s3 + $0xe0] sm:$0xff]
  %v4203 = vld [vmem:[%s3 + $0xe8] sm:$0xff]
  %v4204 = vld [vmem:[%s3 + $0xf0] sm:$0xff]
  %v4205 = vld [vmem:[%s3 + $0xf8] sm:$0xff]
  %v4206 = vld [vmem:[%s3 + $0x100] sm:$0xff]
  %v4207 = vld [vmem:[%s3 + $0x108] sm:$0xff]
  %v4208 = vld [vmem:[%s3 + $0x110] sm:$0xff]
  %v4209 = vld [vmem:[%s3 + $0x118] sm:$0xff]
  %v4210 = vld [vmem:[%s3 + $0x120] sm:$0xff]
  %v4211 = vld [vmem:[%s3 + $0x128] sm:$0xff]
  %v4212 = vld [vmem:[%s3 + $0x130] sm:$0xff]
  %v4213 = vld [vmem:[%s3 + $0x138] sm:$0xff]
  %v4214 = vld [vmem:[%s3 + $0x140] sm:$0xff]
  %v4215 = vld [vmem:[%s3 + $0x148] sm:$0xff]
  %v4216 = vld [vmem:[%s3 + $0x150] sm:$0xff]
  %v4217 = vld [vmem:[%s3 + $0x158] sm:$0xff]
  %v4218 = vld [vmem:[%s3 + $0x160] sm:$0xff]
  %v4219 = vld [vmem:[%s3 + $0x168] sm:$0xff]
  %v4220 = vld [vmem:[%s3 + $0x170] sm:$0xff]
  %v4221 = vld [vmem:[%s3 + $0x178] sm:$0xff]
  %v4222 = vld [vmem:[%s4] sm:$0x7]
  %v4224 = vlaneseq
  %v4225 = vshrl.u32 %v4224, 7
  %v4226 = vsub.s32 0, %v4225
  %v4227 = vrot.slane %v4222, %v4226
  %v4228 = vlaneseq
  %v4229 = vshrl.u32 %v4228, 7
  %v4230 = vsub.s32 1, %v4229
  %v4231 = vrot.slane %v4222, %v4230
  %v4232 = vlaneseq
  %v4233 = vshrl.u32 %v4232, 7
  %v4234 = vsub.s32 2, %v4233
  %v4235 = vrot.slane %v4222, %v4234
  %4239 = vmatprep.subr.mxu0 %v4220
  %4240 = vmatpush1.msra.mxu0 %v4219
  %4241 = vmatprep.subr.mxu0 %v4217
  %4242 = vmatpush1.msra.mxu0 %v4216
  %4243 = vmatprep.subr.mxu0 %v4214
  %4244 = vmatpush1.msra.mxu0 %v4213
  %4245 = vmatprep.subr.mxu0 %v4211
  %4246 = vmatpush1.msra.mxu0 %v4210
  %4247 = vmatprep.subr.mxu0 %v4208
  %4248 = vmatpush1.msra.mxu0 %v4207
  %4249 = vmatprep.subr.mxu0 %v4205
  %4250 = vmatpush1.msra.mxu0 %v4204
  %4251 = vmatprep.subr.mxu0 %v4202
  %4252 = vmatpush1.msra.mxu0 %v4201
  %4253 = vmatprep.subr.mxu0 %v4199
  %4254 = vmatpush1.msra.mxu0 %v4198
  %4255 = vmatprep.subr.mxu0 %v4196
  %4256 = vmatpush1.msra.mxu0 %v4195
  %4257 = vmatprep.subr.mxu0 %v4193
  %4258 = vmatpush1.msra.mxu0 %v4192
  %4259 = vmatprep.subr.mxu0 %v4190
  %4260 = vmatpush1.msra.mxu0 %v4189
  %4261 = vmatprep.subr.mxu0 %v4187
  %4262 = vmatpush1.msra.mxu0 %v4186
  %4263 = vmatprep.subr.mxu0 %v4184
  %4264 = vmatpush1.msra.mxu0 %v4183
  %4265 = vmatprep.subr.mxu0 %v4181
  %4266 = vmatpush1.msra.mxu0 %v4180
  %4267 = vmatprep.subr.mxu0 %v4178
  %4268 = vmatpush1.msra.mxu0 %v4177
  %4269 = vmatprep.subr.mxu0 %v4175
  %4270 = vmatpush1.msra.mxu0 %v4174
  %4271 = vmatprep.subr.mxu0 0.0
  %4272 = vmatpush2.msra.mxu0 0.0
  %4273 = vmatprep.subr.mxu0 0.0
  %4274 = vmatpush2.msra.mxu0 0.0
  %4275 = vmatprep.subr.mxu0 0.0
  %4276 = vmatpush2.msra.mxu0 0.0
  %4277 = vmatprep.subr.mxu0 0.0
  %4278 = vmatpush2.msra.mxu0 0.0
  %4279 = vmatprep.subr.mxu0 0.0
  %4280 = vmatpush2.msra.mxu0 0.0
  %4281 = vmatprep.subr.mxu0 0.0
  %4282 = vmatpush2.msra.mxu0 0.0
  %4283 = vmatprep.subr.mxu0 0.0
  %4284 = vmatpush2.msra.mxu0 0.0
  %4285 = vmatprep.subr.mxu0 0.0
  %4286 = vmatpush2.msra.mxu0 0.0
  %4287 = vmatprep.subr.mxu0 0.0
  %4288 = vmatpush2.msra.mxu0 0.0
  %4289 = vmatprep.subr.mxu0 0.0
  %4290 = vmatpush2.msra.mxu0 0.0
  %4291 = vmatprep.subr.mxu0 0.0
  %4292 = vmatpush2.msra.mxu0 0.0
  %4293 = vmatprep.subr.mxu0 0.0
  %4294 = vmatpush2.msra.mxu0 0.0
  %4295 = vmatprep.subr.mxu0 0.0
  %4296 = vmatpush2.msra.mxu0 0.0
  %4297 = vmatprep.subr.mxu0 0.0
  %4298 = vmatpush2.msra.mxu0 0.0
  %4299 = vmatprep.subr.mxu0 0.0
  %4300 = vmatpush2.msra.mxu0 0.0
  %4301 = vmatprep.subr.mxu0 0.0
  %4302 = vmatpush2.msra.mxu0 0.0
  %4303 = vmatprep.mubr.f32.mxu0 0.0
  %4304 = vmatmul.mubr.f32.gmra.mxu0 %v3855
  %v4305 = vpop.f32.mrf.mxu0
  %v4306 = vadd.f32 %v4227, %v4305
  %v4307 = vpop.f32.mrf.mxu0
  %v4308 = vadd.f32 %v4231, %v4307
  %4309 = vdwg.mxu0
  %4310 = vmatprep.subr.mxu0 0.0
  %4311 = vmatpush1.msra.mxu0 %v4221
  %4312 = vmatprep.subr.mxu0 0.0
  %4313 = vmatpush1.msra.mxu0 %v4218
  %4314 = vmatprep.subr.mxu0 0.0
  %4315 = vmatpush1.msra.mxu0 %v4215
  %4316 = vmatprep.subr.mxu0 0.0
  %4317 = vmatpush1.msra.mxu0 %v4212
  %4318 = vmatprep.subr.mxu0 0.0
  %4319 = vmatpush1.msra.mxu0 %v4209
  %4320 = vmatprep.subr.mxu0 0.0
  %4321 = vmatpush1.msra.mxu0 %v4206
  %4322 = vmatprep.subr.mxu0 0.0
  %4323 = vmatpush1.msra.mxu0 %v4203
  %4324 = vmatprep.subr.mxu0 0.0
  %4325 = vmatpush1.msra.mxu0 %v4200
  %4326 = vmatprep.subr.mxu0 0.0
  %4327 = vmatpush1.msra.mxu0 %v4197
  %4328 = vmatprep.subr.mxu0 0.0
  %4329 = vmatpush1.msra.mxu0 %v4194
  %4330 = vmatprep.subr.mxu0 0.0
  %4331 = vmatpush1.msra.mxu0 %v4191
  %4332 = vmatprep.subr.mxu0 0.0
  %4333 = vmatpush1.msra.mxu0 %v4188
  %4334 = vmatprep.subr.mxu0 0.0
  %4335 = vmatpush1.msra.mxu0 %v4185
  %4336 = vmatprep.subr.mxu0 0.0
  %4337 = vmatpush1.msra.mxu0 %v4182
  %4338 = vmatprep.subr.mxu0 0.0
  %4339 = vmatpush1.msra.mxu0 %v4179
  %4340 = vmatprep.subr.mxu0 0.0
  %4341 = vmatpush1.msra.mxu0 %v4176
  %4342 = vmatprep.subr.mxu0 0.0
  %4343 = vmatpush2.msra.mxu0 0.0
  %4344 = vmatprep.subr.mxu0 0.0
  %4345 = vmatpush2.msra.mxu0 0.0
  %4346 = vmatprep.subr.mxu0 0.0
  %4347 = vmatpush2.msra.mxu0 0.0
  %4348 = vmatprep.subr.mxu0 0.0
  %4349 = vmatpush2.msra.mxu0 0.0
  %4350 = vmatprep.subr.mxu0 0.0
  %4351 = vmatpush2.msra.mxu0 0.0
  %4352 = vmatprep.subr.mxu0 0.0
  %4353 = vmatpush2.msra.mxu0 0.0
  %4354 = vmatprep.subr.mxu0 0.0
  %4355 = vmatpush2.msra.mxu0 0.0
  %4356 = vmatprep.subr.mxu0 0.0
  %4357 = vmatpush2.msra.mxu0 0.0
  %4358 = vmatprep.subr.mxu0 0.0
  %4359 = vmatpush2.msra.mxu0 0.0
  %4360 = vmatprep.subr.mxu0 0.0
  %4361 = vmatpush2.msra.mxu0 0.0
  %4362 = vmatprep.subr.mxu0 0.0
  %4363 = vmatpush2.msra.mxu0 0.0
  %4364 = vmatprep.subr.mxu0 0.0
  %4365 = vmatpush2.msra.mxu0 0.0
  %4366 = vmatprep.subr.mxu0 0.0
  %4367 = vmatpush2.msra.mxu0 0.0
  %4368 = vmatprep.subr.mxu0 0.0
  %4369 = vmatpush2.msra.mxu0 0.0
  %4370 = vmatprep.subr.mxu0 0.0
  %4371 = vmatpush2.msra.mxu0 0.0
  %4372 = vmatprep.subr.mxu0 0.0
  %4373 = vmatpush2.msra.mxu0 0.0
  %4374 = vmatprep.mubr.f32.mxu0 0.0
  %4375 = vmatmul.mubr.f32.gmra.mxu0 %v3855
  %v4376 = vpop.f32.mrf.mxu0
  %v4377 = vadd.f32 %v4235, %v4376
  %v4378 = vpop.f32.mrf.mxu0
  %4379 = vdwg.mxu0
  %v4380 = vadd.f32 %v4171, %v4306
  %v4381 = vxor.u32 %v4380, 2147483648
  %v4382 = vmul.f32 %v4381, 1.442695
  %v4383 = vpow.pop %v4382
  %v4384 = vadd.f32 %v4383, 1.0
  %v4385 = vrcp.pop %v4384
  %v4386 = vmul.f32 1.0, %v4385
  %v4387 = vadd.f32 %v4172, %v4308
  %v4388 = vxor.u32 %v4387, 2147483648
  %v4389 = vmul.f32 %v4388, 1.442695
  %v4390 = vpow.pop %v4389
  %v4391 = vadd.f32 %v4390, 1.0
  %v4392 = vrcp.pop %v4391
  %v4393 = vmul.f32 1.0, %v4392
  %v4394 = vmul.f32 %v4386, %v4377
  %v4395 = vadd.f32 %v4173, %v4394
  %v4396 = vtanh.pop %v4395
  %v4397 = vsub.f32 1.0, %v4393
  %v4398 = vmul.f32 %v4397, %v4396
  %v4399 = vmul.f32 %v4393, %v3855
  %v4400 = vadd.f32 %v4398, %v4399
  %v4401 = vld [vmem:[%s5] sm:$0xff]
  %v4402 = vld [vmem:[%s5 + $0x8] sm:$0xff]
  %v4403 = vld [vmem:[%s5 + $0x10] sm:$0xff]
  %v4404 = vld [vmem:[%s5 + $0x18] sm:$0xff]
  %v4405 = vld [vmem:[%s5 + $0x20] sm:$0xff]
  %v4406 = vld [vmem:[%s5 + $0x28] sm:$0xff]
  %v4407 = vld [vmem:[%s5 + $0x30] sm:$0xff]
  %v4408 = vld [vmem:[%s5 + $0x38] sm:$0xff]
  %v4409 = vld [vmem:[%s5 + $0x40] sm:$0xff]
  %v4410 = vld [vmem:[%s5 + $0x48] sm:$0xff]
  %v4411 = vld [vmem:[%s5 + $0x50] sm:$0xff]
  %v4412 = vld [vmem:[%s5 + $0x58] sm:$0xff]
  %v4413 = vld [vmem:[%s5 + $0x60] sm:$0xff]
  %v4414 = vld [vmem:[%s5 + $0x68] sm:$0xff]
  %v4415 = vld [vmem:[%s5 + $0x70] sm:$0xff]
  %v4416 = vld [vmem:[%s5 + $0x78] sm:$0xff]
  %v4417 = vld [vmem:[%s5 + $0x80] sm:$0xff]
  %v4418 = vld [vmem:[%s5 + $0x88] sm:$0xff]
  %v4419 = vld [vmem:[%s5 + $0x90] sm:$0xff]
  %v4420 = vld [vmem:[%s5 + $0x98] sm:$0xff]
  %v4421 = vld [vmem:[%s5 + $0xa0] sm:$0xff]
  %v4422 = vld [vmem:[%s5 + $0xa8] sm:$0xff]
  %v4423 = vld [vmem:[%s5 + $0xb0] sm:$0xff]
  %v4424 = vld [vmem:[%s5 + $0xb8] sm:$0xff]
  %v4425 = vld [vmem:[%s5 + $0xc0] sm:$0xff]
  %v4426 = vld [vmem:[%s5 + $0xc8] sm:$0xff]
  %v4427 = vld [vmem:[%s5 + $0xd0] sm:$0xff]
  %v4428 = vld [vmem:[%s5 + $0xd8] sm:$0xff]
  %v4429 = vld [vmem:[%s5 + $0xe0] sm:$0xff]
  %v4430 = vld [vmem:[%s5 + $0xe8] sm:$0xff]
  %v4431 = vld [vmem:[%s5 + $0xf0] sm:$0xff]
  %v4432 = vld [vmem:[%s5 + $0xf8] sm:$0xff]
  %v4433 = vld [vmem:[%s5 + $0x100] sm:$0xff]
  %v4434 = vld [vmem:[%s5 + $0x108] sm:$0xff]
  %v4435 = vld [vmem:[%s5 + $0x110] sm:$0xff]
  %v4436 = vld [vmem:[%s5 + $0x118] sm:$0xff]
  %v4437 = vld [vmem:[%s5 + $0x120] sm:$0xff]
  %v4438 = vld [vmem:[%s5 + $0x128] sm:$0xff]
  %v4439 = vld [vmem:[%s5 + $0x130] sm:$0xff]
  %v4440 = vld [vmem:[%s5 + $0x138] sm:$0xff]
  %v4441 = vld [vmem:[%s5 + $0x140] sm:$0xff]
  %v4442 = vld [vmem:[%s5 + $0x148] sm:$0xff]
  %v4443 = vld [vmem:[%s5 + $0x150] sm:$0xff]
  %v4444 = vld [vmem:[%s5 + $0x158] sm:$0xff]
  %v4445 = vld [vmem:[%s5 + $0x160] sm:$0xff]
  %v4446 = vld [vmem:[%s5 + $0x168] sm:$0xff]
  %v4447 = vld [vmem:[%s5 + $0x170] sm:$0xff]
  %v4448 = vld [vmem:[%s5 + $0x178] sm:$0xff]
  %v4449 = vld [vmem:[%s5 + $0x180] sm:$0xff]
  %v4450 = vld [vmem:[%s5 + $0x188] sm:$0xff]
  %v4451 = vld [vmem:[%s5 + $0x190] sm:$0xff]
  %v4452 = vld [vmem:[%s5 + $0x198] sm:$0xff]
  %v4453 = vld [vmem:[%s5 + $0x1a0] sm:$0xff]
  %v4454 = vld [vmem:[%s5 + $0x1a8] sm:$0xff]
  %v4455 = vld [vmem:[%s5 + $0x1b0] sm:$0xff]
  %v4456 = vld [vmem:[%s5 + $0x1b8] sm:$0xff]
  %v4457 = vld [vmem:[%s5 + $0x1c0] sm:$0xff]
  %v4458 = vld [vmem:[%s5 + $0x1c8] sm:$0xff]
  %v4459 = vld [vmem:[%s5 + $0x1d0] sm:$0xff]
  %v4460 = vld [vmem:[%s5 + $0x1d8] sm:$0xff]
  %v4461 = vld [vmem:[%s5 + $0x1e0] sm:$0xff]
  %v4462 = vld [vmem:[%s5 + $0x1e8] sm:$0xff]
  %v4463 = vld [vmem:[%s5 + $0x1f0] sm:$0xff]
  %v4464 = vld [vmem:[%s5 + $0x1f8] sm:$0xff]
  %v4465 = vld [vmem:[%s5 + $0x200] sm:$0xff]
  %v4466 = vld [vmem:[%s5 + $0x208] sm:$0xff]
  %v4467 = vld [vmem:[%s5 + $0x210] sm:$0xff]
  %v4468 = vld [vmem:[%s5 + $0x218] sm:$0xff]
  %v4469 = vld [vmem:[%s5 + $0x220] sm:$0xff]
  %v4470 = vld [vmem:[%s5 + $0x228] sm:$0xff]
  %v4471 = vld [vmem:[%s5 + $0x230] sm:$0xff]
  %v4472 = vld [vmem:[%s5 + $0x238] sm:$0xff]
  %v4473 = vld [vmem:[%s5 + $0x240] sm:$0xff]
  %v4474 = vld [vmem:[%s5 + $0x248] sm:$0xff]
  %v4475 = vld [vmem:[%s5 + $0x250] sm:$0xff]
  %v4476 = vld [vmem:[%s5 + $0x258] sm:$0xff]
  %v4477 = vld [vmem:[%s5 + $0x260] sm:$0xff]
  %v4478 = vld [vmem:[%s5 + $0x268] sm:$0xff]
  %v4479 = vld [vmem:[%s5 + $0x270] sm:$0xff]
  %v4480 = vld [vmem:[%s5 + $0x278] sm:$0xff]
  %v4481 = vld [vmem:[%s5 + $0x280] sm:$0xff]
  %v4482 = vld [vmem:[%s5 + $0x288] sm:$0xff]
  %v4483 = vld [vmem:[%s5 + $0x290] sm:$0xff]
  %v4484 = vld [vmem:[%s5 + $0x298] sm:$0xff]
  %v4485 = vld [vmem:[%s5 + $0x2a0] sm:$0xff]
  %v4486 = vld [vmem:[%s5 + $0x2a8] sm:$0xff]
  %v4487 = vld [vmem:[%s5 + $0x2b0] sm:$0xff]
  %v4488 = vld [vmem:[%s5 + $0x2b8] sm:$0xff]
  %v4489 = vld [vmem:[%s5 + $0x2c0] sm:$0xff]
  %v4490 = vld [vmem:[%s5 + $0x2c8] sm:$0xff]
  %v4491 = vld [vmem:[%s5 + $0x2d0] sm:$0xff]
  %v4492 = vld [vmem:[%s5 + $0x2d8] sm:$0xff]
  %v4493 = vld [vmem:[%s5 + $0x2e0] sm:$0xff]
  %v4494 = vld [vmem:[%s5 + $0x2e8] sm:$0xff]
  %v4495 = vld [vmem:[%s5 + $0x2f0] sm:$0xff]
  %v4496 = vld [vmem:[%s5 + $0x2f8] sm:$0xff]
  %v4497 = vld [vmem:[%s5 + $0x300] sm:$0xff]
  %v4498 = vld [vmem:[%s5 + $0x308] sm:$0xff]
  %v4499 = vld [vmem:[%s5 + $0x310] sm:$0xff]
  %v4500 = vld [vmem:[%s5 + $0x318] sm:$0xff]
  %v4501 = vld [vmem:[%s5 + $0x320] sm:$0xff]
  %v4502 = vld [vmem:[%s5 + $0x328] sm:$0xff]
  %v4503 = vld [vmem:[%s5 + $0x330] sm:$0xff]
  %v4504 = vld [vmem:[%s5 + $0x338] sm:$0xff]
  %v4505 = vld [vmem:[%s5 + $0x340] sm:$0xff]
  %v4506 = vld [vmem:[%s5 + $0x348] sm:$0xff]
  %v4507 = vld [vmem:[%s5 + $0x350] sm:$0xff]
  %v4508 = vld [vmem:[%s5 + $0x358] sm:$0xff]
  %v4509 = vld [vmem:[%s5 + $0x360] sm:$0xff]
  %v4510 = vld [vmem:[%s5 + $0x368] sm:$0xff]
  %v4511 = vld [vmem:[%s5 + $0x370] sm:$0xff]
  %v4512 = vld [vmem:[%s5 + $0x378] sm:$0xff]
  %v4513 = vld [vmem:[%s5 + $0x380] sm:$0xff]
  %v4514 = vld [vmem:[%s5 + $0x388] sm:$0xff]
  %v4515 = vld [vmem:[%s5 + $0x390] sm:$0xff]
  %v4516 = vld [vmem:[%s5 + $0x398] sm:$0xff]
  %v4517 = vld [vmem:[%s5 + $0x3a0] sm:$0xff]
  %v4518 = vld [vmem:[%s5 + $0x3a8] sm:$0xff]
  %v4519 = vld [vmem:[%s5 + $0x3b0] sm:$0xff]
  %v4520 = vld [vmem:[%s5 + $0x3b8] sm:$0xff]
  %v4521 = vld [vmem:[%s5 + $0x3c0] sm:$0xff]
  %v4522 = vld [vmem:[%s5 + $0x3c8] sm:$0xff]
  %v4523 = vld [vmem:[%s5 + $0x3d0] sm:$0xff]
  %v4524 = vld [vmem:[%s5 + $0x3d8] sm:$0xff]
  %v4525 = vld [vmem:[%s5 + $0x3e0] sm:$0xff]
  %v4526 = vld [vmem:[%s5 + $0x3e8] sm:$0xff]
  %v4527 = vld [vmem:[%s5 + $0x3f0] sm:$0xff]
  %v4528 = vld [vmem:[%s5 + $0x3f8] sm:$0xff]
  %v4529 = vld [vmem:[%s6] sm:$0xf]
  %v4531 = vlaneseq
  %v4532 = vshrl.u32 %v4531, 7
  %v4533 = vsub.s32 0, %v4532
  %v4534 = vrot.slane %v4529, %v4533
  %v4535 = vlaneseq
  %v4536 = vshrl.u32 %v4535, 7
  %v4537 = vsub.s32 1, %v4536
  %v4538 = vrot.slane %v4529, %v4537
  %v4539 = vlaneseq
  %v4540 = vshrl.u32 %v4539, 7
  %v4541 = vsub.s32 2, %v4540
  %v4542 = vrot.slane %v4529, %v4541
  %v4543 = vlaneseq
  %v4544 = vshrl.u32 %v4543, 7
  %v4545 = vsub.s32 3, %v4544
  %v4546 = vrot.slane %v4529, %v4545
  %4551 = vmatprep.subr.mxu0 %v4462
  %4552 = vmatpush1.msra.mxu0 %v4461
  %4553 = vmatprep.subr.mxu0 %v4458
  %4554 = vmatpush1.msra.mxu0 %v4457
  %4555 = vmatprep.subr.mxu0 %v4454
  %4556 = vmatpush1.msra.mxu0 %v4453
  %4557 = vmatprep.subr.mxu0 %v4450
  %4558 = vmatpush1.msra.mxu0 %v4449
  %4559 = vmatprep.subr.mxu0 %v4446
  %4560 = vmatpush1.msra.mxu0 %v4445
  %4561 = vmatprep.subr.mxu0 %v4442
  %4562 = vmatpush1.msra.mxu0 %v4441
  %4563 = vmatprep.subr.mxu0 %v4438
  %4564 = vmatpush1.msra.mxu0 %v4437
  %4565 = vmatprep.subr.mxu0 %v4434
  %4566 = vmatpush1.msra.mxu0 %v4433
  %4567 = vmatprep.subr.mxu0 %v4430
  %4568 = vmatpush1.msra.mxu0 %v4429
  %4569 = vmatprep.subr.mxu0 %v4426
  %4570 = vmatpush1.msra.mxu0 %v4425
  %4571 = vmatprep.subr.mxu0 %v4422
  %4572 = vmatpush1.msra.mxu0 %v4421
  %4573 = vmatprep.subr.mxu0 %v4418
  %4574 = vmatpush1.msra.mxu0 %v4417
  %4575 = vmatprep.subr.mxu0 %v4414
  %4576 = vmatpush1.msra.mxu0 %v4413
  %4577 = vmatprep.subr.mxu0 %v4410
  %4578 = vmatpush1.msra.mxu0 %v4409
  %4579 = vmatprep.subr.mxu0 %v4406
  %4580 = vmatpush1.msra.mxu0 %v4405
  %4581 = vmatprep.subr.mxu0 %v4402
  %4582 = vmatpush1.msra.mxu0 %v4401
  %4583 = vmatprep.subr.mxu0 %v4526
  %4584 = vmatpush2.msra.mxu0 %v4525
  %4585 = vmatprep.subr.mxu0 %v4522
  %4586 = vmatpush2.msra.mxu0 %v4521
  %4587 = vmatprep.subr.mxu0 %v4518
  %4588 = vmatpush2.msra.mxu0 %v4517
  %4589 = vmatprep.subr.mxu0 %v4514
  %4590 = vmatpush2.msra.mxu0 %v4513
  %4591 = vmatprep.subr.mxu0 %v4510
  %4592 = vmatpush2.msra.mxu0 %v4509
  %4593 = vmatprep.subr.mxu0 %v4506
  %4594 = vmatpush2.msra.mxu0 %v4505
  %4595 = vmatprep.subr.mxu0 %v4502
  %4596 = vmatpush2.msra.mxu0 %v4501
  %4597 = vmatprep.subr.mxu0 %v4498
  %4598 = vmatpush2.msra.mxu0 %v4497
  %4599 = vmatprep.subr.mxu0 %v4494
  %4600 = vmatpush2.msra.mxu0 %v4493
  %4601 = vmatprep.subr.mxu0 %v4490
  %4602 = vmatpush2.msra.mxu0 %v4489
  %4603 = vmatprep.subr.mxu0 %v4486
  %4604 = vmatpush2.msra.mxu0 %v4485
  %4605 = vmatprep.subr.mxu0 %v4482
  %4606 = vmatpush2.msra.mxu0 %v4481
  %4607 = vmatprep.subr.mxu0 %v4478
  %4608 = vmatpush2.msra.mxu0 %v4477
  %4609 = vmatprep.subr.mxu0 %v4474
  %4610 = vmatpush2.msra.mxu0 %v4473
  %4611 = vmatprep.subr.mxu0 %v4470
  %4612 = vmatpush2.msra.mxu0 %v4469
  %4613 = vmatprep.subr.mxu0 %v4466
  %4614 = vmatpush2.msra.mxu0 %v4465
  %4615 = vmatprep.mubr.f32.mxu0 %v4167
  %4616 = vmatmul.mubr.f32.gmra.mxu0 %v4400
  %v4617 = vpop.f32.mrf.mxu0
  %v4618 = vadd.f32 %v4534, %v4617
  %v4619 = vpop.f32.mrf.mxu0
  %v4620 = vadd.f32 %v4538, %v4619
  %4621 = vdwg.mxu0
  %4622 = vmatprep.subr.mxu0 %v4464
  %4623 = vmatpush1.msra.mxu0 %v4463
  %4624 = vmatprep.subr.mxu0 %v4460
  %4625 = vmatpush1.msra.mxu0 %v4459
  %4626 = vmatprep.subr.mxu0 %v4456
  %4627 = vmatpush1.msra.mxu0 %v4455
  %4628 = vmatprep.subr.mxu0 %v4452
  %4629 = vmatpush1.msra.mxu0 %v4451
  %4630 = vmatprep.subr.mxu0 %v4448
  %4631 = vmatpush1.msra.mxu0 %v4447
  %4632 = vmatprep.subr.mxu0 %v4444
  %4633 = vmatpush1.msra.mxu0 %v4443
  %4634 = vmatprep.subr.mxu0 %v4440
  %4635 = vmatpush1.msra.mxu0 %v4439
  %4636 = vmatprep.subr.mxu0 %v4436
  %4637 = vmatpush1.msra.mxu0 %v4435
  %4638 = vmatprep.subr.mxu0 %v4432
  %4639 = vmatpush1.msra.mxu0 %v4431
  %4640 = vmatprep.subr.mxu0 %v4428
  %4641 = vmatpush1.msra.mxu0 %v4427
  %4642 = vmatprep.subr.mxu0 %v4424
  %4643 = vmatpush1.msra.mxu0 %v4423
  %4644 = vmatprep.subr.mxu0 %v4420
  %4645 = vmatpush1.msra.mxu0 %v4419
  %4646 = vmatprep.subr.mxu0 %v4416
  %4647 = vmatpush1.msra.mxu0 %v4415
  %4648 = vmatprep.subr.mxu0 %v4412
  %4649 = vmatpush1.msra.mxu0 %v4411
  %4650 = vmatprep.subr.mxu0 %v4408
  %4651 = vmatpush1.msra.mxu0 %v4407
  %4652 = vmatprep.subr.mxu0 %v4404
  %4653 = vmatpush1.msra.mxu0 %v4403
  %4654 = vmatprep.subr.mxu0 %v4528
  %4655 = vmatpush2.msra.mxu0 %v4527
  %4656 = vmatprep.subr.mxu0 %v4524
  %4657 = vmatpush2.msra.mxu0 %v4523
  %4658 = vmatprep.subr.mxu0 %v4520
  %4659 = vmatpush2.msra.mxu0 %v4519
  %4660 = vmatprep.subr.mxu0 %v4516
  %4661 = vmatpush2.msra.mxu0 %v4515
  %4662 = vmatprep.subr.mxu0 %v4512
  %4663 = vmatpush2.msra.mxu0 %v4511
  %4664 = vmatprep.subr.mxu0 %v4508
  %4665 = vmatpush2.msra.mxu0 %v4507
  %4666 = vmatprep.subr.mxu0 %v4504
  %4667 = vmatpush2.msra.mxu0 %v4503
  %4668 = vmatprep.subr.mxu0 %v4500
  %4669 = vmatpush2.msra.mxu0 %v4499
  %4670 = vmatprep.subr.mxu0 %v4496
  %4671 = vmatpush2.msra.mxu0 %v4495
  %4672 = vmatprep.subr.mxu0 %v4492
  %4673 = vmatpush2.msra.mxu0 %v4491
  %4674 = vmatprep.subr.mxu0 %v4488
  %4675 = vmatpush2.msra.mxu0 %v4487
  %4676 = vmatprep.subr.mxu0 %v4484
  %4677 = vmatpush2.msra.mxu0 %v4483
  %4678 = vmatprep.subr.mxu0 %v4480
  %4679 = vmatpush2.msra.mxu0 %v4479
  %4680 = vmatprep.subr.mxu0 %v4476
  %4681 = vmatpush2.msra.mxu0 %v4475
  %4682 = vmatprep.subr.mxu0 %v4472
  %4683 = vmatpush2.msra.mxu0 %v4471
  %4684 = vmatprep.subr.mxu0 %v4468
  %4685 = vmatpush2.msra.mxu0 %v4467
  %4686 = vmatprep.mubr.f32.mxu0 %v4167
  %4687 = vmatmul.mubr.f32.gmra.mxu0 %v4400
  %v4688 = vpop.f32.mrf.mxu0
  %v4689 = vadd.f32 %v4542, %v4688
  %v4690 = vpop.f32.mrf.mxu0
  %v4691 = vadd.f32 %v4546, %v4690
  %4692 = vdwg.mxu0
  %v4693 = vxor.u32 %v4618, 2147483648
  %v4694 = vmul.f32 %v4693, 1.442695
  %v4695 = vpow.pop %v4694
  %v4696 = vadd.f32 %v4695, 1.0
  %v4697 = vrcp.pop %v4696
  %v4698 = vmul.f32 1.0, %v4697
  %v4699 = vxor.u32 %v4620, 2147483648
  %v4700 = vmul.f32 %v4699, 1.442695
  %v4701 = vpow.pop %v4700
  %v4702 = vadd.f32 %v4701, 1.0
  %v4703 = vrcp.pop %v4702
  %v4704 = vmul.f32 1.0, %v4703
  %v4705 = vsub.f32 %v4698, 1.0
  %v4706 = vmul.f32 %v4705, %v4691
  %v4707 = vadd.f32 %v4689, %v4706
  %v4708 = vtanh.pop %v4707
  %v4709 = vsub.f32 1.0, %v4704
  %v4710 = vmul.f32 %v4709, %v4708
  %v4711 = vmul.f32 %v4704, %v4167
  %v4712 = vadd.f32 %v4710, %v4711
  %s4713 = scalar_lea.vmem [#allocation3], 64
  %4714 = vst [vmem:[%s4713] sm:$0xff] %v4712
  %v4715 = vld [vmem:[#allocation3] sm:$0xff]
  %v4716 = vld [vmem:[#allocation3 + $0x8] sm:$0xff]
  %v4717 = vld [vmem:[#allocation3 + $0x10] sm:$0xff]
  %v4718 = vld [vmem:[#allocation3 + $0x18] sm:$0xff]
  %v4719 = vld [vmem:[#allocation3 + $0x20] sm:$0xff]
  %v4720 = vld [vmem:[#allocation3 + $0x28] sm:$0xff]
  %v4721 = vld [vmem:[#allocation3 + $0x30] sm:$0xff]
  %v4722 = vld [vmem:[#allocation3 + $0x38] sm:$0xff]
  %v4723 = vld [vmem:[#allocation3 + $0x40] sm:$0xff]
  %v4724 = vld [vmem:[%s7] sm:$0xff]
  %v4725 = vld [vmem:[%s7 + $0x8] sm:$0xff]
  %v4726 = vld [vmem:[%s7 + $0x10] sm:$0xff]
  %v4727 = vld [vmem:[%s7 + $0x18] sm:$0xff]
  %v4728 = vld [vmem:[%s7 + $0x20] sm:$0xff]
  %v4729 = vld [vmem:[%s7 + $0x28] sm:$0xff]
  %v4730 = vld [vmem:[%s7 + $0x30] sm:$0xff]
  %v4731 = vld [vmem:[%s7 + $0x38] sm:$0xff]
  %v4732 = vld [vmem:[%s7 + $0x40] sm:$0xff]
  %v4733 = vld [vmem:[%s7 + $0x48] sm:$0xff]
  %v4734 = vld [vmem:[%s7 + $0x50] sm:$0xff]
  %v4735 = vld [vmem:[%s7 + $0x58] sm:$0xff]
  %v4736 = vld [vmem:[%s7 + $0x60] sm:$0xff]
  %v4737 = vld [vmem:[%s7 + $0x68] sm:$0xff]
  %v4738 = vld [vmem:[%s7 + $0x70] sm:$0xff]
  %v4739 = vld [vmem:[%s7 + $0x78] sm:$0xff]
  %v4740 = vld [vmem:[%s8] sm:$0x1]
  %v4742 = vlaneseq
  %v4743 = vshrl.u32 %v4742, 7
  %v4744 = vsub.s32 0, %v4743
  %v4745 = vrot.slane %v4740, %v4744
  %4747 = vmatprep.subr.mxu0 0.0
  %4748 = vmatpush1.msra.mxu0 %v4739
  %4749 = vmatprep.subr.mxu0 0.0
  %4750 = vmatpush1.msra.mxu0 %v4738
  %4751 = vmatprep.subr.mxu0 0.0
  %4752 = vmatpush1.msra.mxu0 %v4737
  %4753 = vmatprep.subr.mxu0 0.0
  %4754 = vmatpush1.msra.mxu0 %v4736
  %4755 = vmatprep.subr.mxu0 0.0
  %4756 = vmatpush1.msra.mxu0 %v4735
  %4757 = vmatprep.subr.mxu0 0.0
  %4758 = vmatpush1.msra.mxu0 %v4734
  %4759 = vmatprep.subr.mxu0 0.0
  %4760 = vmatpush1.msra.mxu0 %v4733
  %4761 = vmatprep.subr.mxu0 0.0
  %4762 = vmatpush1.msra.mxu0 %v4732
  %4763 = vmatprep.subr.mxu0 0.0
  %4764 = vmatpush1.msra.mxu0 %v4731
  %4765 = vmatprep.subr.mxu0 0.0
  %4766 = vmatpush1.msra.mxu0 %v4730
  %4767 = vmatprep.subr.mxu0 0.0
  %4768 = vmatpush1.msra.mxu0 %v4729
  %4769 = vmatprep.subr.mxu0 0.0
  %4770 = vmatpush1.msra.mxu0 %v4728
  %4771 = vmatprep.subr.mxu0 0.0
  %4772 = vmatpush1.msra.mxu0 %v4727
  %4773 = vmatprep.subr.mxu0 0.0
  %4774 = vmatpush1.msra.mxu0 %v4726
  %4775 = vmatprep.subr.mxu0 0.0
  %4776 = vmatpush1.msra.mxu0 %v4725
  %4777 = vmatprep.subr.mxu0 0.0
  %4778 = vmatpush1.msra.mxu0 %v4724
  %4779 = vmatprep.subr.mxu0 0.0
  %4780 = vmatpush2.msra.mxu0 0.0
  %4781 = vmatprep.subr.mxu0 0.0
  %4782 = vmatpush2.msra.mxu0 0.0
  %4783 = vmatprep.subr.mxu0 0.0
  %4784 = vmatpush2.msra.mxu0 0.0
  %4785 = vmatprep.subr.mxu0 0.0
  %4786 = vmatpush2.msra.mxu0 0.0
  %4787 = vmatprep.subr.mxu0 0.0
  %4788 = vmatpush2.msra.mxu0 0.0
  %4789 = vmatprep.subr.mxu0 0.0
  %4790 = vmatpush2.msra.mxu0 0.0
  %4791 = vmatprep.subr.mxu0 0.0
  %4792 = vmatpush2.msra.mxu0 0.0
  %4793 = vmatprep.subr.mxu0 0.0
  %4794 = vmatpush2.msra.mxu0 0.0
  %4795 = vmatprep.subr.mxu0 0.0
  %4796 = vmatpush2.msra.mxu0 0.0
  %4797 = vmatprep.subr.mxu0 0.0
  %4798 = vmatpush2.msra.mxu0 0.0
  %4799 = vmatprep.subr.mxu0 0.0
  %4800 = vmatpush2.msra.mxu0 0.0
  %4801 = vmatprep.subr.mxu0 0.0
  %4802 = vmatpush2.msra.mxu0 0.0
  %4803 = vmatprep.subr.mxu0 0.0
  %4804 = vmatpush2.msra.mxu0 0.0
  %4805 = vmatprep.subr.mxu0 0.0
  %4806 = vmatpush2.msra.mxu0 0.0
  %4807 = vmatprep.subr.mxu0 0.0
  %4808 = vmatpush2.msra.mxu0 0.0
  %4809 = vmatprep.subr.mxu0 0.0
  %4810 = vmatpush2.msra.mxu0 0.0
  %4811 = vmatprep.mubr.f32.mxu0 0.0
  %4812 = vmatmul.mubr.f32.gmra.mxu0 %v4715
  %v4813 = vpop.f32.mrf.mxu0
  %v4814 = vadd.f32 %v4745, %v4813
  %v4815 = vpop.f32.mrf.mxu0
  %4816 = vmatprep.mubr.f32.mxu0 0.0
  %4817 = vmatmul.mubr.f32.gmra.mxu0 %v4716
  %v4818 = vpop.f32.mrf.mxu0
  %v4819 = vadd.f32 %v4745, %v4818
  %v4820 = vpop.f32.mrf.mxu0
  %4821 = vmatprep.mubr.f32.mxu0 0.0
  %4822 = vmatmul.mubr.f32.gmra.mxu0 %v4717
  %v4823 = vpop.f32.mrf.mxu0
  %v4824 = vadd.f32 %v4745, %v4823
  %v4825 = vpop.f32.mrf.mxu0
  %4826 = vmatprep.mubr.f32.mxu0 0.0
  %4827 = vmatmul.mubr.f32.gmra.mxu0 %v4718
  %v4828 = vpop.f32.mrf.mxu0
  %v4829 = vadd.f32 %v4745, %v4828
  %v4830 = vpop.f32.mrf.mxu0
  %4831 = vmatprep.mubr.f32.mxu0 0.0
  %4832 = vmatmul.mubr.f32.gmra.mxu0 %v4719
  %v4833 = vpop.f32.mrf.mxu0
  %v4834 = vadd.f32 %v4745, %v4833
  %v4835 = vpop.f32.mrf.mxu0
  %4836 = vmatprep.mubr.f32.mxu0 0.0
  %4837 = vmatmul.mubr.f32.gmra.mxu0 %v4720
  %v4838 = vpop.f32.mrf.mxu0
  %v4839 = vadd.f32 %v4745, %v4838
  %v4840 = vpop.f32.mrf.mxu0
  %4841 = vmatprep.mubr.f32.mxu0 0.0
  %4842 = vmatmul.mubr.f32.gmra.mxu0 %v4721
  %v4843 = vpop.f32.mrf.mxu0
  %v4844 = vadd.f32 %v4745, %v4843
  %v4845 = vpop.f32.mrf.mxu0
  %4846 = vmatprep.mubr.f32.mxu0 0.0
  %4847 = vmatmul.mubr.f32.gmra.mxu0 %v4722
  %v4848 = vpop.f32.mrf.mxu0
  %v4849 = vadd.f32 %v4745, %v4848
  %v4850 = vpop.f32.mrf.mxu0
  %4851 = vmatprep.mubr.f32.mxu0 0.0
  %4852 = vmatmul.mubr.f32.gmra.mxu0 %v4723
  %v4853 = vpop.f32.mrf.mxu0
  %v4854 = vadd.f32 %v4745, %v4853
  %v4855 = vpop.f32.mrf.mxu0
  %4856 = vdwg.mxu0
  %4857 = vst [vmem:[%s14] sm:$0xff] %v4819
  %4858 = vst [vmem:[%s14 + $0x8] sm:$0xff] %v4824
  %4859 = vst [vmem:[%s14 + $0x10] sm:$0xff] %v4829
  %4860 = vst [vmem:[%s14 + $0x18] sm:$0xff] %v4834
  %4861 = vst [vmem:[%s14 + $0x20] sm:$0xff] %v4839
  %4862 = vst [vmem:[%s14 + $0x28] sm:$0xff] %v4844
  %4863 = vst [vmem:[%s14 + $0x30] sm:$0xff] %v4849
  %4864 = vst [vmem:[%s14 + $0x38] sm:$0xff] %v4854
  %v4865 = vlaneseq
  %v4866 = vshrl.u32 %v4865, 7
  %v4867 = vadd.s32 %v4866, 8
  %v4868 = vadd.s32 %v4866, 16
  %v4869 = vadd.s32 %v4866, 24
  %v4870 = vadd.s32 %v4866, 32
  %v4871 = vadd.s32 %v4866, 40
  %v4872 = vadd.s32 %v4866, 48
  %v4873 = vadd.s32 %v4866, 56
  %vm4874 = vcmp.lt.s32.totalorder %v4866, 8
  %vm4875 = vcmp.lt.s32.totalorder %v4867, 8
  %vm4876 = vcmp.lt.s32.totalorder %v4868, 8
  %vm4877 = vcmp.lt.s32.totalorder %v4869, 8
  %vm4878 = vcmp.lt.s32.totalorder %v4870, 8
  %vm4879 = vcmp.lt.s32.totalorder %v4871, 8
  %vm4880 = vcmp.lt.s32.totalorder %v4872, 8
  %vm4881 = vcmp.lt.s32.totalorder %v4873, 8
  %v4882 = vsel %vm4874, 0.0, %v4814
  %v4883 = vsel %vm4875, 0.0, %v4819
  %v4884 = vsel %vm4876, 0.0, %v4824
  %v4885 = vsel %vm4877, 0.0, %v4829
  %v4886 = vsel %vm4878, 0.0, %v4834
  %v4887 = vsel %vm4879, 0.0, %v4839
  %v4888 = vsel %vm4880, 0.0, %v4844
  %v4889 = vsel %vm4881, 0.0, %v4849
  %v4890 = vld [vmem:[%s9] sm:$0xff]
  %v4891 = vld [vmem:[%s9 + $0x8] sm:$0xff]
  %v4892 = vld [vmem:[%s9 + $0x10] sm:$0xff]
  %v4893 = vld [vmem:[%s9 + $0x18] sm:$0xff]
  %v4894 = vld [vmem:[%s9 + $0x20] sm:$0xff]
  %v4895 = vld [vmem:[%s9 + $0x28] sm:$0xff]
  %v4896 = vld [vmem:[%s9 + $0x30] sm:$0xff]
  %v4897 = vld [vmem:[%s9 + $0x38] sm:$0xff]
  %v4898 = vld [vmem:[%s9 + $0x40] sm:$0xff]
  %v4899 = vld [vmem:[%s9 + $0x48] sm:$0xff]
  %v4900 = vld [vmem:[%s9 + $0x50] sm:$0xff]
  %v4901 = vld [vmem:[%s9 + $0x58] sm:$0xff]
  %v4902 = vld [vmem:[%s9 + $0x60] sm:$0xff]
  %v4903 = vld [vmem:[%s9 + $0x68] sm:$0xff]
  %v4904 = vld [vmem:[%s9 + $0x70] sm:$0xff]
  %v4905 = vld [vmem:[%s9 + $0x78] sm:$0xff]
  %v4906 = vld [vmem:[%s10] sm:$0xff]
  %v4907 = vld [vmem:[%s10 + $0x8] sm:$0xff]
  %4908 = vmatprep.subr.mxu0 0.0
  %4909 = vmatpush1.msra.mxu0 0.0
  %4910 = vmatprep.subr.mxu0 0.0
  %4911 = vmatpush1.msra.mxu0 0.0
  %4912 = vmatprep.subr.mxu0 0.0
  %4913 = vmatpush1.msra.mxu0 0.0
  %4914 = vmatprep.subr.mxu0 0.0
  %4915 = vmatpush1.msra.mxu0 0.0
  %4916 = vmatprep.subr.mxu0 0.0
  %4917 = vmatpush1.msra.mxu0 0.0
  %4918 = vmatprep.subr.mxu0 0.0
  %4919 = vmatpush1.msra.mxu0 0.0
  %4920 = vmatprep.subr.mxu0 0.0
  %4921 = vmatpush1.msra.mxu0 0.0
  %4922 = vmatprep.subr.mxu0 0.0
  %4923 = vmatpush1.msra.mxu0 0.0
  %4924 = vmatprep.subr.mxu0 0.0
  %4925 = vmatpush1.msra.mxu0 0.0
  %4926 = vmatprep.subr.mxu0 0.0
  %4927 = vmatpush1.msra.mxu0 0.0
  %4928 = vmatprep.subr.mxu0 0.0
  %4929 = vmatpush1.msra.mxu0 0.0
  %4930 = vmatprep.subr.mxu0 0.0
  %4931 = vmatpush1.msra.mxu0 0.0
  %4932 = vmatprep.subr.mxu0 0.0
  %4933 = vmatpush1.msra.mxu0 0.0
  %4934 = vmatprep.subr.mxu0 0.0
  %4935 = vmatpush1.msra.mxu0 0.0
  %4936 = vmatprep.subr.mxu0 0.0
  %4937 = vmatpush1.msra.mxu0 %v4907
  %4938 = vmatprep.subr.mxu0 0.0
  %4939 = vmatpush1.msra.mxu0 %v4906
  %4940 = vmatprep.subr.mxu0 0.0
  %4941 = vmatpush2.msra.mxu0 0.0
  %4942 = vmatprep.subr.mxu0 0.0
  %4943 = vmatpush2.msra.mxu0 0.0
  %4944 = vmatprep.subr.mxu0 0.0
  %4945 = vmatpush2.msra.mxu0 0.0
  %4946 = vmatprep.subr.mxu0 0.0
  %4947 = vmatpush2.msra.mxu0 0.0
  %4948 = vmatprep.subr.mxu0 0.0
  %4949 = vmatpush2.msra.mxu0 0.0
  %4950 = vmatprep.subr.mxu0 0.0
  %4951 = vmatpush2.msra.mxu0 0.0
  %4952 = vmatprep.subr.mxu0 0.0
  %4953 = vmatpush2.msra.mxu0 0.0
  %4954 = vmatprep.subr.mxu0 0.0
  %4955 = vmatpush2.msra.mxu0 0.0
  %4956 = vmatprep.subr.mxu0 0.0
  %4957 = vmatpush2.msra.mxu0 0.0
  %4958 = vmatprep.subr.mxu0 0.0
  %4959 = vmatpush2.msra.mxu0 0.0
  %4960 = vmatprep.subr.mxu0 0.0
  %4961 = vmatpush2.msra.mxu0 0.0
  %4962 = vmatprep.subr.mxu0 0.0
  %4963 = vmatpush2.msra.mxu0 0.0
  %4964 = vmatprep.subr.mxu0 0.0
  %4965 = vmatpush2.msra.mxu0 0.0
  %4966 = vmatprep.subr.mxu0 0.0
  %4967 = vmatpush2.msra.mxu0 0.0
  %4968 = vmatprep.subr.mxu0 0.0
  %4969 = vmatpush2.msra.mxu0 0.0
  %4970 = vmatprep.subr.mxu0 0.0
  %4971 = vmatpush2.msra.mxu0 0.0
  %4972 = vmatprep.mubr.f32.mxu0 0.0
  %4973 = vmatmul.mubr.f32.gmra.mxu0 %v90
  %v4974 = vpop.f32.mrf.mxu0
  %v4975 = vadd.f32 0.0, %v4974
  %v4976 = vpop.f32.mrf.mxu0
  %4977 = vmatprep.mubr.f32.mxu0 0.0
  %4978 = vmatmul.mubr.f32.gmra.mxu0 %v93
  %v4979 = vpop.f32.mrf.mxu0
  %v4980 = vadd.f32 0.0, %v4979
  %v4981 = vpop.f32.mrf.mxu0
  %4982 = vmatprep.mubr.f32.mxu0 0.0
  %4983 = vmatmul.mubr.f32.gmra.mxu0 %v96
  %v4984 = vpop.f32.mrf.mxu0
  %v4985 = vadd.f32 0.0, %v4984
  %v4986 = vpop.f32.mrf.mxu0
  %4987 = vmatprep.mubr.f32.mxu0 0.0
  %4988 = vmatmul.mubr.f32.gmra.mxu0 %v99
  %v4989 = vpop.f32.mrf.mxu0
  %v4990 = vadd.f32 0.0, %v4989
  %v4991 = vpop.f32.mrf.mxu0
  %4992 = vmatprep.mubr.f32.mxu0 0.0
  %4993 = vmatmul.mubr.f32.gmra.mxu0 %v102
  %v4994 = vpop.f32.mrf.mxu0
  %v4995 = vadd.f32 0.0, %v4994
  %v4996 = vpop.f32.mrf.mxu0
  %4997 = vmatprep.mubr.f32.mxu0 0.0
  %4998 = vmatmul.mubr.f32.gmra.mxu0 %v105
  %v4999 = vpop.f32.mrf.mxu0
  %v5000 = vadd.f32 0.0, %v4999
  %v5001 = vpop.f32.mrf.mxu0
  %5002 = vmatprep.mubr.f32.mxu0 0.0
  %5003 = vmatmul.mubr.f32.gmra.mxu0 %v108
  %v5004 = vpop.f32.mrf.mxu0
  %v5005 = vadd.f32 0.0, %v5004
  %v5006 = vpop.f32.mrf.mxu0
  %5007 = vmatprep.mubr.f32.mxu0 0.0
  %5008 = vmatmul.mubr.f32.gmra.mxu0 %v111
  %v5009 = vpop.f32.mrf.mxu0
  %v5010 = vadd.f32 0.0, %v5009
  %v5011 = vpop.f32.mrf.mxu0
  %5012 = vdwg.mxu0
  %5013 = vmatprep.subr.mxu0 0.0
  %5014 = vmatpush1.msra.mxu0 %v4905
  %5015 = vmatprep.subr.mxu0 0.0
  %5016 = vmatpush1.msra.mxu0 %v4904
  %5017 = vmatprep.subr.mxu0 0.0
  %5018 = vmatpush1.msra.mxu0 %v4903
  %5019 = vmatprep.subr.mxu0 0.0
  %5020 = vmatpush1.msra.mxu0 %v4902
  %5021 = vmatprep.subr.mxu0 0.0
  %5022 = vmatpush1.msra.mxu0 %v4901
  %5023 = vmatprep.subr.mxu0 0.0
  %5024 = vmatpush1.msra.mxu0 %v4900
  %5025 = vmatprep.subr.mxu0 0.0
  %5026 = vmatpush1.msra.mxu0 %v4899
  %5027 = vmatprep.subr.mxu0 0.0
  %5028 = vmatpush1.msra.mxu0 %v4898
  %5029 = vmatprep.subr.mxu0 0.0
  %5030 = vmatpush1.msra.mxu0 %v4897
  %5031 = vmatprep.subr.mxu0 0.0
  %5032 = vmatpush1.msra.mxu0 %v4896
  %5033 = vmatprep.subr.mxu0 0.0
  %5034 = vmatpush1.msra.mxu0 %v4895
  %5035 = vmatprep.subr.mxu0 0.0
  %5036 = vmatpush1.msra.mxu0 %v4894
  %5037 = vmatprep.subr.mxu0 0.0
  %5038 = vmatpush1.msra.mxu0 %v4893
  %5039 = vmatprep.subr.mxu0 0.0
  %5040 = vmatpush1.msra.mxu0 %v4892
  %5041 = vmatprep.subr.mxu0 0.0
  %5042 = vmatpush1.msra.mxu0 %v4891
  %5043 = vmatprep.subr.mxu0 0.0
  %5044 = vmatpush1.msra.mxu0 %v4890
  %5045 = vmatprep.subr.mxu0 0.0
  %5046 = vmatpush2.msra.mxu0 0.0
  %5047 = vmatprep.subr.mxu0 0.0
  %5048 = vmatpush2.msra.mxu0 0.0
  %5049 = vmatprep.subr.mxu0 0.0
  %5050 = vmatpush2.msra.mxu0 0.0
  %5051 = vmatprep.subr.mxu0 0.0
  %5052 = vmatpush2.msra.mxu0 0.0
  %5053 = vmatprep.subr.mxu0 0.0
  %5054 = vmatpush2.msra.mxu0 0.0
  %5055 = vmatprep.subr.mxu0 0.0
  %5056 = vmatpush2.msra.mxu0 0.0
  %5057 = vmatprep.subr.mxu0 0.0
  %5058 = vmatpush2.msra.mxu0 0.0
  %5059 = vmatprep.subr.mxu0 0.0
  %5060 = vmatpush2.msra.mxu0 0.0
  %5061 = vmatprep.subr.mxu0 0.0
  %5062 = vmatpush2.msra.mxu0 0.0
  %5063 = vmatprep.subr.mxu0 0.0
  %5064 = vmatpush2.msra.mxu0 0.0
  %5065 = vmatprep.subr.mxu0 0.0
  %5066 = vmatpush2.msra.mxu0 0.0
  %5067 = vmatprep.subr.mxu0 0.0
  %5068 = vmatpush2.msra.mxu0 0.0
  %5069 = vmatprep.subr.mxu0 0.0
  %5070 = vmatpush2.msra.mxu0 0.0
  %5071 = vmatprep.subr.mxu0 0.0
  %5072 = vmatpush2.msra.mxu0 0.0
  %5073 = vmatprep.subr.mxu0 0.0
  %5074 = vmatpush2.msra.mxu0 0.0
  %5075 = vmatprep.subr.mxu0 0.0
  %5076 = vmatpush2.msra.mxu0 0.0
  %5077 = vmatprep.mubr.f32.mxu0 0.0
  %5078 = vmatmul.mubr.f32.gmra.mxu0 %v4882
  %v5079 = vpop.f32.mrf.mxu0
  %v5080 = vadd.f32 %v4975, %v5079
  %v5081 = vpop.f32.mrf.mxu0
  %5082 = vmatprep.mubr.f32.mxu0 0.0
  %5083 = vmatmul.mubr.f32.gmra.mxu0 %v4883
  %v5084 = vpop.f32.mrf.mxu0
  %v5085 = vadd.f32 %v4980, %v5084
  %v5086 = vpop.f32.mrf.mxu0
  %5087 = vmatprep.mubr.f32.mxu0 0.0
  %5088 = vmatmul.mubr.f32.gmra.mxu0 %v4884
  %v5089 = vpop.f32.mrf.mxu0
  %v5090 = vadd.f32 %v4985, %v5089
  %v5091 = vpop.f32.mrf.mxu0
  %5092 = vmatprep.mubr.f32.mxu0 0.0
  %5093 = vmatmul.mubr.f32.gmra.mxu0 %v4885
  %v5094 = vpop.f32.mrf.mxu0
  %v5095 = vadd.f32 %v4990, %v5094
  %v5096 = vpop.f32.mrf.mxu0
  %5097 = vmatprep.mubr.f32.mxu0 0.0
  %5098 = vmatmul.mubr.f32.gmra.mxu0 %v4886
  %v5099 = vpop.f32.mrf.mxu0
  %v5100 = vadd.f32 %v4995, %v5099
  %v5101 = vpop.f32.mrf.mxu0
  %5102 = vmatprep.mubr.f32.mxu0 0.0
  %5103 = vmatmul.mubr.f32.gmra.mxu0 %v4887
  %v5104 = vpop.f32.mrf.mxu0
  %v5105 = vadd.f32 %v5000, %v5104
  %v5106 = vpop.f32.mrf.mxu0
  %5107 = vmatprep.mubr.f32.mxu0 0.0
  %5108 = vmatmul.mubr.f32.gmra.mxu0 %v4888
  %v5109 = vpop.f32.mrf.mxu0
  %v5110 = vadd.f32 %v5005, %v5109
  %v5111 = vpop.f32.mrf.mxu0
  %5112 = vmatprep.mubr.f32.mxu0 0.0
  %5113 = vmatmul.mubr.f32.gmra.mxu0 %v4889
  %v5114 = vpop.f32.mrf.mxu0
  %v5115 = vadd.f32 %v5010, %v5114
  %v5116 = vpop.f32.mrf.mxu0
  %5117 = vdwg.mxu0
  %v5118 = vld [vmem:[%s11] sm:$0x1]
  %v5120 = vlaneseq
  %v5121 = vshrl.u32 %v5120, 7
  %v5122 = vsub.s32 0, %v5121
  %v5123 = vrot.slane %v5118, %v5122
  %v5125 = vadd.f32 %v5080, %v5123
  %v5126 = vadd.f32 %v5085, %v5123
  %v5127 = vadd.f32 %v5090, %v5123
  %v5128 = vadd.f32 %v5095, %v5123
  %v5129 = vadd.f32 %v5100, %v5123
  %v5130 = vadd.f32 %v5105, %v5123
  %v5131 = vadd.f32 %v5110, %v5123
  %v5132 = vadd.f32 %v5115, %v5123
  %v5133 = vmax.f32 %v5125, 0.0
  %v5134 = vmax.f32 %v5126, 0.0
  %v5135 = vmax.f32 %v5127, 0.0
  %v5136 = vmax.f32 %v5128, 0.0
  %v5137 = vmax.f32 %v5129, 0.0
  %v5138 = vmax.f32 %v5130, 0.0
  %v5139 = vmax.f32 %v5131, 0.0
  %v5140 = vmax.f32 %v5132, 0.0
  %v5141 = vld [vmem:[%s12] sm:$0xff]
  %v5142 = vld [vmem:[%s12 + $0x8] sm:$0xff]
  %v5143 = vld [vmem:[%s12 + $0x10] sm:$0xff]
  %v5144 = vld [vmem:[%s12 + $0x18] sm:$0xff]
  %v5145 = vld [vmem:[%s12 + $0x20] sm:$0xff]
  %v5146 = vld [vmem:[%s12 + $0x28] sm:$0xff]
  %v5147 = vld [vmem:[%s12 + $0x30] sm:$0xff]
  %v5148 = vld [vmem:[%s12 + $0x38] sm:$0xff]
  %v5149 = vld [vmem:[%s12 + $0x40] sm:$0xff]
  %v5150 = vld [vmem:[%s12 + $0x48] sm:$0xff]
  %v5151 = vld [vmem:[%s12 + $0x50] sm:$0xff]
  %v5152 = vld [vmem:[%s12 + $0x58] sm:$0xff]
  %v5153 = vld [vmem:[%s12 + $0x60] sm:$0xff]
  %v5154 = vld [vmem:[%s12 + $0x68] sm:$0xff]
  %v5155 = vld [vmem:[%s12 + $0x70] sm:$0xff]
  %v5156 = vld [vmem:[%s12 + $0x78] sm:$0xff]
  %v5157 = vld [vmem:[%s13] sm:$0x1]
  %v5159 = vlaneseq
  %v5160 = vshrl.u32 %v5159, 7
  %v5161 = vsub.s32 0, %v5160
  %v5162 = vrot.slane %v5157, %v5161
  %5164 = vmatprep.subr.mxu0 0.0
  %5165 = vmatpush1.msra.mxu0 %v5156
  %5166 = vmatprep.subr.mxu0 0.0
  %5167 = vmatpush1.msra.mxu0 %v5155
  %5168 = vmatprep.subr.mxu0 0.0
  %5169 = vmatpush1.msra.mxu0 %v5154
  %5170 = vmatprep.subr.mxu0 0.0
  %5171 = vmatpush1.msra.mxu0 %v5153
  %5172 = vmatprep.subr.mxu0 0.0
  %5173 = vmatpush1.msra.mxu0 %v5152
  %5174 = vmatprep.subr.mxu0 0.0
  %5175 = vmatpush1.msra.mxu0 %v5151
  %5176 = vmatprep.subr.mxu0 0.0
  %5177 = vmatpush1.msra.mxu0 %v5150
  %5178 = vmatprep.subr.mxu0 0.0
  %5179 = vmatpush1.msra.mxu0 %v5149
  %5180 = vmatprep.subr.mxu0 0.0
  %5181 = vmatpush1.msra.mxu0 %v5148
  %5182 = vmatprep.subr.mxu0 0.0
  %5183 = vmatpush1.msra.mxu0 %v5147
  %5184 = vmatprep.subr.mxu0 0.0
  %5185 = vmatpush1.msra.mxu0 %v5146
  %5186 = vmatprep.subr.mxu0 0.0
  %5187 = vmatpush1.msra.mxu0 %v5145
  %5188 = vmatprep.subr.mxu0 0.0
  %5189 = vmatpush1.msra.mxu0 %v5144
  %5190 = vmatprep.subr.mxu0 0.0
  %5191 = vmatpush1.msra.mxu0 %v5143
  %5192 = vmatprep.subr.mxu0 0.0
  %5193 = vmatpush1.msra.mxu0 %v5142
  %5194 = vmatprep.subr.mxu0 0.0
  %5195 = vmatpush1.msra.mxu0 %v5141
  %5196 = vmatprep.subr.mxu0 0.0
  %5197 = vmatpush2.msra.mxu0 0.0
  %5198 = vmatprep.subr.mxu0 0.0
  %5199 = vmatpush2.msra.mxu0 0.0
  %5200 = vmatprep.subr.mxu0 0.0
  %5201 = vmatpush2.msra.mxu0 0.0
  %5202 = vmatprep.subr.mxu0 0.0
  %5203 = vmatpush2.msra.mxu0 0.0
  %5204 = vmatprep.subr.mxu0 0.0
  %5205 = vmatpush2.msra.mxu0 0.0
  %5206 = vmatprep.subr.mxu0 0.0
  %5207 = vmatpush2.msra.mxu0 0.0
  %5208 = vmatprep.subr.mxu0 0.0
  %5209 = vmatpush2.msra.mxu0 0.0
  %5210 = vmatprep.subr.mxu0 0.0
  %5211 = vmatpush2.msra.mxu0 0.0
  %5212 = vmatprep.subr.mxu0 0.0
  %5213 = vmatpush2.msra.mxu0 0.0
  %5214 = vmatprep.subr.mxu0 0.0
  %5215 = vmatpush2.msra.mxu0 0.0
  %5216 = vmatprep.subr.mxu0 0.0
  %5217 = vmatpush2.msra.mxu0 0.0
  %5218 = vmatprep.subr.mxu0 0.0
  %5219 = vmatpush2.msra.mxu0 0.0
  %5220 = vmatprep.subr.mxu0 0.0
  %5221 = vmatpush2.msra.mxu0 0.0
  %5222 = vmatprep.subr.mxu0 0.0
  %5223 = vmatpush2.msra.mxu0 0.0
  %5224 = vmatprep.subr.mxu0 0.0
  %5225 = vmatpush2.msra.mxu0 0.0
  %5226 = vmatprep.subr.mxu0 0.0
  %5227 = vmatpush2.msra.mxu0 0.0
  %5228 = vmatprep.mubr.f32.mxu0 0.0
  %5229 = vmatmul.mubr.f32.gmra.mxu0 %v5133
  %v5230 = vpop.f32.mrf.mxu0
  %v5231 = vadd.f32 %v5162, %v5230
  %v5232 = vpop.f32.mrf.mxu0
  %5233 = vmatprep.mubr.f32.mxu0 0.0
  %5234 = vmatmul.mubr.f32.gmra.mxu0 %v5134
  %v5235 = vpop.f32.mrf.mxu0
  %v5236 = vadd.f32 %v5162, %v5235
  %v5237 = vpop.f32.mrf.mxu0
  %5238 = vmatprep.mubr.f32.mxu0 0.0
  %5239 = vmatmul.mubr.f32.gmra.mxu0 %v5135
  %v5240 = vpop.f32.mrf.mxu0
  %v5241 = vadd.f32 %v5162, %v5240
  %v5242 = vpop.f32.mrf.mxu0
  %5243 = vmatprep.mubr.f32.mxu0 0.0
  %5244 = vmatmul.mubr.f32.gmra.mxu0 %v5136
  %v5245 = vpop.f32.mrf.mxu0
  %v5246 = vadd.f32 %v5162, %v5245
  %v5247 = vpop.f32.mrf.mxu0
  %5248 = vmatprep.mubr.f32.mxu0 0.0
  %5249 = vmatmul.mubr.f32.gmra.mxu0 %v5137
  %v5250 = vpop.f32.mrf.mxu0
  %v5251 = vadd.f32 %v5162, %v5250
  %v5252 = vpop.f32.mrf.mxu0
  %5253 = vmatprep.mubr.f32.mxu0 0.0
  %5254 = vmatmul.mubr.f32.gmra.mxu0 %v5138
  %v5255 = vpop.f32.mrf.mxu0
  %v5256 = vadd.f32 %v5162, %v5255
  %v5257 = vpop.f32.mrf.mxu0
  %5258 = vmatprep.mubr.f32.mxu0 0.0
  %5259 = vmatmul.mubr.f32.gmra.mxu0 %v5139
  %v5260 = vpop.f32.mrf.mxu0
  %v5261 = vadd.f32 %v5162, %v5260
  %v5262 = vpop.f32.mrf.mxu0
  %5263 = vmatprep.mubr.f32.mxu0 0.0
  %5264 = vmatmul.mubr.f32.gmra.mxu0 %v5140
  %v5265 = vpop.f32.mrf.mxu0
  %v5266 = vadd.f32 %v5162, %v5265
  %v5267 = vpop.f32.mrf.mxu0
  %5268 = vdwg.mxu0
  %5269 = vst [vmem:[%s15] sm:$0xff] %v5231
  %5270 = vst [vmem:[%s15 + $0x8] sm:$0xff] %v5236
  %5271 = vst [vmem:[%s15 + $0x10] sm:$0xff] %v5241
  %5272 = vst [vmem:[%s15 + $0x18] sm:$0xff] %v5246
  %5273 = vst [vmem:[%s15 + $0x20] sm:$0xff] %v5251
  %5274 = vst [vmem:[%s15 + $0x28] sm:$0xff] %v5256
  %5275 = vst [vmem:[%s15 + $0x30] sm:$0xff] %v5261
  %5276 = vst [vmem:[%s15 + $0x38] sm:$0xff] %v5266
  // Predicated region
  $region58: #{euler_combo_forward.1} parent=0 // pred_check
    _
  $region59: #{euler_combo_forward.1} parent=0 // pred_check_branch
    %5278 = sbr.rel (0) target = $region61
  $region60: #{euler_combo_forward.1} parent=0 // pred_region
    _
  $region61: #{euler_combo_forward.1} parent=0 // pred_fallthru
    _
  // Predicated region
  $region62: #{euler_combo_forward.1} parent=0 // pred_check
    _
  $region63: #{euler_combo_forward.1} parent=0 // pred_check_branch
    %5280 = sbr.rel (0) target = $region65
  $region64: #{euler_combo_forward.1} parent=0 // pred_region
    _
  $region65: #{euler_combo_forward.1} parent=0 // pred_fallthru
    _
  // Predicated region
  $region66: #{euler_combo_forward.1} parent=0 // pred_check
    _
  $region67: #{euler_combo_forward.1} parent=0 // pred_check_branch
    %5282 = sbr.rel (0) target = $region69
  $region68: #{euler_combo_forward.1} parent=0 // pred_region
    _
  $region69: #{euler_combo_forward.1} parent=0 // pred_fallthru
    _
  // Predicated region
  $region70: #{euler_combo_forward.1} parent=0 // pred_check
    _
  $region71: #{euler_combo_forward.1} parent=0 // pred_check_branch
    %5284 = sbr.rel (0) target = $region73
  $region72: #{euler_combo_forward.1} parent=0 // pred_region
    _
  $region73: #{euler_combo_forward.1} parent=0 // pred_fallthru
    _

</llo_original>
